<compile_context>
chip_gen: v7x
topology: tpu7x:2x2x1
jax: 0.10.0
libtpu: 0.0.40
codegen_flags: <defaults>
</compile_context>

<pallas_src>
import functools
import math

import numpy as np
import jax
import jax.numpy as jnp
from jax.experimental import pallas as pl
from jax.experimental.pallas import tpu as pltpu

# ---------------- model hyper-parameters (small, deterministic) ----------------
HIDDEN = 64
HEADS = 4
DH = HIDDEN // HEADS
LAYERS = 2
FF = 128
SRC_VOCAB = 64
CN_VOCAB = 48
EN_VOCAB = 56
PAD_SRC = 0
PAD_CN = 0
PAD_EN = 0
MAX_LEN = 64
LN_EPS = 1e-5
NEG_INF = -1e9
SCALE = 1.0 / math.sqrt(DH)
VOCAB_PAD = 128          # generator output padded to a full 128-lane tile


# ================================ in-kernel helpers ================================
def _ln(x, g, b):
    # f32 LayerNorm over the lane (feature) axis; g/b are (1, H)
    mu = jnp.mean(x, axis=-1, keepdims=True)
    var = jnp.mean(jnp.square(x - mu), axis=-1, keepdims=True)
    return (x - mu) * jax.lax.rsqrt(var + LN_EPS) * g + b


def _dot(a_f32, w_bf16):
    # bf16 MXU operands, f32 accumulation
    return jnp.dot(a_f32.astype(jnp.bfloat16), w_bf16,
                   preferred_element_type=jnp.float32)


def _mha_heads(q_full, k_full, v_full, add_mask, wo, bo, *, scale):
    """All-head attention for one batch element, fully inside the kernel.

    q_full: (Tq, H) f32; k_full/v_full: (Tk, H) f32; add_mask: (1|Tq, Tk) f32
    wo: (H, H) bf16; bo: (1, H) f32.  Output projection is accumulated per
    head (concat(heads) @ Wo == sum_h head_h @ Wo[h*DH:(h+1)*DH, :]).
    """
    out = None
    for h in range(HEADS):
        sl = slice(h * DH, (h + 1) * DH)
        qh = q_full[:, sl].astype(jnp.bfloat16)
        kh = k_full[:, sl].astype(jnp.bfloat16)
        vh = v_full[:, sl].astype(jnp.bfloat16)
        # q @ k^T (contract over the head dim, no explicit transpose)
        s = jax.lax.dot_general(qh, kh, (((1,), (1,)), ((), ())),
                                preferred_element_type=jnp.float32)
        s = s * scale + add_mask
        s = s - jnp.max(s, axis=-1, keepdims=True)
        p = jnp.exp(s)
        p = p * pl.reciprocal(jnp.sum(p, axis=-1, keepdims=True), approx=True)
        oh = jnp.dot(p.astype(jnp.bfloat16), vh, preferred_element_type=jnp.float32)
        contrib = _dot(oh, wo[sl, :])
        out = contrib if out is None else out + contrib
    return out + bo


# ================================ Pallas kernels ================================
def _encoder_layer_kernel(x_ref, pad_ref,
                          ln1g_ref, ln1b_ref, wqkv_ref, bqkv_ref, wo_ref, bo_ref,
                          lnfg_ref, lnfb_ref, w1_ref, b1_ref, w2_ref, b2_ref,
                          o_ref, *, scale):
    x = x_ref[0]                                    # (S, H) f32
    add_mask = pad_ref[0] * NEG_INF                 # (1, S) additive key mask
    # --- pre-norm self attention, fused QKV ---
    h1 = _ln(x, ln1g_ref[...], ln1b_ref[...])
    qkv = _dot(h1, wqkv_ref[...]) + bqkv_ref[...]   # (S, 3H)
    q = qkv[:, 0 * HIDDEN:1 * HIDDEN]
    k = qkv[:, 1 * HIDDEN:2 * HIDDEN]
    v = qkv[:, 2 * HIDDEN:3 * HIDDEN]
    x = x + _mha_heads(q, k, v, add_mask, wo_ref[...], bo_ref[...], scale=scale)
    # --- pre-norm feed forward ---
    h2 = _ln(x, lnfg_ref[...], lnfb_ref[...])
    ff = jnp.maximum(_dot(h2, w1_ref[...]) + b1_ref[...], 0.0)
    ff = _dot(ff, w2_ref[...]) + b2_ref[...]
    o_ref[0] = x + ff


def _decoder_layer_kernel(x_ref, enc_ref, smask_ref, cpad_ref,
                          ln1g_ref, ln1b_ref, wqkv_ref, bqkv_ref, wo_ref, bo_ref,
                          ln2g_ref, ln2b_ref, wqc_ref, bqc_ref, wkvc_ref, bkvc_ref,
                          woc_ref, boc_ref,
                          lnfg_ref, lnfb_ref, w1_ref, b1_ref, w2_ref, b2_ref,
                          o_ref, *, scale):
    x = x_ref[0]                                    # (T, H)
    enc = enc_ref[0]                                # (S, H)
    self_mask = smask_ref[0]                        # (T, T) additive (pad | causal)
    cross_mask = cpad_ref[0] * NEG_INF              # (1, S) additive key mask
    # --- masked self attention ---
    h1 = _ln(x, ln1g_ref[...], ln1b_ref[...])
    qkv = _dot(h1, wqkv_ref[...]) + bqkv_ref[...]
    q = qkv[:, 0 * HIDDEN:1 * HIDDEN]
    k = qkv[:, 1 * HIDDEN:2 * HIDDEN]
    v = qkv[:, 2 * HIDDEN:3 * HIDDEN]
    x = x + _mha_heads(q, k, v, self_mask, wo_ref[...], bo_ref[...], scale=scale)
    # --- encoder-decoder cross attention (fused K,V projection) ---
    h2 = _ln(x, ln2g_ref[...], ln2b_ref[...])
    qc = _dot(h2, wqc_ref[...]) + bqc_ref[...]      # (T, H)
    kv = _dot(enc, wkvc_ref[...]) + bkvc_ref[...]   # (S, 2H)
    kc = kv[:, :HIDDEN]
    vc = kv[:, HIDDEN:]
    x = x + _mha_heads(qc, kc, vc, cross_mask, woc_ref[...], boc_ref[...], scale=scale)
    # --- feed forward ---
    h3 = _ln(x, lnfg_ref[...], lnfb_ref[...])
    ff = jnp.maximum(_dot(h3, w1_ref[...]) + b1_ref[...], 0.0)
    ff = _dot(ff, w2_ref[...]) + b2_ref[...]
    o_ref[0] = x + ff


def _ln_kernel(x_ref, g_ref, b_ref, o_ref):
    o_ref[...] = _ln(x_ref[...], g_ref[...], b_ref[...])


def _ln_generator_kernel(x_ref, g_ref, b_ref, w_ref, bias_ref, o_ref):
    # final decoder LayerNorm + Generator (Linear + LogSoftmax) fused.
    # Vocab is padded to 128 lanes; padded columns carry bias = NEG_INF so
    # they contribute ~0 to the log-sum-exp and the real columns are exact.
    h = _ln(x_ref[...], g_ref[...], b_ref[...])
    s = _dot(h, w_ref[...]) + bias_ref[...]          # (R, VOCAB_PAD) f32
    m = jnp.max(s, axis=-1, keepdims=True)
    z = s - m
    lse = jnp.log(jnp.sum(jnp.exp(z), axis=-1, keepdims=True))
    o_ref[...] = z - lse


# ================================ kernel wrappers ================================
def _weight_specs(weights):
    # every weight/bias/LN param is a small 2D array kept whole-block resident
    return [pl.BlockSpec(w.shape, lambda b: (0, 0)) for w in weights]


def pallas_encoder_layer(x, pad3, lp):
    B, S, H = x.shape
    weights = [lp["ln1_g"], lp["ln1_b"], lp["wqkv"], lp["bqkv"], lp["wo"], lp["bo"],
               lp["lnf_g"], lp["lnf_b"], lp["w1"], lp["b1"], lp["w2"], lp["b2"]]
    return pl.pallas_call(
        functools.partial(_encoder_layer_kernel, scale=SCALE),
        out_shape=jax.ShapeDtypeStruct((B, S, H), jnp.float32),
        grid=(B,),
        in_specs=[pl.BlockSpec((1, S, H), lambda b: (b, 0, 0)),
                  pl.BlockSpec((1, 1, S), lambda b: (b, 0, 0))] + _weight_specs(weights),
        out_specs=pl.BlockSpec((1, S, H), lambda b: (b, 0, 0)),
        compiler_params=pltpu.CompilerParams(dimension_semantics=("parallel",)),
    )(x, pad3, *weights)


def pallas_decoder_layer(x, enc_out, self_mask, cross_pad3, lp):
    B, T, H = x.shape
    S = enc_out.shape[1]
    weights = [lp["ln1_g"], lp["ln1_b"], lp["wqkv"], lp["bqkv"], lp["wo"], lp["bo"],
               lp["ln2_g"], lp["ln2_b"], lp["wq_c"], lp["bq_c"], lp["wkv_c"], lp["bkv_c"],
               lp["wo_c"], lp["bo_c"],
               lp["lnf_g"], lp["lnf_b"], lp["w1"], lp["b1"], lp["w2"], lp["b2"]]
    return pl.pallas_call(
        functools.partial(_decoder_layer_kernel, scale=SCALE),
        out_shape=jax.ShapeDtypeStruct((B, T, H), jnp.float32),
        grid=(B,),
        in_specs=[pl.BlockSpec((1, T, H), lambda b: (b, 0, 0)),
                  pl.BlockSpec((1, S, H), lambda b: (b, 0, 0)),
                  pl.BlockSpec((1, T, T), lambda b: (b, 0, 0)),
                  pl.BlockSpec((1, 1, S), lambda b: (b, 0, 0))] + _weight_specs(weights),
        out_specs=pl.BlockSpec((1, T, H), lambda b: (b, 0, 0)),
        compiler_params=pltpu.CompilerParams(dimension_semantics=("parallel",)),
    )(x, enc_out, self_mask, cross_pad3, *weights)


def pallas_ln(x2d, g, b):
    R, H = x2d.shape
    return pl.pallas_call(
        _ln_kernel,
        out_shape=jax.ShapeDtypeStruct((R, H), jnp.float32),
        grid=(1,),
        in_specs=[pl.BlockSpec((R, H), lambda i: (0, 0)),
                  pl.BlockSpec((1, H), lambda i: (0, 0)),
                  pl.BlockSpec((1, H), lambda i: (0, 0))],
        out_specs=pl.BlockSpec((R, H), lambda i: (0, 0)),
        compiler_params=pltpu.CompilerParams(dimension_semantics=("arbitrary",)),
    )(x2d, g, b)


def pallas_ln_generator(x2d, ln_g, ln_b, w_pad, b_pad, vocab):
    R, H = x2d.shape
    VP = w_pad.shape[1]
    out = pl.pallas_call(
        _ln_generator_kernel,
        out_shape=jax.ShapeDtypeStruct((R, VP), jnp.float32),
        grid=(1,),
        in_specs=[pl.BlockSpec((R, H), lambda i: (0, 0)),
                  pl.BlockSpec((1, H), lambda i: (0, 0)),
                  pl.BlockSpec((1, H), lambda i: (0, 0)),
                  pl.BlockSpec((H, VP), lambda i: (0, 0)),
                  pl.BlockSpec((1, VP), lambda i: (0, 0))],
        out_specs=pl.BlockSpec((R, VP), lambda i: (0, 0)),
        compiler_params=pltpu.CompilerParams(dimension_semantics=("arbitrary",)),
    )(x2d, ln_g, ln_b, w_pad, b_pad)
    return out[:, :vocab]


# ================================ model glue (JAX) ================================
def sinusoidal_pe(max_len, dim):
    pos = jnp.arange(max_len, dtype=jnp.float32)[:, None]
    i = jnp.arange(0, dim, 2, dtype=jnp.float32)
    div = jnp.exp(-math.log(10000.0) * i / dim)
    pe = jnp.zeros((max_len, dim), jnp.float32)
    pe = pe.at[:, 0::2].set(jnp.sin(pos * div))
    pe = pe.at[:, 1::2].set(jnp.cos(pos * div))
    return pe


def embed(ep, tokens):
    t = tokens.shape[1]
    x = ep["table"][tokens] * math.sqrt(HIDDEN) + ep["pe"][:t][None, :, :]
    return x.astype(jnp.float32)


# TODO(synk): exact beaver Encoder/Decoder layer source was not provided; a standard
# pre-norm Transformer encoder/decoder with the same interface (pad masks, causal
# self-attention, encoder-decoder cross attention) is used here.
def encoder_forward(p, source, source_pad):
    x = embed(p["emb"], source)
    B, S, H = x.shape
    pad3 = source_pad.astype(jnp.float32).reshape(B, 1, S)
    for lp in p["layers"]:
        x = pallas_encoder_layer(x, pad3, lp)
    x = pallas_ln(x.reshape(B * S, H), p["ln_out_g"], p["ln_out_b"]).reshape(B, S, H)
    return x


def decoder_generator_forward(dp, gp, vocab, tgt, enc_out, src_pad, tgt_pad):
    x = embed(dp["emb"], tgt)
    B, T, H = x.shape
    S = enc_out.shape[1]
    causal = jnp.triu(jnp.ones((T, T), dtype=bool), k=1)
    self_mask = jnp.where(tgt_pad[:, None, :] | causal[None, :, :],
                          NEG_INF, 0.0).astype(jnp.float32)          # (B, T, T)
    cross_pad3 = src_pad.astype(jnp.float32).reshape(B, 1, S)
    for lp in dp["layers"]:
        x = pallas_decoder_layer(x, enc_out, self_mask, cross_pad3, lp)
    scores = pallas_ln_generator(x.reshape(B * T, H), dp["ln_out_g"], dp["ln_out_b"],
                                 gp["w"], gp["b"], vocab)
    return scores.reshape(B, T, vocab)


# TODO(synk): on v7x the cn/en decoder branches are independent and could be split
# across the two TensorCores (pl.core_map); here the per-batch "parallel" grid is
# the only megacore exposure.
def nmt_forward(params, source, summary_cn, summary_en):
    # matches NMTModel.forward
    summary_cn = summary_cn[:, :-1]
    summary_en = summary_en[:, :-1]
    source_pad = source == PAD_SRC
    summary_cn_pad = summary_cn == PAD_CN
    summary_en_pad = summary_en == PAD_EN
    enc_out = encoder_forward(params["encoder"], source, source_pad)
    cn_scores = decoder_generator_forward(params["cn_decoder"], params["cn_generator"],
                                          CN_VOCAB, summary_cn, enc_out,
                                          source_pad, summary_cn_pad)
    en_scores = decoder_generator_forward(params["en_decoder"], params["en_generator"],
                                          EN_VOCAB, summary_en, enc_out,
                                          source_pad, summary_en_pad)
    return cn_scores, en_scores


# ================================ parameter init ================================
class KeyGen:
    def __init__(self, key):
        self.key = key

    def __call__(self):
        self.key, sub = jax.random.split(self.key)
        return sub


def xavier_uniform(key, fan_in, fan_out):
    limit = math.sqrt(6.0 / (fan_in + fan_out))
    return jax.random.uniform(key, (fan_in, fan_out), jnp.float32, -limit, limit)


def init_linear(kg, fan_in, fan_out):
    w = xavier_uniform(kg(), fan_in, fan_out)
    bound = 1.0 / math.sqrt(fan_in)
    b = jax.random.uniform(kg(), (fan_out,), jnp.float32, -bound, bound)
    return w, b


def init_ln_pair():
    return jnp.ones((1, HIDDEN), jnp.float32), jnp.zeros((1, HIDDEN), jnp.float32)


def init_embedding(kg, vocab, pad_idx):
    table = jax.random.normal(kg(), (vocab, HIDDEN), jnp.float32) * (HIDDEN ** -0.5)
    table = table.at[pad_idx].set(0.0)
    return {"table": table, "pe": sinusoidal_pe(MAX_LEN, HIDDEN)}


def init_layer(kg, with_cross):
    wq, bq = init_linear(kg, HIDDEN, HIDDEN)
    wk, bk = init_linear(kg, HIDDEN, HIDDEN)
    wv, bv = init_linear(kg, HIDDEN, HIDDEN)
    wo, bo = init_linear(kg, HIDDEN, HIDDEN)
    w1, b1 = init_linear(kg, HIDDEN, FF)
    w2, b2 = init_linear(kg, FF, HIDDEN)
    g1, bb1 = init_ln_pair()
    gf, bbf = init_ln_pair()
    lp = {
        "ln1_g": g1, "ln1_b": bb1,
        # fused QKV projection: one (H, 3H) bf16 matmul
        "wqkv": jnp.concatenate([wq, wk, wv], axis=1).astype(jnp.bfloat16),
        "bqkv": jnp.concatenate([bq, bk, bv]).reshape(1, 3 * HIDDEN),
        "wo": wo.astype(jnp.bfloat16), "bo": bo.reshape(1, HIDDEN),
        "lnf_g": gf, "lnf_b": bbf,
        "w1": w1.astype(jnp.bfloat16), "b1": b1.reshape(1, FF),
        "w2": w2.astype(jnp.bfloat16), "b2": b2.reshape(1, HIDDEN),
    }
    if with_cross:
        wqc, bqc = init_linear(kg, HIDDEN, HIDDEN)
        wkc, bkc = init_linear(kg, HIDDEN, HIDDEN)
        wvc, bvc = init_linear(kg, HIDDEN, HIDDEN)
        woc, boc = init_linear(kg, HIDDEN, HIDDEN)
        g2, bb2 = init_ln_pair()
        lp.update({
            "ln2_g": g2, "ln2_b": bb2,
            "wq_c": wqc.astype(jnp.bfloat16), "bq_c": bqc.reshape(1, HIDDEN),
            # fused cross K,V projection: one (H, 2H) bf16 matmul on enc_out
            "wkv_c": jnp.concatenate([wkc, wvc], axis=1).astype(jnp.bfloat16),
            "bkv_c": jnp.concatenate([bkc, bvc]).reshape(1, 2 * HIDDEN),
            "wo_c": woc.astype(jnp.bfloat16), "bo_c": boc.reshape(1, HIDDEN),
        })
    return lp


def init_encoder(kg, vocab, pad_idx):
    g, b = init_ln_pair()
    return {"emb": init_embedding(kg, vocab, pad_idx),
            "layers": [init_layer(kg, with_cross=False) for _ in range(LAYERS)],
            "ln_out_g": g, "ln_out_b": b}


def init_decoder(kg, vocab, pad_idx):
    g, b = init_ln_pair()
    return {"emb": init_embedding(kg, vocab, pad_idx),
            "layers": [init_layer(kg, with_cross=True) for _ in range(LAYERS)],
            "ln_out_g": g, "ln_out_b": b}


def init_generator(kg, vocab):
    # Generator.reset_parameters(): xavier_uniform_ on weight; torch default bias init
    w = xavier_uniform(kg(), HIDDEN, vocab)
    bound = 1.0 / math.sqrt(HIDDEN)
    b = jax.random.uniform(kg(), (vocab,), jnp.float32, -bound, bound)
    # lane-pad vocab to 128: zero weight cols, NEG_INF bias -> no effect on log-softmax
    w_pad = jnp.zeros((HIDDEN, VOCAB_PAD), jnp.float32).at[:, :vocab].set(w)
    b_pad = jnp.full((1, VOCAB_PAD), NEG_INF, jnp.float32).at[0, :vocab].set(b)
    return {"w": w_pad.astype(jnp.bfloat16), "b": b_pad}


def init_model(kg):
    return {"encoder": init_encoder(kg, SRC_VOCAB, PAD_SRC),
            "cn_decoder": init_decoder(kg, CN_VOCAB, PAD_CN),
            "en_decoder": init_decoder(kg, EN_VOCAB, PAD_EN),
            "cn_generator": init_generator(kg, CN_VOCAB),
            "en_generator": init_generator(kg, EN_VOCAB)}


# ================================ main ================================
if __name__ == "__main__":
    kg = KeyGen(jax.random.PRNGKey(0))
    params = init_model(kg)

    B, S, T = 2, 10, 9  # summaries are sliced [:, :-1] inside forward -> length 8
    source = jax.random.randint(kg(), (B, S), 1, SRC_VOCAB, dtype=jnp.int32)
    source = source.at[0, -2:].set(PAD_SRC)
    summary_cn = jax.random.randint(kg(), (B, T), 1, CN_VOCAB, dtype=jnp.int32)
    summary_cn = summary_cn.at[1, -3:].set(PAD_CN)
    summary_en = jax.random.randint(kg(), (B, T), 1, EN_VOCAB, dtype=jnp.int32)
    summary_en = summary_en.at[0, -2:].set(PAD_EN)

    fwd = jax.jit(nmt_forward)
    cn_scores, en_scores = fwd(params, source, summary_cn, summary_en)
    (cn_scores, en_scores) = jax.block_until_ready((cn_scores, en_scores))

    # sanity checks: shapes and log-softmax normalization
    assert cn_scores.shape == (B, T - 1, CN_VOCAB), cn_scores.shape
    assert en_scores.shape == (B, T - 1, EN_VOCAB), en_scores.shape
    cn_probs = np.exp(np.asarray(cn_scores, dtype=np.float64)).sum(-1)
    en_probs = np.exp(np.asarray(en_scores, dtype=np.float64)).sum(-1)
    assert np.allclose(cn_probs, 1.0, atol=1e-4) and np.allclose(en_probs, 1.0, atol=1e-4)
    assert np.isfinite(np.asarray(cn_scores)).all() and np.isfinite(np.asarray(en_scores)).all()

    print("KERNEL_OK")
</pallas_src>

<mosaic_0001>
module attributes {stable_mosaic.version = 11 : i64} {
  func.func @_ln_kernel(%arg0: i32, %arg1: memref<20x64xf32, #tpu.memory_space<vmem>>, %arg2: memref<1x64xf32, #tpu.memory_space<vmem>>, %arg3: memref<1x64xf32, #tpu.memory_space<vmem>>, %arg4: memref<20x64xf32, #tpu.memory_space<vmem>>) attributes {dimension_semantics = [#tpu.dimension_semantics<arbitrary>], iteration_bounds = array<i64: 1>, scalar_prefetch = 0 : i64, scratch_operands = 0 : i64, tpu.core_type = #tpu.core_type<tc>, window_params = [{pipeline_mode = #tpu.pipeline_mode<synchronous>, transform_indices = @transform_0, window_bounds = array<i64: 20, 64>}, {pipeline_mode = #tpu.pipeline_mode<synchronous>, transform_indices = @transform_1, window_bounds = array<i64: 1, 64>}, {pipeline_mode = #tpu.pipeline_mode<synchronous>, transform_indices = @transform_2, window_bounds = array<i64: 1, 64>}, {pipeline_mode = #tpu.pipeline_mode<synchronous>, transform_indices = @transform_3, window_bounds = array<i64: 20, 64>}]} {
    %c0 = arith.constant 0 : index
    %c0_0 = arith.constant 0 : index
    %0 = vector.load %arg1[%c0, %c0_0] : memref<20x64xf32, #tpu.memory_space<vmem>>, vector<20x64xf32>
    %c0_1 = arith.constant 0 : index
    %c0_2 = arith.constant 0 : index
    %1 = vector.load %arg2[%c0_1, %c0_2] : memref<1x64xf32, #tpu.memory_space<vmem>>, vector<1x64xf32>
    %c0_3 = arith.constant 0 : index
    %c0_4 = arith.constant 0 : index
    %2 = vector.load %arg3[%c0_3, %c0_4] : memref<1x64xf32, #tpu.memory_space<vmem>>, vector<1x64xf32>
    %cst = arith.constant dense<0.000000e+00> : vector<20xf32>
    %3 = vector.multi_reduction <add>, %0, %cst [1] : vector<20x64xf32> to vector<20xf32>
    %4 = vector.shape_cast %3 : vector<20xf32> to vector<20x1xf32>
    %cst_5 = arith.constant 6.400000e+01 : f32
    %5 = vector.broadcast %cst_5 : f32 to vector<20x1xf32>
    %6 = arith.divf %4, %5 : vector<20x1xf32>
    %7 = vector.broadcast %6 : vector<20x1xf32> to vector<20x64xf32>
    %8 = arith.subf %0, %7 : vector<20x64xf32>
    %9 = arith.mulf %8, %8 : vector<20x64xf32>
    %cst_6 = arith.constant dense<0.000000e+00> : vector<20xf32>
    %10 = vector.multi_reduction <add>, %9, %cst_6 [1] : vector<20x64xf32> to vector<20xf32>
    %11 = vector.shape_cast %10 : vector<20xf32> to vector<20x1xf32>
    %cst_7 = arith.constant 6.400000e+01 : f32
    %12 = vector.broadcast %cst_7 : f32 to vector<20x1xf32>
    %13 = arith.divf %11, %12 : vector<20x1xf32>
    %14 = vector.broadcast %6 : vector<20x1xf32> to vector<20x64xf32>
    %15 = arith.subf %0, %14 : vector<20x64xf32>
    %cst_8 = arith.constant 9.99999974E-6 : f32
    %16 = vector.broadcast %cst_8 : f32 to vector<20x1xf32>
    %17 = arith.addf %13, %16 : vector<20x1xf32>
    %18 = math.rsqrt %17 : vector<20x1xf32>
    %19 = vector.broadcast %18 : vector<20x1xf32> to vector<20x64xf32>
    %20 = arith.mulf %15, %19 : vector<20x64xf32>
    %21 = vector.broadcast %1 : vector<1x64xf32> to vector<20x64xf32>
    %22 = arith.mulf %20, %21 : vector<20x64xf32>
    %23 = vector.broadcast %2 : vector<1x64xf32> to vector<20x64xf32>
    %24 = arith.addf %22, %23 : vector<20x64xf32>
    %c0_9 = arith.constant 0 : index
    %c0_10 = arith.constant 0 : index
    %25 = vector.load %arg4[%c0_9, %c0_10] : memref<20x64xf32, #tpu.memory_space<vmem>>, vector<20x64xf32>
    tpu.vector_store %arg4[%c0_9, %c0_10], %24 {strides = array<i32>} : memref<20x64xf32, #tpu.memory_space<vmem>>, vector<20x64xf32>,
    return
  }
  func.func @transform_0(%arg0: i32) -> (i32, i32) {
    %c0_i32 = arith.constant 0 : i32
    %c0_i32_0 = arith.constant 0 : i32
    %c0_i32_1 = arith.constant 0 : i32
    return %c0_i32, %c0_i32_0 : i32, i32
  }
  func.func @transform_1(%arg0: i32) -> (i32, i32) {
    %c0_i32 = arith.constant 0 : i32
    %c0_i32_0 = arith.constant 0 : i32
    %c0_i32_1 = arith.constant 0 : i32
    return %c0_i32, %c0_i32_0 : i32, i32
  }
  func.func @transform_2(%arg0: i32) -> (i32, i32) {
    %c0_i32 = arith.constant 0 : i32
    %c0_i32_0 = arith.constant 0 : i32
    %c0_i32_1 = arith.constant 0 : i32
    return %c0_i32, %c0_i32_0 : i32, i32
  }
  func.func @transform_3(%arg0: i32) -> (i32, i32) {
    %c0_i32 = arith.constant 0 : i32
    %c0_i32_0 = arith.constant 0 : i32
    %c0_i32_1 = arith.constant 0 : i32
    return %c0_i32, %c0_i32_0 : i32, i32
  }
}

module attributes {stable_mosaic.version = 11 : i64} {
  func.func @_encoder_layer_kernel(%arg0: i32, %arg1: memref<1x10x64xf32, #tpu.memory_space<vmem>>, %arg2: memref<1x1x10xf32, #tpu.memory_space<vmem>>, %arg3: memref<1x64xf32, #tpu.memory_space<vmem>>, %arg4: memref<1x64xf32, #tpu.memory_space<vmem>>, %arg5: memref<64x192xbf16, #tpu.memory_space<vmem>>, %arg6: memref<1x192xf32, #tpu.memory_space<vmem>>, %arg7: memref<64x64xbf16, #tpu.memory_space<vmem>>, %arg8: memref<1x64xf32, #tpu.memory_space<vmem>>, %arg9: memref<1x64xf32, #tpu.memory_space<vmem>>, %arg10: memref<1x64xf32, #tpu.memory_space<vmem>>, %arg11: memref<64x128xbf16, #tpu.memory_space<vmem>>, %arg12: memref<1x128xf32, #tpu.memory_space<vmem>>, %arg13: memref<128x64xbf16, #tpu.memory_space<vmem>>, %arg14: memref<1x64xf32, #tpu.memory_space<vmem>>, %arg15: memref<1x10x64xf32, #tpu.memory_space<vmem>>) attributes {dimension_semantics = [#tpu.dimension_semantics<parallel>], iteration_bounds = array<i64: 2>, scalar_prefetch = 0 : i64, scratch_operands = 0 : i64, tpu.core_type = #tpu.core_type<tc>, window_params = [{transform_indices = @transform_0, window_bounds = array<i64: 1, 10, 64>}, {transform_indices = @transform_1, window_bounds = array<i64: 1, 1, 10>}, {pipeline_mode = #tpu.pipeline_mode<synchronous>, transform_indices = @transform_2, window_bounds = array<i64: 1, 64>}, {pipeline_mode = #tpu.pipeline_mode<synchronous>, transform_indices = @transform_3, window_bounds = array<i64: 1, 64>}, {pipeline_mode = #tpu.pipeline_mode<synchronous>, transform_indices = @transform_4, window_bounds = array<i64: 64, 192>}, {pipeline_mode = #tpu.pipeline_mode<synchronous>, transform_indices = @transform_5, window_bounds = array<i64: 1, 192>}, {pipeline_mode = #tpu.pipeline_mode<synchronous>, transform_indices = @transform_6, window_bounds = array<i64: 64, 64>}, {pipeline_mode = #tpu.pipeline_mode<synchronous>, transform_indices = @transform_7, window_bounds = array<i64: 1, 64>}, {pipeline_mode = #tpu.pipeline_mode<synchronous>, transform_indices = @transform_8, window_bounds = array<i64: 1, 64>}, {pipeline_mode = #tpu.pipeline_mode<synchronous>, transform_indices = @transform_9, window_bounds = array<i64: 1, 64>}, {pipeline_mode = #tpu.pipeline_mode<synchronous>, transform_indices = @transform_10, window_bounds = array<i64: 64, 128>}, {pipeline_mode = #tpu.pipeline_mode<synchronous>, transform_indices = @transform_11, window_bounds = array<i64: 1, 128>}, {pipeline_mode = #tpu.pipeline_mode<synchronous>, transform_indices = @transform_12, window_bounds = array<i64: 128, 64>}, {pipeline_mode = #tpu.pipeline_mode<synchronous>, transform_indices = @transform_13, window_bounds = array<i64: 1, 64>}, {transform_indices = @transform_14, window_bounds = array<i64: 1, 10, 64>}]} {
    %c0 = arith.constant 0 : index
    %c0_0 = arith.constant 0 : index
    %c0_1 = arith.constant 0 : index
    %0 = vector.load %arg1[%c0, %c0_0, %c0_1] : memref<1x10x64xf32, #tpu.memory_space<vmem>>, vector<1x10x64xf32>
    %1 = vector.shape_cast %0 : vector<1x10x64xf32> to vector<10x64xf32>
    %c0_2 = arith.constant 0 : index
    %c0_3 = arith.constant 0 : index
    %c0_4 = arith.constant 0 : index
    %2 = vector.load %arg2[%c0_2, %c0_3, %c0_4] : memref<1x1x10xf32, #tpu.memory_space<vmem>>, vector<1x1x10xf32>
    %3 = vector.shape_cast %2 : vector<1x1x10xf32> to vector<1x10xf32>
    %cst = arith.constant -1.000000e+09 : f32
    %4 = vector.broadcast %cst : f32 to vector<1x10xf32>
    %5 = arith.mulf %3, %4 : vector<1x10xf32>
    %c0_5 = arith.constant 0 : index
    %c0_6 = arith.constant 0 : index
    %6 = vector.load %arg3[%c0_5, %c0_6] : memref<1x64xf32, #tpu.memory_space<vmem>>, vector<1x64xf32>
    %c0_7 = arith.constant 0 : index
    %c0_8 = arith.constant 0 : index
    %7 = vector.load %arg4[%c0_7, %c0_8] : memref<1x64xf32, #tpu.memory_space<vmem>>, vector<1x64xf32>
    %cst_9 = arith.constant dense<0.000000e+00> : vector<10xf32>
    %8 = vector.multi_reduction <add>, %1, %cst_9 [1] : vector<10x64xf32> to vector<10xf32>
    %9 = vector.shape_cast %8 : vector<10xf32> to vector<10x1xf32>
    %cst_10 = arith.constant 6.400000e+01 : f32
    %10 = vector.broadcast %cst_10 : f32 to vector<10x1xf32>
    %11 = arith.divf %9, %10 : vector<10x1xf32>
    %12 = vector.broadcast %11 : vector<10x1xf32> to vector<10x64xf32>
    %13 = arith.subf %1, %12 : vector<10x64xf32>
    %14 = arith.mulf %13, %13 : vector<10x64xf32>
    %cst_11 = arith.constant dense<0.000000e+00> : vector<10xf32>
    %15 = vector.multi_reduction <add>, %14, %cst_11 [1] : vector<10x64xf32> to vector<10xf32>
    %16 = vector.shape_cast %15 : vector<10xf32> to vector<10x1xf32>
    %cst_12 = arith.constant 6.400000e+01 : f32
    %17 = vector.broadcast %cst_12 : f32 to vector<10x1xf32>
    %18 = arith.divf %16, %17 : vector<10x1xf32>
    %19 = vector.broadcast %11 : vector<10x1xf32> to vector<10x64xf32>
    %20 = arith.subf %1, %19 : vector<10x64xf32>
    %cst_13 = arith.constant 9.99999974E-6 : f32
    %21 = vector.broadcast %cst_13 : f32 to vector<10x1xf32>
    %22 = arith.addf %18, %21 : vector<10x1xf32>
    %23 = math.rsqrt %22 : vector<10x1xf32>
    %24 = vector.broadcast %23 : vector<10x1xf32> to vector<10x64xf32>
    %25 = arith.mulf %20, %24 : vector<10x64xf32>
    %26 = vector.broadcast %6 : vector<1x64xf32> to vector<10x64xf32>
    %27 = arith.mulf %25, %26 : vector<10x64xf32>
    %28 = vector.broadcast %7 : vector<1x64xf32> to vector<10x64xf32>
    %29 = arith.addf %27, %28 : vector<10x64xf32>
    %c0_14 = arith.constant 0 : index
    %c0_15 = arith.constant 0 : index
    %30 = vector.load %arg5[%c0_14, %c0_15] : memref<64x192xbf16, #tpu.memory_space<vmem>>, vector<64x192xbf16>
    %31 = arith.truncf %29 : vector<10x64xf32> to vector<10x64xbf16>
    %cst_16 = arith.constant dense<0.000000e+00> : vector<10x192xf32>
    %32 = tpu.matmul %31, %30, %cst_16 {dimension_numbers = #tpu.dot_dimension_numbers<[1], [0], [0], [1], [0, 0, 1, 1], [], []>} : vector<10x64xbf16>, vector<64x192xbf16>, vector<10x192xf32> -> vector<10x192xf32>
    %c0_17 = arith.constant 0 : index
    %c0_18 = arith.constant 0 : index
    %33 = vector.load %arg6[%c0_17, %c0_18] : memref<1x192xf32, #tpu.memory_space<vmem>>, vector<1x192xf32>
    %34 = vector.broadcast %33 : vector<1x192xf32> to vector<10x192xf32>
    %35 = arith.addf %32, %34 : vector<10x192xf32>
    %36 = vector.extract_strided_slice %35 {offsets = [0, 0], sizes = [10, 64], strides = [1, 1]} : vector<10x192xf32> to vector<10x64xf32>
    %37 = vector.extract_strided_slice %35 {offsets = [0, 64], sizes = [10, 64], strides = [1, 1]} : vector<10x192xf32> to vector<10x64xf32>
    %38 = vector.extract_strided_slice %35 {offsets = [0, 128], sizes = [10, 64], strides = [1, 1]} : vector<10x192xf32> to vector<10x64xf32>
    %c0_19 = arith.constant 0 : index
    %c0_20 = arith.constant 0 : index
    %39 = vector.load %arg7[%c0_19, %c0_20] : memref<64x64xbf16, #tpu.memory_space<vmem>>, vector<64x64xbf16>
    %c0_21 = arith.constant 0 : index
    %c0_22 = arith.constant 0 : index
    %40 = vector.load %arg8[%c0_21, %c0_22] : memref<1x64xf32, #tpu.memory_space<vmem>>, vector<1x64xf32>
    %41 = vector.extract_strided_slice %36 {offsets = [0, 0], sizes = [10, 16], strides = [1, 1]} : vector<10x64xf32> to vector<10x16xf32>
    %42 = arith.truncf %41 : vector<10x16xf32> to vector<10x16xbf16>
    %43 = vector.extract_strided_slice %37 {offsets = [0, 0], sizes = [10, 16], strides = [1, 1]} : vector<10x64xf32> to vector<10x16xf32>
    %44 = arith.truncf %43 : vector<10x16xf32> to vector<10x16xbf16>
    %45 = vector.extract_strided_slice %38 {offsets = [0, 0], sizes = [10, 16], strides = [1, 1]} : vector<10x64xf32> to vector<10x16xf32>
    %46 = arith.truncf %45 : vector<10x16xf32> to vector<10x16xbf16>
    %cst_23 = arith.constant dense<0.000000e+00> : vector<10x10xf32>
    %47 = tpu.matmul %42, %44, %cst_23 {dimension_numbers = #tpu.dot_dimension_numbers<[1], [1], [0], [0], [0, 0, 1, 0], [], []>} : vector<10x16xbf16>, vector<10x16xbf16>, vector<10x10xf32> -> vector<10x10xf32>
    %cst_24 = arith.constant 2.500000e-01 : f32
    %48 = vector.broadcast %cst_24 : f32 to vector<10x10xf32>
    %49 = arith.mulf %47, %48 : vector<10x10xf32>
    %50 = vector.broadcast %5 : vector<1x10xf32> to vector<10x10xf32>
    %51 = arith.addf %49, %50 : vector<10x10xf32>
    %cst_25 = arith.constant dense<0xFF800000> : vector<10xf32>
    %52 = vector.multi_reduction <maximumf>, %51, %cst_25 [1] : vector<10x10xf32> to vector<10xf32>
    %53 = vector.shape_cast %52 : vector<10xf32> to vector<10x1xf32>
    %54 = vector.broadcast %53 : vector<10x1xf32> to vector<10x10xf32>
    %55 = arith.subf %51, %54 : vector<10x10xf32>
    %56 = math.exp %55 : vector<10x10xf32>
    %cst_26 = arith.constant dense<0.000000e+00> : vector<10xf32>
    %57 = vector.multi_reduction <add>, %56, %cst_26 [1] : vector<10x10xf32> to vector<10xf32>
    %58 = vector.shape_cast %57 : vector<10xf32> to vector<10x1xf32>
    %59 = tpu.reciprocal %58 {approx = true} : vector<10x1xf32> -> vector<10x1xf32>
    %60 = vector.broadcast %59 : vector<10x1xf32> to vector<10x10xf32>
    %61 = arith.mulf %56, %60 : vector<10x10xf32>
    %62 = arith.truncf %61 : vector<10x10xf32> to vector<10x10xbf16>
    %cst_27 = arith.constant dense<0.000000e+00> : vector<10x16xf32>
    %63 = tpu.matmul %62, %46, %cst_27 {dimension_numbers = #tpu.dot_dimension_numbers<[1], [0], [0], [1], [0, 0, 1, 1], [], []>} : vector<10x10xbf16>, vector<10x16xbf16>, vector<10x16xf32> -> vector<10x16xf32>
    %64 = vector.extract_strided_slice %39 {offsets = [0, 0], sizes = [16, 64], strides = [1, 1]} : vector<64x64xbf16> to vector<16x64xbf16>
    %65 = arith.truncf %63 : vector<10x16xf32> to vector<10x16xbf16>
    %cst_28 = arith.constant dense<0.000000e+00> : vector<10x64xf32>
    %66 = tpu.matmul %65, %64, %cst_28 {dimension_numbers = #tpu.dot_dimension_numbers<[1], [0], [0], [1], [0, 0, 1, 1], [], []>} : vector<10x16xbf16>, vector<16x64xbf16>, vector<10x64xf32> -> vector<10x64xf32>
    %67 = vector.extract_strided_slice %36 {offsets = [0, 16], sizes = [10, 16], strides = [1, 1]} : vector<10x64xf32> to vector<10x16xf32>
    %68 = arith.truncf %67 : vector<10x16xf32> to vector<10x16xbf16>
    %69 = vector.extract_strided_slice %37 {offsets = [0, 16], sizes = [10, 16], strides = [1, 1]} : vector<10x64xf32> to vector<10x16xf32>
    %70 = arith.truncf %69 : vector<10x16xf32> to vector<10x16xbf16>
    %71 = vector.extract_strided_slice %38 {offsets = [0, 16], sizes = [10, 16], strides = [1, 1]} : vector<10x64xf32> to vector<10x16xf32>
    %72 = arith.truncf %71 : vector<10x16xf32> to vector<10x16xbf16>
    %cst_29 = arith.constant dense<0.000000e+00> : vector<10x10xf32>
    %73 = tpu.matmul %68, %70, %cst_29 {dimension_numbers = #tpu.dot_dimension_numbers<[1], [1], [0], [0], [0, 0, 1, 0], [], []>} : vector<10x16xbf16>, vector<10x16xbf16>, vector<10x10xf32> -> vector<10x10xf32>
    %cst_30 = arith.constant 2.500000e-01 : f32
    %74 = vector.broadcast %cst_30 : f32 to vector<10x10xf32>
    %75 = arith.mulf %73, %74 : vector<10x10xf32>
    %76 = vector.broadcast %5 : vector<1x10xf32> to vector<10x10xf32>
    %77 = arith.addf %75, %76 : vector<10x10xf32>
    %cst_31 = arith.constant dense<0xFF800000> : vector<10xf32>
    %78 = vector.multi_reduction <maximumf>, %77, %cst_31 [1] : vector<10x10xf32> to vector<10xf32>
    %79 = vector.shape_cast %78 : vector<10xf32> to vector<10x1xf32>
    %80 = vector.broadcast %79 : vector<10x1xf32> to vector<10x10xf32>
    %81 = arith.subf %77, %80 : vector<10x10xf32>
    %82 = math.exp %81 : vector<10x10xf32>
    %cst_32 = arith.constant dense<0.000000e+00> : vector<10xf32>
    %83 = vector.multi_reduction <add>, %82, %cst_32 [1] : vector<10x10xf32> to vector<10xf32>
    %84 = vector.shape_cast %83 : vector<10xf32> to vector<10x1xf32>
    %85 = tpu.reciprocal %84 {approx = true} : vector<10x1xf32> -> vector<10x1xf32>
    %86 = vector.broadcast %85 : vector<10x1xf32> to vector<10x10xf32>
    %87 = arith.mulf %82, %86 : vector<10x10xf32>
    %88 = arith.truncf %87 : vector<10x10xf32> to vector<10x10xbf16>
    %cst_33 = arith.constant dense<0.000000e+00> : vector<10x16xf32>
    %89 = tpu.matmul %88, %72, %cst_33 {dimension_numbers = #tpu.dot_dimension_numbers<[1], [0], [0], [1], [0, 0, 1, 1], [], []>} : vector<10x10xbf16>, vector<10x16xbf16>, vector<10x16xf32> -> vector<10x16xf32>
    %90 = vector.extract_strided_slice %39 {offsets = [16, 0], sizes = [16, 64], strides = [1, 1]} : vector<64x64xbf16> to vector<16x64xbf16>
    %91 = arith.truncf %89 : vector<10x16xf32> to vector<10x16xbf16>
    %cst_34 = arith.constant dense<0.000000e+00> : vector<10x64xf32>
    %92 = tpu.matmul %91, %90, %cst_34 {dimension_numbers = #tpu.dot_dimension_numbers<[1], [0], [0], [1], [0, 0, 1, 1], [], []>} : vector<10x16xbf16>, vector<16x64xbf16>, vector<10x64xf32> -> vector<10x64xf32>
    %93 = arith.addf %66, %92 : vector<10x64xf32>
    %94 = vector.extract_strided_slice %36 {offsets = [0, 32], sizes = [10, 16], strides = [1, 1]} : vector<10x64xf32> to vector<10x16xf32>
    %95 = arith.truncf %94 : vector<10x16xf32> to vector<10x16xbf16>
    %96 = vector.extract_strided_slice %37 {offsets = [0, 32], sizes = [10, 16], strides = [1, 1]} : vector<10x64xf32> to vector<10x16xf32>
    %97 = arith.truncf %96 : vector<10x16xf32> to vector<10x16xbf16>
    %98 = vector.extract_strided_slice %38 {offsets = [0, 32], sizes = [10, 16], strides = [1, 1]} : vector<10x64xf32> to vector<10x16xf32>
    %99 = arith.truncf %98 : vector<10x16xf32> to vector<10x16xbf16>
    %cst_35 = arith.constant dense<0.000000e+00> : vector<10x10xf32>
    %100 = tpu.matmul %95, %97, %cst_35 {dimension_numbers = #tpu.dot_dimension_numbers<[1], [1], [0], [0], [0, 0, 1, 0], [], []>} : vector<10x16xbf16>, vector<10x16xbf16>, vector<10x10xf32> -> vector<10x10xf32>
    %cst_36 = arith.constant 2.500000e-01 : f32
    %101 = vector.broadcast %cst_36 : f32 to vector<10x10xf32>
    %102 = arith.mulf %100, %101 : vector<10x10xf32>
    %103 = vector.broadcast %5 : vector<1x10xf32> to vector<10x10xf32>
    %104 = arith.addf %102, %103 : vector<10x10xf32>
    %cst_37 = arith.constant dense<0xFF800000> : vector<10xf32>
    %105 = vector.multi_reduction <maximumf>, %104, %cst_37 [1] : vector<10x10xf32> to vector<10xf32>
    %106 = vector.shape_cast %105 : vector<10xf32> to vector<10x1xf32>
    %107 = vector.broadcast %106 : vector<10x1xf32> to vector<10x10xf32>
    %108 = arith.subf %104, %107 : vector<10x10xf32>
    %109 = math.exp %108 : vector<10x10xf32>
    %cst_38 = arith.constant dense<0.000000e+00> : vector<10xf32>
    %110 = vector.multi_reduction <add>, %109, %cst_38 [1] : vector<10x10xf32> to vector<10xf32>
    %111 = vector.shape_cast %110 : vector<10xf32> to vector<10x1xf32>
    %112 = tpu.reciprocal %111 {approx = true} : vector<10x1xf32> -> vector<10x1xf32>
    %113 = vector.broadcast %112 : vector<10x1xf32> to vector<10x10xf32>
    %114 = arith.mulf %109, %113 : vector<10x10xf32>
    %115 = arith.truncf %114 : vector<10x10xf32> to vector<10x10xbf16>
    %cst_39 = arith.constant dense<0.000000e+00> : vector<10x16xf32>
    %116 = tpu.matmul %115, %99, %cst_39 {dimension_numbers = #tpu.dot_dimension_numbers<[1], [0], [0], [1], [0, 0, 1, 1], [], []>} : vector<10x10xbf16>, vector<10x16xbf16>, vector<10x16xf32> -> vector<10x16xf32>
    %117 = vector.extract_strided_slice %39 {offsets = [32, 0], sizes = [16, 64], strides = [1, 1]} : vector<64x64xbf16> to vector<16x64xbf16>
    %118 = arith.truncf %116 : vector<10x16xf32> to vector<10x16xbf16>
    %cst_40 = arith.constant dense<0.000000e+00> : vector<10x64xf32>
    %119 = tpu.matmul %118, %117, %cst_40 {dimension_numbers = #tpu.dot_dimension_numbers<[1], [0], [0], [1], [0, 0, 1, 1], [], []>} : vector<10x16xbf16>, vector<16x64xbf16>, vector<10x64xf32> -> vector<10x64xf32>
    %120 = arith.addf %93, %119 : vector<10x64xf32>
    %121 = vector.extract_strided_slice %36 {offsets = [0, 48], sizes = [10, 16], strides = [1, 1]} : vector<10x64xf32> to vector<10x16xf32>
    %122 = arith.truncf %121 : vector<10x16xf32> to vector<10x16xbf16>
    %123 = vector.extract_strided_slice %37 {offsets = [0, 48], sizes = [10, 16], strides = [1, 1]} : vector<10x64xf32> to vector<10x16xf32>
    %124 = arith.truncf %123 : vector<10x16xf32> to vector<10x16xbf16>
    %125 = vector.extract_strided_slice %38 {offsets = [0, 48], sizes = [10, 16], strides = [1, 1]} : vector<10x64xf32> to vector<10x16xf32>
    %126 = arith.truncf %125 : vector<10x16xf32> to vector<10x16xbf16>
    %cst_41 = arith.constant dense<0.000000e+00> : vector<10x10xf32>
    %127 = tpu.matmul %122, %124, %cst_41 {dimension_numbers = #tpu.dot_dimension_numbers<[1], [1], [0], [0], [0, 0, 1, 0], [], []>} : vector<10x16xbf16>, vector<10x16xbf16>, vector<10x10xf32> -> vector<10x10xf32>
    %cst_42 = arith.constant 2.500000e-01 : f32
    %128 = vector.broadcast %cst_42 : f32 to vector<10x10xf32>
    %129 = arith.mulf %127, %128 : vector<10x10xf32>
    %130 = vector.broadcast %5 : vector<1x10xf32> to vector<10x10xf32>
    %131 = arith.addf %129, %130 : vector<10x10xf32>
    %cst_43 = arith.constant dense<0xFF800000> : vector<10xf32>
    %132 = vector.multi_reduction <maximumf>, %131, %cst_43 [1] : vector<10x10xf32> to vector<10xf32>
    %133 = vector.shape_cast %132 : vector<10xf32> to vector<10x1xf32>
    %134 = vector.broadcast %133 : vector<10x1xf32> to vector<10x10xf32>
    %135 = arith.subf %131, %134 : vector<10x10xf32>
    %136 = math.exp %135 : vector<10x10xf32>
    %cst_44 = arith.constant dense<0.000000e+00> : vector<10xf32>
    %137 = vector.multi_reduction <add>, %136, %cst_44 [1] : vector<10x10xf32> to vector<10xf32>
    %138 = vector.shape_cast %137 : vector<10xf32> to vector<10x1xf32>
    %139 = tpu.reciprocal %138 {approx = true} : vector<10x1xf32> -> vector<10x1xf32>
    %140 = vector.broadcast %139 : vector<10x1xf32> to vector<10x10xf32>
    %141 = arith.mulf %136, %140 : vector<10x10xf32>
    %142 = arith.truncf %141 : vector<10x10xf32> to vector<10x10xbf16>
    %cst_45 = arith.constant dense<0.000000e+00> : vector<10x16xf32>
    %143 = tpu.matmul %142, %126, %cst_45 {dimension_numbers = #tpu.dot_dimension_numbers<[1], [0], [0], [1], [0, 0, 1, 1], [], []>} : vector<10x10xbf16>, vector<10x16xbf16>, vector<10x16xf32> -> vector<10x16xf32>
    %144 = vector.extract_strided_slice %39 {offsets = [48, 0], sizes = [16, 64], strides = [1, 1]} : vector<64x64xbf16> to vector<16x64xbf16>
    %145 = arith.truncf %143 : vector<10x16xf32> to vector<10x16xbf16>
    %cst_46 = arith.constant dense<0.000000e+00> : vector<10x64xf32>
    %146 = tpu.matmul %145, %144, %cst_46 {dimension_numbers = #tpu.dot_dimension_numbers<[1], [0], [0], [1], [0, 0, 1, 1], [], []>} : vector<10x16xbf16>, vector<16x64xbf16>, vector<10x64xf32> -> vector<10x64xf32>
    %147 = arith.addf %120, %146 : vector<10x64xf32>
    %148 = vector.broadcast %40 : vector<1x64xf32> to vector<10x64xf32>
    %149 = arith.addf %147, %148 : vector<10x64xf32>
    %150 = arith.addf %1, %149 : vector<10x64xf32>
    %c0_47 = arith.constant 0 : index
    %c0_48 = arith.constant 0 : index
    %151 = vector.load %arg9[%c0_47, %c0_48] : memref<1x64xf32, #tpu.memory_space<vmem>>, vector<1x64xf32>
    %c0_49 = arith.constant 0 : index
    %c0_50 = arith.constant 0 : index
    %152 = vector.load %arg10[%c0_49, %c0_50] : memref<1x64xf32, #tpu.memory_space<vmem>>, vector<1x64xf32>
    %cst_51 = arith.constant dense<0.000000e+00> : vector<10xf32>
    %153 = vector.multi_reduction <add>, %150, %cst_51 [1] : vector<10x64xf32> to vector<10xf32>
    %154 = vector.shape_cast %153 : vector<10xf32> to vector<10x1xf32>
    %cst_52 = arith.constant 6.400000e+01 : f32
    %155 = vector.broadcast %cst_52 : f32 to vector<10x1xf32>
    %156 = arith.divf %154, %155 : vector<10x1xf32>
    %157 = vector.broadcast %156 : vector<10x1xf32> to vector<10x64xf32>
    %158 = arith.subf %150, %157 : vector<10x64xf32>
    %159 = arith.mulf %158, %158 : vector<10x64xf32>
    %cst_53 = arith.constant dense<0.000000e+00> : vector<10xf32>
    %160 = vector.multi_reduction <add>, %159, %cst_53 [1] : vector<10x64xf32> to vector<10xf32>
    %161 = vector.shape_cast %160 : vector<10xf32> to vector<10x1xf32>
    %cst_54 = arith.constant 6.400000e+01 : f32
    %162 = vector.broadcast %cst_54 : f32 to vector<10x1xf32>
    %163 = arith.divf %161, %162 : vector<10x1xf32>
    %164 = vector.broadcast %156 : vector<10x1xf32> to vector<10x64xf32>
    %165 = arith.subf %150, %164 : vector<10x64xf32>
    %cst_55 = arith.constant 9.99999974E-6 : f32
    %166 = vector.broadcast %cst_55 : f32 to vector<10x1xf32>
    %167 = arith.addf %163, %166 : vector<10x1xf32>
    %168 = math.rsqrt %167 : vector<10x1xf32>
    %169 = vector.broadcast %168 : vector<10x1xf32> to vector<10x64xf32>
    %170 = arith.mulf %165, %169 : vector<10x64xf32>
    %171 = vector.broadcast %151 : vector<1x64xf32> to vector<10x64xf32>
    %172 = arith.mulf %170, %171 : vector<10x64xf32>
    %173 = vector.broadcast %152 : vector<1x64xf32> to vector<10x64xf32>
    %174 = arith.addf %172, %173 : vector<10x64xf32>
    %c0_56 = arith.constant 0 : index
    %c0_57 = arith.constant 0 : index
    %175 = vector.load %arg11[%c0_56, %c0_57] : memref<64x128xbf16, #tpu.memory_space<vmem>>, vector<64x128xbf16>
    %176 = arith.truncf %174 : vector<10x64xf32> to vector<10x64xbf16>
    %cst_58 = arith.constant dense<0.000000e+00> : vector<10x128xf32>
    %177 = tpu.matmul %176, %175, %cst_58 {dimension_numbers = #tpu.dot_dimension_numbers<[1], [0], [0], [1], [0, 0, 1, 1], [], []>} : vector<10x64xbf16>, vector<64x128xbf16>, vector<10x128xf32> -> vector<10x128xf32>
    %c0_59 = arith.constant 0 : index
    %c0_60 = arith.constant 0 : index
    %178 = vector.load %arg12[%c0_59, %c0_60] : memref<1x128xf32, #tpu.memory_space<vmem>>, vector<1x128xf32>
    %179 = vector.broadcast %178 : vector<1x128xf32> to vector<10x128xf32>
    %180 = arith.addf %177, %179 : vector<10x128xf32>
    %cst_61 = arith.constant 0.000000e+00 : f32
    %181 = vector.broadcast %cst_61 : f32 to vector<10x128xf32>
    %182 = arith.maximumf %180, %181 : vector<10x128xf32>
    %c0_62 = arith.constant 0 : index
    %c0_63 = arith.constant 0 : index
    %183 = vector.load %arg13[%c0_62, %c0_63] : memref<128x64xbf16, #tpu.memory_space<vmem>>, vector<128x64xbf16>
    %184 = arith.truncf %182 : vector<10x128xf32> to vector<10x128xbf16>
    %cst_64 = arith.constant dense<0.000000e+00> : vector<10x64xf32>
    %185 = tpu.matmul %184, %183, %cst_64 {dimension_numbers = #tpu.dot_dimension_numbers<[1], [0], [0], [1], [0, 0, 1, 1], [], []>} : vector<10x128xbf16>, vector<128x64xbf16>, vector<10x64xf32> -> vector<10x64xf32>
    %c0_65 = arith.constant 0 : index
    %c0_66 = arith.constant 0 : index
    %186 = vector.load %arg14[%c0_65, %c0_66] : memref<1x64xf32, #tpu.memory_space<vmem>>, vector<1x64xf32>
    %187 = vector.broadcast %186 : vector<1x64xf32> to vector<10x64xf32>
    %188 = arith.addf %185, %187 : vector<10x64xf32>
    %189 = arith.addf %150, %188 : vector<10x64xf32>
    %c0_67 = arith.constant 0 : index
    %c0_68 = arith.constant 0 : index
    %c0_69 = arith.constant 0 : index
    %190 = vector.load %arg15[%c0_67, %c0_68, %c0_69] : memref<1x10x64xf32, #tpu.memory_space<vmem>>, vector<1x10x64xf32>
    %191 = vector.shape_cast %190 : vector<1x10x64xf32> to vector<10x64xf32>
    %192 = vector.shape_cast %189 : vector<10x64xf32> to vector<1x10x64xf32>
    tpu.vector_store %arg15[%c0_67, %c0_68, %c0_69], %192 {strides = array<i32>} : memref<1x10x64xf32, #tpu.memory_space<vmem>>, vector<1x10x64xf32>,
    return
  }
  func.func @transform_0(%arg0: i32) -> (i32, i32, i32) {
    %c0_i32 = arith.constant 0 : i32
    %c0_i32_0 = arith.constant 0 : i32
    %c0_i32_1 = arith.constant 0 : i32
    return %arg0, %c0_i32, %c0_i32_0 : i32, i32, i32
  }
  func.func @transform_1(%arg0: i32) -> (i32, i32, i32) {
    %c0_i32 = arith.constant 0 : i32
    %c0_i32_0 = arith.constant 0 : i32
    %c0_i32_1 = arith.constant 0 : i32
    return %arg0, %c0_i32, %c0_i32_0 : i32, i32, i32
  }
  func.func @transform_2(%arg0: i32) -> (i32, i32) {
    %c0_i32 = arith.constant 0 : i32
    %c0_i32_0 = arith.constant 0 : i32
    %c0_i32_1 = arith.constant 0 : i32
    return %c0_i32, %c0_i32_0 : i32, i32
  }
  func.func @transform_3(%arg0: i32) -> (i32, i32) {
    %c0_i32 = arith.constant 0 : i32
    %c0_i32_0 = arith.constant 0 : i32
    %c0_i32_1 = arith.constant 0 : i32
    return %c0_i32, %c0_i32_0 : i32, i32
  }
  func.func @transform_4(%arg0: i32) -> (i32, i32) {
    %c0_i32 = arith.constant 0 : i32
    %c0_i32_0 = arith.constant 0 : i32
    %c0_i32_1 = arith.constant 0 : i32
    return %c0_i32, %c0_i32_0 : i32, i32
  }
  func.func @transform_5(%arg0: i32) -> (i32, i32) {
    %c0_i32 = arith.constant 0 : i32
    %c0_i32_0 = arith.constant 0 : i32
    %c0_i32_1 = arith.constant 0 : i32
    return %c0_i32, %c0_i32_0 : i32, i32
  }
  func.func @transform_6(%arg0: i32) -> (i32, i32) {
    %c0_i32 = arith.constant 0 : i32
    %c0_i32_0 = arith.constant 0 : i32
    %c0_i32_1 = arith.constant 0 : i32
    return %c0_i32, %c0_i32_0 : i32, i32
  }
  func.func @transform_7(%arg0: i32) -> (i32, i32) {
    %c0_i32 = arith.constant 0 : i32
    %c0_i32_0 = arith.constant 0 : i32
    %c0_i32_1 = arith.constant 0 : i32
    return %c0_i32, %c0_i32_0 : i32, i32
  }
  func.func @transform_8(%arg0: i32) -> (i32, i32) {
    %c0_i32 = arith.constant 0 : i32
    %c0_i32_0 = arith.constant 0 : i32
    %c0_i32_1 = arith.constant 0 : i32
    return %c0_i32, %c0_i32_0 : i32, i32
  }
  func.func @transform_9(%arg0: i32) -> (i32, i32) {
    %c0_i32 = arith.constant 0 : i32
    %c0_i32_0 = arith.constant 0 : i32
    %c0_i32_1 = arith.constant 0 : i32
    return %c0_i32, %c0_i32_0 : i32, i32
  }
  func.func @transform_10(%arg0: i32) -> (i32, i32) {
    %c0_i32 = arith.constant 0 : i32
    %c0_i32_0 = arith.constant 0 : i32
    %c0_i32_1 = arith.constant 0 : i32
    return %c0_i32, %c0_i32_0 : i32, i32
  }
  func.func @transform_11(%arg0: i32) -> (i32, i32) {
    %c0_i32 = arith.constant 0 : i32
    %c0_i32_0 = arith.constant 0 : i32
    %c0_i32_1 = arith.constant 0 : i32
    return %c0_i32, %c0_i32_0 : i32, i32
  }
  func.func @transform_12(%arg0: i32) -> (i32, i32) {
    %c0_i32 = arith.constant 0 : i32
    %c0_i32_0 = arith.constant 0 : i32
    %c0_i32_1 = arith.constant 0 : i32
    return %c0_i32, %c0_i32_0 : i32, i32
  }
  func.func @transform_13(%arg0: i32) -> (i32, i32) {
    %c0_i32 = arith.constant 0 : i32
    %c0_i32_0 = arith.constant 0 : i32
    %c0_i32_1 = arith.constant 0 : i32
    return %c0_i32, %c0_i32_0 : i32, i32
  }
  func.func @transform_14(%arg0: i32) -> (i32, i32, i32) {
    %c0_i32 = arith.constant 0 : i32
    %c0_i32_0 = arith.constant 0 : i32
    %c0_i32_1 = arith.constant 0 : i32
    return %arg0, %c0_i32, %c0_i32_0 : i32, i32, i32
  }
}

module attributes {stable_mosaic.version = 11 : i64} {
  func.func @_decoder_layer_kernel(%arg0: i32, %arg1: memref<1x8x64xf32, #tpu.memory_space<vmem>>, %arg2: memref<1x10x64xf32, #tpu.memory_space<vmem>>, %arg3: memref<1x8x8xf32, #tpu.memory_space<vmem>>, %arg4: memref<1x1x10xf32, #tpu.memory_space<vmem>>, %arg5: memref<1x64xf32, #tpu.memory_space<vmem>>, %arg6: memref<1x64xf32, #tpu.memory_space<vmem>>, %arg7: memref<64x192xbf16, #tpu.memory_space<vmem>>, %arg8: memref<1x192xf32, #tpu.memory_space<vmem>>, %arg9: memref<64x64xbf16, #tpu.memory_space<vmem>>, %arg10: memref<1x64xf32, #tpu.memory_space<vmem>>, %arg11: memref<1x64xf32, #tpu.memory_space<vmem>>, %arg12: memref<1x64xf32, #tpu.memory_space<vmem>>, %arg13: memref<64x64xbf16, #tpu.memory_space<vmem>>, %arg14: memref<1x64xf32, #tpu.memory_space<vmem>>, %arg15: memref<64x128xbf16, #tpu.memory_space<vmem>>, %arg16: memref<1x128xf32, #tpu.memory_space<vmem>>, %arg17: memref<64x64xbf16, #tpu.memory_space<vmem>>, %arg18: memref<1x64xf32, #tpu.memory_space<vmem>>, %arg19: memref<1x64xf32, #tpu.memory_space<vmem>>, %arg20: memref<1x64xf32, #tpu.memory_space<vmem>>, %arg21: memref<64x128xbf16, #tpu.memory_space<vmem>>, %arg22: memref<1x128xf32, #tpu.memory_space<vmem>>, %arg23: memref<128x64xbf16, #tpu.memory_space<vmem>>, %arg24: memref<1x64xf32, #tpu.memory_space<vmem>>, %arg25: memref<1x8x64xf32, #tpu.memory_space<vmem>>) attributes {dimension_semantics = [#tpu.dimension_semantics<parallel>], iteration_bounds = array<i64: 2>, scalar_prefetch = 0 : i64, scratch_operands = 0 : i64, tpu.core_type = #tpu.core_type<tc>, window_params = [{transform_indices = @transform_0, window_bounds = array<i64: 1, 8, 64>}, {transform_indices = @transform_1, window_bounds = array<i64: 1, 10, 64>}, {transform_indices = @transform_2, window_bounds = array<i64: 1, 8, 8>}, {transform_indices = @transform_3, window_bounds = array<i64: 1, 1, 10>}, {pipeline_mode = #tpu.pipeline_mode<synchronous>, transform_indices = @transform_4, window_bounds = array<i64: 1, 64>}, {pipeline_mode = #tpu.pipeline_mode<synchronous>, transform_indices = @transform_5, window_bounds = array<i64: 1, 64>}, {pipeline_mode = #tpu.pipeline_mode<synchronous>, transform_indices = @transform_6, window_bounds = array<i64: 64, 192>}, {pipeline_mode = #tpu.pipeline_mode<synchronous>, transform_indices = @transform_7, window_bounds = array<i64: 1, 192>}, {pipeline_mode = #tpu.pipeline_mode<synchronous>, transform_indices = @transform_8, window_bounds = array<i64: 64, 64>}, {pipeline_mode = #tpu.pipeline_mode<synchronous>, transform_indices = @transform_9, window_bounds = array<i64: 1, 64>}, {pipeline_mode = #tpu.pipeline_mode<synchronous>, transform_indices = @transform_10, window_bounds = array<i64: 1, 64>}, {pipeline_mode = #tpu.pipeline_mode<synchronous>, transform_indices = @transform_11, window_bounds = array<i64: 1, 64>}, {pipeline_mode = #tpu.pipeline_mode<synchronous>, transform_indices = @transform_12, window_bounds = array<i64: 64, 64>}, {pipeline_mode = #tpu.pipeline_mode<synchronous>, transform_indices = @transform_13, window_bounds = array<i64: 1, 64>}, {pipeline_mode = #tpu.pipeline_mode<synchronous>, transform_indices = @transform_14, window_bounds = array<i64: 64, 128>}, {pipeline_mode = #tpu.pipeline_mode<synchronous>, transform_indices = @transform_15, window_bounds = array<i64: 1, 128>}, {pipeline_mode = #tpu.pipeline_mode<synchronous>, transform_indices = @transform_16, window_bounds = array<i64: 64, 64>}, {pipeline_mode = #tpu.pipeline_mode<synchronous>, transform_indices = @transform_17, window_bounds = array<i64: 1, 64>}, {pipeline_mode = #tpu.pipeline_mode<synchronous>, transform_indices = @transform_18, window_bounds = array<i64: 1, 64>}, {pipeline_mode = #tpu.pipeline_mode<synchronous>, transform_indices = @transform_19, window_bounds = array<i64: 1, 64>}, {pipeline_mode = #tpu.pipeline_mode<synchronous>, transform_indices = @transform_20, window_bounds = array<i64: 64, 128>}, {pipeline_mode = #tpu.pipeline_mode<synchronous>, transform_indices = @transform_21, window_bounds = array<i64: 1, 128>}, {pipeline_mode = #tpu.pipeline_mode<synchronous>, transform_indices = @transform_22, window_bounds = array<i64: 128, 64>}, {pipeline_mode = #tpu.pipeline_mode<synchronous>, transform_indices = @transform_23, window_bounds = array<i64: 1, 64>}, {transform_indices = @transform_24, window_bounds = array<i64: 1, 8, 64>}]} {
    %c0 = arith.constant 0 : index
    %c0_0 = arith.constant 0 : index
    %c0_1 = arith.constant 0 : index
    %0 = vector.load %arg1[%c0, %c0_0, %c0_1] : memref<1x8x64xf32, #tpu.memory_space<vmem>>, vector<1x8x64xf32>
    %1 = vector.shape_cast %0 : vector<1x8x64xf32> to vector<8x64xf32>
    %c0_2 = arith.constant 0 : index
    %c0_3 = arith.constant 0 : index
    %c0_4 = arith.constant 0 : index
    %2 = vector.load %arg2[%c0_2, %c0_3, %c0_4] : memref<1x10x64xf32, #tpu.memory_space<vmem>>, vector<1x10x64xf32>
    %3 = vector.shape_cast %2 : vector<1x10x64xf32> to vector<10x64xf32>
    %c0_5 = arith.constant 0 : index
    %c0_6 = arith.constant 0 : index
    %c0_7 = arith.constant 0 : index
    %4 = vector.load %arg3[%c0_5, %c0_6, %c0_7] : memref<1x8x8xf32, #tpu.memory_space<vmem>>, vector<1x8x8xf32>
    %5 = vector.shape_cast %4 : vector<1x8x8xf32> to vector<8x8xf32>
    %c0_8 = arith.constant 0 : index
    %c0_9 = arith.constant 0 : index
    %c0_10 = arith.constant 0 : index
    %6 = vector.load %arg4[%c0_8, %c0_9, %c0_10] : memref<1x1x10xf32, #tpu.memory_space<vmem>>, vector<1x1x10xf32>
    %7 = vector.shape_cast %6 : vector<1x1x10xf32> to vector<1x10xf32>
    %cst = arith.constant -1.000000e+09 : f32
    %8 = vector.broadcast %cst : f32 to vector<1x10xf32>
    %9 = arith.mulf %7, %8 : vector<1x10xf32>
    %c0_11 = arith.constant 0 : index
    %c0_12 = arith.constant 0 : index
    %10 = vector.load %arg5[%c0_11, %c0_12] : memref<1x64xf32, #tpu.memory_space<vmem>>, vector<1x64xf32>
    %c0_13 = arith.constant 0 : index
    %c0_14 = arith.constant 0 : index
    %11 = vector.load %arg6[%c0_13, %c0_14] : memref<1x64xf32, #tpu.memory_space<vmem>>, vector<1x64xf32>
    %cst_15 = arith.constant dense<0.000000e+00> : vector<8xf32>
    %12 = vector.multi_reduction <add>, %1, %cst_15 [1] : vector<8x64xf32> to vector<8xf32>
    %13 = vector.shape_cast %12 : vector<8xf32> to vector<8x1xf32>
    %cst_16 = arith.constant 6.400000e+01 : f32
    %14 = vector.broadcast %cst_16 : f32 to vector<8x1xf32>
    %15 = arith.divf %13, %14 : vector<8x1xf32>
    %16 = vector.broadcast %15 : vector<8x1xf32> to vector<8x64xf32>
    %17 = arith.subf %1, %16 : vector<8x64xf32>
    %18 = arith.mulf %17, %17 : vector<8x64xf32>
    %cst_17 = arith.constant dense<0.000000e+00> : vector<8xf32>
    %19 = vector.multi_reduction <add>, %18, %cst_17 [1] : vector<8x64xf32> to vector<8xf32>
    %20 = vector.shape_cast %19 : vector<8xf32> to vector<8x1xf32>
    %cst_18 = arith.constant 6.400000e+01 : f32
    %21 = vector.broadcast %cst_18 : f32 to vector<8x1xf32>
    %22 = arith.divf %20, %21 : vector<8x1xf32>
    %23 = vector.broadcast %15 : vector<8x1xf32> to vector<8x64xf32>
    %24 = arith.subf %1, %23 : vector<8x64xf32>
    %cst_19 = arith.constant 9.99999974E-6 : f32
    %25 = vector.broadcast %cst_19 : f32 to vector<8x1xf32>
    %26 = arith.addf %22, %25 : vector<8x1xf32>
    %27 = math.rsqrt %26 : vector<8x1xf32>
    %28 = vector.broadcast %27 : vector<8x1xf32> to vector<8x64xf32>
    %29 = arith.mulf %24, %28 : vector<8x64xf32>
    %30 = vector.broadcast %10 : vector<1x64xf32> to vector<8x64xf32>
    %31 = arith.mulf %29, %30 : vector<8x64xf32>
    %32 = vector.broadcast %11 : vector<1x64xf32> to vector<8x64xf32>
    %33 = arith.addf %31, %32 : vector<8x64xf32>
    %c0_20 = arith.constant 0 : index
    %c0_21 = arith.constant 0 : index
    %34 = vector.load %arg7[%c0_20, %c0_21] : memref<64x192xbf16, #tpu.memory_space<vmem>>, vector<64x192xbf16>
    %35 = arith.truncf %33 : vector<8x64xf32> to vector<8x64xbf16>
    %cst_22 = arith.constant dense<0.000000e+00> : vector<8x192xf32>
    %36 = tpu.matmul %35, %34, %cst_22 {dimension_numbers = #tpu.dot_dimension_numbers<[1], [0], [0], [1], [0, 0, 1, 1], [], []>} : vector<8x64xbf16>, vector<64x192xbf16>, vector<8x192xf32> -> vector<8x192xf32>
    %c0_23 = arith.constant 0 : index
    %c0_24 = arith.constant 0 : index
    %37 = vector.load %arg8[%c0_23, %c0_24] : memref<1x192xf32, #tpu.memory_space<vmem>>, vector<1x192xf32>
    %38 = vector.broadcast %37 : vector<1x192xf32> to vector<8x192xf32>
    %39 = arith.addf %36, %38 : vector<8x192xf32>
    %40 = vector.extract_strided_slice %39 {offsets = [0, 0], sizes = [8, 64], strides = [1, 1]} : vector<8x192xf32> to vector<8x64xf32>
    %41 = vector.extract_strided_slice %39 {offsets = [0, 64], sizes = [8, 64], strides = [1, 1]} : vector<8x192xf32> to vector<8x64xf32>
    %42 = vector.extract_strided_slice %39 {offsets = [0, 128], sizes = [8, 64], strides = [1, 1]} : vector<8x192xf32> to vector<8x64xf32>
    %c0_25 = arith.constant 0 : index
    %c0_26 = arith.constant 0 : index
    %43 = vector.load %arg9[%c0_25, %c0_26] : memref<64x64xbf16, #tpu.memory_space<vmem>>, vector<64x64xbf16>
    %c0_27 = arith.constant 0 : index
    %c0_28 = arith.constant 0 : index
    %44 = vector.load %arg10[%c0_27, %c0_28] : memref<1x64xf32, #tpu.memory_space<vmem>>, vector<1x64xf32>
    %45 = vector.extract_strided_slice %40 {offsets = [0, 0], sizes = [8, 16], strides = [1, 1]} : vector<8x64xf32> to vector<8x16xf32>
    %46 = arith.truncf %45 : vector<8x16xf32> to vector<8x16xbf16>
    %47 = vector.extract_strided_slice %41 {offsets = [0, 0], sizes = [8, 16], strides = [1, 1]} : vector<8x64xf32> to vector<8x16xf32>
    %48 = arith.truncf %47 : vector<8x16xf32> to vector<8x16xbf16>
    %49 = vector.extract_strided_slice %42 {offsets = [0, 0], sizes = [8, 16], strides = [1, 1]} : vector<8x64xf32> to vector<8x16xf32>
    %50 = arith.truncf %49 : vector<8x16xf32> to vector<8x16xbf16>
    %cst_29 = arith.constant dense<0.000000e+00> : vector<8x8xf32>
    %51 = tpu.matmul %46, %48, %cst_29 {dimension_numbers = #tpu.dot_dimension_numbers<[1], [1], [0], [0], [0, 0, 1, 0], [], []>} : vector<8x16xbf16>, vector<8x16xbf16>, vector<8x8xf32> -> vector<8x8xf32>
    %cst_30 = arith.constant 2.500000e-01 : f32
    %52 = vector.broadcast %cst_30 : f32 to vector<8x8xf32>
    %53 = arith.mulf %51, %52 : vector<8x8xf32>
    %54 = arith.addf %53, %5 : vector<8x8xf32>
    %cst_31 = arith.constant dense<0xFF800000> : vector<8xf32>
    %55 = vector.multi_reduction <maximumf>, %54, %cst_31 [1] : vector<8x8xf32> to vector<8xf32>
    %56 = vector.shape_cast %55 : vector<8xf32> to vector<8x1xf32>
    %57 = vector.broadcast %56 : vector<8x1xf32> to vector<8x8xf32>
    %58 = arith.subf %54, %57 : vector<8x8xf32>
    %59 = math.exp %58 : vector<8x8xf32>
    %cst_32 = arith.constant dense<0.000000e+00> : vector<8xf32>
    %60 = vector.multi_reduction <add>, %59, %cst_32 [1] : vector<8x8xf32> to vector<8xf32>
    %61 = vector.shape_cast %60 : vector<8xf32> to vector<8x1xf32>
    %62 = tpu.reciprocal %61 {approx = true} : vector<8x1xf32> -> vector<8x1xf32>
    %63 = vector.broadcast %62 : vector<8x1xf32> to vector<8x8xf32>
    %64 = arith.mulf %59, %63 : vector<8x8xf32>
    %65 = arith.truncf %64 : vector<8x8xf32> to vector<8x8xbf16>
    %cst_33 = arith.constant dense<0.000000e+00> : vector<8x16xf32>
    %66 = tpu.matmul %65, %50, %cst_33 {dimension_numbers = #tpu.dot_dimension_numbers<[1], [0], [0], [1], [0, 0, 1, 1], [], []>} : vector<8x8xbf16>, vector<8x16xbf16>, vector<8x16xf32> -> vector<8x16xf32>
    %67 = vector.extract_strided_slice %43 {offsets = [0, 0], sizes = [16, 64], strides = [1, 1]} : vector<64x64xbf16> to vector<16x64xbf16>
    %68 = arith.truncf %66 : vector<8x16xf32> to vector<8x16xbf16>
    %cst_34 = arith.constant dense<0.000000e+00> : vector<8x64xf32>
    %69 = tpu.matmul %68, %67, %cst_34 {dimension_numbers = #tpu.dot_dimension_numbers<[1], [0], [0], [1], [0, 0, 1, 1], [], []>} : vector<8x16xbf16>, vector<16x64xbf16>, vector<8x64xf32> -> vector<8x64xf32>
    %70 = vector.extract_strided_slice %40 {offsets = [0, 16], sizes = [8, 16], strides = [1, 1]} : vector<8x64xf32> to vector<8x16xf32>
    %71 = arith.truncf %70 : vector<8x16xf32> to vector<8x16xbf16>
    %72 = vector.extract_strided_slice %41 {offsets = [0, 16], sizes = [8, 16], strides = [1, 1]} : vector<8x64xf32> to vector<8x16xf32>
    %73 = arith.truncf %72 : vector<8x16xf32> to vector<8x16xbf16>
    %74 = vector.extract_strided_slice %42 {offsets = [0, 16], sizes = [8, 16], strides = [1, 1]} : vector<8x64xf32> to vector<8x16xf32>
    %75 = arith.truncf %74 : vector<8x16xf32> to vector<8x16xbf16>
    %cst_35 = arith.constant dense<0.000000e+00> : vector<8x8xf32>
    %76 = tpu.matmul %71, %73, %cst_35 {dimension_numbers = #tpu.dot_dimension_numbers<[1], [1], [0], [0], [0, 0, 1, 0], [], []>} : vector<8x16xbf16>, vector<8x16xbf16>, vector<8x8xf32> -> vector<8x8xf32>
    %cst_36 = arith.constant 2.500000e-01 : f32
    %77 = vector.broadcast %cst_36 : f32 to vector<8x8xf32>
    %78 = arith.mulf %76, %77 : vector<8x8xf32>
    %79 = arith.addf %78, %5 : vector<8x8xf32>
    %cst_37 = arith.constant dense<0xFF800000> : vector<8xf32>
    %80 = vector.multi_reduction <maximumf>, %79, %cst_37 [1] : vector<8x8xf32> to vector<8xf32>
    %81 = vector.shape_cast %80 : vector<8xf32> to vector<8x1xf32>
    %82 = vector.broadcast %81 : vector<8x1xf32> to vector<8x8xf32>
    %83 = arith.subf %79, %82 : vector<8x8xf32>
    %84 = math.exp %83 : vector<8x8xf32>
    %cst_38 = arith.constant dense<0.000000e+00> : vector<8xf32>
    %85 = vector.multi_reduction <add>, %84, %cst_38 [1] : vector<8x8xf32> to vector<8xf32>
    %86 = vector.shape_cast %85 : vector<8xf32> to vector<8x1xf32>
    %87 = tpu.reciprocal %86 {approx = true} : vector<8x1xf32> -> vector<8x1xf32>
    %88 = vector.broadcast %87 : vector<8x1xf32> to vector<8x8xf32>
    %89 = arith.mulf %84, %88 : vector<8x8xf32>
    %90 = arith.truncf %89 : vector<8x8xf32> to vector<8x8xbf16>
    %cst_39 = arith.constant dense<0.000000e+00> : vector<8x16xf32>
    %91 = tpu.matmul %90, %75, %cst_39 {dimension_numbers = #tpu.dot_dimension_numbers<[1], [0], [0], [1], [0, 0, 1, 1], [], []>} : vector<8x8xbf16>, vector<8x16xbf16>, vector<8x16xf32> -> vector<8x16xf32>
    %92 = vector.extract_strided_slice %43 {offsets = [16, 0], sizes = [16, 64], strides = [1, 1]} : vector<64x64xbf16> to vector<16x64xbf16>
    %93 = arith.truncf %91 : vector<8x16xf32> to vector<8x16xbf16>
    %cst_40 = arith.constant dense<0.000000e+00> : vector<8x64xf32>
    %94 = tpu.matmul %93, %92, %cst_40 {dimension_numbers = #tpu.dot_dimension_numbers<[1], [0], [0], [1], [0, 0, 1, 1], [], []>} : vector<8x16xbf16>, vector<16x64xbf16>, vector<8x64xf32> -> vector<8x64xf32>
    %95 = arith.addf %69, %94 : vector<8x64xf32>
    %96 = vector.extract_strided_slice %40 {offsets = [0, 32], sizes = [8, 16], strides = [1, 1]} : vector<8x64xf32> to vector<8x16xf32>
    %97 = arith.truncf %96 : vector<8x16xf32> to vector<8x16xbf16>
    %98 = vector.extract_strided_slice %41 {offsets = [0, 32], sizes = [8, 16], strides = [1, 1]} : vector<8x64xf32> to vector<8x16xf32>
    %99 = arith.truncf %98 : vector<8x16xf32> to vector<8x16xbf16>
    %100 = vector.extract_strided_slice %42 {offsets = [0, 32], sizes = [8, 16], strides = [1, 1]} : vector<8x64xf32> to vector<8x16xf32>
    %101 = arith.truncf %100 : vector<8x16xf32> to vector<8x16xbf16>
    %cst_41 = arith.constant dense<0.000000e+00> : vector<8x8xf32>
    %102 = tpu.matmul %97, %99, %cst_41 {dimension_numbers = #tpu.dot_dimension_numbers<[1], [1], [0], [0], [0, 0, 1, 0], [], []>} : vector<8x16xbf16>, vector<8x16xbf16>, vector<8x8xf32> -> vector<8x8xf32>
    %cst_42 = arith.constant 2.500000e-01 : f32
    %103 = vector.broadcast %cst_42 : f32 to vector<8x8xf32>
    %104 = arith.mulf %102, %103 : vector<8x8xf32>
    %105 = arith.addf %104, %5 : vector<8x8xf32>
    %cst_43 = arith.constant dense<0xFF800000> : vector<8xf32>
    %106 = vector.multi_reduction <maximumf>, %105, %cst_43 [1] : vector<8x8xf32> to vector<8xf32>
    %107 = vector.shape_cast %106 : vector<8xf32> to vector<8x1xf32>
    %108 = vector.broadcast %107 : vector<8x1xf32> to vector<8x8xf32>
    %109 = arith.subf %105, %108 : vector<8x8xf32>
    %110 = math.exp %109 : vector<8x8xf32>
    %cst_44 = arith.constant dense<0.000000e+00> : vector<8xf32>
    %111 = vector.multi_reduction <add>, %110, %cst_44 [1] : vector<8x8xf32> to vector<8xf32>
    %112 = vector.shape_cast %111 : vector<8xf32> to vector<8x1xf32>
    %113 = tpu.reciprocal %112 {approx = true} : vector<8x1xf32> -> vector<8x1xf32>
    %114 = vector.broadcast %113 : vector<8x1xf32> to vector<8x8xf32>
    %115 = arith.mulf %110, %114 : vector<8x8xf32>
    %116 = arith.truncf %115 : vector<8x8xf32> to vector<8x8xbf16>
    %cst_45 = arith.constant dense<0.000000e+00> : vector<8x16xf32>
    %117 = tpu.matmul %116, %101, %cst_45 {dimension_numbers = #tpu.dot_dimension_numbers<[1], [0], [0], [1], [0, 0, 1, 1], [], []>} : vector<8x8xbf16>, vector<8x16xbf16>, vector<8x16xf32> -> vector<8x16xf32>
    %118 = vector.extract_strided_slice %43 {offsets = [32, 0], sizes = [16, 64], strides = [1, 1]} : vector<64x64xbf16> to vector<16x64xbf16>
    %119 = arith.truncf %117 : vector<8x16xf32> to vector<8x16xbf16>
    %cst_46 = arith.constant dense<0.000000e+00> : vector<8x64xf32>
    %120 = tpu.matmul %119, %118, %cst_46 {dimension_numbers = #tpu.dot_dimension_numbers<[1], [0], [0], [1], [0, 0, 1, 1], [], []>} : vector<8x16xbf16>, vector<16x64xbf16>, vector<8x64xf32> -> vector<8x64xf32>
    %121 = arith.addf %95, %120 : vector<8x64xf32>
    %122 = vector.extract_strided_slice %40 {offsets = [0, 48], sizes = [8, 16], strides = [1, 1]} : vector<8x64xf32> to vector<8x16xf32>
    %123 = arith.truncf %122 : vector<8x16xf32> to vector<8x16xbf16>
    %124 = vector.extract_strided_slice %41 {offsets = [0, 48], sizes = [8, 16], strides = [1, 1]} : vector<8x64xf32> to vector<8x16xf32>
    %125 = arith.truncf %124 : vector<8x16xf32> to vector<8x16xbf16>
    %126 = vector.extract_strided_slice %42 {offsets = [0, 48], sizes = [8, 16], strides = [1, 1]} : vector<8x64xf32> to vector<8x16xf32>
    %127 = arith.truncf %126 : vector<8x16xf32> to vector<8x16xbf16>
    %cst_47 = arith.constant dense<0.000000e+00> : vector<8x8xf32>
    %128 = tpu.matmul %123, %125, %cst_47 {dimension_numbers = #tpu.dot_dimension_numbers<[1], [1], [0], [0], [0, 0, 1, 0], [], []>} : vector<8x16xbf16>, vector<8x16xbf16>, vector<8x8xf32> -> vector<8x8xf32>
    %cst_48 = arith.constant 2.500000e-01 : f32
    %129 = vector.broadcast %cst_48 : f32 to vector<8x8xf32>
    %130 = arith.mulf %128, %129 : vector<8x8xf32>
    %131 = arith.addf %130, %5 : vector<8x8xf32>
    %cst_49 = arith.constant dense<0xFF800000> : vector<8xf32>
    %132 = vector.multi_reduction <maximumf>, %131, %cst_49 [1] : vector<8x8xf32> to vector<8xf32>
    %133 = vector.shape_cast %132 : vector<8xf32> to vector<8x1xf32>
    %134 = vector.broadcast %133 : vector<8x1xf32> to vector<8x8xf32>
    %135 = arith.subf %131, %134 : vector<8x8xf32>
    %136 = math.exp %135 : vector<8x8xf32>
    %cst_50 = arith.constant dense<0.000000e+00> : vector<8xf32>
    %137 = vector.multi_reduction <add>, %136, %cst_50 [1] : vector<8x8xf32> to vector<8xf32>
    %138 = vector.shape_cast %137 : vector<8xf32> to vector<8x1xf32>
    %139 = tpu.reciprocal %138 {approx = true} : vector<8x1xf32> -> vector<8x1xf32>
    %140 = vector.broadcast %139 : vector<8x1xf32> to vector<8x8xf32>
    %141 = arith.mulf %136, %140 : vector<8x8xf32>
    %142 = arith.truncf %141 : vector<8x8xf32> to vector<8x8xbf16>
    %cst_51 = arith.constant dense<0.000000e+00> : vector<8x16xf32>
    %143 = tpu.matmul %142, %127, %cst_51 {dimension_numbers = #tpu.dot_dimension_numbers<[1], [0], [0], [1], [0, 0, 1, 1], [], []>} : vector<8x8xbf16>, vector<8x16xbf16>, vector<8x16xf32> -> vector<8x16xf32>
    %144 = vector.extract_strided_slice %43 {offsets = [48, 0], sizes = [16, 64], strides = [1, 1]} : vector<64x64xbf16> to vector<16x64xbf16>
    %145 = arith.truncf %143 : vector<8x16xf32> to vector<8x16xbf16>
    %cst_52 = arith.constant dense<0.000000e+00> : vector<8x64xf32>
    %146 = tpu.matmul %145, %144, %cst_52 {dimension_numbers = #tpu.dot_dimension_numbers<[1], [0], [0], [1], [0, 0, 1, 1], [], []>} : vector<8x16xbf16>, vector<16x64xbf16>, vector<8x64xf32> -> vector<8x64xf32>
    %147 = arith.addf %121, %146 : vector<8x64xf32>
    %148 = vector.broadcast %44 : vector<1x64xf32> to vector<8x64xf32>
    %149 = arith.addf %147, %148 : vector<8x64xf32>
    %150 = arith.addf %1, %149 : vector<8x64xf32>
    %c0_53 = arith.constant 0 : index
    %c0_54 = arith.constant 0 : index
    %151 = vector.load %arg11[%c0_53, %c0_54] : memref<1x64xf32, #tpu.memory_space<vmem>>, vector<1x64xf32>
    %c0_55 = arith.constant 0 : index
    %c0_56 = arith.constant 0 : index
    %152 = vector.load %arg12[%c0_55, %c0_56] : memref<1x64xf32, #tpu.memory_space<vmem>>, vector<1x64xf32>
    %cst_57 = arith.constant dense<0.000000e+00> : vector<8xf32>
    %153 = vector.multi_reduction <add>, %150, %cst_57 [1] : vector<8x64xf32> to vector<8xf32>
    %154 = vector.shape_cast %153 : vector<8xf32> to vector<8x1xf32>
    %cst_58 = arith.constant 6.400000e+01 : f32
    %155 = vector.broadcast %cst_58 : f32 to vector<8x1xf32>
    %156 = arith.divf %154, %155 : vector<8x1xf32>
    %157 = vector.broadcast %156 : vector<8x1xf32> to vector<8x64xf32>
    %158 = arith.subf %150, %157 : vector<8x64xf32>
    %159 = arith.mulf %158, %158 : vector<8x64xf32>
    %cst_59 = arith.constant dense<0.000000e+00> : vector<8xf32>
    %160 = vector.multi_reduction <add>, %159, %cst_59 [1] : vector<8x64xf32> to vector<8xf32>
    %161 = vector.shape_cast %160 : vector<8xf32> to vector<8x1xf32>
    %cst_60 = arith.constant 6.400000e+01 : f32
    %162 = vector.broadcast %cst_60 : f32 to vector<8x1xf32>
    %163 = arith.divf %161, %162 : vector<8x1xf32>
    %164 = vector.broadcast %156 : vector<8x1xf32> to vector<8x64xf32>
    %165 = arith.subf %150, %164 : vector<8x64xf32>
    %cst_61 = arith.constant 9.99999974E-6 : f32
    %166 = vector.broadcast %cst_61 : f32 to vector<8x1xf32>
    %167 = arith.addf %163, %166 : vector<8x1xf32>
    %168 = math.rsqrt %167 : vector<8x1xf32>
    %169 = vector.broadcast %168 : vector<8x1xf32> to vector<8x64xf32>
    %170 = arith.mulf %165, %169 : vector<8x64xf32>
    %171 = vector.broadcast %151 : vector<1x64xf32> to vector<8x64xf32>
    %172 = arith.mulf %170, %171 : vector<8x64xf32>
    %173 = vector.broadcast %152 : vector<1x64xf32> to vector<8x64xf32>
    %174 = arith.addf %172, %173 : vector<8x64xf32>
    %c0_62 = arith.constant 0 : index
    %c0_63 = arith.constant 0 : index
    %175 = vector.load %arg13[%c0_62, %c0_63] : memref<64x64xbf16, #tpu.memory_space<vmem>>, vector<64x64xbf16>
    %176 = arith.truncf %174 : vector<8x64xf32> to vector<8x64xbf16>
    %cst_64 = arith.constant dense<0.000000e+00> : vector<8x64xf32>
    %177 = tpu.matmul %176, %175, %cst_64 {dimension_numbers = #tpu.dot_dimension_numbers<[1], [0], [0], [1], [0, 0, 1, 1], [], []>} : vector<8x64xbf16>, vector<64x64xbf16>, vector<8x64xf32> -> vector<8x64xf32>
    %c0_65 = arith.constant 0 : index
    %c0_66 = arith.constant 0 : index
    %178 = vector.load %arg14[%c0_65, %c0_66] : memref<1x64xf32, #tpu.memory_space<vmem>>, vector<1x64xf32>
    %179 = vector.broadcast %178 : vector<1x64xf32> to vector<8x64xf32>
    %180 = arith.addf %177, %179 : vector<8x64xf32>
    %c0_67 = arith.constant 0 : index
    %c0_68 = arith.constant 0 : index
    %181 = vector.load %arg15[%c0_67, %c0_68] : memref<64x128xbf16, #tpu.memory_space<vmem>>, vector<64x128xbf16>
    %182 = arith.truncf %3 : vector<10x64xf32> to vector<10x64xbf16>
    %cst_69 = arith.constant dense<0.000000e+00> : vector<10x128xf32>
    %183 = tpu.matmul %182, %181, %cst_69 {dimension_numbers = #tpu.dot_dimension_numbers<[1], [0], [0], [1], [0, 0, 1, 1], [], []>} : vector<10x64xbf16>, vector<64x128xbf16>, vector<10x128xf32> -> vector<10x128xf32>
    %c0_70 = arith.constant 0 : index
    %c0_71 = arith.constant 0 : index
    %184 = vector.load %arg16[%c0_70, %c0_71] : memref<1x128xf32, #tpu.memory_space<vmem>>, vector<1x128xf32>
    %185 = vector.broadcast %184 : vector<1x128xf32> to vector<10x128xf32>
    %186 = arith.addf %183, %185 : vector<10x128xf32>
    %187 = vector.extract_strided_slice %186 {offsets = [0, 0], sizes = [10, 64], strides = [1, 1]} : vector<10x128xf32> to vector<10x64xf32>
    %188 = vector.extract_strided_slice %186 {offsets = [0, 64], sizes = [10, 64], strides = [1, 1]} : vector<10x128xf32> to vector<10x64xf32>
    %c0_72 = arith.constant 0 : index
    %c0_73 = arith.constant 0 : index
    %189 = vector.load %arg17[%c0_72, %c0_73] : memref<64x64xbf16, #tpu.memory_space<vmem>>, vector<64x64xbf16>
    %c0_74 = arith.constant 0 : index
    %c0_75 = arith.constant 0 : index
    %190 = vector.load %arg18[%c0_74, %c0_75] : memref<1x64xf32, #tpu.memory_space<vmem>>, vector<1x64xf32>
    %191 = vector.extract_strided_slice %180 {offsets = [0, 0], sizes = [8, 16], strides = [1, 1]} : vector<8x64xf32> to vector<8x16xf32>
    %192 = arith.truncf %191 : vector<8x16xf32> to vector<8x16xbf16>
    %193 = vector.extract_strided_slice %187 {offsets = [0, 0], sizes = [10, 16], strides = [1, 1]} : vector<10x64xf32> to vector<10x16xf32>
    %194 = arith.truncf %193 : vector<10x16xf32> to vector<10x16xbf16>
    %195 = vector.extract_strided_slice %188 {offsets = [0, 0], sizes = [10, 16], strides = [1, 1]} : vector<10x64xf32> to vector<10x16xf32>
    %196 = arith.truncf %195 : vector<10x16xf32> to vector<10x16xbf16>
    %cst_76 = arith.constant dense<0.000000e+00> : vector<8x10xf32>
    %197 = tpu.matmul %192, %194, %cst_76 {dimension_numbers = #tpu.dot_dimension_numbers<[1], [1], [0], [0], [0, 0, 1, 0], [], []>} : vector<8x16xbf16>, vector<10x16xbf16>, vector<8x10xf32> -> vector<8x10xf32>
    %cst_77 = arith.constant 2.500000e-01 : f32
    %198 = vector.broadcast %cst_77 : f32 to vector<8x10xf32>
    %199 = arith.mulf %197, %198 : vector<8x10xf32>
    %200 = vector.broadcast %9 : vector<1x10xf32> to vector<8x10xf32>
    %201 = arith.addf %199, %200 : vector<8x10xf32>
    %cst_78 = arith.constant dense<0xFF800000> : vector<8xf32>
    %202 = vector.multi_reduction <maximumf>, %201, %cst_78 [1] : vector<8x10xf32> to vector<8xf32>
    %203 = vector.shape_cast %202 : vector<8xf32> to vector<8x1xf32>
    %204 = vector.broadcast %203 : vector<8x1xf32> to vector<8x10xf32>
    %205 = arith.subf %201, %204 : vector<8x10xf32>
    %206 = math.exp %205 : vector<8x10xf32>
    %cst_79 = arith.constant dense<0.000000e+00> : vector<8xf32>
    %207 = vector.multi_reduction <add>, %206, %cst_79 [1] : vector<8x10xf32> to vector<8xf32>
    %208 = vector.shape_cast %207 : vector<8xf32> to vector<8x1xf32>
    %209 = tpu.reciprocal %208 {approx = true} : vector<8x1xf32> -> vector<8x1xf32>
    %210 = vector.broadcast %209 : vector<8x1xf32> to vector<8x10xf32>
    %211 = arith.mulf %206, %210 : vector<8x10xf32>
    %212 = arith.truncf %211 : vector<8x10xf32> to vector<8x10xbf16>
    %cst_80 = arith.constant dense<0.000000e+00> : vector<8x16xf32>
    %213 = tpu.matmul %212, %196, %cst_80 {dimension_numbers = #tpu.dot_dimension_numbers<[1], [0], [0], [1], [0, 0, 1, 1], [], []>} : vector<8x10xbf16>, vector<10x16xbf16>, vector<8x16xf32> -> vector<8x16xf32>
    %214 = vector.extract_strided_slice %189 {offsets = [0, 0], sizes = [16, 64], strides = [1, 1]} : vector<64x64xbf16> to vector<16x64xbf16>
    %215 = arith.truncf %213 : vector<8x16xf32> to vector<8x16xbf16>
    %cst_81 = arith.constant dense<0.000000e+00> : vector<8x64xf32>
    %216 = tpu.matmul %215, %214, %cst_81 {dimension_numbers = #tpu.dot_dimension_numbers<[1], [0], [0], [1], [0, 0, 1, 1], [], []>} : vector<8x16xbf16>, vector<16x64xbf16>, vector<8x64xf32> -> vector<8x64xf32>
    %217 = vector.extract_strided_slice %180 {offsets = [0, 16], sizes = [8, 16], strides = [1, 1]} : vector<8x64xf32> to vector<8x16xf32>
    %218 = arith.truncf %217 : vector<8x16xf32> to vector<8x16xbf16>
    %219 = vector.extract_strided_slice %187 {offsets = [0, 16], sizes = [10, 16], strides = [1, 1]} : vector<10x64xf32> to vector<10x16xf32>
    %220 = arith.truncf %219 : vector<10x16xf32> to vector<10x16xbf16>
    %221 = vector.extract_strided_slice %188 {offsets = [0, 16], sizes = [10, 16], strides = [1, 1]} : vector<10x64xf32> to vector<10x16xf32>
    %222 = arith.truncf %221 : vector<10x16xf32> to vector<10x16xbf16>
    %cst_82 = arith.constant dense<0.000000e+00> : vector<8x10xf32>
    %223 = tpu.matmul %218, %220, %cst_82 {dimension_numbers = #tpu.dot_dimension_numbers<[1], [1], [0], [0], [0, 0, 1, 0], [], []>} : vector<8x16xbf16>, vector<10x16xbf16>, vector<8x10xf32> -> vector<8x10xf32>
    %cst_83 = arith.constant 2.500000e-01 : f32
    %224 = vector.broadcast %cst_83 : f32 to vector<8x10xf32>
    %225 = arith.mulf %223, %224 : vector<8x10xf32>
    %226 = vector.broadcast %9 : vector<1x10xf32> to vector<8x10xf32>
    %227 = arith.addf %225, %226 : vector<8x10xf32>
    %cst_84 = arith.constant dense<0xFF800000> : vector<8xf32>
    %228 = vector.multi_reduction <maximumf>, %227, %cst_84 [1] : vector<8x10xf32> to vector<8xf32>
    %229 = vector.shape_cast %228 : vector<8xf32> to vector<8x1xf32>
    %230 = vector.broadcast %229 : vector<8x1xf32> to vector<8x10xf32>
    %231 = arith.subf %227, %230 : vector<8x10xf32>
    %232 = math.exp %231 : vector<8x10xf32>
    %cst_85 = arith.constant dense<0.000000e+00> : vector<8xf32>
    %233 = vector.multi_reduction <add>, %232, %cst_85 [1] : vector<8x10xf32> to vector<8xf32>
    %234 = vector.shape_cast %233 : vector<8xf32> to vector<8x1xf32>
    %235 = tpu.reciprocal %234 {approx = true} : vector<8x1xf32> -> vector<8x1xf32>
    %236 = vector.broadcast %235 : vector<8x1xf32> to vector<8x10xf32>
    %237 = arith.mulf %232, %236 : vector<8x10xf32>
    %238 = arith.truncf %237 : vector<8x10xf32> to vector<8x10xbf16>
    %cst_86 = arith.constant dense<0.000000e+00> : vector<8x16xf32>
    %239 = tpu.matmul %238, %222, %cst_86 {dimension_numbers = #tpu.dot_dimension_numbers<[1], [0], [0], [1], [0, 0, 1, 1], [], []>} : vector<8x10xbf16>, vector<10x16xbf16>, vector<8x16xf32> -> vector<8x16xf32>
    %240 = vector.extract_strided_slice %189 {offsets = [16, 0], sizes = [16, 64], strides = [1, 1]} : vector<64x64xbf16> to vector<16x64xbf16>
    %241 = arith.truncf %239 : vector<8x16xf32> to vector<8x16xbf16>
    %cst_87 = arith.constant dense<0.000000e+00> : vector<8x64xf32>
    %242 = tpu.matmul %241, %240, %cst_87 {dimension_numbers = #tpu.dot_dimension_numbers<[1], [0], [0], [1], [0, 0, 1, 1], [], []>} : vector<8x16xbf16>, vector<16x64xbf16>, vector<8x64xf32> -> vector<8x64xf32>
    %243 = arith.addf %216, %242 : vector<8x64xf32>
    %244 = vector.extract_strided_slice %180 {offsets = [0, 32], sizes = [8, 16], strides = [1, 1]} : vector<8x64xf32> to vector<8x16xf32>
    %245 = arith.truncf %244 : vector<8x16xf32> to vector<8x16xbf16>
    %246 = vector.extract_strided_slice %187 {offsets = [0, 32], sizes = [10, 16], strides = [1, 1]} : vector<10x64xf32> to vector<10x16xf32>
    %247 = arith.truncf %246 : vector<10x16xf32> to vector<10x16xbf16>
    %248 = vector.extract_strided_slice %188 {offsets = [0, 32], sizes = [10, 16], strides = [1, 1]} : vector<10x64xf32> to vector<10x16xf32>
    %249 = arith.truncf %248 : vector<10x16xf32> to vector<10x16xbf16>
    %cst_88 = arith.constant dense<0.000000e+00> : vector<8x10xf32>
    %250 = tpu.matmul %245, %247, %cst_88 {dimension_numbers = #tpu.dot_dimension_numbers<[1], [1], [0], [0], [0, 0, 1, 0], [], []>} : vector<8x16xbf16>, vector<10x16xbf16>, vector<8x10xf32> -> vector<8x10xf32>
    %cst_89 = arith.constant 2.500000e-01 : f32
    %251 = vector.broadcast %cst_89 : f32 to vector<8x10xf32>
    %252 = arith.mulf %250, %251 : vector<8x10xf32>
    %253 = vector.broadcast %9 : vector<1x10xf32> to vector<8x10xf32>
    %254 = arith.addf %252, %253 : vector<8x10xf32>
    %cst_90 = arith.constant dense<0xFF800000> : vector<8xf32>
    %255 = vector.multi_reduction <maximumf>, %254, %cst_90 [1] : vector<8x10xf32> to vector<8xf32>
    %256 = vector.shape_cast %255 : vector<8xf32> to vector<8x1xf32>
    %257 = vector.broadcast %256 : vector<8x1xf32> to vector<8x10xf32>
    %258 = arith.subf %254, %257 : vector<8x10xf32>
    %259 = math.exp %258 : vector<8x10xf32>
    %cst_91 = arith.constant dense<0.000000e+00> : vector<8xf32>
    %260 = vector.multi_reduction <add>, %259, %cst_91 [1] : vector<8x10xf32> to vector<8xf32>
    %261 = vector.shape_cast %260 : vector<8xf32> to vector<8x1xf32>
    %262 = tpu.reciprocal %261 {approx = true} : vector<8x1xf32> -> vector<8x1xf32>
    %263 = vector.broadcast %262 : vector<8x1xf32> to vector<8x10xf32>
    %264 = arith.mulf %259, %263 : vector<8x10xf32>
    %265 = arith.truncf %264 : vector<8x10xf32> to vector<8x10xbf16>
    %cst_92 = arith.constant dense<0.000000e+00> : vector<8x16xf32>
    %266 = tpu.matmul %265, %249, %cst_92 {dimension_numbers = #tpu.dot_dimension_numbers<[1], [0], [0], [1], [0, 0, 1, 1], [], []>} : vector<8x10xbf16>, vector<10x16xbf16>, vector<8x16xf32> -> vector<8x16xf32>
    %267 = vector.extract_strided_slice %189 {offsets = [32, 0], sizes = [16, 64], strides = [1, 1]} : vector<64x64xbf16> to vector<16x64xbf16>
    %268 = arith.truncf %266 : vector<8x16xf32> to vector<8x16xbf16>
    %cst_93 = arith.constant dense<0.000000e+00> : vector<8x64xf32>
    %269 = tpu.matmul %268, %267, %cst_93 {dimension_numbers = #tpu.dot_dimension_numbers<[1], [0], [0], [1], [0, 0, 1, 1], [], []>} : vector<8x16xbf16>, vector<16x64xbf16>, vector<8x64xf32> -> vector<8x64xf32>
    %270 = arith.addf %243, %269 : vector<8x64xf32>
    %271 = vector.extract_strided_slice %180 {offsets = [0, 48], sizes = [8, 16], strides = [1, 1]} : vector<8x64xf32> to vector<8x16xf32>
    %272 = arith.truncf %271 : vector<8x16xf32> to vector<8x16xbf16>
    %273 = vector.extract_strided_slice %187 {offsets = [0, 48], sizes = [10, 16], strides = [1, 1]} : vector<10x64xf32> to vector<10x16xf32>
    %274 = arith.truncf %273 : vector<10x16xf32> to vector<10x16xbf16>
    %275 = vector.extract_strided_slice %188 {offsets = [0, 48], sizes = [10, 16], strides = [1, 1]} : vector<10x64xf32> to vector<10x16xf32>
    %276 = arith.truncf %275 : vector<10x16xf32> to vector<10x16xbf16>
    %cst_94 = arith.constant dense<0.000000e+00> : vector<8x10xf32>
    %277 = tpu.matmul %272, %274, %cst_94 {dimension_numbers = #tpu.dot_dimension_numbers<[1], [1], [0], [0], [0, 0, 1, 0], [], []>} : vector<8x16xbf16>, vector<10x16xbf16>, vector<8x10xf32> -> vector<8x10xf32>
    %cst_95 = arith.constant 2.500000e-01 : f32
    %278 = vector.broadcast %cst_95 : f32 to vector<8x10xf32>
    %279 = arith.mulf %277, %278 : vector<8x10xf32>
    %280 = vector.broadcast %9 : vector<1x10xf32> to vector<8x10xf32>
    %281 = arith.addf %279, %280 : vector<8x10xf32>
    %cst_96 = arith.constant dense<0xFF800000> : vector<8xf32>
    %282 = vector.multi_reduction <maximumf>, %281, %cst_96 [1] : vector<8x10xf32> to vector<8xf32>
    %283 = vector.shape_cast %282 : vector<8xf32> to vector<8x1xf32>
    %284 = vector.broadcast %283 : vector<8x1xf32> to vector<8x10xf32>
    %285 = arith.subf %281, %284 : vector<8x10xf32>
    %286 = math.exp %285 : vector<8x10xf32>
    %cst_97 = arith.constant dense<0.000000e+00> : vector<8xf32>
    %287 = vector.multi_reduction <add>, %286, %cst_97 [1] : vector<8x10xf32> to vector<8xf32>
    %288 = vector.shape_cast %287 : vector<8xf32> to vector<8x1xf32>
    %289 = tpu.reciprocal %288 {approx = true} : vector<8x1xf32> -> vector<8x1xf32>
    %290 = vector.broadcast %289 : vector<8x1xf32> to vector<8x10xf32>
    %291 = arith.mulf %286, %290 : vector<8x10xf32>
    %292 = arith.truncf %291 : vector<8x10xf32> to vector<8x10xbf16>
    %cst_98 = arith.constant dense<0.000000e+00> : vector<8x16xf32>
    %293 = tpu.matmul %292, %276, %cst_98 {dimension_numbers = #tpu.dot_dimension_numbers<[1], [0], [0], [1], [0, 0, 1, 1], [], []>} : vector<8x10xbf16>, vector<10x16xbf16>, vector<8x16xf32> -> vector<8x16xf32>
    %294 = vector.extract_strided_slice %189 {offsets = [48, 0], sizes = [16, 64], strides = [1, 1]} : vector<64x64xbf16> to vector<16x64xbf16>
    %295 = arith.truncf %293 : vector<8x16xf32> to vector<8x16xbf16>
    %cst_99 = arith.constant dense<0.000000e+00> : vector<8x64xf32>
    %296 = tpu.matmul %295, %294, %cst_99 {dimension_numbers = #tpu.dot_dimension_numbers<[1], [0], [0], [1], [0, 0, 1, 1], [], []>} : vector<8x16xbf16>, vector<16x64xbf16>, vector<8x64xf32> -> vector<8x64xf32>
    %297 = arith.addf %270, %296 : vector<8x64xf32>
    %298 = vector.broadcast %190 : vector<1x64xf32> to vector<8x64xf32>
    %299 = arith.addf %297, %298 : vector<8x64xf32>
    %300 = arith.addf %150, %299 : vector<8x64xf32>
    %c0_100 = arith.constant 0 : index
    %c0_101 = arith.constant 0 : index
    %301 = vector.load %arg19[%c0_100, %c0_101] : memref<1x64xf32, #tpu.memory_space<vmem>>, vector<1x64xf32>
    %c0_102 = arith.constant 0 : index
    %c0_103 = arith.constant 0 : index
    %302 = vector.load %arg20[%c0_102, %c0_103] : memref<1x64xf32, #tpu.memory_space<vmem>>, vector<1x64xf32>
    %cst_104 = arith.constant dense<0.000000e+00> : vector<8xf32>
    %303 = vector.multi_reduction <add>, %300, %cst_104 [1] : vector<8x64xf32> to vector<8xf32>
    %304 = vector.shape_cast %303 : vector<8xf32> to vector<8x1xf32>
    %cst_105 = arith.constant 6.400000e+01 : f32
    %305 = vector.broadcast %cst_105 : f32 to vector<8x1xf32>
    %306 = arith.divf %304, %305 : vector<8x1xf32>
    %307 = vector.broadcast %306 : vector<8x1xf32> to vector<8x64xf32>
    %308 = arith.subf %300, %307 : vector<8x64xf32>
    %309 = arith.mulf %308, %308 : vector<8x64xf32>
    %cst_106 = arith.constant dense<0.000000e+00> : vector<8xf32>
    %310 = vector.multi_reduction <add>, %309, %cst_106 [1] : vector<8x64xf32> to vector<8xf32>
    %311 = vector.shape_cast %310 : vector<8xf32> to vector<8x1xf32>
    %cst_107 = arith.constant 6.400000e+01 : f32
    %312 = vector.broadcast %cst_107 : f32 to vector<8x1xf32>
    %313 = arith.divf %311, %312 : vector<8x1xf32>
    %314 = vector.broadcast %306 : vector<8x1xf32> to vector<8x64xf32>
    %315 = arith.subf %300, %314 : vector<8x64xf32>
    %cst_108 = arith.constant 9.99999974E-6 : f32
    %316 = vector.broadcast %cst_108 : f32 to vector<8x1xf32>
    %317 = arith.addf %313, %316 : vector<8x1xf32>
    %318 = math.rsqrt %317 : vector<8x1xf32>
    %319 = vector.broadcast %318 : vector<8x1xf32> to vector<8x64xf32>
    %320 = arith.mulf %315, %319 : vector<8x64xf32>
    %321 = vector.broadcast %301 : vector<1x64xf32> to vector<8x64xf32>
    %322 = arith.mulf %320, %321 : vector<8x64xf32>
    %323 = vector.broadcast %302 : vector<1x64xf32> to vector<8x64xf32>
    %324 = arith.addf %322, %323 : vector<8x64xf32>
    %c0_109 = arith.constant 0 : index
    %c0_110 = arith.constant 0 : index
    %325 = vector.load %arg21[%c0_109, %c0_110] : memref<64x128xbf16, #tpu.memory_space<vmem>>, vector<64x128xbf16>
    %326 = arith.truncf %324 : vector<8x64xf32> to vector<8x64xbf16>
    %cst_111 = arith.constant dense<0.000000e+00> : vector<8x128xf32>
    %327 = tpu.matmul %326, %325, %cst_111 {dimension_numbers = #tpu.dot_dimension_numbers<[1], [0], [0], [1], [0, 0, 1, 1], [], []>} : vector<8x64xbf16>, vector<64x128xbf16>, vector<8x128xf32> -> vector<8x128xf32>
    %c0_112 = arith.constant 0 : index
    %c0_113 = arith.constant 0 : index
    %328 = vector.load %arg22[%c0_112, %c0_113] : memref<1x128xf32, #tpu.memory_space<vmem>>, vector<1x128xf32>
    %329 = vector.broadcast %328 : vector<1x128xf32> to vector<8x128xf32>
    %330 = arith.addf %327, %329 : vector<8x128xf32>
    %cst_114 = arith.constant 0.000000e+00 : f32
    %331 = vector.broadcast %cst_114 : f32 to vector<8x128xf32>
    %332 = arith.maximumf %330, %331 : vector<8x128xf32>
    %c0_115 = arith.constant 0 : index
    %c0_116 = arith.constant 0 : index
    %333 = vector.load %arg23[%c0_115, %c0_116] : memref<128x64xbf16, #tpu.memory_space<vmem>>, vector<128x64xbf16>
    %334 = arith.truncf %332 : vector<8x128xf32> to vector<8x128xbf16>
    %cst_117 = arith.constant dense<0.000000e+00> : vector<8x64xf32>
    %335 = tpu.matmul %334, %333, %cst_117 {dimension_numbers = #tpu.dot_dimension_numbers<[1], [0], [0], [1], [0, 0, 1, 1], [], []>} : vector<8x128xbf16>, vector<128x64xbf16>, vector<8x64xf32> -> vector<8x64xf32>
    %c0_118 = arith.constant 0 : index
    %c0_119 = arith.constant 0 : index
    %336 = vector.load %arg24[%c0_118, %c0_119] : memref<1x64xf32, #tpu.memory_space<vmem>>, vector<1x64xf32>
    %337 = vector.broadcast %336 : vector<1x64xf32> to vector<8x64xf32>
    %338 = arith.addf %335, %337 : vector<8x64xf32>
    %339 = arith.addf %300, %338 : vector<8x64xf32>
    %c0_120 = arith.constant 0 : index
    %c0_121 = arith.constant 0 : index
    %c0_122 = arith.constant 0 : index
    %340 = vector.load %arg25[%c0_120, %c0_121, %c0_122] : memref<1x8x64xf32, #tpu.memory_space<vmem>>, vector<1x8x64xf32>
    %341 = vector.shape_cast %340 : vector<1x8x64xf32> to vector<8x64xf32>
    %342 = vector.shape_cast %339 : vector<8x64xf32> to vector<1x8x64xf32>
    tpu.vector_store %arg25[%c0_120, %c0_121, %c0_122], %342 {strides = array<i32>} : memref<1x8x64xf32, #tpu.memory_space<vmem>>, vector<1x8x64xf32>,
    return
  }
  func.func @transform_0(%arg0: i32) -> (i32, i32, i32) {
    %c0_i32 = arith.constant 0 : i32
    %c0_i32_0 = arith.constant 0 : i32
    %c0_i32_1 = arith.constant 0 : i32
    return %arg0, %c0_i32, %c0_i32_0 : i32, i32, i32
  }
  func.func @transform_1(%arg0: i32) -> (i32, i32, i32) {
    %c0_i32 = arith.constant 0 : i32
    %c0_i32_0 = arith.constant 0 : i32
    %c0_i32_1 = arith.constant 0 : i32
    return %arg0, %c0_i32, %c0_i32_0 : i32, i32, i32
  }
  func.func @transform_2(%arg0: i32) -> (i32, i32, i32) {
    %c0_i32 = arith.constant 0 : i32
    %c0_i32_0 = arith.constant 0 : i32
    %c0_i32_1 = arith.constant 0 : i32
    return %arg0, %c0_i32, %c0_i32_0 : i32, i32, i32
  }
  func.func @transform_3(%arg0: i32) -> (i32, i32, i32) {
    %c0_i32 = arith.constant 0 : i32
    %c0_i32_0 = arith.constant 0 : i32
    %c0_i32_1 = arith.constant 0 : i32
    return %arg0, %c0_i32, %c0_i32_0 : i32, i32, i32
  }
  func.func @transform_4(%arg0: i32) -> (i32, i32) {
    %c0_i32 = arith.constant 0 : i32
    %c0_i32_0 = arith.constant 0 : i32
    %c0_i32_1 = arith.constant 0 : i32
    return %c0_i32, %c0_i32_0 : i32, i32
  }
  func.func @transform_5(%arg0: i32) -> (i32, i32) {
    %c0_i32 = arith.constant 0 : i32
    %c0_i32_0 = arith.constant 0 : i32
    %c0_i32_1 = arith.constant 0 : i32
    return %c0_i32, %c0_i32_0 : i32, i32
  }
  func.func @transform_6(%arg0: i32) -> (i32, i32) {
    %c0_i32 = arith.constant 0 : i32
    %c0_i32_0 = arith.constant 0 : i32
    %c0_i32_1 = arith.constant 0 : i32
    return %c0_i32, %c0_i32_0 : i32, i32
  }
  func.func @transform_7(%arg0: i32) -> (i32, i32) {
    %c0_i32 = arith.constant 0 : i32
    %c0_i32_0 = arith.constant 0 : i32
    %c0_i32_1 = arith.constant 0 : i32
    return %c0_i32, %c0_i32_0 : i32, i32
  }
  func.func @transform_8(%arg0: i32) -> (i32, i32) {
    %c0_i32 = arith.constant 0 : i32
    %c0_i32_0 = arith.constant 0 : i32
    %c0_i32_1 = arith.constant 0 : i32
    return %c0_i32, %c0_i32_0 : i32, i32
  }
  func.func @transform_9(%arg0: i32) -> (i32, i32) {
    %c0_i32 = arith.constant 0 : i32
    %c0_i32_0 = arith.constant 0 : i32
    %c0_i32_1 = arith.constant 0 : i32
    return %c0_i32, %c0_i32_0 : i32, i32
  }
  func.func @transform_10(%arg0: i32) -> (i32, i32) {
    %c0_i32 = arith.constant 0 : i32
    %c0_i32_0 = arith.constant 0 : i32
    %c0_i32_1 = arith.constant 0 : i32
    return %c0_i32, %c0_i32_0 : i32, i32
  }
  func.func @transform_11(%arg0: i32) -> (i32, i32) {
    %c0_i32 = arith.constant 0 : i32
    %c0_i32_0 = arith.constant 0 : i32
    %c0_i32_1 = arith.constant 0 : i32
    return %c0_i32, %c0_i32_0 : i32, i32
  }
  func.func @transform_12(%arg0: i32) -> (i32, i32) {
    %c0_i32 = arith.constant 0 : i32
    %c0_i32_0 = arith.constant 0 : i32
    %c0_i32_1 = arith.constant 0 : i32
    return %c0_i32, %c0_i32_0 : i32, i32
  }
  func.func @transform_13(%arg0: i32) -> (i32, i32) {
    %c0_i32 = arith.constant 0 : i32
    %c0_i32_0 = arith.constant 0 : i32
    %c0_i32_1 = arith.constant 0 : i32
    return %c0_i32, %c0_i32_0 : i32, i32
  }
  func.func @transform_14(%arg0: i32) -> (i32, i32) {
    %c0_i32 = arith.constant 0 : i32
    %c0_i32_0 = arith.constant 0 : i32
    %c0_i32_1 = arith.constant 0 : i32
    return %c0_i32, %c0_i32_0 : i32, i32
  }
  func.func @transform_15(%arg0: i32) -> (i32, i32) {
    %c0_i32 = arith.constant 0 : i32
    %c0_i32_0 = arith.constant 0 : i32
    %c0_i32_1 = arith.constant 0 : i32
    return %c0_i32, %c0_i32_0 : i32, i32
  }
  func.func @transform_16(%arg0: i32) -> (i32, i32) {
    %c0_i32 = arith.constant 0 : i32
    %c0_i32_0 = arith.constant 0 : i32
    %c0_i32_1 = arith.constant 0 : i32
    return %c0_i32, %c0_i32_0 : i32, i32
  }
  func.func @transform_17(%arg0: i32) -> (i32, i32) {
    %c0_i32 = arith.constant 0 : i32
    %c0_i32_0 = arith.constant 0 : i32
    %c0_i32_1 = arith.constant 0 : i32
    return %c0_i32, %c0_i32_0 : i32, i32
  }
  func.func @transform_18(%arg0: i32) -> (i32, i32) {
    %c0_i32 = arith.constant 0 : i32
    %c0_i32_0 = arith.constant 0 : i32
    %c0_i32_1 = arith.constant 0 : i32
    return %c0_i32, %c0_i32_0 : i32, i32
  }
  func.func @transform_19(%arg0: i32) -> (i32, i32) {
    %c0_i32 = arith.constant 0 : i32
    %c0_i32_0 = arith.constant 0 : i32
    %c0_i32_1 = arith.constant 0 : i32
    return %c0_i32, %c0_i32_0 : i32, i32
  }
  func.func @transform_20(%arg0: i32) -> (i32, i32) {
    %c0_i32 = arith.constant 0 : i32
    %c0_i32_0 = arith.constant 0 : i32
    %c0_i32_1 = arith.constant 0 : i32
    return %c0_i32, %c0_i32_0 : i32, i32
  }
  func.func @transform_21(%arg0: i32) -> (i32, i32) {
    %c0_i32 = arith.constant 0 : i32
    %c0_i32_0 = arith.constant 0 : i32
    %c0_i32_1 = arith.constant 0 : i32
    return %c0_i32, %c0_i32_0 : i32, i32
  }
  func.func @transform_22(%arg0: i32) -> (i32, i32) {
    %c0_i32 = arith.constant 0 : i32
    %c0_i32_0 = arith.constant 0 : i32
    %c0_i32_1 = arith.constant 0 : i32
    return %c0_i32, %c0_i32_0 : i32, i32
  }
  func.func @transform_23(%arg0: i32) -> (i32, i32) {
    %c0_i32 = arith.constant 0 : i32
    %c0_i32_0 = arith.constant 0 : i32
    %c0_i32_1 = arith.constant 0 : i32
    return %c0_i32, %c0_i32_0 : i32, i32
  }
  func.func @transform_24(%arg0: i32) -> (i32, i32, i32) {
    %c0_i32 = arith.constant 0 : i32
    %c0_i32_0 = arith.constant 0 : i32
    %c0_i32_1 = arith.constant 0 : i32
    return %arg0, %c0_i32, %c0_i32_0 : i32, i32, i32
  }
}

module attributes {stable_mosaic.version = 11 : i64} {
  func.func @_decoder_layer_kernel(%arg0: i32, %arg1: memref<1x8x64xf32, #tpu.memory_space<vmem>>, %arg2: memref<1x10x64xf32, #tpu.memory_space<vmem>>, %arg3: memref<1x8x8xf32, #tpu.memory_space<vmem>>, %arg4: memref<1x1x10xf32, #tpu.memory_space<vmem>>, %arg5: memref<1x64xf32, #tpu.memory_space<vmem>>, %arg6: memref<1x64xf32, #tpu.memory_space<vmem>>, %arg7: memref<64x192xbf16, #tpu.memory_space<vmem>>, %arg8: memref<1x192xf32, #tpu.memory_space<vmem>>, %arg9: memref<64x64xbf16, #tpu.memory_space<vmem>>, %arg10: memref<1x64xf32, #tpu.memory_space<vmem>>, %arg11: memref<1x64xf32, #tpu.memory_space<vmem>>, %arg12: memref<1x64xf32, #tpu.memory_space<vmem>>, %arg13: memref<64x64xbf16, #tpu.memory_space<vmem>>, %arg14: memref<1x64xf32, #tpu.memory_space<vmem>>, %arg15: memref<64x128xbf16, #tpu.memory_space<vmem>>, %arg16: memref<1x128xf32, #tpu.memory_space<vmem>>, %arg17: memref<64x64xbf16, #tpu.memory_space<vmem>>, %arg18: memref<1x64xf32, #tpu.memory_space<vmem>>, %arg19: memref<1x64xf32, #tpu.memory_space<vmem>>, %arg20: memref<1x64xf32, #tpu.memory_space<vmem>>, %arg21: memref<64x128xbf16, #tpu.memory_space<vmem>>, %arg22: memref<1x128xf32, #tpu.memory_space<vmem>>, %arg23: memref<128x64xbf16, #tpu.memory_space<vmem>>, %arg24: memref<1x64xf32, #tpu.memory_space<vmem>>, %arg25: memref<1x8x64xf32, #tpu.memory_space<vmem>>) attributes {dimension_semantics = [#tpu.dimension_semantics<parallel>], iteration_bounds = array<i64: 2>, scalar_prefetch = 0 : i64, scratch_operands = 0 : i64, tpu.core_type = #tpu.core_type<tc>, window_params = [{transform_indices = @transform_0, window_bounds = array<i64: 1, 8, 64>}, {transform_indices = @transform_1, window_bounds = array<i64: 1, 10, 64>}, {transform_indices = @transform_2, window_bounds = array<i64: 1, 8, 8>}, {transform_indices = @transform_3, window_bounds = array<i64: 1, 1, 10>}, {pipeline_mode = #tpu.pipeline_mode<synchronous>, transform_indices = @transform_4, window_bounds = array<i64: 1, 64>}, {pipeline_mode = #tpu.pipeline_mode<synchronous>, transform_indices = @transform_5, window_bounds = array<i64: 1, 64>}, {pipeline_mode = #tpu.pipeline_mode<synchronous>, transform_indices = @transform_6, window_bounds = array<i64: 64, 192>}, {pipeline_mode = #tpu.pipeline_mode<synchronous>, transform_indices = @transform_7, window_bounds = array<i64: 1, 192>}, {pipeline_mode = #tpu.pipeline_mode<synchronous>, transform_indices = @transform_8, window_bounds = array<i64: 64, 64>}, {pipeline_mode = #tpu.pipeline_mode<synchronous>, transform_indices = @transform_9, window_bounds = array<i64: 1, 64>}, {pipeline_mode = #tpu.pipeline_mode<synchronous>, transform_indices = @transform_10, window_bounds = array<i64: 1, 64>}, {pipeline_mode = #tpu.pipeline_mode<synchronous>, transform_indices = @transform_11, window_bounds = array<i64: 1, 64>}, {pipeline_mode = #tpu.pipeline_mode<synchronous>, transform_indices = @transform_12, window_bounds = array<i64: 64, 64>}, {pipeline_mode = #tpu.pipeline_mode<synchronous>, transform_indices = @transform_13, window_bounds = array<i64: 1, 64>}, {pipeline_mode = #tpu.pipeline_mode<synchronous>, transform_indices = @transform_14, window_bounds = array<i64: 64, 128>}, {pipeline_mode = #tpu.pipeline_mode<synchronous>, transform_indices = @transform_15, window_bounds = array<i64: 1, 128>}, {pipeline_mode = #tpu.pipeline_mode<synchronous>, transform_indices = @transform_16, window_bounds = array<i64: 64, 64>}, {pipeline_mode = #tpu.pipeline_mode<synchronous>, transform_indices = @transform_17, window_bounds = array<i64: 1, 64>}, {pipeline_mode = #tpu.pipeline_mode<synchronous>, transform_indices = @transform_18, window_bounds = array<i64: 1, 64>}, {pipeline_mode = #tpu.pipeline_mode<synchronous>, transform_indices = @transform_19, window_bounds = array<i64: 1, 64>}, {pipeline_mode = #tpu.pipeline_mode<synchronous>, transform_indices = @transform_20, window_bounds = array<i64: 64, 128>}, {pipeline_mode = #tpu.pipeline_mode<synchronous>, transform_indices = @transform_21, window_bounds = array<i64: 1, 128>}, {pipeline_mode = #tpu.pipeline_mode<synchronous>, transform_indices = @transform_22, window_bounds = array<i64: 128, 64>}, {pipeline_mode = #tpu.pipeline_mode<synchronous>, transform_indices = @transform_23, window_bounds = array<i64: 1, 64>}, {transform_indices = @transform_24, window_bounds = array<i64: 1, 8, 64>}]} {
    %c0 = arith.constant 0 : index
    %c0_0 = arith.constant 0 : index
    %c0_1 = arith.constant 0 : index
    %0 = vector.load %arg1[%c0, %c0_0, %c0_1] : memref<1x8x64xf32, #tpu.memory_space<vmem>>, vector<1x8x64xf32>
    %1 = vector.shape_cast %0 : vector<1x8x64xf32> to vector<8x64xf32>
    %c0_2 = arith.constant 0 : index
    %c0_3 = arith.constant 0 : index
    %c0_4 = arith.constant 0 : index
    %2 = vector.load %arg2[%c0_2, %c0_3, %c0_4] : memref<1x10x64xf32, #tpu.memory_space<vmem>>, vector<1x10x64xf32>
    %3 = vector.shape_cast %2 : vector<1x10x64xf32> to vector<10x64xf32>
    %c0_5 = arith.constant 0 : index
    %c0_6 = arith.constant 0 : index
    %c0_7 = arith.constant 0 : index
    %4 = vector.load %arg3[%c0_5, %c0_6, %c0_7] : memref<1x8x8xf32, #tpu.memory_space<vmem>>, vector<1x8x8xf32>
    %5 = vector.shape_cast %4 : vector<1x8x8xf32> to vector<8x8xf32>
    %c0_8 = arith.constant 0 : index
    %c0_9 = arith.constant 0 : index
    %c0_10 = arith.constant 0 : index
    %6 = vector.load %arg4[%c0_8, %c0_9, %c0_10] : memref<1x1x10xf32, #tpu.memory_space<vmem>>, vector<1x1x10xf32>
    %7 = vector.shape_cast %6 : vector<1x1x10xf32> to vector<1x10xf32>
    %cst = arith.constant -1.000000e+09 : f32
    %8 = vector.broadcast %cst : f32 to vector<1x10xf32>
    %9 = arith.mulf %7, %8 : vector<1x10xf32>
    %c0_11 = arith.constant 0 : index
    %c0_12 = arith.constant 0 : index
    %10 = vector.load %arg5[%c0_11, %c0_12] : memref<1x64xf32, #tpu.memory_space<vmem>>, vector<1x64xf32>
    %c0_13 = arith.constant 0 : index
    %c0_14 = arith.constant 0 : index
    %11 = vector.load %arg6[%c0_13, %c0_14] : memref<1x64xf32, #tpu.memory_space<vmem>>, vector<1x64xf32>
    %cst_15 = arith.constant dense<0.000000e+00> : vector<8xf32>
    %12 = vector.multi_reduction <add>, %1, %cst_15 [1] : vector<8x64xf32> to vector<8xf32>
    %13 = vector.shape_cast %12 : vector<8xf32> to vector<8x1xf32>
    %cst_16 = arith.constant 6.400000e+01 : f32
    %14 = vector.broadcast %cst_16 : f32 to vector<8x1xf32>
    %15 = arith.divf %13, %14 : vector<8x1xf32>
    %16 = vector.broadcast %15 : vector<8x1xf32> to vector<8x64xf32>
    %17 = arith.subf %1, %16 : vector<8x64xf32>
    %18 = arith.mulf %17, %17 : vector<8x64xf32>
    %cst_17 = arith.constant dense<0.000000e+00> : vector<8xf32>
    %19 = vector.multi_reduction <add>, %18, %cst_17 [1] : vector<8x64xf32> to vector<8xf32>
    %20 = vector.shape_cast %19 : vector<8xf32> to vector<8x1xf32>
    %cst_18 = arith.constant 6.400000e+01 : f32
    %21 = vector.broadcast %cst_18 : f32 to vector<8x1xf32>
    %22 = arith.divf %20, %21 : vector<8x1xf32>
    %23 = vector.broadcast %15 : vector<8x1xf32> to vector<8x64xf32>
    %24 = arith.subf %1, %23 : vector<8x64xf32>
    %cst_19 = arith.constant 9.99999974E-6 : f32
    %25 = vector.broadcast %cst_19 : f32 to vector<8x1xf32>
    %26 = arith.addf %22, %25 : vector<8x1xf32>
    %27 = math.rsqrt %26 : vector<8x1xf32>
    %28 = vector.broadcast %27 : vector<8x1xf32> to vector<8x64xf32>
    %29 = arith.mulf %24, %28 : vector<8x64xf32>
    %30 = vector.broadcast %10 : vector<1x64xf32> to vector<8x64xf32>
    %31 = arith.mulf %29, %30 : vector<8x64xf32>
    %32 = vector.broadcast %11 : vector<1x64xf32> to vector<8x64xf32>
    %33 = arith.addf %31, %32 : vector<8x64xf32>
    %c0_20 = arith.constant 0 : index
    %c0_21 = arith.constant 0 : index
    %34 = vector.load %arg7[%c0_20, %c0_21] : memref<64x192xbf16, #tpu.memory_space<vmem>>, vector<64x192xbf16>
    %35 = arith.truncf %33 : vector<8x64xf32> to vector<8x64xbf16>
    %cst_22 = arith.constant dense<0.000000e+00> : vector<8x192xf32>
    %36 = tpu.matmul %35, %34, %cst_22 {dimension_numbers = #tpu.dot_dimension_numbers<[1], [0], [0], [1], [0, 0, 1, 1], [], []>} : vector<8x64xbf16>, vector<64x192xbf16>, vector<8x192xf32> -> vector<8x192xf32>
    %c0_23 = arith.constant 0 : index
    %c0_24 = arith.constant 0 : index
    %37 = vector.load %arg8[%c0_23, %c0_24] : memref<1x192xf32, #tpu.memory_space<vmem>>, vector<1x192xf32>
    %38 = vector.broadcast %37 : vector<1x192xf32> to vector<8x192xf32>
    %39 = arith.addf %36, %38 : vector<8x192xf32>
    %40 = vector.extract_strided_slice %39 {offsets = [0, 0], sizes = [8, 64], strides = [1, 1]} : vector<8x192xf32> to vector<8x64xf32>
    %41 = vector.extract_strided_slice %39 {offsets = [0, 64], sizes = [8, 64], strides = [1, 1]} : vector<8x192xf32> to vector<8x64xf32>
    %42 = vector.extract_strided_slice %39 {offsets = [0, 128], sizes = [8, 64], strides = [1, 1]} : vector<8x192xf32> to vector<8x64xf32>
    %c0_25 = arith.constant 0 : index
    %c0_26 = arith.constant 0 : index
    %43 = vector.load %arg9[%c0_25, %c0_26] : memref<64x64xbf16, #tpu.memory_space<vmem>>, vector<64x64xbf16>
    %c0_27 = arith.constant 0 : index
    %c0_28 = arith.constant 0 : index
    %44 = vector.load %arg10[%c0_27, %c0_28] : memref<1x64xf32, #tpu.memory_space<vmem>>, vector<1x64xf32>
    %45 = vector.extract_strided_slice %40 {offsets = [0, 0], sizes = [8, 16], strides = [1, 1]} : vector<8x64xf32> to vector<8x16xf32>
    %46 = arith.truncf %45 : vector<8x16xf32> to vector<8x16xbf16>
    %47 = vector.extract_strided_slice %41 {offsets = [0, 0], sizes = [8, 16], strides = [1, 1]} : vector<8x64xf32> to vector<8x16xf32>
    %48 = arith.truncf %47 : vector<8x16xf32> to vector<8x16xbf16>
    %49 = vector.extract_strided_slice %42 {offsets = [0, 0], sizes = [8, 16], strides = [1, 1]} : vector<8x64xf32> to vector<8x16xf32>
    %50 = arith.truncf %49 : vector<8x16xf32> to vector<8x16xbf16>
    %cst_29 = arith.constant dense<0.000000e+00> : vector<8x8xf32>
    %51 = tpu.matmul %46, %48, %cst_29 {dimension_numbers = #tpu.dot_dimension_numbers<[1], [1], [0], [0], [0, 0, 1, 0], [], []>} : vector<8x16xbf16>, vector<8x16xbf16>, vector<8x8xf32> -> vector<8x8xf32>
    %cst_30 = arith.constant 2.500000e-01 : f32
    %52 = vector.broadcast %cst_30 : f32 to vector<8x8xf32>
    %53 = arith.mulf %51, %52 : vector<8x8xf32>
    %54 = arith.addf %53, %5 : vector<8x8xf32>
    %cst_31 = arith.constant dense<0xFF800000> : vector<8xf32>
    %55 = vector.multi_reduction <maximumf>, %54, %cst_31 [1] : vector<8x8xf32> to vector<8xf32>
    %56 = vector.shape_cast %55 : vector<8xf32> to vector<8x1xf32>
    %57 = vector.broadcast %56 : vector<8x1xf32> to vector<8x8xf32>
    %58 = arith.subf %54, %57 : vector<8x8xf32>
    %59 = math.exp %58 : vector<8x8xf32>
    %cst_32 = arith.constant dense<0.000000e+00> : vector<8xf32>
    %60 = vector.multi_reduction <add>, %59, %cst_32 [1] : vector<8x8xf32> to vector<8xf32>
    %61 = vector.shape_cast %60 : vector<8xf32> to vector<8x1xf32>
    %62 = tpu.reciprocal %61 {approx = true} : vector<8x1xf32> -> vector<8x1xf32>
    %63 = vector.broadcast %62 : vector<8x1xf32> to vector<8x8xf32>
    %64 = arith.mulf %59, %63 : vector<8x8xf32>
    %65 = arith.truncf %64 : vector<8x8xf32> to vector<8x8xbf16>
    %cst_33 = arith.constant dense<0.000000e+00> : vector<8x16xf32>
    %66 = tpu.matmul %65, %50, %cst_33 {dimension_numbers = #tpu.dot_dimension_numbers<[1], [0], [0], [1], [0, 0, 1, 1], [], []>} : vector<8x8xbf16>, vector<8x16xbf16>, vector<8x16xf32> -> vector<8x16xf32>
    %67 = vector.extract_strided_slice %43 {offsets = [0, 0], sizes = [16, 64], strides = [1, 1]} : vector<64x64xbf16> to vector<16x64xbf16>
    %68 = arith.truncf %66 : vector<8x16xf32> to vector<8x16xbf16>
    %cst_34 = arith.constant dense<0.000000e+00> : vector<8x64xf32>
    %69 = tpu.matmul %68, %67, %cst_34 {dimension_numbers = #tpu.dot_dimension_numbers<[1], [0], [0], [1], [0, 0, 1, 1], [], []>} : vector<8x16xbf16>, vector<16x64xbf16>, vector<8x64xf32> -> vector<8x64xf32>
    %70 = vector.extract_strided_slice %40 {offsets = [0, 16], sizes = [8, 16], strides = [1, 1]} : vector<8x64xf32> to vector<8x16xf32>
    %71 = arith.truncf %70 : vector<8x16xf32> to vector<8x16xbf16>
    %72 = vector.extract_strided_slice %41 {offsets = [0, 16], sizes = [8, 16], strides = [1, 1]} : vector<8x64xf32> to vector<8x16xf32>
    %73 = arith.truncf %72 : vector<8x16xf32> to vector<8x16xbf16>
    %74 = vector.extract_strided_slice %42 {offsets = [0, 16], sizes = [8, 16], strides = [1, 1]} : vector<8x64xf32> to vector<8x16xf32>
    %75 = arith.truncf %74 : vector<8x16xf32> to vector<8x16xbf16>
    %cst_35 = arith.constant dense<0.000000e+00> : vector<8x8xf32>
    %76 = tpu.matmul %71, %73, %cst_35 {dimension_numbers = #tpu.dot_dimension_numbers<[1], [1], [0], [0], [0, 0, 1, 0], [], []>} : vector<8x16xbf16>, vector<8x16xbf16>, vector<8x8xf32> -> vector<8x8xf32>
    %cst_36 = arith.constant 2.500000e-01 : f32
    %77 = vector.broadcast %cst_36 : f32 to vector<8x8xf32>
    %78 = arith.mulf %76, %77 : vector<8x8xf32>
    %79 = arith.addf %78, %5 : vector<8x8xf32>
    %cst_37 = arith.constant dense<0xFF800000> : vector<8xf32>
    %80 = vector.multi_reduction <maximumf>, %79, %cst_37 [1] : vector<8x8xf32> to vector<8xf32>
    %81 = vector.shape_cast %80 : vector<8xf32> to vector<8x1xf32>
    %82 = vector.broadcast %81 : vector<8x1xf32> to vector<8x8xf32>
    %83 = arith.subf %79, %82 : vector<8x8xf32>
    %84 = math.exp %83 : vector<8x8xf32>
    %cst_38 = arith.constant dense<0.000000e+00> : vector<8xf32>
    %85 = vector.multi_reduction <add>, %84, %cst_38 [1] : vector<8x8xf32> to vector<8xf32>
    %86 = vector.shape_cast %85 : vector<8xf32> to vector<8x1xf32>
    %87 = tpu.reciprocal %86 {approx = true} : vector<8x1xf32> -> vector<8x1xf32>
    %88 = vector.broadcast %87 : vector<8x1xf32> to vector<8x8xf32>
    %89 = arith.mulf %84, %88 : vector<8x8xf32>
    %90 = arith.truncf %89 : vector<8x8xf32> to vector<8x8xbf16>
    %cst_39 = arith.constant dense<0.000000e+00> : vector<8x16xf32>
    %91 = tpu.matmul %90, %75, %cst_39 {dimension_numbers = #tpu.dot_dimension_numbers<[1], [0], [0], [1], [0, 0, 1, 1], [], []>} : vector<8x8xbf16>, vector<8x16xbf16>, vector<8x16xf32> -> vector<8x16xf32>
    %92 = vector.extract_strided_slice %43 {offsets = [16, 0], sizes = [16, 64], strides = [1, 1]} : vector<64x64xbf16> to vector<16x64xbf16>
    %93 = arith.truncf %91 : vector<8x16xf32> to vector<8x16xbf16>
    %cst_40 = arith.constant dense<0.000000e+00> : vector<8x64xf32>
    %94 = tpu.matmul %93, %92, %cst_40 {dimension_numbers = #tpu.dot_dimension_numbers<[1], [0], [0], [1], [0, 0, 1, 1], [], []>} : vector<8x16xbf16>, vector<16x64xbf16>, vector<8x64xf32> -> vector<8x64xf32>
    %95 = arith.addf %69, %94 : vector<8x64xf32>
    %96 = vector.extract_strided_slice %40 {offsets = [0, 32], sizes = [8, 16], strides = [1, 1]} : vector<8x64xf32> to vector<8x16xf32>
    %97 = arith.truncf %96 : vector<8x16xf32> to vector<8x16xbf16>
    %98 = vector.extract_strided_slice %41 {offsets = [0, 32], sizes = [8, 16], strides = [1, 1]} : vector<8x64xf32> to vector<8x16xf32>
    %99 = arith.truncf %98 : vector<8x16xf32> to vector<8x16xbf16>
    %100 = vector.extract_strided_slice %42 {offsets = [0, 32], sizes = [8, 16], strides = [1, 1]} : vector<8x64xf32> to vector<8x16xf32>
    %101 = arith.truncf %100 : vector<8x16xf32> to vector<8x16xbf16>
    %cst_41 = arith.constant dense<0.000000e+00> : vector<8x8xf32>
    %102 = tpu.matmul %97, %99, %cst_41 {dimension_numbers = #tpu.dot_dimension_numbers<[1], [1], [0], [0], [0, 0, 1, 0], [], []>} : vector<8x16xbf16>, vector<8x16xbf16>, vector<8x8xf32> -> vector<8x8xf32>
    %cst_42 = arith.constant 2.500000e-01 : f32
    %103 = vector.broadcast %cst_42 : f32 to vector<8x8xf32>
    %104 = arith.mulf %102, %103 : vector<8x8xf32>
    %105 = arith.addf %104, %5 : vector<8x8xf32>
    %cst_43 = arith.constant dense<0xFF800000> : vector<8xf32>
    %106 = vector.multi_reduction <maximumf>, %105, %cst_43 [1] : vector<8x8xf32> to vector<8xf32>
    %107 = vector.shape_cast %106 : vector<8xf32> to vector<8x1xf32>
    %108 = vector.broadcast %107 : vector<8x1xf32> to vector<8x8xf32>
    %109 = arith.subf %105, %108 : vector<8x8xf32>
    %110 = math.exp %109 : vector<8x8xf32>
    %cst_44 = arith.constant dense<0.000000e+00> : vector<8xf32>
    %111 = vector.multi_reduction <add>, %110, %cst_44 [1] : vector<8x8xf32> to vector<8xf32>
    %112 = vector.shape_cast %111 : vector<8xf32> to vector<8x1xf32>
    %113 = tpu.reciprocal %112 {approx = true} : vector<8x1xf32> -> vector<8x1xf32>
    %114 = vector.broadcast %113 : vector<8x1xf32> to vector<8x8xf32>
    %115 = arith.mulf %110, %114 : vector<8x8xf32>
    %116 = arith.truncf %115 : vector<8x8xf32> to vector<8x8xbf16>
    %cst_45 = arith.constant dense<0.000000e+00> : vector<8x16xf32>
    %117 = tpu.matmul %116, %101, %cst_45 {dimension_numbers = #tpu.dot_dimension_numbers<[1], [0], [0], [1], [0, 0, 1, 1], [], []>} : vector<8x8xbf16>, vector<8x16xbf16>, vector<8x16xf32> -> vector<8x16xf32>
    %118 = vector.extract_strided_slice %43 {offsets = [32, 0], sizes = [16, 64], strides = [1, 1]} : vector<64x64xbf16> to vector<16x64xbf16>
    %119 = arith.truncf %117 : vector<8x16xf32> to vector<8x16xbf16>
    %cst_46 = arith.constant dense<0.000000e+00> : vector<8x64xf32>
    %120 = tpu.matmul %119, %118, %cst_46 {dimension_numbers = #tpu.dot_dimension_numbers<[1], [0], [0], [1], [0, 0, 1, 1], [], []>} : vector<8x16xbf16>, vector<16x64xbf16>, vector<8x64xf32> -> vector<8x64xf32>
    %121 = arith.addf %95, %120 : vector<8x64xf32>
    %122 = vector.extract_strided_slice %40 {offsets = [0, 48], sizes = [8, 16], strides = [1, 1]} : vector<8x64xf32> to vector<8x16xf32>
    %123 = arith.truncf %122 : vector<8x16xf32> to vector<8x16xbf16>
    %124 = vector.extract_strided_slice %41 {offsets = [0, 48], sizes = [8, 16], strides = [1, 1]} : vector<8x64xf32> to vector<8x16xf32>
    %125 = arith.truncf %124 : vector<8x16xf32> to vector<8x16xbf16>
    %126 = vector.extract_strided_slice %42 {offsets = [0, 48], sizes = [8, 16], strides = [1, 1]} : vector<8x64xf32> to vector<8x16xf32>
    %127 = arith.truncf %126 : vector<8x16xf32> to vector<8x16xbf16>
    %cst_47 = arith.constant dense<0.000000e+00> : vector<8x8xf32>
    %128 = tpu.matmul %123, %125, %cst_47 {dimension_numbers = #tpu.dot_dimension_numbers<[1], [1], [0], [0], [0, 0, 1, 0], [], []>} : vector<8x16xbf16>, vector<8x16xbf16>, vector<8x8xf32> -> vector<8x8xf32>
    %cst_48 = arith.constant 2.500000e-01 : f32
    %129 = vector.broadcast %cst_48 : f32 to vector<8x8xf32>
    %130 = arith.mulf %128, %129 : vector<8x8xf32>
    %131 = arith.addf %130, %5 : vector<8x8xf32>
    %cst_49 = arith.constant dense<0xFF800000> : vector<8xf32>
    %132 = vector.multi_reduction <maximumf>, %131, %cst_49 [1] : vector<8x8xf32> to vector<8xf32>
    %133 = vector.shape_cast %132 : vector<8xf32> to vector<8x1xf32>
    %134 = vector.broadcast %133 : vector<8x1xf32> to vector<8x8xf32>
    %135 = arith.subf %131, %134 : vector<8x8xf32>
    %136 = math.exp %135 : vector<8x8xf32>
    %cst_50 = arith.constant dense<0.000000e+00> : vector<8xf32>
    %137 = vector.multi_reduction <add>, %136, %cst_50 [1] : vector<8x8xf32> to vector<8xf32>
    %138 = vector.shape_cast %137 : vector<8xf32> to vector<8x1xf32>
    %139 = tpu.reciprocal %138 {approx = true} : vector<8x1xf32> -> vector<8x1xf32>
    %140 = vector.broadcast %139 : vector<8x1xf32> to vector<8x8xf32>
    %141 = arith.mulf %136, %140 : vector<8x8xf32>
    %142 = arith.truncf %141 : vector<8x8xf32> to vector<8x8xbf16>
    %cst_51 = arith.constant dense<0.000000e+00> : vector<8x16xf32>
    %143 = tpu.matmul %142, %127, %cst_51 {dimension_numbers = #tpu.dot_dimension_numbers<[1], [0], [0], [1], [0, 0, 1, 1], [], []>} : vector<8x8xbf16>, vector<8x16xbf16>, vector<8x16xf32> -> vector<8x16xf32>
    %144 = vector.extract_strided_slice %43 {offsets = [48, 0], sizes = [16, 64], strides = [1, 1]} : vector<64x64xbf16> to vector<16x64xbf16>
    %145 = arith.truncf %143 : vector<8x16xf32> to vector<8x16xbf16>
    %cst_52 = arith.constant dense<0.000000e+00> : vector<8x64xf32>
    %146 = tpu.matmul %145, %144, %cst_52 {dimension_numbers = #tpu.dot_dimension_numbers<[1], [0], [0], [1], [0, 0, 1, 1], [], []>} : vector<8x16xbf16>, vector<16x64xbf16>, vector<8x64xf32> -> vector<8x64xf32>
    %147 = arith.addf %121, %146 : vector<8x64xf32>
    %148 = vector.broadcast %44 : vector<1x64xf32> to vector<8x64xf32>
    %149 = arith.addf %147, %148 : vector<8x64xf32>
    %150 = arith.addf %1, %149 : vector<8x64xf32>
    %c0_53 = arith.constant 0 : index
    %c0_54 = arith.constant 0 : index
    %151 = vector.load %arg11[%c0_53, %c0_54] : memref<1x64xf32, #tpu.memory_space<vmem>>, vector<1x64xf32>
    %c0_55 = arith.constant 0 : index
    %c0_56 = arith.constant 0 : index
    %152 = vector.load %arg12[%c0_55, %c0_56] : memref<1x64xf32, #tpu.memory_space<vmem>>, vector<1x64xf32>
    %cst_57 = arith.constant dense<0.000000e+00> : vector<8xf32>
    %153 = vector.multi_reduction <add>, %150, %cst_57 [1] : vector<8x64xf32> to vector<8xf32>
    %154 = vector.shape_cast %153 : vector<8xf32> to vector<8x1xf32>
    %cst_58 = arith.constant 6.400000e+01 : f32
    %155 = vector.broadcast %cst_58 : f32 to vector<8x1xf32>
    %156 = arith.divf %154, %155 : vector<8x1xf32>
    %157 = vector.broadcast %156 : vector<8x1xf32> to vector<8x64xf32>
    %158 = arith.subf %150, %157 : vector<8x64xf32>
    %159 = arith.mulf %158, %158 : vector<8x64xf32>
    %cst_59 = arith.constant dense<0.000000e+00> : vector<8xf32>
    %160 = vector.multi_reduction <add>, %159, %cst_59 [1] : vector<8x64xf32> to vector<8xf32>
    %161 = vector.shape_cast %160 : vector<8xf32> to vector<8x1xf32>
    %cst_60 = arith.constant 6.400000e+01 : f32
    %162 = vector.broadcast %cst_60 : f32 to vector<8x1xf32>
    %163 = arith.divf %161, %162 : vector<8x1xf32>
    %164 = vector.broadcast %156 : vector<8x1xf32> to vector<8x64xf32>
    %165 = arith.subf %150, %164 : vector<8x64xf32>
    %cst_61 = arith.constant 9.99999974E-6 : f32
    %166 = vector.broadcast %cst_61 : f32 to vector<8x1xf32>
    %167 = arith.addf %163, %166 : vector<8x1xf32>
    %168 = math.rsqrt %167 : vector<8x1xf32>
    %169 = vector.broadcast %168 : vector<8x1xf32> to vector<8x64xf32>
    %170 = arith.mulf %165, %169 : vector<8x64xf32>
    %171 = vector.broadcast %151 : vector<1x64xf32> to vector<8x64xf32>
    %172 = arith.mulf %170, %171 : vector<8x64xf32>
    %173 = vector.broadcast %152 : vector<1x64xf32> to vector<8x64xf32>
    %174 = arith.addf %172, %173 : vector<8x64xf32>
    %c0_62 = arith.constant 0 : index
    %c0_63 = arith.constant 0 : index
    %175 = vector.load %arg13[%c0_62, %c0_63] : memref<64x64xbf16, #tpu.memory_space<vmem>>, vector<64x64xbf16>
    %176 = arith.truncf %174 : vector<8x64xf32> to vector<8x64xbf16>
    %cst_64 = arith.constant dense<0.000000e+00> : vector<8x64xf32>
    %177 = tpu.matmul %176, %175, %cst_64 {dimension_numbers = #tpu.dot_dimension_numbers<[1], [0], [0], [1], [0, 0, 1, 1], [], []>} : vector<8x64xbf16>, vector<64x64xbf16>, vector<8x64xf32> -> vector<8x64xf32>
    %c0_65 = arith.constant 0 : index
    %c0_66 = arith.constant 0 : index
    %178 = vector.load %arg14[%c0_65, %c0_66] : memref<1x64xf32, #tpu.memory_space<vmem>>, vector<1x64xf32>
    %179 = vector.broadcast %178 : vector<1x64xf32> to vector<8x64xf32>
    %180 = arith.addf %177, %179 : vector<8x64xf32>
    %c0_67 = arith.constant 0 : index
    %c0_68 = arith.constant 0 : index
    %181 = vector.load %arg15[%c0_67, %c0_68] : memref<64x128xbf16, #tpu.memory_space<vmem>>, vector<64x128xbf16>
    %182 = arith.truncf %3 : vector<10x64xf32> to vector<10x64xbf16>
    %cst_69 = arith.constant dense<0.000000e+00> : vector<10x128xf32>
    %183 = tpu.matmul %182, %181, %cst_69 {dimension_numbers = #tpu.dot_dimension_numbers<[1], [0], [0], [1], [0, 0, 1, 1], [], []>} : vector<10x64xbf16>, vector<64x128xbf16>, vector<10x128xf32> -> vector<10x128xf32>
    %c0_70 = arith.constant 0 : index
    %c0_71 = arith.constant 0 : index
    %184 = vector.load %arg16[%c0_70, %c0_71] : memref<1x128xf32, #tpu.memory_space<vmem>>, vector<1x128xf32>
    %185 = vector.broadcast %184 : vector<1x128xf32> to vector<10x128xf32>
    %186 = arith.addf %183, %185 : vector<10x128xf32>
    %187 = vector.extract_strided_slice %186 {offsets = [0, 0], sizes = [10, 64], strides = [1, 1]} : vector<10x128xf32> to vector<10x64xf32>
    %188 = vector.extract_strided_slice %186 {offsets = [0, 64], sizes = [10, 64], strides = [1, 1]} : vector<10x128xf32> to vector<10x64xf32>
    %c0_72 = arith.constant 0 : index
    %c0_73 = arith.constant 0 : index
    %189 = vector.load %arg17[%c0_72, %c0_73] : memref<64x64xbf16, #tpu.memory_space<vmem>>, vector<64x64xbf16>
    %c0_74 = arith.constant 0 : index
    %c0_75 = arith.constant 0 : index
    %190 = vector.load %arg18[%c0_74, %c0_75] : memref<1x64xf32, #tpu.memory_space<vmem>>, vector<1x64xf32>
    %191 = vector.extract_strided_slice %180 {offsets = [0, 0], sizes = [8, 16], strides = [1, 1]} : vector<8x64xf32> to vector<8x16xf32>
    %192 = arith.truncf %191 : vector<8x16xf32> to vector<8x16xbf16>
    %193 = vector.extract_strided_slice %187 {offsets = [0, 0], sizes = [10, 16], strides = [1, 1]} : vector<10x64xf32> to vector<10x16xf32>
    %194 = arith.truncf %193 : vector<10x16xf32> to vector<10x16xbf16>
    %195 = vector.extract_strided_slice %188 {offsets = [0, 0], sizes = [10, 16], strides = [1, 1]} : vector<10x64xf32> to vector<10x16xf32>
    %196 = arith.truncf %195 : vector<10x16xf32> to vector<10x16xbf16>
    %cst_76 = arith.constant dense<0.000000e+00> : vector<8x10xf32>
    %197 = tpu.matmul %192, %194, %cst_76 {dimension_numbers = #tpu.dot_dimension_numbers<[1], [1], [0], [0], [0, 0, 1, 0], [], []>} : vector<8x16xbf16>, vector<10x16xbf16>, vector<8x10xf32> -> vector<8x10xf32>
    %cst_77 = arith.constant 2.500000e-01 : f32
    %198 = vector.broadcast %cst_77 : f32 to vector<8x10xf32>
    %199 = arith.mulf %197, %198 : vector<8x10xf32>
    %200 = vector.broadcast %9 : vector<1x10xf32> to vector<8x10xf32>
    %201 = arith.addf %199, %200 : vector<8x10xf32>
    %cst_78 = arith.constant dense<0xFF800000> : vector<8xf32>
    %202 = vector.multi_reduction <maximumf>, %201, %cst_78 [1] : vector<8x10xf32> to vector<8xf32>
    %203 = vector.shape_cast %202 : vector<8xf32> to vector<8x1xf32>
    %204 = vector.broadcast %203 : vector<8x1xf32> to vector<8x10xf32>
    %205 = arith.subf %201, %204 : vector<8x10xf32>
    %206 = math.exp %205 : vector<8x10xf32>
    %cst_79 = arith.constant dense<0.000000e+00> : vector<8xf32>
    %207 = vector.multi_reduction <add>, %206, %cst_79 [1] : vector<8x10xf32> to vector<8xf32>
    %208 = vector.shape_cast %207 : vector<8xf32> to vector<8x1xf32>
    %209 = tpu.reciprocal %208 {approx = true} : vector<8x1xf32> -> vector<8x1xf32>
    %210 = vector.broadcast %209 : vector<8x1xf32> to vector<8x10xf32>
    %211 = arith.mulf %206, %210 : vector<8x10xf32>
    %212 = arith.truncf %211 : vector<8x10xf32> to vector<8x10xbf16>
    %cst_80 = arith.constant dense<0.000000e+00> : vector<8x16xf32>
    %213 = tpu.matmul %212, %196, %cst_80 {dimension_numbers = #tpu.dot_dimension_numbers<[1], [0], [0], [1], [0, 0, 1, 1], [], []>} : vector<8x10xbf16>, vector<10x16xbf16>, vector<8x16xf32> -> vector<8x16xf32>
    %214 = vector.extract_strided_slice %189 {offsets = [0, 0], sizes = [16, 64], strides = [1, 1]} : vector<64x64xbf16> to vector<16x64xbf16>
    %215 = arith.truncf %213 : vector<8x16xf32> to vector<8x16xbf16>
    %cst_81 = arith.constant dense<0.000000e+00> : vector<8x64xf32>
    %216 = tpu.matmul %215, %214, %cst_81 {dimension_numbers = #tpu.dot_dimension_numbers<[1], [0], [0], [1], [0, 0, 1, 1], [], []>} : vector<8x16xbf16>, vector<16x64xbf16>, vector<8x64xf32> -> vector<8x64xf32>
    %217 = vector.extract_strided_slice %180 {offsets = [0, 16], sizes = [8, 16], strides = [1, 1]} : vector<8x64xf32> to vector<8x16xf32>
    %218 = arith.truncf %217 : vector<8x16xf32> to vector<8x16xbf16>
    %219 = vector.extract_strided_slice %187 {offsets = [0, 16], sizes = [10, 16], strides = [1, 1]} : vector<10x64xf32> to vector<10x16xf32>
    %220 = arith.truncf %219 : vector<10x16xf32> to vector<10x16xbf16>
    %221 = vector.extract_strided_slice %188 {offsets = [0, 16], sizes = [10, 16], strides = [1, 1]} : vector<10x64xf32> to vector<10x16xf32>
    %222 = arith.truncf %221 : vector<10x16xf32> to vector<10x16xbf16>
    %cst_82 = arith.constant dense<0.000000e+00> : vector<8x10xf32>
    %223 = tpu.matmul %218, %220, %cst_82 {dimension_numbers = #tpu.dot_dimension_numbers<[1], [1], [0], [0], [0, 0, 1, 0], [], []>} : vector<8x16xbf16>, vector<10x16xbf16>, vector<8x10xf32> -> vector<8x10xf32>
    %cst_83 = arith.constant 2.500000e-01 : f32
    %224 = vector.broadcast %cst_83 : f32 to vector<8x10xf32>
    %225 = arith.mulf %223, %224 : vector<8x10xf32>
    %226 = vector.broadcast %9 : vector<1x10xf32> to vector<8x10xf32>
    %227 = arith.addf %225, %226 : vector<8x10xf32>
    %cst_84 = arith.constant dense<0xFF800000> : vector<8xf32>
    %228 = vector.multi_reduction <maximumf>, %227, %cst_84 [1] : vector<8x10xf32> to vector<8xf32>
    %229 = vector.shape_cast %228 : vector<8xf32> to vector<8x1xf32>
    %230 = vector.broadcast %229 : vector<8x1xf32> to vector<8x10xf32>
    %231 = arith.subf %227, %230 : vector<8x10xf32>
    %232 = math.exp %231 : vector<8x10xf32>
    %cst_85 = arith.constant dense<0.000000e+00> : vector<8xf32>
    %233 = vector.multi_reduction <add>, %232, %cst_85 [1] : vector<8x10xf32> to vector<8xf32>
    %234 = vector.shape_cast %233 : vector<8xf32> to vector<8x1xf32>
    %235 = tpu.reciprocal %234 {approx = true} : vector<8x1xf32> -> vector<8x1xf32>
    %236 = vector.broadcast %235 : vector<8x1xf32> to vector<8x10xf32>
    %237 = arith.mulf %232, %236 : vector<8x10xf32>
    %238 = arith.truncf %237 : vector<8x10xf32> to vector<8x10xbf16>
    %cst_86 = arith.constant dense<0.000000e+00> : vector<8x16xf32>
    %239 = tpu.matmul %238, %222, %cst_86 {dimension_numbers = #tpu.dot_dimension_numbers<[1], [0], [0], [1], [0, 0, 1, 1], [], []>} : vector<8x10xbf16>, vector<10x16xbf16>, vector<8x16xf32> -> vector<8x16xf32>
    %240 = vector.extract_strided_slice %189 {offsets = [16, 0], sizes = [16, 64], strides = [1, 1]} : vector<64x64xbf16> to vector<16x64xbf16>
    %241 = arith.truncf %239 : vector<8x16xf32> to vector<8x16xbf16>
    %cst_87 = arith.constant dense<0.000000e+00> : vector<8x64xf32>
    %242 = tpu.matmul %241, %240, %cst_87 {dimension_numbers = #tpu.dot_dimension_numbers<[1], [0], [0], [1], [0, 0, 1, 1], [], []>} : vector<8x16xbf16>, vector<16x64xbf16>, vector<8x64xf32> -> vector<8x64xf32>
    %243 = arith.addf %216, %242 : vector<8x64xf32>
    %244 = vector.extract_strided_slice %180 {offsets = [0, 32], sizes = [8, 16], strides = [1, 1]} : vector<8x64xf32> to vector<8x16xf32>
    %245 = arith.truncf %244 : vector<8x16xf32> to vector<8x16xbf16>
    %246 = vector.extract_strided_slice %187 {offsets = [0, 32], sizes = [10, 16], strides = [1, 1]} : vector<10x64xf32> to vector<10x16xf32>
    %247 = arith.truncf %246 : vector<10x16xf32> to vector<10x16xbf16>
    %248 = vector.extract_strided_slice %188 {offsets = [0, 32], sizes = [10, 16], strides = [1, 1]} : vector<10x64xf32> to vector<10x16xf32>
    %249 = arith.truncf %248 : vector<10x16xf32> to vector<10x16xbf16>
    %cst_88 = arith.constant dense<0.000000e+00> : vector<8x10xf32>
    %250 = tpu.matmul %245, %247, %cst_88 {dimension_numbers = #tpu.dot_dimension_numbers<[1], [1], [0], [0], [0, 0, 1, 0], [], []>} : vector<8x16xbf16>, vector<10x16xbf16>, vector<8x10xf32> -> vector<8x10xf32>
    %cst_89 = arith.constant 2.500000e-01 : f32
    %251 = vector.broadcast %cst_89 : f32 to vector<8x10xf32>
    %252 = arith.mulf %250, %251 : vector<8x10xf32>
    %253 = vector.broadcast %9 : vector<1x10xf32> to vector<8x10xf32>
    %254 = arith.addf %252, %253 : vector<8x10xf32>
    %cst_90 = arith.constant dense<0xFF800000> : vector<8xf32>
    %255 = vector.multi_reduction <maximumf>, %254, %cst_90 [1] : vector<8x10xf32> to vector<8xf32>
    %256 = vector.shape_cast %255 : vector<8xf32> to vector<8x1xf32>
    %257 = vector.broadcast %256 : vector<8x1xf32> to vector<8x10xf32>
    %258 = arith.subf %254, %257 : vector<8x10xf32>
    %259 = math.exp %258 : vector<8x10xf32>
    %cst_91 = arith.constant dense<0.000000e+00> : vector<8xf32>
    %260 = vector.multi_reduction <add>, %259, %cst_91 [1] : vector<8x10xf32> to vector<8xf32>
    %261 = vector.shape_cast %260 : vector<8xf32> to vector<8x1xf32>
    %262 = tpu.reciprocal %261 {approx = true} : vector<8x1xf32> -> vector<8x1xf32>
    %263 = vector.broadcast %262 : vector<8x1xf32> to vector<8x10xf32>
    %264 = arith.mulf %259, %263 : vector<8x10xf32>
    %265 = arith.truncf %264 : vector<8x10xf32> to vector<8x10xbf16>
    %cst_92 = arith.constant dense<0.000000e+00> : vector<8x16xf32>
    %266 = tpu.matmul %265, %249, %cst_92 {dimension_numbers = #tpu.dot_dimension_numbers<[1], [0], [0], [1], [0, 0, 1, 1], [], []>} : vector<8x10xbf16>, vector<10x16xbf16>, vector<8x16xf32> -> vector<8x16xf32>
    %267 = vector.extract_strided_slice %189 {offsets = [32, 0], sizes = [16, 64], strides = [1, 1]} : vector<64x64xbf16> to vector<16x64xbf16>
    %268 = arith.truncf %266 : vector<8x16xf32> to vector<8x16xbf16>
    %cst_93 = arith.constant dense<0.000000e+00> : vector<8x64xf32>
    %269 = tpu.matmul %268, %267, %cst_93 {dimension_numbers = #tpu.dot_dimension_numbers<[1], [0], [0], [1], [0, 0, 1, 1], [], []>} : vector<8x16xbf16>, vector<16x64xbf16>, vector<8x64xf32> -> vector<8x64xf32>
    %270 = arith.addf %243, %269 : vector<8x64xf32>
    %271 = vector.extract_strided_slice %180 {offsets = [0, 48], sizes = [8, 16], strides = [1, 1]} : vector<8x64xf32> to vector<8x16xf32>
    %272 = arith.truncf %271 : vector<8x16xf32> to vector<8x16xbf16>
    %273 = vector.extract_strided_slice %187 {offsets = [0, 48], sizes = [10, 16], strides = [1, 1]} : vector<10x64xf32> to vector<10x16xf32>
    %274 = arith.truncf %273 : vector<10x16xf32> to vector<10x16xbf16>
    %275 = vector.extract_strided_slice %188 {offsets = [0, 48], sizes = [10, 16], strides = [1, 1]} : vector<10x64xf32> to vector<10x16xf32>
    %276 = arith.truncf %275 : vector<10x16xf32> to vector<10x16xbf16>
    %cst_94 = arith.constant dense<0.000000e+00> : vector<8x10xf32>
    %277 = tpu.matmul %272, %274, %cst_94 {dimension_numbers = #tpu.dot_dimension_numbers<[1], [1], [0], [0], [0, 0, 1, 0], [], []>} : vector<8x16xbf16>, vector<10x16xbf16>, vector<8x10xf32> -> vector<8x10xf32>
    %cst_95 = arith.constant 2.500000e-01 : f32
    %278 = vector.broadcast %cst_95 : f32 to vector<8x10xf32>
    %279 = arith.mulf %277, %278 : vector<8x10xf32>
    %280 = vector.broadcast %9 : vector<1x10xf32> to vector<8x10xf32>
    %281 = arith.addf %279, %280 : vector<8x10xf32>
    %cst_96 = arith.constant dense<0xFF800000> : vector<8xf32>
    %282 = vector.multi_reduction <maximumf>, %281, %cst_96 [1] : vector<8x10xf32> to vector<8xf32>
    %283 = vector.shape_cast %282 : vector<8xf32> to vector<8x1xf32>
    %284 = vector.broadcast %283 : vector<8x1xf32> to vector<8x10xf32>
    %285 = arith.subf %281, %284 : vector<8x10xf32>
    %286 = math.exp %285 : vector<8x10xf32>
    %cst_97 = arith.constant dense<0.000000e+00> : vector<8xf32>
    %287 = vector.multi_reduction <add>, %286, %cst_97 [1] : vector<8x10xf32> to vector<8xf32>
    %288 = vector.shape_cast %287 : vector<8xf32> to vector<8x1xf32>
    %289 = tpu.reciprocal %288 {approx = true} : vector<8x1xf32> -> vector<8x1xf32>
    %290 = vector.broadcast %289 : vector<8x1xf32> to vector<8x10xf32>
    %291 = arith.mulf %286, %290 : vector<8x10xf32>
    %292 = arith.truncf %291 : vector<8x10xf32> to vector<8x10xbf16>
    %cst_98 = arith.constant dense<0.000000e+00> : vector<8x16xf32>
    %293 = tpu.matmul %292, %276, %cst_98 {dimension_numbers = #tpu.dot_dimension_numbers<[1], [0], [0], [1], [0, 0, 1, 1], [], []>} : vector<8x10xbf16>, vector<10x16xbf16>, vector<8x16xf32> -> vector<8x16xf32>
    %294 = vector.extract_strided_slice %189 {offsets = [48, 0], sizes = [16, 64], strides = [1, 1]} : vector<64x64xbf16> to vector<16x64xbf16>
    %295 = arith.truncf %293 : vector<8x16xf32> to vector<8x16xbf16>
    %cst_99 = arith.constant dense<0.000000e+00> : vector<8x64xf32>
    %296 = tpu.matmul %295, %294, %cst_99 {dimension_numbers = #tpu.dot_dimension_numbers<[1], [0], [0], [1], [0, 0, 1, 1], [], []>} : vector<8x16xbf16>, vector<16x64xbf16>, vector<8x64xf32> -> vector<8x64xf32>
    %297 = arith.addf %270, %296 : vector<8x64xf32>
    %298 = vector.broadcast %190 : vector<1x64xf32> to vector<8x64xf32>
    %299 = arith.addf %297, %298 : vector<8x64xf32>
    %300 = arith.addf %150, %299 : vector<8x64xf32>
    %c0_100 = arith.constant 0 : index
    %c0_101 = arith.constant 0 : index
    %301 = vector.load %arg19[%c0_100, %c0_101] : memref<1x64xf32, #tpu.memory_space<vmem>>, vector<1x64xf32>
    %c0_102 = arith.constant 0 : index
    %c0_103 = arith.constant 0 : index
    %302 = vector.load %arg20[%c0_102, %c0_103] : memref<1x64xf32, #tpu.memory_space<vmem>>, vector<1x64xf32>
    %cst_104 = arith.constant dense<0.000000e+00> : vector<8xf32>
    %303 = vector.multi_reduction <add>, %300, %cst_104 [1] : vector<8x64xf32> to vector<8xf32>
    %304 = vector.shape_cast %303 : vector<8xf32> to vector<8x1xf32>
    %cst_105 = arith.constant 6.400000e+01 : f32
    %305 = vector.broadcast %cst_105 : f32 to vector<8x1xf32>
    %306 = arith.divf %304, %305 : vector<8x1xf32>
    %307 = vector.broadcast %306 : vector<8x1xf32> to vector<8x64xf32>
    %308 = arith.subf %300, %307 : vector<8x64xf32>
    %309 = arith.mulf %308, %308 : vector<8x64xf32>
    %cst_106 = arith.constant dense<0.000000e+00> : vector<8xf32>
    %310 = vector.multi_reduction <add>, %309, %cst_106 [1] : vector<8x64xf32> to vector<8xf32>
    %311 = vector.shape_cast %310 : vector<8xf32> to vector<8x1xf32>
    %cst_107 = arith.constant 6.400000e+01 : f32
    %312 = vector.broadcast %cst_107 : f32 to vector<8x1xf32>
    %313 = arith.divf %311, %312 : vector<8x1xf32>
    %314 = vector.broadcast %306 : vector<8x1xf32> to vector<8x64xf32>
    %315 = arith.subf %300, %314 : vector<8x64xf32>
    %cst_108 = arith.constant 9.99999974E-6 : f32
    %316 = vector.broadcast %cst_108 : f32 to vector<8x1xf32>
    %317 = arith.addf %313, %316 : vector<8x1xf32>
    %318 = math.rsqrt %317 : vector<8x1xf32>
    %319 = vector.broadcast %318 : vector<8x1xf32> to vector<8x64xf32>
    %320 = arith.mulf %315, %319 : vector<8x64xf32>
    %321 = vector.broadcast %301 : vector<1x64xf32> to vector<8x64xf32>
    %322 = arith.mulf %320, %321 : vector<8x64xf32>
    %323 = vector.broadcast %302 : vector<1x64xf32> to vector<8x64xf32>
    %324 = arith.addf %322, %323 : vector<8x64xf32>
    %c0_109 = arith.constant 0 : index
    %c0_110 = arith.constant 0 : index
    %325 = vector.load %arg21[%c0_109, %c0_110] : memref<64x128xbf16, #tpu.memory_space<vmem>>, vector<64x128xbf16>
    %326 = arith.truncf %324 : vector<8x64xf32> to vector<8x64xbf16>
    %cst_111 = arith.constant dense<0.000000e+00> : vector<8x128xf32>
    %327 = tpu.matmul %326, %325, %cst_111 {dimension_numbers = #tpu.dot_dimension_numbers<[1], [0], [0], [1], [0, 0, 1, 1], [], []>} : vector<8x64xbf16>, vector<64x128xbf16>, vector<8x128xf32> -> vector<8x128xf32>
    %c0_112 = arith.constant 0 : index
    %c0_113 = arith.constant 0 : index
    %328 = vector.load %arg22[%c0_112, %c0_113] : memref<1x128xf32, #tpu.memory_space<vmem>>, vector<1x128xf32>
    %329 = vector.broadcast %328 : vector<1x128xf32> to vector<8x128xf32>
    %330 = arith.addf %327, %329 : vector<8x128xf32>
    %cst_114 = arith.constant 0.000000e+00 : f32
    %331 = vector.broadcast %cst_114 : f32 to vector<8x128xf32>
    %332 = arith.maximumf %330, %331 : vector<8x128xf32>
    %c0_115 = arith.constant 0 : index
    %c0_116 = arith.constant 0 : index
    %333 = vector.load %arg23[%c0_115, %c0_116] : memref<128x64xbf16, #tpu.memory_space<vmem>>, vector<128x64xbf16>
    %334 = arith.truncf %332 : vector<8x128xf32> to vector<8x128xbf16>
    %cst_117 = arith.constant dense<0.000000e+00> : vector<8x64xf32>
    %335 = tpu.matmul %334, %333, %cst_117 {dimension_numbers = #tpu.dot_dimension_numbers<[1], [0], [0], [1], [0, 0, 1, 1], [], []>} : vector<8x128xbf16>, vector<128x64xbf16>, vector<8x64xf32> -> vector<8x64xf32>
    %c0_118 = arith.constant 0 : index
    %c0_119 = arith.constant 0 : index
    %336 = vector.load %arg24[%c0_118, %c0_119] : memref<1x64xf32, #tpu.memory_space<vmem>>, vector<1x64xf32>
    %337 = vector.broadcast %336 : vector<1x64xf32> to vector<8x64xf32>
    %338 = arith.addf %335, %337 : vector<8x64xf32>
    %339 = arith.addf %300, %338 : vector<8x64xf32>
    %c0_120 = arith.constant 0 : index
    %c0_121 = arith.constant 0 : index
    %c0_122 = arith.constant 0 : index
    %340 = vector.load %arg25[%c0_120, %c0_121, %c0_122] : memref<1x8x64xf32, #tpu.memory_space<vmem>>, vector<1x8x64xf32>
    %341 = vector.shape_cast %340 : vector<1x8x64xf32> to vector<8x64xf32>
    %342 = vector.shape_cast %339 : vector<8x64xf32> to vector<1x8x64xf32>
    tpu.vector_store %arg25[%c0_120, %c0_121, %c0_122], %342 {strides = array<i32>} : memref<1x8x64xf32, #tpu.memory_space<vmem>>, vector<1x8x64xf32>,
    return
  }
  func.func @transform_0(%arg0: i32) -> (i32, i32, i32) {
    %c0_i32 = arith.constant 0 : i32
    %c0_i32_0 = arith.constant 0 : i32
    %c0_i32_1 = arith.constant 0 : i32
    return %arg0, %c0_i32, %c0_i32_0 : i32, i32, i32
  }
  func.func @transform_1(%arg0: i32) -> (i32, i32, i32) {
    %c0_i32 = arith.constant 0 : i32
    %c0_i32_0 = arith.constant 0 : i32
    %c0_i32_1 = arith.constant 0 : i32
    return %arg0, %c0_i32, %c0_i32_0 : i32, i32, i32
  }
  func.func @transform_2(%arg0: i32) -> (i32, i32, i32) {
    %c0_i32 = arith.constant 0 : i32
    %c0_i32_0 = arith.constant 0 : i32
    %c0_i32_1 = arith.constant 0 : i32
    return %arg0, %c0_i32, %c0_i32_0 : i32, i32, i32
  }
  func.func @transform_3(%arg0: i32) -> (i32, i32, i32) {
    %c0_i32 = arith.constant 0 : i32
    %c0_i32_0 = arith.constant 0 : i32
    %c0_i32_1 = arith.constant 0 : i32
    return %arg0, %c0_i32, %c0_i32_0 : i32, i32, i32
  }
  func.func @transform_4(%arg0: i32) -> (i32, i32) {
    %c0_i32 = arith.constant 0 : i32
    %c0_i32_0 = arith.constant 0 : i32
    %c0_i32_1 = arith.constant 0 : i32
    return %c0_i32, %c0_i32_0 : i32, i32
  }
  func.func @transform_5(%arg0: i32) -> (i32, i32) {
    %c0_i32 = arith.constant 0 : i32
    %c0_i32_0 = arith.constant 0 : i32
    %c0_i32_1 = arith.constant 0 : i32
    return %c0_i32, %c0_i32_0 : i32, i32
  }
  func.func @transform_6(%arg0: i32) -> (i32, i32) {
    %c0_i32 = arith.constant 0 : i32
    %c0_i32_0 = arith.constant 0 : i32
    %c0_i32_1 = arith.constant 0 : i32
    return %c0_i32, %c0_i32_0 : i32, i32
  }
  func.func @transform_7(%arg0: i32) -> (i32, i32) {
    %c0_i32 = arith.constant 0 : i32
    %c0_i32_0 = arith.constant 0 : i32
    %c0_i32_1 = arith.constant 0 : i32
    return %c0_i32, %c0_i32_0 : i32, i32
  }
  func.func @transform_8(%arg0: i32) -> (i32, i32) {
    %c0_i32 = arith.constant 0 : i32
    %c0_i32_0 = arith.constant 0 : i32
    %c0_i32_1 = arith.constant 0 : i32
    return %c0_i32, %c0_i32_0 : i32, i32
  }
  func.func @transform_9(%arg0: i32) -> (i32, i32) {
    %c0_i32 = arith.constant 0 : i32
    %c0_i32_0 = arith.constant 0 : i32
    %c0_i32_1 = arith.constant 0 : i32
    return %c0_i32, %c0_i32_0 : i32, i32
  }
  func.func @transform_10(%arg0: i32) -> (i32, i32) {
    %c0_i32 = arith.constant 0 : i32
    %c0_i32_0 = arith.constant 0 : i32
    %c0_i32_1 = arith.constant 0 : i32
    return %c0_i32, %c0_i32_0 : i32, i32
  }
  func.func @transform_11(%arg0: i32) -> (i32, i32) {
    %c0_i32 = arith.constant 0 : i32
    %c0_i32_0 = arith.constant 0 : i32
    %c0_i32_1 = arith.constant 0 : i32
    return %c0_i32, %c0_i32_0 : i32, i32
  }
  func.func @transform_12(%arg0: i32) -> (i32, i32) {
    %c0_i32 = arith.constant 0 : i32
    %c0_i32_0 = arith.constant 0 : i32
    %c0_i32_1 = arith.constant 0 : i32
    return %c0_i32, %c0_i32_0 : i32, i32
  }
  func.func @transform_13(%arg0: i32) -> (i32, i32) {
    %c0_i32 = arith.constant 0 : i32
    %c0_i32_0 = arith.constant 0 : i32
    %c0_i32_1 = arith.constant 0 : i32
    return %c0_i32, %c0_i32_0 : i32, i32
  }
  func.func @transform_14(%arg0: i32) -> (i32, i32) {
    %c0_i32 = arith.constant 0 : i32
    %c0_i32_0 = arith.constant 0 : i32
    %c0_i32_1 = arith.constant 0 : i32
    return %c0_i32, %c0_i32_0 : i32, i32
  }
  func.func @transform_15(%arg0: i32) -> (i32, i32) {
    %c0_i32 = arith.constant 0 : i32
    %c0_i32_0 = arith.constant 0 : i32
    %c0_i32_1 = arith.constant 0 : i32
    return %c0_i32, %c0_i32_0 : i32, i32
  }
  func.func @transform_16(%arg0: i32) -> (i32, i32) {
    %c0_i32 = arith.constant 0 : i32
    %c0_i32_0 = arith.constant 0 : i32
    %c0_i32_1 = arith.constant 0 : i32
    return %c0_i32, %c0_i32_0 : i32, i32
  }
  func.func @transform_17(%arg0: i32) -> (i32, i32) {
    %c0_i32 = arith.constant 0 : i32
    %c0_i32_0 = arith.constant 0 : i32
    %c0_i32_1 = arith.constant 0 : i32
    return %c0_i32, %c0_i32_0 : i32, i32
  }
  func.func @transform_18(%arg0: i32) -> (i32, i32) {
    %c0_i32 = arith.constant 0 : i32
    %c0_i32_0 = arith.constant 0 : i32
    %c0_i32_1 = arith.constant 0 : i32
    return %c0_i32, %c0_i32_0 : i32, i32
  }
  func.func @transform_19(%arg0: i32) -> (i32, i32) {
    %c0_i32 = arith.constant 0 : i32
    %c0_i32_0 = arith.constant 0 : i32
    %c0_i32_1 = arith.constant 0 : i32
    return %c0_i32, %c0_i32_0 : i32, i32
  }
  func.func @transform_20(%arg0: i32) -> (i32, i32) {
    %c0_i32 = arith.constant 0 : i32
    %c0_i32_0 = arith.constant 0 : i32
    %c0_i32_1 = arith.constant 0 : i32
    return %c0_i32, %c0_i32_0 : i32, i32
  }
  func.func @transform_21(%arg0: i32) -> (i32, i32) {
    %c0_i32 = arith.constant 0 : i32
    %c0_i32_0 = arith.constant 0 : i32
    %c0_i32_1 = arith.constant 0 : i32
    return %c0_i32, %c0_i32_0 : i32, i32
  }
  func.func @transform_22(%arg0: i32) -> (i32, i32) {
    %c0_i32 = arith.constant 0 : i32
    %c0_i32_0 = arith.constant 0 : i32
    %c0_i32_1 = arith.constant 0 : i32
    return %c0_i32, %c0_i32_0 : i32, i32
  }
  func.func @transform_23(%arg0: i32) -> (i32, i32) {
    %c0_i32 = arith.constant 0 : i32
    %c0_i32_0 = arith.constant 0 : i32
    %c0_i32_1 = arith.constant 0 : i32
    return %c0_i32, %c0_i32_0 : i32, i32
  }
  func.func @transform_24(%arg0: i32) -> (i32, i32, i32) {
    %c0_i32 = arith.constant 0 : i32
    %c0_i32_0 = arith.constant 0 : i32
    %c0_i32_1 = arith.constant 0 : i32
    return %arg0, %c0_i32, %c0_i32_0 : i32, i32, i32
  }
}

module attributes {stable_mosaic.version = 11 : i64} {
  func.func @_ln_generator_kernel(%arg0: i32, %arg1: memref<16x64xf32, #tpu.memory_space<vmem>>, %arg2: memref<1x64xf32, #tpu.memory_space<vmem>>, %arg3: memref<1x64xf32, #tpu.memory_space<vmem>>, %arg4: memref<64x128xbf16, #tpu.memory_space<vmem>>, %arg5: memref<1x128xf32, #tpu.memory_space<vmem>>, %arg6: memref<16x128xf32, #tpu.memory_space<vmem>>) attributes {dimension_semantics = [#tpu.dimension_semantics<arbitrary>], iteration_bounds = array<i64: 1>, scalar_prefetch = 0 : i64, scratch_operands = 0 : i64, tpu.core_type = #tpu.core_type<tc>, window_params = [{pipeline_mode = #tpu.pipeline_mode<synchronous>, transform_indices = @transform_0, window_bounds = array<i64: 16, 64>}, {pipeline_mode = #tpu.pipeline_mode<synchronous>, transform_indices = @transform_1, window_bounds = array<i64: 1, 64>}, {pipeline_mode = #tpu.pipeline_mode<synchronous>, transform_indices = @transform_2, window_bounds = array<i64: 1, 64>}, {pipeline_mode = #tpu.pipeline_mode<synchronous>, transform_indices = @transform_3, window_bounds = array<i64: 64, 128>}, {pipeline_mode = #tpu.pipeline_mode<synchronous>, transform_indices = @transform_4, window_bounds = array<i64: 1, 128>}, {pipeline_mode = #tpu.pipeline_mode<synchronous>, transform_indices = @transform_5, window_bounds = array<i64: 16, 128>}]} {
    %c0 = arith.constant 0 : index
    %c0_0 = arith.constant 0 : index
    %0 = vector.load %arg1[%c0, %c0_0] : memref<16x64xf32, #tpu.memory_space<vmem>>, vector<16x64xf32>
    %c0_1 = arith.constant 0 : index
    %c0_2 = arith.constant 0 : index
    %1 = vector.load %arg2[%c0_1, %c0_2] : memref<1x64xf32, #tpu.memory_space<vmem>>, vector<1x64xf32>
    %c0_3 = arith.constant 0 : index
    %c0_4 = arith.constant 0 : index
    %2 = vector.load %arg3[%c0_3, %c0_4] : memref<1x64xf32, #tpu.memory_space<vmem>>, vector<1x64xf32>
    %cst = arith.constant dense<0.000000e+00> : vector<16xf32>
    %3 = vector.multi_reduction <add>, %0, %cst [1] : vector<16x64xf32> to vector<16xf32>
    %4 = vector.shape_cast %3 : vector<16xf32> to vector<16x1xf32>
    %cst_5 = arith.constant 6.400000e+01 : f32
    %5 = vector.broadcast %cst_5 : f32 to vector<16x1xf32>
    %6 = arith.divf %4, %5 : vector<16x1xf32>
    %7 = vector.broadcast %6 : vector<16x1xf32> to vector<16x64xf32>
    %8 = arith.subf %0, %7 : vector<16x64xf32>
    %9 = arith.mulf %8, %8 : vector<16x64xf32>
    %cst_6 = arith.constant dense<0.000000e+00> : vector<16xf32>
    %10 = vector.multi_reduction <add>, %9, %cst_6 [1] : vector<16x64xf32> to vector<16xf32>
    %11 = vector.shape_cast %10 : vector<16xf32> to vector<16x1xf32>
    %cst_7 = arith.constant 6.400000e+01 : f32
    %12 = vector.broadcast %cst_7 : f32 to vector<16x1xf32>
    %13 = arith.divf %11, %12 : vector<16x1xf32>
    %14 = vector.broadcast %6 : vector<16x1xf32> to vector<16x64xf32>
    %15 = arith.subf %0, %14 : vector<16x64xf32>
    %cst_8 = arith.constant 9.99999974E-6 : f32
    %16 = vector.broadcast %cst_8 : f32 to vector<16x1xf32>
    %17 = arith.addf %13, %16 : vector<16x1xf32>
    %18 = math.rsqrt %17 : vector<16x1xf32>
    %19 = vector.broadcast %18 : vector<16x1xf32> to vector<16x64xf32>
    %20 = arith.mulf %15, %19 : vector<16x64xf32>
    %21 = vector.broadcast %1 : vector<1x64xf32> to vector<16x64xf32>
    %22 = arith.mulf %20, %21 : vector<16x64xf32>
    %23 = vector.broadcast %2 : vector<1x64xf32> to vector<16x64xf32>
    %24 = arith.addf %22, %23 : vector<16x64xf32>
    %c0_9 = arith.constant 0 : index
    %c0_10 = arith.constant 0 : index
    %25 = vector.load %arg4[%c0_9, %c0_10] : memref<64x128xbf16, #tpu.memory_space<vmem>>, vector<64x128xbf16>
    %26 = arith.truncf %24 : vector<16x64xf32> to vector<16x64xbf16>
    %cst_11 = arith.constant dense<0.000000e+00> : vector<16x128xf32>
    %27 = tpu.matmul %26, %25, %cst_11 {dimension_numbers = #tpu.dot_dimension_numbers<[1], [0], [0], [1], [0, 0, 1, 1], [], []>} : vector<16x64xbf16>, vector<64x128xbf16>, vector<16x128xf32> -> vector<16x128xf32>
    %c0_12 = arith.constant 0 : index
    %c0_13 = arith.constant 0 : index
    %28 = vector.load %arg5[%c0_12, %c0_13] : memref<1x128xf32, #tpu.memory_space<vmem>>, vector<1x128xf32>
    %29 = vector.broadcast %28 : vector<1x128xf32> to vector<16x128xf32>
    %30 = arith.addf %27, %29 : vector<16x128xf32>
    %cst_14 = arith.constant dense<0xFF800000> : vector<16xf32>
    %31 = vector.multi_reduction <maximumf>, %30, %cst_14 [1] : vector<16x128xf32> to vector<16xf32>
    %32 = vector.shape_cast %31 : vector<16xf32> to vector<16x1xf32>
    %33 = vector.broadcast %32 : vector<16x1xf32> to vector<16x128xf32>
    %34 = arith.subf %30, %33 : vector<16x128xf32>
    %35 = math.exp %34 : vector<16x128xf32>
    %cst_15 = arith.constant dense<0.000000e+00> : vector<16xf32>
    %36 = vector.multi_reduction <add>, %35, %cst_15 [1] : vector<16x128xf32> to vector<16xf32>
    %37 = vector.shape_cast %36 : vector<16xf32> to vector<16x1xf32>
    %38 = math.log %37 : vector<16x1xf32>
    %39 = vector.broadcast %38 : vector<16x1xf32> to vector<16x128xf32>
    %40 = arith.subf %34, %39 : vector<16x128xf32>
    %c0_16 = arith.constant 0 : index
    %c0_17 = arith.constant 0 : index
    %41 = vector.load %arg6[%c0_16, %c0_17] : memref<16x128xf32, #tpu.memory_space<vmem>>, vector<16x128xf32>
    tpu.vector_store %arg6[%c0_16, %c0_17], %40 {strides = array<i32>} : memref<16x128xf32, #tpu.memory_space<vmem>>, vector<16x128xf32>,
    return
  }
  func.func @transform_0(%arg0: i32) -> (i32, i32) {
    %c0_i32 = arith.constant 0 : i32
    %c0_i32_0 = arith.constant 0 : i32
    %c0_i32_1 = arith.constant 0 : i32
    return %c0_i32, %c0_i32_0 : i32, i32
  }
  func.func @transform_1(%arg0: i32) -> (i32, i32) {
    %c0_i32 = arith.constant 0 : i32
    %c0_i32_0 = arith.constant 0 : i32
    %c0_i32_1 = arith.constant 0 : i32
    return %c0_i32, %c0_i32_0 : i32, i32
  }
  func.func @transform_2(%arg0: i32) -> (i32, i32) {
    %c0_i32 = arith.constant 0 : i32
    %c0_i32_0 = arith.constant 0 : i32
    %c0_i32_1 = arith.constant 0 : i32
    return %c0_i32, %c0_i32_0 : i32, i32
  }
  func.func @transform_3(%arg0: i32) -> (i32, i32) {
    %c0_i32 = arith.constant 0 : i32
    %c0_i32_0 = arith.constant 0 : i32
    %c0_i32_1 = arith.constant 0 : i32
    return %c0_i32, %c0_i32_0 : i32, i32
  }
  func.func @transform_4(%arg0: i32) -> (i32, i32) {
    %c0_i32 = arith.constant 0 : i32
    %c0_i32_0 = arith.constant 0 : i32
    %c0_i32_1 = arith.constant 0 : i32
    return %c0_i32, %c0_i32_0 : i32, i32
  }
  func.func @transform_5(%arg0: i32) -> (i32, i32) {
    %c0_i32 = arith.constant 0 : i32
    %c0_i32_0 = arith.constant 0 : i32
    %c0_i32_1 = arith.constant 0 : i32
    return %c0_i32, %c0_i32_0 : i32, i32
  }
}

</mosaic_0001>

<llo_original>
// kernel: nmt_forward.11
$region0: #{nmt_forward.11}
  #allocation0 [shape = 'u32[]', space=smem, size = 0x4, offset = 0x4, fixed_abs, tag = 'smem constant byte address 0x4 - core index']
  #allocation1 [shape = 'u32[144,128]{1,0:T(1,128)}', space=vmem, size = 0x12000, scoped, tag = 'internal scratch']
  %s0 = inlined_call_operand.vmem [shape: f32[20,64], index: 0, kind: input, shape index: {}]
  %s1 = inlined_call_operand.vmem [shape: f32[1,64], index: 1, kind: input, shape index: {}]
  %s2 = inlined_call_operand.vmem [shape: f32[1,64], index: 2, kind: input, shape index: {}]
  %s3 = inlined_call_operand.vmem [shape: f32[20,64], index: 3, kind: output, shape index: {}]
  %s4 = sld [smem:[#allocation0]]
  $region22: #{nmt_forward.11} parent=0
    _
  %s6 = ssub.s32 1, %s4
  %s7 = scalar_select 0, %s6, %s4
  // Predicated region
  $region2: #{nmt_forward.11} parent=0 // pred_check
    _
  $region3: #{nmt_forward.11} parent=0 // pred_check_branch
    %9 = sbr.rel (0) target = $region5
  $region4: #{nmt_forward.11} parent=0 // pred_region
    _
  $region5: #{nmt_forward.11} parent=0 // pred_fallthru
    _
  // Predicated region
  $region6: #{nmt_forward.11} parent=0 // pred_check
    _
  $region7: #{nmt_forward.11} parent=0 // pred_check_branch
    %11 = sbr.rel (0) target = $region9
  $region8: #{nmt_forward.11} parent=0 // pred_region
    _
  $region9: #{nmt_forward.11} parent=0 // pred_fallthru
    _
  // Predicated region
  $region10: #{nmt_forward.11} parent=0 // pred_check
    _
  $region11: #{nmt_forward.11} parent=0 // pred_check_branch
    %13 = sbr.rel (0) target = $region13
  $region12: #{nmt_forward.11} parent=0 // pred_region
    _
  $region13: #{nmt_forward.11} parent=0 // pred_fallthru
    _
  %v14 = vld [vmem:[%s0] sm:$0xff]
  %v15 = vld [vmem:[%s0 + $0x8] sm:$0xff]
  %v16 = vld [vmem:[%s0 + $0x10] sm:$0xf]
  %v17 = vld [vmem:[%s1] sm:$0x1]
  %v18 = vld [vmem:[%s2] sm:$0x1]
  %vm19 = vcmask 523264
  %v20 = vsel %vm19, %v14, 0.0
  %21 = vadd.xlane.f32.xlu0 %v20
  %v22 = vpop.xlane.xlu0 %21
  %v23 = vsel %vm19, %v15, 0.0
  %24 = vadd.xlane.f32.xlu0 %v23
  %v25 = vpop.xlane.xlu0 %24
  %vm26 = vcmask 519168
  %v27 = vsel %vm26, %v16, 0.0
  %28 = vadd.xlane.f32.xlu0 %v27
  %v29 = vpop.xlane.xlu0 %28
  %v30 = vrcp.pop 64.0
  %v31 = vmul.f32 %v22, %v30
  %v32 = vmul.f32 %v25, %v30
  %v33 = vmul.f32 %v29, %v30
  %v34 = vsub.f32 %v14, %v31
  %v35 = vsub.f32 %v15, %v32
  %v36 = vsub.f32 %v16, %v33
  %v37 = vmul.f32 %v34, %v34
  %v38 = vmul.f32 %v35, %v35
  %v39 = vmul.f32 %v36, %v36
  %v40 = vsel %vm19, %v37, 0.0
  %41 = vadd.xlane.f32.xlu0 %v40
  %v42 = vpop.xlane.xlu0 %41
  %v43 = vsel %vm19, %v38, 0.0
  %44 = vadd.xlane.f32.xlu0 %v43
  %v45 = vpop.xlane.xlu0 %44
  %v46 = vsel %vm26, %v39, 0.0
  %47 = vadd.xlane.f32.xlu0 %v46
  %v48 = vpop.xlane.xlu0 %47
  %v49 = vmul.f32 %v42, %v30
  %v50 = vmul.f32 %v45, %v30
  %v51 = vmul.f32 %v48, %v30
  %v52 = vadd.f32 %v49, 1e-05
  %v53 = vadd.f32 %v50, 1e-05
  %v54 = vadd.f32 %v51, 1e-05
  %v55 = vrsqrt.pop %v52
  %v56 = vrsqrt.pop %v53
  %v57 = vrsqrt.pop %v54
  %v58 = vmul.f32 %v34, %v55
  %v59 = vmul.f32 %v35, %v56
  %v60 = vmul.f32 %v36, %v57
  %v62 = vlaneseq
  %v63 = vshrl.u32 %v62, 7
  %v64 = vsub.s32 0, %v63
  %v65 = vrot.slane %v17, %v64
  %v67 = vmul.f32 %v58, %v65
  %v68 = vmul.f32 %v59, %v65
  %v69 = vmul.f32 %v60, %v65
  %v71 = vlaneseq
  %v72 = vshrl.u32 %v71, 7
  %v73 = vsub.s32 0, %v72
  %v74 = vrot.slane %v18, %v73
  %v76 = vadd.f32 %v67, %v74
  %v77 = vadd.f32 %v68, %v74
  %v78 = vadd.f32 %v69, %v74
  %79 = vst.msk [vmem:[%s3] sm:$0xff] %vm19, %v76
  %80 = vst.msk [vmem:[%s3 + $0x8] sm:$0xff] %vm19, %v77
  %81 = vst.msk [vmem:[%s3 + $0x10] sm:$0xf] %vm26, %v78
  // Predicated region
  $region14: #{nmt_forward.11} parent=0 // pred_check
    _
  $region15: #{nmt_forward.11} parent=0 // pred_check_branch
    %83 = sbr.rel (0) target = $region17
  $region16: #{nmt_forward.11} parent=0 // pred_region
    _
  $region17: #{nmt_forward.11} parent=0 // pred_fallthru
    _
  // Predicated region
  $region18: #{nmt_forward.11} parent=0 // pred_check
    _
  $region19: #{nmt_forward.11} parent=0 // pred_check_branch
    %85 = sbr.rel (0) target = $region21
  $region20: #{nmt_forward.11} parent=0 // pred_region
    _
  $region21: #{nmt_forward.11} parent=0 // pred_fallthru
    _

// kernel: nmt_forward.9
$region0: #{nmt_forward.9}
  #allocation0 [shape = 'u32[]', space=smem, size = 0x4, offset = 0x4, fixed_abs, tag = 'smem constant byte address 0x4 - core index']
  #allocation1 [shape = 'u32[144,128]{1,0:T(1,128)}', space=vmem, size = 0x12000, scoped, tag = 'internal scratch']
  %s0 = inlined_call_operand.vmem [shape: f32[2,10,64], index: 0, kind: input, shape index: {}]
  %s1 = inlined_call_operand.vmem [shape: f32[2,1,10], index: 1, kind: input, shape index: {}]
  %s2 = inlined_call_operand.vmem [shape: f32[1,64], index: 2, kind: input, shape index: {}]
  %s3 = inlined_call_operand.vmem [shape: f32[1,64], index: 3, kind: input, shape index: {}]
  %s4 = inlined_call_operand.vmem [shape: bf16[64,192], index: 4, kind: input, shape index: {}]
  %s5 = inlined_call_operand.vmem [shape: f32[1,192], index: 5, kind: input, shape index: {}]
  %s6 = inlined_call_operand.vmem [shape: bf16[64,64], index: 6, kind: input, shape index: {}]
  %s7 = inlined_call_operand.vmem [shape: f32[1,64], index: 7, kind: input, shape index: {}]
  %s8 = inlined_call_operand.vmem [shape: f32[1,64], index: 8, kind: input, shape index: {}]
  %s9 = inlined_call_operand.vmem [shape: f32[1,64], index: 9, kind: input, shape index: {}]
  %s10 = inlined_call_operand.vmem [shape: bf16[64,128], index: 10, kind: input, shape index: {}]
  %s11 = inlined_call_operand.vmem [shape: f32[1,128], index: 11, kind: input, shape index: {}]
  %s12 = inlined_call_operand.vmem [shape: bf16[128,64], index: 12, kind: input, shape index: {}]
  %s13 = inlined_call_operand.vmem [shape: f32[1,64], index: 13, kind: input, shape index: {}]
  %s14 = inlined_call_operand.vmem [shape: f32[2,10,64], index: 14, kind: output, shape index: {}]
  %s15 = sld [smem:[#allocation0]]
  $region89: #{nmt_forward.9} parent=0
    _
  %s17 = ssub.s32 1, %s15
  %s18 = scalar_select 0, %s17, %s15
  loop: start=0, step=1, limit=4
  $region2: #{nmt_forward.9} parent=0 // loop_pre_header
    _
  $region3: #{nmt_forward.9} parent=0 // loop_header
    %s20 = sphi 0, %s24
    %p21 = scmp.ge.s32.totalorder %s20, 4
    %s30 = sphi 0, %s32
    %s33 = sphi 0, %s30
    %s34 = sphi 0, %s33
    %s50 = sphi 0, %s34
    %s56 = sphi 0, %s58
    %s59 = sphi 0, %s56
    %s60 = sphi 0, %s59
    %s76 = sphi 0, %s60
    %s80 = sphi 0, %s80
    %s82 = sphi 0, %s80
    %s83 = sphi 0, %s82
    %s97 = sphi 0, %s83
    %s101 = sphi 0, %s101
    %s103 = sphi 0, %s101
    %s104 = sphi 0, %s103
    %s118 = sphi 0, %s104
    %s122 = sphi 0, %s122
    %s124 = sphi 0, %s122
    %s125 = sphi 0, %s124
    %s139 = sphi 0, %s125
    %s143 = sphi 0, %s143
    %s145 = sphi 0, %s143
    %s146 = sphi 0, %s145
    %s160 = sphi 0, %s146
    %s164 = sphi 0, %s164
    %s166 = sphi 0, %s164
    %s167 = sphi 0, %s166
    %s181 = sphi 0, %s167
    %s185 = sphi 0, %s185
    %s187 = sphi 0, %s185
    %s188 = sphi 0, %s187
    %s202 = sphi 0, %s188
    %s206 = sphi 0, %s206
    %s208 = sphi 0, %s206
    %s209 = sphi 0, %s208
    %s223 = sphi 0, %s209
    %s227 = sphi 0, %s227
    %s229 = sphi 0, %s227
    %s230 = sphi 0, %s229
    %s244 = sphi 0, %s230
    %s248 = sphi 0, %s248
    %s250 = sphi 0, %s248
    %s251 = sphi 0, %s250
    %s265 = sphi 0, %s251
    %s269 = sphi 0, %s269
    %s271 = sphi 0, %s269
    %s272 = sphi 0, %s271
    %s286 = sphi 0, %s272
    %s290 = sphi 0, %s290
    %s292 = sphi 0, %s290
    %s293 = sphi 0, %s292
    %s307 = sphi 0, %s293
    %s311 = sphi 0, %s311
    %s313 = sphi 0, %s311
    %s314 = sphi 0, %s313
    %s328 = sphi 0, %s314
    %s334 = sphi 0, %s336
    %s337 = sphi 0, %s334
    %s338 = sphi 0, %s337
    %s354 = sphi 0, %s338
  $region4: #{nmt_forward.9} parent=0 // loop_header_branch
    %23 = sbr.rel (%p21) target = $region8
  $region5: #{nmt_forward.9} parent=0 // loop_body
    %s25 = ssub.s32 %s20, 1
    %s26 = ssub.s32 %s20, 2
    %s27 = sadd.s32 %s20, 1
    %s28 = ssub.s32 %s20, %s27
    %p29 = scmp.eq.s32.totalorder %s28, 0
    %s31 = sadd.s32 %s30, 1
    %s32 = scalar_select %p29, %s30, %s31
    %p35 = pneg %p29
    %p36 = scmp.eq.s32.totalorder %s20, 1
    %p37 = por %p35, %p36
    %p38 = scmp.ne.s32.totalorder %s30, %s33
    %p39 = scmp.eq.s32.totalorder %s20, 0
    %p40 = por %p38, %p39
    %p41 = scmp.ne.s32.totalorder %s30, %s33
    %p42 = scmp.eq.s32.totalorder %s25, 1
    %p43 = por %p41, %p42
    %p44 = scmp.ne.s32.totalorder %s33, %s34
    %p45 = scmp.eq.s32.totalorder %s25, 0
    %p46 = por %p44, %p45
    %p47 = scmp.ne.s32.totalorder %s33, %s34
    %p48 = scmp.eq.s32.totalorder %s26, 1
    %p49 = por %p47, %p48
    %p51 = scmp.ne.s32.totalorder %s34, %s50
    %p52 = scmp.eq.s32.totalorder %s26, 0
    %p53 = por %p51, %p52
    %s54 = ssub.s32 %s20, %s27
    %p55 = scmp.eq.s32.totalorder %s54, 0
    %s57 = sadd.s32 %s56, 1
    %s58 = scalar_select %p55, %s56, %s57
    %p61 = pneg %p55
    %p62 = scmp.eq.s32.totalorder %s20, 1
    %p63 = por %p61, %p62
    %p64 = scmp.ne.s32.totalorder %s56, %s59
    %p65 = scmp.eq.s32.totalorder %s20, 0
    %p66 = por %p64, %p65
    %p67 = scmp.ne.s32.totalorder %s56, %s59
    %p68 = scmp.eq.s32.totalorder %s25, 1
    %p69 = por %p67, %p68
    %p70 = scmp.ne.s32.totalorder %s59, %s60
    %p71 = scmp.eq.s32.totalorder %s25, 0
    %p72 = por %p70, %p71
    %p73 = scmp.ne.s32.totalorder %s59, %s60
    %p74 = scmp.eq.s32.totalorder %s26, 1
    %p75 = por %p73, %p74
    %p77 = scmp.ne.s32.totalorder %s60, %s76
    %p78 = scmp.eq.s32.totalorder %s26, 0
    %p79 = por %p77, %p78
    %s81 = sadd.s32 %s80, 1
    %p84 = scmp.eq.s32.totalorder %s20, 1
    %p85 = scmp.ne.s32.totalorder %s80, %s82
    %p86 = scmp.eq.s32.totalorder %s20, 0
    %p87 = por %p85, %p86
    %p88 = scmp.ne.s32.totalorder %s80, %s82
    %p89 = scmp.eq.s32.totalorder %s25, 1
    %p90 = por %p88, %p89
    %p91 = scmp.ne.s32.totalorder %s82, %s83
    %p92 = scmp.eq.s32.totalorder %s25, 0
    %p93 = por %p91, %p92
    %p94 = scmp.ne.s32.totalorder %s82, %s83
    %p95 = scmp.eq.s32.totalorder %s26, 1
    %p96 = por %p94, %p95
    %p98 = scmp.ne.s32.totalorder %s83, %s97
    %p99 = scmp.eq.s32.totalorder %s26, 0
    %p100 = por %p98, %p99
    %s102 = sadd.s32 %s101, 1
    %p105 = scmp.eq.s32.totalorder %s20, 1
    %p106 = scmp.ne.s32.totalorder %s101, %s103
    %p107 = scmp.eq.s32.totalorder %s20, 0
    %p108 = por %p106, %p107
    %p109 = scmp.ne.s32.totalorder %s101, %s103
    %p110 = scmp.eq.s32.totalorder %s25, 1
    %p111 = por %p109, %p110
    %p112 = scmp.ne.s32.totalorder %s103, %s104
    %p113 = scmp.eq.s32.totalorder %s25, 0
    %p114 = por %p112, %p113
    %p115 = scmp.ne.s32.totalorder %s103, %s104
    %p116 = scmp.eq.s32.totalorder %s26, 1
    %p117 = por %p115, %p116
    %p119 = scmp.ne.s32.totalorder %s104, %s118
    %p120 = scmp.eq.s32.totalorder %s26, 0
    %p121 = por %p119, %p120
    %s123 = sadd.s32 %s122, 1
    %p126 = scmp.eq.s32.totalorder %s20, 1
    %p127 = scmp.ne.s32.totalorder %s122, %s124
    %p128 = scmp.eq.s32.totalorder %s20, 0
    %p129 = por %p127, %p128
    %p130 = scmp.ne.s32.totalorder %s122, %s124
    %p131 = scmp.eq.s32.totalorder %s25, 1
    %p132 = por %p130, %p131
    %p133 = scmp.ne.s32.totalorder %s124, %s125
    %p134 = scmp.eq.s32.totalorder %s25, 0
    %p135 = por %p133, %p134
    %p136 = scmp.ne.s32.totalorder %s124, %s125
    %p137 = scmp.eq.s32.totalorder %s26, 1
    %p138 = por %p136, %p137
    %p140 = scmp.ne.s32.totalorder %s125, %s139
    %p141 = scmp.eq.s32.totalorder %s26, 0
    %p142 = por %p140, %p141
    %s144 = sadd.s32 %s143, 1
    %p147 = scmp.eq.s32.totalorder %s20, 1
    %p148 = scmp.ne.s32.totalorder %s143, %s145
    %p149 = scmp.eq.s32.totalorder %s20, 0
    %p150 = por %p148, %p149
    %p151 = scmp.ne.s32.totalorder %s143, %s145
    %p152 = scmp.eq.s32.totalorder %s25, 1
    %p153 = por %p151, %p152
    %p154 = scmp.ne.s32.totalorder %s145, %s146
    %p155 = scmp.eq.s32.totalorder %s25, 0
    %p156 = por %p154, %p155
    %p157 = scmp.ne.s32.totalorder %s145, %s146
    %p158 = scmp.eq.s32.totalorder %s26, 1
    %p159 = por %p157, %p158
    %p161 = scmp.ne.s32.totalorder %s146, %s160
    %p162 = scmp.eq.s32.totalorder %s26, 0
    %p163 = por %p161, %p162
    %s165 = sadd.s32 %s164, 1
    %p168 = scmp.eq.s32.totalorder %s20, 1
    %p169 = scmp.ne.s32.totalorder %s164, %s166
    %p170 = scmp.eq.s32.totalorder %s20, 0
    %p171 = por %p169, %p170
    %p172 = scmp.ne.s32.totalorder %s164, %s166
    %p173 = scmp.eq.s32.totalorder %s25, 1
    %p174 = por %p172, %p173
    %p175 = scmp.ne.s32.totalorder %s166, %s167
    %p176 = scmp.eq.s32.totalorder %s25, 0
    %p177 = por %p175, %p176
    %p178 = scmp.ne.s32.totalorder %s166, %s167
    %p179 = scmp.eq.s32.totalorder %s26, 1
    %p180 = por %p178, %p179
    %p182 = scmp.ne.s32.totalorder %s167, %s181
    %p183 = scmp.eq.s32.totalorder %s26, 0
    %p184 = por %p182, %p183
    %s186 = sadd.s32 %s185, 1
    %p189 = scmp.eq.s32.totalorder %s20, 1
    %p190 = scmp.ne.s32.totalorder %s185, %s187
    %p191 = scmp.eq.s32.totalorder %s20, 0
    %p192 = por %p190, %p191
    %p193 = scmp.ne.s32.totalorder %s185, %s187
    %p194 = scmp.eq.s32.totalorder %s25, 1
    %p195 = por %p193, %p194
    %p196 = scmp.ne.s32.totalorder %s187, %s188
    %p197 = scmp.eq.s32.totalorder %s25, 0
    %p198 = por %p196, %p197
    %p199 = scmp.ne.s32.totalorder %s187, %s188
    %p200 = scmp.eq.s32.totalorder %s26, 1
    %p201 = por %p199, %p200
    %p203 = scmp.ne.s32.totalorder %s188, %s202
    %p204 = scmp.eq.s32.totalorder %s26, 0
    %p205 = por %p203, %p204
    %s207 = sadd.s32 %s206, 1
    %p210 = scmp.eq.s32.totalorder %s20, 1
    %p211 = scmp.ne.s32.totalorder %s206, %s208
    %p212 = scmp.eq.s32.totalorder %s20, 0
    %p213 = por %p211, %p212
    %p214 = scmp.ne.s32.totalorder %s206, %s208
    %p215 = scmp.eq.s32.totalorder %s25, 1
    %p216 = por %p214, %p215
    %p217 = scmp.ne.s32.totalorder %s208, %s209
    %p218 = scmp.eq.s32.totalorder %s25, 0
    %p219 = por %p217, %p218
    %p220 = scmp.ne.s32.totalorder %s208, %s209
    %p221 = scmp.eq.s32.totalorder %s26, 1
    %p222 = por %p220, %p221
    %p224 = scmp.ne.s32.totalorder %s209, %s223
    %p225 = scmp.eq.s32.totalorder %s26, 0
    %p226 = por %p224, %p225
    %s228 = sadd.s32 %s227, 1
    %p231 = scmp.eq.s32.totalorder %s20, 1
    %p232 = scmp.ne.s32.totalorder %s227, %s229
    %p233 = scmp.eq.s32.totalorder %s20, 0
    %p234 = por %p232, %p233
    %p235 = scmp.ne.s32.totalorder %s227, %s229
    %p236 = scmp.eq.s32.totalorder %s25, 1
    %p237 = por %p235, %p236
    %p238 = scmp.ne.s32.totalorder %s229, %s230
    %p239 = scmp.eq.s32.totalorder %s25, 0
    %p240 = por %p238, %p239
    %p241 = scmp.ne.s32.totalorder %s229, %s230
    %p242 = scmp.eq.s32.totalorder %s26, 1
    %p243 = por %p241, %p242
    %p245 = scmp.ne.s32.totalorder %s230, %s244
    %p246 = scmp.eq.s32.totalorder %s26, 0
    %p247 = por %p245, %p246
    %s249 = sadd.s32 %s248, 1
    %p252 = scmp.eq.s32.totalorder %s20, 1
    %p253 = scmp.ne.s32.totalorder %s248, %s250
    %p254 = scmp.eq.s32.totalorder %s20, 0
    %p255 = por %p253, %p254
    %p256 = scmp.ne.s32.totalorder %s248, %s250
    %p257 = scmp.eq.s32.totalorder %s25, 1
    %p258 = por %p256, %p257
    %p259 = scmp.ne.s32.totalorder %s250, %s251
    %p260 = scmp.eq.s32.totalorder %s25, 0
    %p261 = por %p259, %p260
    %p262 = scmp.ne.s32.totalorder %s250, %s251
    %p263 = scmp.eq.s32.totalorder %s26, 1
    %p264 = por %p262, %p263
    %p266 = scmp.ne.s32.totalorder %s251, %s265
    %p267 = scmp.eq.s32.totalorder %s26, 0
    %p268 = por %p266, %p267
    %s270 = sadd.s32 %s269, 1
    %p273 = scmp.eq.s32.totalorder %s20, 1
    %p274 = scmp.ne.s32.totalorder %s269, %s271
    %p275 = scmp.eq.s32.totalorder %s20, 0
    %p276 = por %p274, %p275
    %p277 = scmp.ne.s32.totalorder %s269, %s271
    %p278 = scmp.eq.s32.totalorder %s25, 1
    %p279 = por %p277, %p278
    %p280 = scmp.ne.s32.totalorder %s271, %s272
    %p281 = scmp.eq.s32.totalorder %s25, 0
    %p282 = por %p280, %p281
    %p283 = scmp.ne.s32.totalorder %s271, %s272
    %p284 = scmp.eq.s32.totalorder %s26, 1
    %p285 = por %p283, %p284
    %p287 = scmp.ne.s32.totalorder %s272, %s286
    %p288 = scmp.eq.s32.totalorder %s26, 0
    %p289 = por %p287, %p288
    %s291 = sadd.s32 %s290, 1
    %p294 = scmp.eq.s32.totalorder %s20, 1
    %p295 = scmp.ne.s32.totalorder %s290, %s292
    %p296 = scmp.eq.s32.totalorder %s20, 0
    %p297 = por %p295, %p296
    %p298 = scmp.ne.s32.totalorder %s290, %s292
    %p299 = scmp.eq.s32.totalorder %s25, 1
    %p300 = por %p298, %p299
    %p301 = scmp.ne.s32.totalorder %s292, %s293
    %p302 = scmp.eq.s32.totalorder %s25, 0
    %p303 = por %p301, %p302
    %p304 = scmp.ne.s32.totalorder %s292, %s293
    %p305 = scmp.eq.s32.totalorder %s26, 1
    %p306 = por %p304, %p305
    %p308 = scmp.ne.s32.totalorder %s293, %s307
    %p309 = scmp.eq.s32.totalorder %s26, 0
    %p310 = por %p308, %p309
    %s312 = sadd.s32 %s311, 1
    %p315 = scmp.eq.s32.totalorder %s20, 1
    %p316 = scmp.ne.s32.totalorder %s311, %s313
    %p317 = scmp.eq.s32.totalorder %s20, 0
    %p318 = por %p316, %p317
    %p319 = scmp.ne.s32.totalorder %s311, %s313
    %p320 = scmp.eq.s32.totalorder %s25, 1
    %p321 = por %p319, %p320
    %p322 = scmp.ne.s32.totalorder %s313, %s314
    %p323 = scmp.eq.s32.totalorder %s25, 0
    %p324 = por %p322, %p323
    %p325 = scmp.ne.s32.totalorder %s313, %s314
    %p326 = scmp.eq.s32.totalorder %s26, 1
    %p327 = por %p325, %p326
    %p329 = scmp.ne.s32.totalorder %s314, %s328
    %p330 = scmp.eq.s32.totalorder %s26, 0
    %p331 = por %p329, %p330
    %s332 = ssub.s32 %s20, %s27
    %p333 = scmp.eq.s32.totalorder %s332, 0
    %s335 = sadd.s32 %s334, 1
    %s336 = scalar_select %p333, %s334, %s335
    %p339 = pneg %p333
    %p340 = scmp.eq.s32.totalorder %s20, 1
    %p341 = por %p339, %p340
    %p342 = scmp.ne.s32.totalorder %s334, %s337
    %p343 = scmp.eq.s32.totalorder %s20, 0
    %p344 = por %p342, %p343
    %p345 = scmp.ne.s32.totalorder %s334, %s337
    %p346 = scmp.eq.s32.totalorder %s25, 1
    %p347 = por %p345, %p346
    %p348 = scmp.ne.s32.totalorder %s337, %s338
    %p349 = scmp.eq.s32.totalorder %s25, 0
    %p350 = por %p348, %p349
    %p351 = scmp.ne.s32.totalorder %s337, %s338
    %p352 = scmp.eq.s32.totalorder %s26, 1
    %p353 = por %p351, %p352
    %p355 = scmp.ne.s32.totalorder %s338, %s354
    %p356 = scmp.eq.s32.totalorder %s26, 0
    %p357 = por %p355, %p356
    %p358 = scmp.le.s32.totalorder 1, %s20
    %p359 = scmp.lt.s32.totalorder %s20, 3
    %p360 = pnand %p358, %p359
    %p361 = pneg %p360
    // Predicated region
    $region9: #{nmt_forward.9} parent=5 // pred_check
      _
    $region10: #{nmt_forward.9} parent=5 // pred_check_branch
      %363 = sbr.rel (%p360) target = $region12
    $region11: #{nmt_forward.9} parent=5 // pred_region
      %s364 = ssub.s32 %s20, 1
      // Predicated region
      $region13: #{nmt_forward.9} parent=11 // pred_check
        %p365 = pneg %p93
      $region14: #{nmt_forward.9} parent=11 // pred_check_branch
        %367 = sbr.rel (%p365) target = $region16
      $region15: #{nmt_forward.9} parent=11 // pred_region
        _
      $region16: #{nmt_forward.9} parent=11 // pred_fallthru
        _
      // Predicated region
      $region17: #{nmt_forward.9} parent=11 // pred_check
        %p368 = pneg %p114
      $region18: #{nmt_forward.9} parent=11 // pred_check_branch
        %370 = sbr.rel (%p368) target = $region20
      $region19: #{nmt_forward.9} parent=11 // pred_region
        _
      $region20: #{nmt_forward.9} parent=11 // pred_fallthru
        _
      // Predicated region
      $region21: #{nmt_forward.9} parent=11 // pred_check
        %p371 = pneg %p135
      $region22: #{nmt_forward.9} parent=11 // pred_check_branch
        %373 = sbr.rel (%p371) target = $region24
      $region23: #{nmt_forward.9} parent=11 // pred_region
        _
      $region24: #{nmt_forward.9} parent=11 // pred_fallthru
        _
      // Predicated region
      $region25: #{nmt_forward.9} parent=11 // pred_check
        %p374 = pneg %p156
      $region26: #{nmt_forward.9} parent=11 // pred_check_branch
        %376 = sbr.rel (%p374) target = $region28
      $region27: #{nmt_forward.9} parent=11 // pred_region
        _
      $region28: #{nmt_forward.9} parent=11 // pred_fallthru
        _
      // Predicated region
      $region29: #{nmt_forward.9} parent=11 // pred_check
        %p377 = pneg %p177
      $region30: #{nmt_forward.9} parent=11 // pred_check_branch
        %379 = sbr.rel (%p377) target = $region32
      $region31: #{nmt_forward.9} parent=11 // pred_region
        _
      $region32: #{nmt_forward.9} parent=11 // pred_fallthru
        _
      // Predicated region
      $region33: #{nmt_forward.9} parent=11 // pred_check
        %p380 = pneg %p198
      $region34: #{nmt_forward.9} parent=11 // pred_check_branch
        %382 = sbr.rel (%p380) target = $region36
      $region35: #{nmt_forward.9} parent=11 // pred_region
        _
      $region36: #{nmt_forward.9} parent=11 // pred_fallthru
        _
      // Predicated region
      $region37: #{nmt_forward.9} parent=11 // pred_check
        %p383 = pneg %p219
      $region38: #{nmt_forward.9} parent=11 // pred_check_branch
        %385 = sbr.rel (%p383) target = $region40
      $region39: #{nmt_forward.9} parent=11 // pred_region
        _
      $region40: #{nmt_forward.9} parent=11 // pred_fallthru
        _
      // Predicated region
      $region41: #{nmt_forward.9} parent=11 // pred_check
        %p386 = pneg %p240
      $region42: #{nmt_forward.9} parent=11 // pred_check_branch
        %388 = sbr.rel (%p386) target = $region44
      $region43: #{nmt_forward.9} parent=11 // pred_region
        _
      $region44: #{nmt_forward.9} parent=11 // pred_fallthru
        _
      // Predicated region
      $region45: #{nmt_forward.9} parent=11 // pred_check
        %p389 = pneg %p261
      $region46: #{nmt_forward.9} parent=11 // pred_check_branch
        %391 = sbr.rel (%p389) target = $region48
      $region47: #{nmt_forward.9} parent=11 // pred_region
        _
      $region48: #{nmt_forward.9} parent=11 // pred_fallthru
        _
      // Predicated region
      $region49: #{nmt_forward.9} parent=11 // pred_check
        %p392 = pneg %p282
      $region50: #{nmt_forward.9} parent=11 // pred_check_branch
        %394 = sbr.rel (%p392) target = $region52
      $region51: #{nmt_forward.9} parent=11 // pred_region
        _
      $region52: #{nmt_forward.9} parent=11 // pred_fallthru
        _
      // Predicated region
      $region53: #{nmt_forward.9} parent=11 // pred_check
        %p395 = pneg %p303
      $region54: #{nmt_forward.9} parent=11 // pred_check_branch
        %397 = sbr.rel (%p395) target = $region56
      $region55: #{nmt_forward.9} parent=11 // pred_region
        _
      $region56: #{nmt_forward.9} parent=11 // pred_fallthru
        _
      // Predicated region
      $region57: #{nmt_forward.9} parent=11 // pred_check
        %p398 = pneg %p324
      $region58: #{nmt_forward.9} parent=11 // pred_check_branch
        %400 = sbr.rel (%p398) target = $region60
      $region59: #{nmt_forward.9} parent=11 // pred_region
        _
      $region60: #{nmt_forward.9} parent=11 // pred_fallthru
        _
    $region12: #{nmt_forward.9} parent=5 // pred_fallthru
      _
    %p401 = scmp.lt.s32.totalorder %s20, 2
    // Predicated region
    $region61: #{nmt_forward.9} parent=5 // pred_check
      %p402 = pneg %p401
    $region62: #{nmt_forward.9} parent=5 // pred_check_branch
      %404 = sbr.rel (%p402) target = $region64
    $region63: #{nmt_forward.9} parent=5 // pred_region
      // Predicated region
      $region65: #{nmt_forward.9} parent=63 // pred_check
        %p405 = pneg %p40
      $region66: #{nmt_forward.9} parent=63 // pred_check_branch
        %407 = sbr.rel (%p405) target = $region68
      $region67: #{nmt_forward.9} parent=63 // pred_region
        %p408 = scmp.lt.s32.totalorder %s20, 1
        %s409 = scalar_select %p408, %s20, 1
        %s410 = smul.addr %s409, 2
        %s411 = smul.addr %s410, 8
        %s412 = scalar_lea.vmem %s0, %s411
      $region68: #{nmt_forward.9} parent=63 // pred_fallthru
        _
      // Predicated region
      $region69: #{nmt_forward.9} parent=63 // pred_check
        %p413 = pneg %p66
      $region70: #{nmt_forward.9} parent=63 // pred_check_branch
        %415 = sbr.rel (%p413) target = $region72
      $region71: #{nmt_forward.9} parent=63 // pred_region
        %p416 = scmp.lt.s32.totalorder %s20, 1
        %s417 = scalar_select %p416, %s20, 1
        %s418 = scalar_lea.vmem %s1, %s417
      $region72: #{nmt_forward.9} parent=63 // pred_fallthru
        _
    $region64: #{nmt_forward.9} parent=5 // pred_fallthru
      _
    %p419 = scmp.le.s32.totalorder 1, %s20
    %p420 = scmp.lt.s32.totalorder %s20, 3
    %p421 = pnand %p419, %p420
    %p422 = pneg %p421
    // Predicated region
    $region73: #{nmt_forward.9} parent=5 // pred_check
      _
    $region74: #{nmt_forward.9} parent=5 // pred_check_branch
      %424 = sbr.rel (%p421) target = $region76
    $region75: #{nmt_forward.9} parent=5 // pred_region
      %s425 = ssub.s32 %s20, 1
      %p426 = scmp.lt.s32.totalorder %s25, 1
      %s427 = scalar_select %p426, %s25, 1
      %s428 = smul.addr %s427, 2
      %s429 = smul.addr %s428, 8
      %s430 = scalar_lea.vmem %s0, %s429
      %p431 = pneg %p46
      %p432 = pneg %p43
      %p433 = scmp.lt.s32.totalorder %s25, 1
      %s434 = scalar_select %p433, %s25, 1
      %s435 = scalar_lea.vmem %s1, %s434
      %p436 = pneg %p72
      %p437 = pneg %p69
      %p438 = pneg %p93
      %p439 = pneg %p90
      %p440 = pneg %p114
      %p441 = pneg %p111
      %p442 = pneg %p135
      %p443 = pneg %p132
      %p444 = pneg %p156
      %p445 = pneg %p153
      %p446 = pneg %p177
      %p447 = pneg %p174
      %p448 = pneg %p198
      %p449 = pneg %p195
      %p450 = pneg %p219
      %p451 = pneg %p216
      %p452 = pneg %p240
      %p453 = pneg %p237
      %p454 = pneg %p261
      %p455 = pneg %p258
      %p456 = pneg %p282
      %p457 = pneg %p279
      %p458 = pneg %p303
      %p459 = pneg %p300
      %p460 = pneg %p324
      %p461 = pneg %p321
      %p462 = pneg %p350
      %p463 = pneg %p347
      %p464 = scmp.lt.s32.totalorder %s25, 1
      %s465 = scalar_select %p464, %s25, 1
      %s466 = smul.addr %s465, 2
      %s467 = smul.addr %s466, 8
      %s468 = scalar_lea.vmem %s14, %s467
      %p469 = scmp.lt.s32.totalorder %s25, 1
      %s470 = scalar_select %p469, %s25, 1
      %s471 = smul.addr %s470, 2
      %s472 = smul.addr %s471, 8
      %s473 = scalar_lea.vmem %s0, %s472
      %p474 = scmp.lt.s32.totalorder %s25, 1
      %s475 = scalar_select %p474, %s25, 1
      %s476 = scalar_lea.vmem %s1, %s475
      %p477 = scmp.lt.s32.totalorder %s25, 1
      %s478 = scalar_select %p477, %s25, 1
      %s479 = smul.addr %s478, 2
      %s480 = smul.addr %s479, 8
      %s481 = scalar_lea.vmem %s14, %s480
      %v483 = vld [vmem:[%s473] sm:$0xff]
      %v484 = vld [vmem:[%s473 + $0x8] sm:$0x3]
      %v485 = vld [vmem:[%s476] sm:$0x1]
      %v486 = vmul.f32 %v485, -1e+09
      %v487 = vld [vmem:[%s2] sm:$0x1]
      %v488 = vld [vmem:[%s3] sm:$0x1]
      %vm489 = vcmask 523264
      %v490 = vsel %vm489, %v483, 0.0
      %491 = vadd.xlane.f32.xlu0 %v490
      %v492 = vpop.xlane.xlu0 %491
      %vm493 = vcmask 517120
      %v494 = vsel %vm493, %v484, 0.0
      %495 = vadd.xlane.f32.xlu0 %v494
      %v496 = vpop.xlane.xlu0 %495
      %v497 = vrcp.pop 64.0
      %v498 = vmul.f32 %v492, %v497
      %v499 = vmul.f32 %v496, %v497
      %v500 = vsub.f32 %v483, %v498
      %v501 = vsub.f32 %v484, %v499
      %v502 = vmul.f32 %v500, %v500
      %v503 = vmul.f32 %v501, %v501
      %v504 = vsel %vm489, %v502, 0.0
      %505 = vadd.xlane.f32.xlu0 %v504
      %v506 = vpop.xlane.xlu0 %505
      %v507 = vsel %vm493, %v503, 0.0
      %508 = vadd.xlane.f32.xlu0 %v507
      %v509 = vpop.xlane.xlu0 %508
      %v510 = vmul.f32 %v506, %v497
      %v511 = vmul.f32 %v509, %v497
      %v512 = vadd.f32 %v510, 1e-05
      %v513 = vadd.f32 %v511, 1e-05
      %v514 = vrsqrt.pop %v512
      %v515 = vrsqrt.pop %v513
      %v516 = vmul.f32 %v500, %v514
      %v517 = vmul.f32 %v501, %v515
      %v519 = vlaneseq
      %v520 = vshrl.u32 %v519, 7
      %v521 = vsub.s32 0, %v520
      %v522 = vrot.slane %v487, %v521
      %v524 = vmul.f32 %v516, %v522
      %v525 = vmul.f32 %v517, %v522
      %v527 = vlaneseq
      %v528 = vshrl.u32 %v527, 7
      %v529 = vsub.s32 0, %v528
      %v530 = vrot.slane %v488, %v529
      %v532 = vadd.f32 %v524, %v530
      %v533 = vadd.f32 %v525, %v530
      %v534 = vld [vmem:[%s4] sm:$0xff]
      %v535 = vld [vmem:[%s4 + $0x8] sm:$0xff]
      %v536 = vld [vmem:[%s4 + $0x10] sm:$0xff]
      %v537 = vld [vmem:[%s4 + $0x18] sm:$0xff]
      %v538 = vld [vmem:[%s4 + $0x20] sm:$0xff]
      %v539 = vld [vmem:[%s4 + $0x28] sm:$0xff]
      %v540 = vld [vmem:[%s4 + $0x30] sm:$0xff]
      %v541 = vld [vmem:[%s4 + $0x38] sm:$0xff]
      %v542 = vpack.c.bf16 %v533, %v532
      %v543 = vld [vmem:[%s5] sm:$0x3]
      %v545 = vlaneseq
      %v546 = vshrl.u32 %v545, 7
      %v547 = vsub.s32 0, %v546
      %v548 = vrot.slane %v543, %v547
      %v549 = vlaneseq
      %v550 = vshrl.u32 %v549, 7
      %v551 = vsub.s32 1, %v550
      %v552 = vrot.slane %v543, %v551
      %v563 = vunpack.c.l.b16 %v534
      %v564 = vunpack.c.h.b16 %v534
      %v565 = vunpack.c.l.b16 %v535
      %v566 = vunpack.c.h.b16 %v535
      %v567 = vunpack.c.l.b16 %v536
      %v568 = vunpack.c.h.b16 %v536
      %v569 = vunpack.c.l.b16 %v537
      %v570 = vunpack.c.h.b16 %v537
      %v571 = vunpack.c.l.b16 %v538
      %v572 = vunpack.c.h.b16 %v538
      %v573 = vunpack.c.l.b16 %v539
      %v574 = vunpack.c.h.b16 %v539
      %v575 = vunpack.c.l.b16 %v540
      %v576 = vunpack.c.h.b16 %v540
      %v577 = vunpack.c.l.b16 %v541
      %v578 = vunpack.c.h.b16 %v541
      %v579 = vpack.c.b16 %v565, %v563
      %v580 = vpack.c.b16 %v566, %v564
      %v581 = vpack.c.b16 %v569, %v567
      %v582 = vpack.c.b16 %v570, %v568
      %v583 = vpack.c.b16 %v573, %v571
      %v584 = vpack.c.b16 %v574, %v572
      %v585 = vpack.c.b16 %v577, %v575
      %v586 = vpack.c.b16 %v578, %v576
      %v596 = vsel %vm489, %v542, 0
      %598 = vmatprep.subr.bf16.mxu0 %v580
      %599 = vmatpush1.bf16.msra.mxu0 %v579
      %600 = vmatprep.subr.bf16.mxu0 %v582
      %601 = vmatpush1.bf16.msra.mxu0 %v581
      %602 = vmatprep.subr.bf16.mxu0 %v584
      %603 = vmatpush1.bf16.msra.mxu0 %v583
      %604 = vmatprep.subr.bf16.mxu0 %v586
      %605 = vmatpush1.bf16.msra.mxu0 %v585
      %606 = vmatprep.subr.bf16.mxu0 0
      %607 = vmatpush1.bf16.msra.mxu0 0
      %608 = vmatprep.subr.bf16.mxu0 0
      %609 = vmatpush1.bf16.msra.mxu0 0
      %610 = vmatprep.subr.bf16.mxu0 0
      %611 = vmatpush1.bf16.msra.mxu0 0
      %612 = vmatprep.subr.bf16.mxu0 0
      %613 = vmatpush1.bf16.msra.mxu0 0
      %614 = vmatprep.subr.bf16.mxu0 0
      %615 = vmatpush1.bf16.msra.mxu0 0
      %616 = vmatprep.subr.bf16.mxu0 0
      %617 = vmatpush1.bf16.msra.mxu0 0
      %618 = vmatprep.subr.bf16.mxu0 0
      %619 = vmatpush1.bf16.msra.mxu0 0
      %620 = vmatprep.subr.bf16.mxu0 0
      %621 = vmatpush1.bf16.msra.mxu0 0
      %622 = vmatprep.subr.bf16.mxu0 0
      %623 = vmatpush1.bf16.msra.mxu0 0
      %624 = vmatprep.subr.bf16.mxu0 0
      %625 = vmatpush1.bf16.msra.mxu0 0
      %626 = vmatprep.subr.bf16.mxu0 0
      %627 = vmatpush1.bf16.msra.mxu0 0
      %628 = vmatprep.subr.bf16.mxu0 0
      %629 = vmatpush1.bf16.msra.mxu0 0
      %630 = vmatprep.mubr.bf16.mxu0 0
      %631 = vmatmul.mubr.bf16.gmra.mrb[0].mxu0 %v596
      %v632 = vpop.f32.mrb[0].mxu0
      %v633 = vadd.f32 %v548, %v632
      %v634 = vpop.f32.mrb[0].mxu0
      %v635 = vadd.f32 %v552, %v634
      %v636 = vpop.f32.mrb[0].mxu0
      %v637 = vadd.f32 %v548, %v636
      %v638 = vpop.f32.mrb[0].mxu0
      %v639 = vadd.f32 %v552, %v638
      %640 = vdwg.mxu0
      %v641 = vld [vmem:[%s6] sm:$0xf]
      %v642 = vld [vmem:[%s6 + $0x4] sm:$0xf]
      %v643 = vld [vmem:[%s6 + $0x8] sm:$0xf]
      %v644 = vld [vmem:[%s6 + $0xc] sm:$0xf]
      %v645 = vld [vmem:[%s6 + $0x10] sm:$0xf]
      %v646 = vld [vmem:[%s6 + $0x14] sm:$0xf]
      %v647 = vld [vmem:[%s6 + $0x18] sm:$0xf]
      %v648 = vld [vmem:[%s6 + $0x1c] sm:$0xf]
      %v649 = vld [vmem:[%s7] sm:$0x1]
      %v650 = vpack.c.bf16 %v637, %v633
      %v651 = vpack.c.bf16 %v639, %v635
      %653 = vrot.lane.b32.xlu0 %v650, 64
      %v654 = vpop.permute.xlu0 %653
      %vm655 = vcmask 130048
      %v657 = vsel %vm655, %v650, 0
      %v660 = vsel %vm655, %v654, 0
      %662 = vmatprep.subr.bf16.mxu0 0
      %663 = vmatpush1.bf16.xpose.msra.mxu0 %v660
      %664 = vmatprep.subr.bf16.mxu0 0
      %665 = vmatpush1.bf16.xpose.msra.mxu0 0
      %666 = vmatprep.subr.bf16.mxu0 0
      %667 = vmatpush1.bf16.xpose.msra.mxu0 0
      %668 = vmatprep.subr.bf16.mxu0 0
      %669 = vmatpush1.bf16.xpose.msra.mxu0 0
      %670 = vmatprep.subr.bf16.mxu0 0
      %671 = vmatpush1.bf16.xpose.msra.mxu0 0
      %672 = vmatprep.subr.bf16.mxu0 0
      %673 = vmatpush1.bf16.xpose.msra.mxu0 0
      %674 = vmatprep.subr.bf16.mxu0 0
      %675 = vmatpush1.bf16.xpose.msra.mxu0 0
      %676 = vmatprep.subr.bf16.mxu0 0
      %677 = vmatpush1.bf16.xpose.msra.mxu0 0
      %678 = vmatprep.subr.bf16.mxu0 0
      %679 = vmatpush1.bf16.xpose.msra.mxu0 0
      %680 = vmatprep.subr.bf16.mxu0 0
      %681 = vmatpush1.bf16.xpose.msra.mxu0 0
      %682 = vmatprep.subr.bf16.mxu0 0
      %683 = vmatpush1.bf16.xpose.msra.mxu0 0
      %684 = vmatprep.subr.bf16.mxu0 0
      %685 = vmatpush1.bf16.xpose.msra.mxu0 0
      %686 = vmatprep.subr.bf16.mxu0 0
      %687 = vmatpush1.bf16.xpose.msra.mxu0 0
      %688 = vmatprep.subr.bf16.mxu0 0
      %689 = vmatpush1.bf16.xpose.msra.mxu0 0
      %690 = vmatprep.subr.bf16.mxu0 0
      %691 = vmatpush1.bf16.xpose.msra.mxu0 0
      %692 = vmatprep.subr.bf16.mxu0 0
      %693 = vmatpush1.bf16.xpose.msra.mxu0 0
      %694 = vmatprep.mubr.bf16.mxu0 0
      %695 = vmatmul.mubr.bf16.gmra.mrb[0].mxu0 %v657
      %v696 = vpop.f32.mrb[0].mxu0
      %v697 = vadd.f32 0.0, %v696
      %v698 = vpop.f32.mrb[0].mxu0
      %v699 = vpop.f32.mrb[0].mxu0
      %v700 = vadd.f32 0.0, %v699
      %v701 = vpop.f32.mrb[0].mxu0
      %702 = vdwg.mxu0
      %v703 = vmul.f32 %v697, 0.25
      %v704 = vmul.f32 %v700, 0.25
      %v706 = vlaneseq
      %v707 = vshrl.u32 %v706, 7
      %v708 = vsub.s32 0, %v707
      %v709 = vrot.slane %v486, %v708
      %v711 = vadd.f32 %v703, %v709
      %v712 = vadd.f32 %v704, %v709
      %vm713 = vcmask 80896
      %v714 = vsel %vm713, %v711, -inf
      %715 = vmax.xlane.f32.xlu0 %v714
      %v716 = vpop.xlane.xlu0 %715
      %vm717 = vcmask 74752
      %v718 = vsel %vm717, %v712, -inf
      %719 = vmax.xlane.f32.xlu0 %v718
      %v720 = vpop.xlane.xlu0 %719
      %v721 = vsub.f32 %v711, %v716
      %v722 = vsub.f32 %v712, %v720
      %v723 = vmul.f32 %v721, 1.442695
      %v724 = vpow.pop %v723
      %v725 = vmul.f32 %v722, 1.442695
      %v726 = vpow.pop %v725
      %v727 = vsel %vm713, %v724, 0.0
      %728 = vadd.xlane.f32.xlu0 %v727
      %v729 = vpop.xlane.xlu0 %728
      %v730 = vsel %vm717, %v726, 0.0
      %731 = vadd.xlane.f32.xlu0 %v730
      %v732 = vpop.xlane.xlu0 %731
      %v733 = vrcp.pop %v729
      %v734 = vrcp.pop %v732
      %v735 = vmul.f32 %v724, %v733
      %v736 = vmul.f32 %v726, %v734
      %v737 = vpack.c.bf16 %v736, %v735
      %v739 = vsel %vm713, %v737, 0
      %vm741 = vcmask 1044480
      %v743 = vsel %vm741, %v651, 0
      %745 = vmatprep.subr.bf16.mxu0 0
      %746 = vmatpush1.bf16.msra.mxu0 %v743
      %747 = vmatprep.subr.bf16.mxu0 0
      %748 = vmatpush1.bf16.msra.mxu0 0
      %749 = vmatprep.subr.bf16.mxu0 0
      %750 = vmatpush1.bf16.msra.mxu0 0
      %751 = vmatprep.subr.bf16.mxu0 0
      %752 = vmatpush1.bf16.msra.mxu0 0
      %753 = vmatprep.subr.bf16.mxu0 0
      %754 = vmatpush1.bf16.msra.mxu0 0
      %755 = vmatprep.subr.bf16.mxu0 0
      %756 = vmatpush1.bf16.msra.mxu0 0
      %757 = vmatprep.subr.bf16.mxu0 0
      %758 = vmatpush1.bf16.msra.mxu0 0
      %759 = vmatprep.subr.bf16.mxu0 0
      %760 = vmatpush1.bf16.msra.mxu0 0
      %761 = vmatprep.subr.bf16.mxu0 0
      %762 = vmatpush1.bf16.msra.mxu0 0
      %763 = vmatprep.subr.bf16.mxu0 0
      %764 = vmatpush1.bf16.msra.mxu0 0
      %765 = vmatprep.subr.bf16.mxu0 0
      %766 = vmatpush1.bf16.msra.mxu0 0
      %767 = vmatprep.subr.bf16.mxu0 0
      %768 = vmatpush1.bf16.msra.mxu0 0
      %769 = vmatprep.subr.bf16.mxu0 0
      %770 = vmatpush1.bf16.msra.mxu0 0
      %771 = vmatprep.subr.bf16.mxu0 0
      %772 = vmatpush1.bf16.msra.mxu0 0
      %773 = vmatprep.subr.bf16.mxu0 0
      %774 = vmatpush1.bf16.msra.mxu0 0
      %775 = vmatprep.subr.bf16.mxu0 0
      %776 = vmatpush1.bf16.msra.mxu0 0
      %777 = vmatprep.mubr.bf16.mxu0 0
      %778 = vmatmul.mubr.bf16.gmra.mrb[0].mxu0 %v739
      %v779 = vpop.f32.mrb[0].mxu0
      %v780 = vadd.f32 0.0, %v779
      %v781 = vpop.f32.mrb[0].mxu0
      %v782 = vpop.f32.mrb[0].mxu0
      %v783 = vadd.f32 0.0, %v782
      %v784 = vpop.f32.mrb[0].mxu0
      %785 = vdwg.mxu0
      %v786 = vpack.c.bf16 %v783, %v780
      %787 = vrot.lane.b32.xlu0 %v650, 112
      %v788 = vpop.permute.xlu0 %787
      %789 = vrot.lane.b32.xlu0 %v650, 48
      %v790 = vpop.permute.xlu0 %789
      %v792 = vsel %vm655, %v788, 0
      %v795 = vsel %vm655, %v790, 0
      %797 = vmatprep.subr.bf16.mxu0 0
      %798 = vmatpush1.bf16.xpose.msra.mxu0 %v795
      %799 = vmatprep.subr.bf16.mxu0 0
      %800 = vmatpush1.bf16.xpose.msra.mxu0 0
      %801 = vmatprep.subr.bf16.mxu0 0
      %802 = vmatpush1.bf16.xpose.msra.mxu0 0
      %803 = vmatprep.subr.bf16.mxu0 0
      %804 = vmatpush1.bf16.xpose.msra.mxu0 0
      %805 = vmatprep.subr.bf16.mxu0 0
      %806 = vmatpush1.bf16.xpose.msra.mxu0 0
      %807 = vmatprep.subr.bf16.mxu0 0
      %808 = vmatpush1.bf16.xpose.msra.mxu0 0
      %809 = vmatprep.subr.bf16.mxu0 0
      %810 = vmatpush1.bf16.xpose.msra.mxu0 0
      %811 = vmatprep.subr.bf16.mxu0 0
      %812 = vmatpush1.bf16.xpose.msra.mxu0 0
      %813 = vmatprep.subr.bf16.mxu0 0
      %814 = vmatpush1.bf16.xpose.msra.mxu0 0
      %815 = vmatprep.subr.bf16.mxu0 0
      %816 = vmatpush1.bf16.xpose.msra.mxu0 0
      %817 = vmatprep.subr.bf16.mxu0 0
      %818 = vmatpush1.bf16.xpose.msra.mxu0 0
      %819 = vmatprep.subr.bf16.mxu0 0
      %820 = vmatpush1.bf16.xpose.msra.mxu0 0
      %821 = vmatprep.subr.bf16.mxu0 0
      %822 = vmatpush1.bf16.xpose.msra.mxu0 0
      %823 = vmatprep.subr.bf16.mxu0 0
      %824 = vmatpush1.bf16.xpose.msra.mxu0 0
      %825 = vmatprep.subr.bf16.mxu0 0
      %826 = vmatpush1.bf16.xpose.msra.mxu0 0
      %827 = vmatprep.subr.bf16.mxu0 0
      %828 = vmatpush1.bf16.xpose.msra.mxu0 0
      %829 = vmatprep.mubr.bf16.mxu0 0
      %830 = vmatmul.mubr.bf16.gmra.mrb[0].mxu0 %v792
      %v831 = vpop.f32.mrb[0].mxu0
      %v832 = vadd.f32 0.0, %v831
      %v833 = vpop.f32.mrb[0].mxu0
      %v834 = vpop.f32.mrb[0].mxu0
      %v835 = vadd.f32 0.0, %v834
      %v836 = vpop.f32.mrb[0].mxu0
      %837 = vdwg.mxu0
      %v838 = vmul.f32 %v832, 0.25
      %v839 = vmul.f32 %v835, 0.25
      %v840 = vadd.f32 %v838, %v709
      %v841 = vadd.f32 %v839, %v709
      %v842 = vsel %vm713, %v840, -inf
      %843 = vmax.xlane.f32.xlu0 %v842
      %v844 = vpop.xlane.xlu0 %843
      %v845 = vsel %vm717, %v841, -inf
      %846 = vmax.xlane.f32.xlu0 %v845
      %v847 = vpop.xlane.xlu0 %846
      %v848 = vsub.f32 %v840, %v844
      %v849 = vsub.f32 %v841, %v847
      %v850 = vmul.f32 %v848, 1.442695
      %v851 = vpow.pop %v850
      %v852 = vmul.f32 %v849, 1.442695
      %v853 = vpow.pop %v852
      %v854 = vsel %vm713, %v851, 0.0
      %855 = vadd.xlane.f32.xlu0 %v854
      %v856 = vpop.xlane.xlu0 %855
      %v857 = vsel %vm717, %v853, 0.0
      %858 = vadd.xlane.f32.xlu0 %v857
      %v859 = vpop.xlane.xlu0 %858
      %v860 = vrcp.pop %v856
      %v861 = vrcp.pop %v859
      %v862 = vmul.f32 %v851, %v860
      %v863 = vmul.f32 %v853, %v861
      %v864 = vpack.c.bf16 %v863, %v862
      %866 = vrot.lane.b32.xlu0 %v651, 112
      %v867 = vpop.permute.xlu0 %866
      %v869 = vsel %vm713, %v864, 0
      %v872 = vsel %vm741, %v867, 0
      %874 = vmatprep.subr.bf16.mxu0 0
      %875 = vmatpush1.bf16.msra.mxu0 %v872
      %876 = vmatprep.subr.bf16.mxu0 0
      %877 = vmatpush1.bf16.msra.mxu0 0
      %878 = vmatprep.subr.bf16.mxu0 0
      %879 = vmatpush1.bf16.msra.mxu0 0
      %880 = vmatprep.subr.bf16.mxu0 0
      %881 = vmatpush1.bf16.msra.mxu0 0
      %882 = vmatprep.subr.bf16.mxu0 0
      %883 = vmatpush1.bf16.msra.mxu0 0
      %884 = vmatprep.subr.bf16.mxu0 0
      %885 = vmatpush1.bf16.msra.mxu0 0
      %886 = vmatprep.subr.bf16.mxu0 0
      %887 = vmatpush1.bf16.msra.mxu0 0
      %888 = vmatprep.subr.bf16.mxu0 0
      %889 = vmatpush1.bf16.msra.mxu0 0
      %890 = vmatprep.subr.bf16.mxu0 0
      %891 = vmatpush1.bf16.msra.mxu0 0
      %892 = vmatprep.subr.bf16.mxu0 0
      %893 = vmatpush1.bf16.msra.mxu0 0
      %894 = vmatprep.subr.bf16.mxu0 0
      %895 = vmatpush1.bf16.msra.mxu0 0
      %896 = vmatprep.subr.bf16.mxu0 0
      %897 = vmatpush1.bf16.msra.mxu0 0
      %898 = vmatprep.subr.bf16.mxu0 0
      %899 = vmatpush1.bf16.msra.mxu0 0
      %900 = vmatprep.subr.bf16.mxu0 0
      %901 = vmatpush1.bf16.msra.mxu0 0
      %902 = vmatprep.subr.bf16.mxu0 0
      %903 = vmatpush1.bf16.msra.mxu0 0
      %904 = vmatprep.subr.bf16.mxu0 0
      %905 = vmatpush1.bf16.msra.mxu0 0
      %906 = vmatprep.mubr.bf16.mxu0 0
      %907 = vmatmul.mubr.bf16.gmra.mrb[0].mxu0 %v869
      %v908 = vpop.f32.mrb[0].mxu0
      %v909 = vadd.f32 0.0, %v908
      %v910 = vpop.f32.mrb[0].mxu0
      %v911 = vpop.f32.mrb[0].mxu0
      %v912 = vadd.f32 0.0, %v911
      %v913 = vpop.f32.mrb[0].mxu0
      %914 = vdwg.mxu0
      %v915 = vpack.c.bf16 %v912, %v909
      %v918 = vunpack.c.l.b16 %v643
      %v919 = vunpack.c.l.b16 %v644
      %v920 = vpack.c.b16 %v919, %v918
      %v923 = vsel %vm655, %v915, 0
      %925 = vmatprep.subr.bf16.mxu0 0
      %926 = vmatpush1.bf16.msra.mxu0 %v920
      %927 = vmatprep.subr.bf16.mxu0 0
      %928 = vmatpush1.bf16.msra.mxu0 0
      %929 = vmatprep.subr.bf16.mxu0 0
      %930 = vmatpush1.bf16.msra.mxu0 0
      %931 = vmatprep.subr.bf16.mxu0 0
      %932 = vmatpush1.bf16.msra.mxu0 0
      %933 = vmatprep.subr.bf16.mxu0 0
      %934 = vmatpush1.bf16.msra.mxu0 0
      %935 = vmatprep.subr.bf16.mxu0 0
      %936 = vmatpush1.bf16.msra.mxu0 0
      %937 = vmatprep.subr.bf16.mxu0 0
      %938 = vmatpush1.bf16.msra.mxu0 0
      %939 = vmatprep.subr.bf16.mxu0 0
      %940 = vmatpush1.bf16.msra.mxu0 0
      %941 = vmatprep.subr.bf16.mxu0 0
      %942 = vmatpush1.bf16.msra.mxu0 0
      %943 = vmatprep.subr.bf16.mxu0 0
      %944 = vmatpush1.bf16.msra.mxu0 0
      %945 = vmatprep.subr.bf16.mxu0 0
      %946 = vmatpush1.bf16.msra.mxu0 0
      %947 = vmatprep.subr.bf16.mxu0 0
      %948 = vmatpush1.bf16.msra.mxu0 0
      %949 = vmatprep.subr.bf16.mxu0 0
      %950 = vmatpush1.bf16.msra.mxu0 0
      %951 = vmatprep.subr.bf16.mxu0 0
      %952 = vmatpush1.bf16.msra.mxu0 0
      %953 = vmatprep.subr.bf16.mxu0 0
      %954 = vmatpush1.bf16.msra.mxu0 0
      %955 = vmatprep.subr.bf16.mxu0 0
      %956 = vmatpush1.bf16.msra.mxu0 0
      %957 = vmatprep.mubr.bf16.mxu0 0
      %958 = vmatmul.mubr.bf16.gmra.mrb[0].mxu0 %v923
      %v959 = vpop.f32.mrb[0].mxu0
      %v960 = vadd.f32 0.0, %v959
      %v961 = vpop.f32.mrb[0].mxu0
      %v962 = vpop.f32.mrb[0].mxu0
      %v963 = vadd.f32 0.0, %v962
      %v964 = vpop.f32.mrb[0].mxu0
      %965 = vdwg.mxu0
      %v968 = vunpack.c.l.b16 %v641
      %v969 = vunpack.c.l.b16 %v642
      %v970 = vpack.c.b16 %v969, %v968
      %v973 = vsel %vm655, %v786, 0
      %975 = vmatprep.subr.bf16.mxu0 0
      %976 = vmatpush1.bf16.msra.mxu0 %v970
      %977 = vmatprep.subr.bf16.mxu0 0
      %978 = vmatpush1.bf16.msra.mxu0 0
      %979 = vmatprep.subr.bf16.mxu0 0
      %980 = vmatpush1.bf16.msra.mxu0 0
      %981 = vmatprep.subr.bf16.mxu0 0
      %982 = vmatpush1.bf16.msra.mxu0 0
      %983 = vmatprep.subr.bf16.mxu0 0
      %984 = vmatpush1.bf16.msra.mxu0 0
      %985 = vmatprep.subr.bf16.mxu0 0
      %986 = vmatpush1.bf16.msra.mxu0 0
      %987 = vmatprep.subr.bf16.mxu0 0
      %988 = vmatpush1.bf16.msra.mxu0 0
      %989 = vmatprep.subr.bf16.mxu0 0
      %990 = vmatpush1.bf16.msra.mxu0 0
      %991 = vmatprep.subr.bf16.mxu0 0
      %992 = vmatpush1.bf16.msra.mxu0 0
      %993 = vmatprep.subr.bf16.mxu0 0
      %994 = vmatpush1.bf16.msra.mxu0 0
      %995 = vmatprep.subr.bf16.mxu0 0
      %996 = vmatpush1.bf16.msra.mxu0 0
      %997 = vmatprep.subr.bf16.mxu0 0
      %998 = vmatpush1.bf16.msra.mxu0 0
      %999 = vmatprep.subr.bf16.mxu0 0
      %1000 = vmatpush1.bf16.msra.mxu0 0
      %1001 = vmatprep.subr.bf16.mxu0 0
      %1002 = vmatpush1.bf16.msra.mxu0 0
      %1003 = vmatprep.subr.bf16.mxu0 0
      %1004 = vmatpush1.bf16.msra.mxu0 0
      %1005 = vmatprep.subr.bf16.mxu0 0
      %1006 = vmatpush1.bf16.msra.mxu0 0
      %1007 = vmatprep.mubr.bf16.mxu0 0
      %1008 = vmatmul.mubr.bf16.gmra.mrb[0].mxu0 %v973
      %v1009 = vpop.f32.mrb[0].mxu0
      %v1010 = vadd.f32 %v960, %v1009
      %v1011 = vpop.f32.mrb[0].mxu0
      %v1012 = vpop.f32.mrb[0].mxu0
      %v1013 = vadd.f32 %v963, %v1012
      %v1014 = vpop.f32.mrb[0].mxu0
      %1015 = vdwg.mxu0
      %1016 = vrot.lane.b32.xlu0 %v650, 96
      %v1017 = vpop.permute.xlu0 %1016
      %1018 = vrot.lane.b32.xlu0 %v650, 32
      %v1019 = vpop.permute.xlu0 %1018
      %v1021 = vsel %vm655, %v1017, 0
      %v1024 = vsel %vm655, %v1019, 0
      %1026 = vmatprep.subr.bf16.mxu0 0
      %1027 = vmatpush1.bf16.xpose.msra.mxu0 %v1024
      %1028 = vmatprep.subr.bf16.mxu0 0
      %1029 = vmatpush1.bf16.xpose.msra.mxu0 0
      %1030 = vmatprep.subr.bf16.mxu0 0
      %1031 = vmatpush1.bf16.xpose.msra.mxu0 0
      %1032 = vmatprep.subr.bf16.mxu0 0
      %1033 = vmatpush1.bf16.xpose.msra.mxu0 0
      %1034 = vmatprep.subr.bf16.mxu0 0
      %1035 = vmatpush1.bf16.xpose.msra.mxu0 0
      %1036 = vmatprep.subr.bf16.mxu0 0
      %1037 = vmatpush1.bf16.xpose.msra.mxu0 0
      %1038 = vmatprep.subr.bf16.mxu0 0
      %1039 = vmatpush1.bf16.xpose.msra.mxu0 0
      %1040 = vmatprep.subr.bf16.mxu0 0
      %1041 = vmatpush1.bf16.xpose.msra.mxu0 0
      %1042 = vmatprep.subr.bf16.mxu0 0
      %1043 = vmatpush1.bf16.xpose.msra.mxu0 0
      %1044 = vmatprep.subr.bf16.mxu0 0
      %1045 = vmatpush1.bf16.xpose.msra.mxu0 0
      %1046 = vmatprep.subr.bf16.mxu0 0
      %1047 = vmatpush1.bf16.xpose.msra.mxu0 0
      %1048 = vmatprep.subr.bf16.mxu0 0
      %1049 = vmatpush1.bf16.xpose.msra.mxu0 0
      %1050 = vmatprep.subr.bf16.mxu0 0
      %1051 = vmatpush1.bf16.xpose.msra.mxu0 0
      %1052 = vmatprep.subr.bf16.mxu0 0
      %1053 = vmatpush1.bf16.xpose.msra.mxu0 0
      %1054 = vmatprep.subr.bf16.mxu0 0
      %1055 = vmatpush1.bf16.xpose.msra.mxu0 0
      %1056 = vmatprep.subr.bf16.mxu0 0
      %1057 = vmatpush1.bf16.xpose.msra.mxu0 0
      %1058 = vmatprep.mubr.bf16.mxu0 0
      %1059 = vmatmul.mubr.bf16.gmra.mrb[0].mxu0 %v1021
      %v1060 = vpop.f32.mrb[0].mxu0
      %v1061 = vadd.f32 0.0, %v1060
      %v1062 = vpop.f32.mrb[0].mxu0
      %v1063 = vpop.f32.mrb[0].mxu0
      %v1064 = vadd.f32 0.0, %v1063
      %v1065 = vpop.f32.mrb[0].mxu0
      %1066 = vdwg.mxu0
      %v1067 = vmul.f32 %v1061, 0.25
      %v1068 = vmul.f32 %v1064, 0.25
      %v1069 = vadd.f32 %v1067, %v709
      %v1070 = vadd.f32 %v1068, %v709
      %v1071 = vsel %vm713, %v1069, -inf
      %1072 = vmax.xlane.f32.xlu0 %v1071
      %v1073 = vpop.xlane.xlu0 %1072
      %v1074 = vsel %vm717, %v1070, -inf
      %1075 = vmax.xlane.f32.xlu0 %v1074
      %v1076 = vpop.xlane.xlu0 %1075
      %v1077 = vsub.f32 %v1069, %v1073
      %v1078 = vsub.f32 %v1070, %v1076
      %v1079 = vmul.f32 %v1077, 1.442695
      %v1080 = vpow.pop %v1079
      %v1081 = vmul.f32 %v1078, 1.442695
      %v1082 = vpow.pop %v1081
      %v1083 = vsel %vm713, %v1080, 0.0
      %1084 = vadd.xlane.f32.xlu0 %v1083
      %v1085 = vpop.xlane.xlu0 %1084
      %v1086 = vsel %vm717, %v1082, 0.0
      %1087 = vadd.xlane.f32.xlu0 %v1086
      %v1088 = vpop.xlane.xlu0 %1087
      %v1089 = vrcp.pop %v1085
      %v1090 = vrcp.pop %v1088
      %v1091 = vmul.f32 %v1080, %v1089
      %v1092 = vmul.f32 %v1082, %v1090
      %v1093 = vpack.c.bf16 %v1092, %v1091
      %1094 = vrot.lane.b32.xlu0 %v651, 96
      %v1095 = vpop.permute.xlu0 %1094
      %v1097 = vsel %vm713, %v1093, 0
      %v1100 = vsel %vm741, %v1095, 0
      %1102 = vmatprep.subr.bf16.mxu0 0
      %1103 = vmatpush1.bf16.msra.mxu0 %v1100
      %1104 = vmatprep.subr.bf16.mxu0 0
      %1105 = vmatpush1.bf16.msra.mxu0 0
      %1106 = vmatprep.subr.bf16.mxu0 0
      %1107 = vmatpush1.bf16.msra.mxu0 0
      %1108 = vmatprep.subr.bf16.mxu0 0
      %1109 = vmatpush1.bf16.msra.mxu0 0
      %1110 = vmatprep.subr.bf16.mxu0 0
      %1111 = vmatpush1.bf16.msra.mxu0 0
      %1112 = vmatprep.subr.bf16.mxu0 0
      %1113 = vmatpush1.bf16.msra.mxu0 0
      %1114 = vmatprep.subr.bf16.mxu0 0
      %1115 = vmatpush1.bf16.msra.mxu0 0
      %1116 = vmatprep.subr.bf16.mxu0 0
      %1117 = vmatpush1.bf16.msra.mxu0 0
      %1118 = vmatprep.subr.bf16.mxu0 0
      %1119 = vmatpush1.bf16.msra.mxu0 0
      %1120 = vmatprep.subr.bf16.mxu0 0
      %1121 = vmatpush1.bf16.msra.mxu0 0
      %1122 = vmatprep.subr.bf16.mxu0 0
      %1123 = vmatpush1.bf16.msra.mxu0 0
      %1124 = vmatprep.subr.bf16.mxu0 0
      %1125 = vmatpush1.bf16.msra.mxu0 0
      %1126 = vmatprep.subr.bf16.mxu0 0
      %1127 = vmatpush1.bf16.msra.mxu0 0
      %1128 = vmatprep.subr.bf16.mxu0 0
      %1129 = vmatpush1.bf16.msra.mxu0 0
      %1130 = vmatprep.subr.bf16.mxu0 0
      %1131 = vmatpush1.bf16.msra.mxu0 0
      %1132 = vmatprep.subr.bf16.mxu0 0
      %1133 = vmatpush1.bf16.msra.mxu0 0
      %1134 = vmatprep.mubr.bf16.mxu0 0
      %1135 = vmatmul.mubr.bf16.gmra.mrb[0].mxu0 %v1097
      %v1136 = vpop.f32.mrb[0].mxu0
      %v1137 = vadd.f32 0.0, %v1136
      %v1138 = vpop.f32.mrb[0].mxu0
      %v1139 = vpop.f32.mrb[0].mxu0
      %v1140 = vadd.f32 0.0, %v1139
      %v1141 = vpop.f32.mrb[0].mxu0
      %1142 = vdwg.mxu0
      %v1143 = vpack.c.bf16 %v1140, %v1137
      %v1146 = vunpack.c.l.b16 %v645
      %v1147 = vunpack.c.l.b16 %v646
      %v1148 = vpack.c.b16 %v1147, %v1146
      %v1151 = vsel %vm655, %v1143, 0
      %1153 = vmatprep.subr.bf16.mxu0 0
      %1154 = vmatpush1.bf16.msra.mxu0 %v1148
      %1155 = vmatprep.subr.bf16.mxu0 0
      %1156 = vmatpush1.bf16.msra.mxu0 0
      %1157 = vmatprep.subr.bf16.mxu0 0
      %1158 = vmatpush1.bf16.msra.mxu0 0
      %1159 = vmatprep.subr.bf16.mxu0 0
      %1160 = vmatpush1.bf16.msra.mxu0 0
      %1161 = vmatprep.subr.bf16.mxu0 0
      %1162 = vmatpush1.bf16.msra.mxu0 0
      %1163 = vmatprep.subr.bf16.mxu0 0
      %1164 = vmatpush1.bf16.msra.mxu0 0
      %1165 = vmatprep.subr.bf16.mxu0 0
      %1166 = vmatpush1.bf16.msra.mxu0 0
      %1167 = vmatprep.subr.bf16.mxu0 0
      %1168 = vmatpush1.bf16.msra.mxu0 0
      %1169 = vmatprep.subr.bf16.mxu0 0
      %1170 = vmatpush1.bf16.msra.mxu0 0
      %1171 = vmatprep.subr.bf16.mxu0 0
      %1172 = vmatpush1.bf16.msra.mxu0 0
      %1173 = vmatprep.subr.bf16.mxu0 0
      %1174 = vmatpush1.bf16.msra.mxu0 0
      %1175 = vmatprep.subr.bf16.mxu0 0
      %1176 = vmatpush1.bf16.msra.mxu0 0
      %1177 = vmatprep.subr.bf16.mxu0 0
      %1178 = vmatpush1.bf16.msra.mxu0 0
      %1179 = vmatprep.subr.bf16.mxu0 0
      %1180 = vmatpush1.bf16.msra.mxu0 0
      %1181 = vmatprep.subr.bf16.mxu0 0
      %1182 = vmatpush1.bf16.msra.mxu0 0
      %1183 = vmatprep.subr.bf16.mxu0 0
      %1184 = vmatpush1.bf16.msra.mxu0 0
      %1185 = vmatprep.mubr.bf16.mxu0 0
      %1186 = vmatmul.mubr.bf16.gmra.mrb[0].mxu0 %v1151
      %v1187 = vpop.f32.mrb[0].mxu0
      %v1188 = vadd.f32 0.0, %v1187
      %v1189 = vpop.f32.mrb[0].mxu0
      %v1190 = vpop.f32.mrb[0].mxu0
      %v1191 = vadd.f32 0.0, %v1190
      %v1192 = vpop.f32.mrb[0].mxu0
      %1193 = vdwg.mxu0
      %v1194 = vadd.f32 %v1010, %v1188
      %v1195 = vadd.f32 %v1013, %v1191
      %1196 = vrot.lane.b32.xlu0 %v650, 80
      %v1197 = vpop.permute.xlu0 %1196
      %1198 = vrot.lane.b32.xlu0 %v650, 16
      %v1199 = vpop.permute.xlu0 %1198
      %v1201 = vsel %vm655, %v1197, 0
      %v1204 = vsel %vm655, %v1199, 0
      %1206 = vmatprep.subr.bf16.mxu0 0
      %1207 = vmatpush1.bf16.xpose.msra.mxu0 %v1204
      %1208 = vmatprep.subr.bf16.mxu0 0
      %1209 = vmatpush1.bf16.xpose.msra.mxu0 0
      %1210 = vmatprep.subr.bf16.mxu0 0
      %1211 = vmatpush1.bf16.xpose.msra.mxu0 0
      %1212 = vmatprep.subr.bf16.mxu0 0
      %1213 = vmatpush1.bf16.xpose.msra.mxu0 0
      %1214 = vmatprep.subr.bf16.mxu0 0
      %1215 = vmatpush1.bf16.xpose.msra.mxu0 0
      %1216 = vmatprep.subr.bf16.mxu0 0
      %1217 = vmatpush1.bf16.xpose.msra.mxu0 0
      %1218 = vmatprep.subr.bf16.mxu0 0
      %1219 = vmatpush1.bf16.xpose.msra.mxu0 0
      %1220 = vmatprep.subr.bf16.mxu0 0
      %1221 = vmatpush1.bf16.xpose.msra.mxu0 0
      %1222 = vmatprep.subr.bf16.mxu0 0
      %1223 = vmatpush1.bf16.xpose.msra.mxu0 0
      %1224 = vmatprep.subr.bf16.mxu0 0
      %1225 = vmatpush1.bf16.xpose.msra.mxu0 0
      %1226 = vmatprep.subr.bf16.mxu0 0
      %1227 = vmatpush1.bf16.xpose.msra.mxu0 0
      %1228 = vmatprep.subr.bf16.mxu0 0
      %1229 = vmatpush1.bf16.xpose.msra.mxu0 0
      %1230 = vmatprep.subr.bf16.mxu0 0
      %1231 = vmatpush1.bf16.xpose.msra.mxu0 0
      %1232 = vmatprep.subr.bf16.mxu0 0
      %1233 = vmatpush1.bf16.xpose.msra.mxu0 0
      %1234 = vmatprep.subr.bf16.mxu0 0
      %1235 = vmatpush1.bf16.xpose.msra.mxu0 0
      %1236 = vmatprep.subr.bf16.mxu0 0
      %1237 = vmatpush1.bf16.xpose.msra.mxu0 0
      %1238 = vmatprep.mubr.bf16.mxu0 0
      %1239 = vmatmul.mubr.bf16.gmra.mrb[0].mxu0 %v1201
      %v1240 = vpop.f32.mrb[0].mxu0
      %v1241 = vadd.f32 0.0, %v1240
      %v1242 = vpop.f32.mrb[0].mxu0
      %v1243 = vpop.f32.mrb[0].mxu0
      %v1244 = vadd.f32 0.0, %v1243
      %v1245 = vpop.f32.mrb[0].mxu0
      %1246 = vdwg.mxu0
      %v1247 = vmul.f32 %v1241, 0.25
      %v1248 = vmul.f32 %v1244, 0.25
      %v1249 = vadd.f32 %v1247, %v709
      %v1250 = vadd.f32 %v1248, %v709
      %v1251 = vsel %vm713, %v1249, -inf
      %1252 = vmax.xlane.f32.xlu0 %v1251
      %v1253 = vpop.xlane.xlu0 %1252
      %v1254 = vsel %vm717, %v1250, -inf
      %1255 = vmax.xlane.f32.xlu0 %v1254
      %v1256 = vpop.xlane.xlu0 %1255
      %v1257 = vsub.f32 %v1249, %v1253
      %v1258 = vsub.f32 %v1250, %v1256
      %v1259 = vmul.f32 %v1257, 1.442695
      %v1260 = vpow.pop %v1259
      %v1261 = vmul.f32 %v1258, 1.442695
      %v1262 = vpow.pop %v1261
      %v1263 = vsel %vm713, %v1260, 0.0
      %1264 = vadd.xlane.f32.xlu0 %v1263
      %v1265 = vpop.xlane.xlu0 %1264
      %v1266 = vsel %vm717, %v1262, 0.0
      %1267 = vadd.xlane.f32.xlu0 %v1266
      %v1268 = vpop.xlane.xlu0 %1267
      %v1269 = vrcp.pop %v1265
      %v1270 = vrcp.pop %v1268
      %v1271 = vmul.f32 %v1260, %v1269
      %v1272 = vmul.f32 %v1262, %v1270
      %v1273 = vpack.c.bf16 %v1272, %v1271
      %1274 = vrot.lane.b32.xlu0 %v651, 80
      %v1275 = vpop.permute.xlu0 %1274
      %v1277 = vsel %vm713, %v1273, 0
      %v1280 = vsel %vm741, %v1275, 0
      %1282 = vmatprep.subr.bf16.mxu0 0
      %1283 = vmatpush1.bf16.msra.mxu0 %v1280
      %1284 = vmatprep.subr.bf16.mxu0 0
      %1285 = vmatpush1.bf16.msra.mxu0 0
      %1286 = vmatprep.subr.bf16.mxu0 0
      %1287 = vmatpush1.bf16.msra.mxu0 0
      %1288 = vmatprep.subr.bf16.mxu0 0
      %1289 = vmatpush1.bf16.msra.mxu0 0
      %1290 = vmatprep.subr.bf16.mxu0 0
      %1291 = vmatpush1.bf16.msra.mxu0 0
      %1292 = vmatprep.subr.bf16.mxu0 0
      %1293 = vmatpush1.bf16.msra.mxu0 0
      %1294 = vmatprep.subr.bf16.mxu0 0
      %1295 = vmatpush1.bf16.msra.mxu0 0
      %1296 = vmatprep.subr.bf16.mxu0 0
      %1297 = vmatpush1.bf16.msra.mxu0 0
      %1298 = vmatprep.subr.bf16.mxu0 0
      %1299 = vmatpush1.bf16.msra.mxu0 0
      %1300 = vmatprep.subr.bf16.mxu0 0
      %1301 = vmatpush1.bf16.msra.mxu0 0
      %1302 = vmatprep.subr.bf16.mxu0 0
      %1303 = vmatpush1.bf16.msra.mxu0 0
      %1304 = vmatprep.subr.bf16.mxu0 0
      %1305 = vmatpush1.bf16.msra.mxu0 0
      %1306 = vmatprep.subr.bf16.mxu0 0
      %1307 = vmatpush1.bf16.msra.mxu0 0
      %1308 = vmatprep.subr.bf16.mxu0 0
      %1309 = vmatpush1.bf16.msra.mxu0 0
      %1310 = vmatprep.subr.bf16.mxu0 0
      %1311 = vmatpush1.bf16.msra.mxu0 0
      %1312 = vmatprep.subr.bf16.mxu0 0
      %1313 = vmatpush1.bf16.msra.mxu0 0
      %1314 = vmatprep.mubr.bf16.mxu0 0
      %1315 = vmatmul.mubr.bf16.gmra.mrb[0].mxu0 %v1277
      %v1316 = vpop.f32.mrb[0].mxu0
      %v1317 = vadd.f32 0.0, %v1316
      %v1318 = vpop.f32.mrb[0].mxu0
      %v1319 = vpop.f32.mrb[0].mxu0
      %v1320 = vadd.f32 0.0, %v1319
      %v1321 = vpop.f32.mrb[0].mxu0
      %1322 = vdwg.mxu0
      %v1323 = vpack.c.bf16 %v1320, %v1317
      %v1326 = vunpack.c.l.b16 %v647
      %v1327 = vunpack.c.l.b16 %v648
      %v1328 = vpack.c.b16 %v1327, %v1326
      %v1331 = vsel %vm655, %v1323, 0
      %1333 = vmatprep.subr.bf16.mxu0 0
      %1334 = vmatpush1.bf16.msra.mxu0 %v1328
      %1335 = vmatprep.subr.bf16.mxu0 0
      %1336 = vmatpush1.bf16.msra.mxu0 0
      %1337 = vmatprep.subr.bf16.mxu0 0
      %1338 = vmatpush1.bf16.msra.mxu0 0
      %1339 = vmatprep.subr.bf16.mxu0 0
      %1340 = vmatpush1.bf16.msra.mxu0 0
      %1341 = vmatprep.subr.bf16.mxu0 0
      %1342 = vmatpush1.bf16.msra.mxu0 0
      %1343 = vmatprep.subr.bf16.mxu0 0
      %1344 = vmatpush1.bf16.msra.mxu0 0
      %1345 = vmatprep.subr.bf16.mxu0 0
      %1346 = vmatpush1.bf16.msra.mxu0 0
      %1347 = vmatprep.subr.bf16.mxu0 0
      %1348 = vmatpush1.bf16.msra.mxu0 0
      %1349 = vmatprep.subr.bf16.mxu0 0
      %1350 = vmatpush1.bf16.msra.mxu0 0
      %1351 = vmatprep.subr.bf16.mxu0 0
      %1352 = vmatpush1.bf16.msra.mxu0 0
      %1353 = vmatprep.subr.bf16.mxu0 0
      %1354 = vmatpush1.bf16.msra.mxu0 0
      %1355 = vmatprep.subr.bf16.mxu0 0
      %1356 = vmatpush1.bf16.msra.mxu0 0
      %1357 = vmatprep.subr.bf16.mxu0 0
      %1358 = vmatpush1.bf16.msra.mxu0 0
      %1359 = vmatprep.subr.bf16.mxu0 0
      %1360 = vmatpush1.bf16.msra.mxu0 0
      %1361 = vmatprep.subr.bf16.mxu0 0
      %1362 = vmatpush1.bf16.msra.mxu0 0
      %1363 = vmatprep.subr.bf16.mxu0 0
      %1364 = vmatpush1.bf16.msra.mxu0 0
      %1365 = vmatprep.mubr.bf16.mxu0 0
      %1366 = vmatmul.mubr.bf16.gmra.mrb[0].mxu0 %v1331
      %v1367 = vpop.f32.mrb[0].mxu0
      %v1368 = vadd.f32 0.0, %v1367
      %v1369 = vpop.f32.mrb[0].mxu0
      %v1370 = vpop.f32.mrb[0].mxu0
      %v1371 = vadd.f32 0.0, %v1370
      %v1372 = vpop.f32.mrb[0].mxu0
      %1373 = vdwg.mxu0
      %v1374 = vadd.f32 %v1194, %v1368
      %v1375 = vadd.f32 %v1195, %v1371
      %v1377 = vlaneseq
      %v1378 = vshrl.u32 %v1377, 7
      %v1379 = vsub.s32 0, %v1378
      %v1380 = vrot.slane %v649, %v1379
      %v1382 = vadd.f32 %v1374, %v1380
      %v1383 = vadd.f32 %v1375, %v1380
      %v1384 = vadd.f32 %v483, %v1382
      %v1385 = vadd.f32 %v484, %v1383
      %v1386 = vld [vmem:[%s8] sm:$0x1]
      %v1387 = vld [vmem:[%s9] sm:$0x1]
      %v1388 = vsel %vm489, %v1384, 0.0
      %1389 = vadd.xlane.f32.xlu0 %v1388
      %v1390 = vpop.xlane.xlu0 %1389
      %v1391 = vsel %vm493, %v1385, 0.0
      %1392 = vadd.xlane.f32.xlu0 %v1391
      %v1393 = vpop.xlane.xlu0 %1392
      %v1394 = vmul.f32 %v1390, %v497
      %v1395 = vmul.f32 %v1393, %v497
      %v1396 = vsub.f32 %v1384, %v1394
      %v1397 = vsub.f32 %v1385, %v1395
      %v1398 = vmul.f32 %v1396, %v1396
      %v1399 = vmul.f32 %v1397, %v1397
      %v1400 = vsel %vm489, %v1398, 0.0
      %1401 = vadd.xlane.f32.xlu0 %v1400
      %v1402 = vpop.xlane.xlu0 %1401
      %v1403 = vsel %vm493, %v1399, 0.0
      %1404 = vadd.xlane.f32.xlu0 %v1403
      %v1405 = vpop.xlane.xlu0 %1404
      %v1406 = vmul.f32 %v1402, %v497
      %v1407 = vmul.f32 %v1405, %v497
      %v1408 = vadd.f32 %v1406, 1e-05
      %v1409 = vadd.f32 %v1407, 1e-05
      %v1410 = vrsqrt.pop %v1408
      %v1411 = vrsqrt.pop %v1409
      %v1412 = vmul.f32 %v1396, %v1410
      %v1413 = vmul.f32 %v1397, %v1411
      %v1415 = vlaneseq
      %v1416 = vshrl.u32 %v1415, 7
      %v1417 = vsub.s32 0, %v1416
      %v1418 = vrot.slane %v1386, %v1417
      %v1420 = vmul.f32 %v1412, %v1418
      %v1421 = vmul.f32 %v1413, %v1418
      %v1423 = vlaneseq
      %v1424 = vshrl.u32 %v1423, 7
      %v1425 = vsub.s32 0, %v1424
      %v1426 = vrot.slane %v1387, %v1425
      %v1428 = vadd.f32 %v1420, %v1426
      %v1429 = vadd.f32 %v1421, %v1426
      %v1430 = vld [vmem:[%s10] sm:$0xf]
      %v1431 = vld [vmem:[%s10 + $0x4] sm:$0xf]
      %v1432 = vld [vmem:[%s10 + $0x8] sm:$0xf]
      %v1433 = vld [vmem:[%s10 + $0xc] sm:$0xf]
      %v1434 = vld [vmem:[%s10 + $0x10] sm:$0xf]
      %v1435 = vld [vmem:[%s10 + $0x14] sm:$0xf]
      %v1436 = vld [vmem:[%s10 + $0x18] sm:$0xf]
      %v1437 = vld [vmem:[%s10 + $0x1c] sm:$0xf]
      %v1438 = vpack.c.bf16 %v1429, %v1428
      %v1439 = vld [vmem:[%s11] sm:$0x1]
      %v1441 = vlaneseq
      %v1442 = vshrl.u32 %v1441, 7
      %v1443 = vsub.s32 0, %v1442
      %v1444 = vrot.slane %v1439, %v1443
      %v1454 = vunpack.c.l.b16 %v1430
      %v1455 = vunpack.c.l.b16 %v1431
      %v1456 = vunpack.c.l.b16 %v1432
      %v1457 = vunpack.c.l.b16 %v1433
      %v1458 = vunpack.c.l.b16 %v1434
      %v1459 = vunpack.c.l.b16 %v1435
      %v1460 = vunpack.c.l.b16 %v1436
      %v1461 = vunpack.c.l.b16 %v1437
      %v1462 = vpack.c.b16 %v1455, %v1454
      %v1463 = vpack.c.b16 %v1457, %v1456
      %v1464 = vpack.c.b16 %v1459, %v1458
      %v1465 = vpack.c.b16 %v1461, %v1460
      %v1471 = vsel %vm489, %v1438, 0
      %1473 = vmatprep.subr.bf16.mxu0 0
      %1474 = vmatpush1.bf16.msra.mxu0 %v1462
      %1475 = vmatprep.subr.bf16.mxu0 0
      %1476 = vmatpush1.bf16.msra.mxu0 %v1463
      %1477 = vmatprep.subr.bf16.mxu0 0
      %1478 = vmatpush1.bf16.msra.mxu0 %v1464
      %1479 = vmatprep.subr.bf16.mxu0 0
      %1480 = vmatpush1.bf16.msra.mxu0 %v1465
      %1481 = vmatprep.subr.bf16.mxu0 0
      %1482 = vmatpush1.bf16.msra.mxu0 0
      %1483 = vmatprep.subr.bf16.mxu0 0
      %1484 = vmatpush1.bf16.msra.mxu0 0
      %1485 = vmatprep.subr.bf16.mxu0 0
      %1486 = vmatpush1.bf16.msra.mxu0 0
      %1487 = vmatprep.subr.bf16.mxu0 0
      %1488 = vmatpush1.bf16.msra.mxu0 0
      %1489 = vmatprep.subr.bf16.mxu0 0
      %1490 = vmatpush1.bf16.msra.mxu0 0
      %1491 = vmatprep.subr.bf16.mxu0 0
      %1492 = vmatpush1.bf16.msra.mxu0 0
      %1493 = vmatprep.subr.bf16.mxu0 0
      %1494 = vmatpush1.bf16.msra.mxu0 0
      %1495 = vmatprep.subr.bf16.mxu0 0
      %1496 = vmatpush1.bf16.msra.mxu0 0
      %1497 = vmatprep.subr.bf16.mxu0 0
      %1498 = vmatpush1.bf16.msra.mxu0 0
      %1499 = vmatprep.subr.bf16.mxu0 0
      %1500 = vmatpush1.bf16.msra.mxu0 0
      %1501 = vmatprep.subr.bf16.mxu0 0
      %1502 = vmatpush1.bf16.msra.mxu0 0
      %1503 = vmatprep.subr.bf16.mxu0 0
      %1504 = vmatpush1.bf16.msra.mxu0 0
      %1505 = vmatprep.mubr.bf16.mxu0 0
      %1506 = vmatmul.mubr.bf16.gmra.mrb[0].mxu0 %v1471
      %v1507 = vpop.f32.mrb[0].mxu0
      %v1508 = vadd.f32 %v1444, %v1507
      %v1509 = vpop.f32.mrb[0].mxu0
      %v1510 = vpop.f32.mrb[0].mxu0
      %v1511 = vadd.f32 %v1444, %v1510
      %v1512 = vpop.f32.mrb[0].mxu0
      %1513 = vdwg.mxu0
      %v1514 = vmax.f32 %v1508, 0.0
      %v1515 = vmax.f32 %v1511, 0.0
      %v1516 = vld [vmem:[%s12] sm:$0xf]
      %v1517 = vld [vmem:[%s12 + $0x4] sm:$0xf]
      %v1518 = vld [vmem:[%s12 + $0x8] sm:$0xf]
      %v1519 = vld [vmem:[%s12 + $0xc] sm:$0xf]
      %v1520 = vld [vmem:[%s12 + $0x10] sm:$0xf]
      %v1521 = vld [vmem:[%s12 + $0x14] sm:$0xf]
      %v1522 = vld [vmem:[%s12 + $0x18] sm:$0xf]
      %v1523 = vld [vmem:[%s12 + $0x1c] sm:$0xf]
      %v1524 = vld [vmem:[%s12 + $0x20] sm:$0xf]
      %v1525 = vld [vmem:[%s12 + $0x24] sm:$0xf]
      %v1526 = vld [vmem:[%s12 + $0x28] sm:$0xf]
      %v1527 = vld [vmem:[%s12 + $0x2c] sm:$0xf]
      %v1528 = vld [vmem:[%s12 + $0x30] sm:$0xf]
      %v1529 = vld [vmem:[%s12 + $0x34] sm:$0xf]
      %v1530 = vld [vmem:[%s12 + $0x38] sm:$0xf]
      %v1531 = vld [vmem:[%s12 + $0x3c] sm:$0xf]
      %v1532 = vpack.c.bf16 %v1515, %v1514
      %v1533 = vld [vmem:[%s13] sm:$0x1]
      %v1535 = vlaneseq
      %v1536 = vshrl.u32 %v1535, 7
      %v1537 = vsub.s32 0, %v1536
      %v1538 = vrot.slane %v1533, %v1537
      %v1556 = vunpack.c.l.b16 %v1516
      %v1557 = vunpack.c.l.b16 %v1517
      %v1558 = vunpack.c.l.b16 %v1518
      %v1559 = vunpack.c.l.b16 %v1519
      %v1560 = vunpack.c.l.b16 %v1520
      %v1561 = vunpack.c.l.b16 %v1521
      %v1562 = vunpack.c.l.b16 %v1522
      %v1563 = vunpack.c.l.b16 %v1523
      %v1564 = vunpack.c.l.b16 %v1524
      %v1565 = vunpack.c.l.b16 %v1525
      %v1566 = vunpack.c.l.b16 %v1526
      %v1567 = vunpack.c.l.b16 %v1527
      %v1568 = vunpack.c.l.b16 %v1528
      %v1569 = vunpack.c.l.b16 %v1529
      %v1570 = vunpack.c.l.b16 %v1530
      %v1571 = vunpack.c.l.b16 %v1531
      %v1572 = vpack.c.b16 %v1557, %v1556
      %v1573 = vpack.c.b16 %v1559, %v1558
      %v1574 = vpack.c.b16 %v1561, %v1560
      %v1575 = vpack.c.b16 %v1563, %v1562
      %v1576 = vpack.c.b16 %v1565, %v1564
      %v1577 = vpack.c.b16 %v1567, %v1566
      %v1578 = vpack.c.b16 %v1569, %v1568
      %v1579 = vpack.c.b16 %v1571, %v1570
      %1588 = vmatprep.subr.bf16.mxu0 0
      %1589 = vmatpush1.bf16.msra.mxu0 %v1572
      %1590 = vmatprep.subr.bf16.mxu0 0
      %1591 = vmatpush1.bf16.msra.mxu0 %v1573
      %1592 = vmatprep.subr.bf16.mxu0 0
      %1593 = vmatpush1.bf16.msra.mxu0 %v1574
      %1594 = vmatprep.subr.bf16.mxu0 0
      %1595 = vmatpush1.bf16.msra.mxu0 %v1575
      %1596 = vmatprep.subr.bf16.mxu0 0
      %1597 = vmatpush1.bf16.msra.mxu0 %v1576
      %1598 = vmatprep.subr.bf16.mxu0 0
      %1599 = vmatpush1.bf16.msra.mxu0 %v1577
      %1600 = vmatprep.subr.bf16.mxu0 0
      %1601 = vmatpush1.bf16.msra.mxu0 %v1578
      %1602 = vmatprep.subr.bf16.mxu0 0
      %1603 = vmatpush1.bf16.msra.mxu0 %v1579
      %1604 = vmatprep.subr.bf16.mxu0 0
      %1605 = vmatpush1.bf16.msra.mxu0 0
      %1606 = vmatprep.subr.bf16.mxu0 0
      %1607 = vmatpush1.bf16.msra.mxu0 0
      %1608 = vmatprep.subr.bf16.mxu0 0
      %1609 = vmatpush1.bf16.msra.mxu0 0
      %1610 = vmatprep.subr.bf16.mxu0 0
      %1611 = vmatpush1.bf16.msra.mxu0 0
      %1612 = vmatprep.subr.bf16.mxu0 0
      %1613 = vmatpush1.bf16.msra.mxu0 0
      %1614 = vmatprep.subr.bf16.mxu0 0
      %1615 = vmatpush1.bf16.msra.mxu0 0
      %1616 = vmatprep.subr.bf16.mxu0 0
      %1617 = vmatpush1.bf16.msra.mxu0 0
      %1618 = vmatprep.subr.bf16.mxu0 0
      %1619 = vmatpush1.bf16.msra.mxu0 0
      %1620 = vmatprep.mubr.bf16.mxu0 0
      %1621 = vmatmul.mubr.bf16.gmra.mrb[0].mxu0 %v1532
      %v1622 = vpop.f32.mrb[0].mxu0
      %v1623 = vadd.f32 %v1538, %v1622
      %v1624 = vpop.f32.mrb[0].mxu0
      %v1625 = vpop.f32.mrb[0].mxu0
      %v1626 = vadd.f32 %v1538, %v1625
      %v1627 = vpop.f32.mrb[0].mxu0
      %1628 = vdwg.mxu0
      %v1629 = vadd.f32 %v1384, %v1623
      %v1630 = vadd.f32 %v1385, %v1626
      %1631 = vst.msk [vmem:[%s481] sm:$0xff] %vm489, %v1629
      %1632 = vst.msk [vmem:[%s481 + $0x8] sm:$0x3] %vm493, %v1630
      %p1633 = scmp.lt.s32.totalorder %s25, 1
      %s1634 = scalar_select %p1633, %s25, 1
      %s1635 = smul.addr %s1634, 2
      %s1636 = smul.addr %s1635, 8
      %s1637 = scalar_lea.vmem %s14, %s1636
      // Predicated region
      $region77: #{nmt_forward.9} parent=75 // pred_check
        %p1638 = pneg %p347
      $region78: #{nmt_forward.9} parent=75 // pred_check_branch
        %1640 = sbr.rel (%p1638) target = $region80
      $region79: #{nmt_forward.9} parent=75 // pred_region
        _
      $region80: #{nmt_forward.9} parent=75 // pred_fallthru
        _
    $region76: #{nmt_forward.9} parent=5 // pred_fallthru
      _
    %p1641 = scmp.le.s32.totalorder 2, %s20
    // Predicated region
    $region81: #{nmt_forward.9} parent=5 // pred_check
      %p1642 = pneg %p1641
    $region82: #{nmt_forward.9} parent=5 // pred_check_branch
      %1644 = sbr.rel (%p1642) target = $region84
    $region83: #{nmt_forward.9} parent=5 // pred_region
      %s1645 = ssub.s32 %s20, 2
      // Predicated region
      $region85: #{nmt_forward.9} parent=83 // pred_check
        %p1646 = pneg %p353
      $region86: #{nmt_forward.9} parent=83 // pred_check_branch
        %1648 = sbr.rel (%p1646) target = $region88
      $region87: #{nmt_forward.9} parent=83 // pred_region
        %p1649 = scmp.lt.s32.totalorder %s26, 1
        %s1650 = scalar_select %p1649, %s26, 1
        %s1651 = smul.addr %s1650, 2
        %s1652 = smul.addr %s1651, 8
        %s1653 = scalar_lea.vmem %s14, %s1652
      $region88: #{nmt_forward.9} parent=83 // pred_fallthru
        _
    $region84: #{nmt_forward.9} parent=5 // pred_fallthru
      _
  $region6: #{nmt_forward.9} parent=0 // loop_footer
    %s24 = sadd.s32 1, %s20
  $region7: #{nmt_forward.9} parent=0 // loop_footer_branch
    %19 = sbr.rel target = $region3
  $region8: #{nmt_forward.9} parent=0 // loop_exit
    _

// kernel: nmt_forward.14
$region0: #{nmt_forward.14}
  #allocation0 [shape = 'u32[]', space=smem, size = 0x4, offset = 0x4, fixed_abs, tag = 'smem constant byte address 0x4 - core index']
  #allocation1 [shape = 'u32[144,128]{1,0:T(1,128)}', space=vmem, size = 0x12000, scoped, tag = 'internal scratch']
  %s0 = inlined_call_operand.vmem [shape: f32[16,64], index: 0, kind: input, shape index: {}]
  %s1 = inlined_call_operand.vmem [shape: f32[1,64], index: 1, kind: input, shape index: {}]
  %s2 = inlined_call_operand.vmem [shape: f32[1,64], index: 2, kind: input, shape index: {}]
  %s3 = inlined_call_operand.vmem [shape: bf16[64,128], index: 3, kind: input, shape index: {}]
  %s4 = inlined_call_operand.vmem [shape: f32[1,128], index: 4, kind: input, shape index: {}]
  %s5 = inlined_call_operand.vmem [shape: f32[16,128], index: 5, kind: output, shape index: {}]
  %s6 = sld [smem:[#allocation0]]
  $region30: #{nmt_forward.14} parent=0
    _
  %s8 = ssub.s32 1, %s6
  %s9 = scalar_select 0, %s8, %s6
  // Predicated region
  $region2: #{nmt_forward.14} parent=0 // pred_check
    _
  $region3: #{nmt_forward.14} parent=0 // pred_check_branch
    %11 = sbr.rel (0) target = $region5
  $region4: #{nmt_forward.14} parent=0 // pred_region
    _
  $region5: #{nmt_forward.14} parent=0 // pred_fallthru
    _
  // Predicated region
  $region6: #{nmt_forward.14} parent=0 // pred_check
    _
  $region7: #{nmt_forward.14} parent=0 // pred_check_branch
    %13 = sbr.rel (0) target = $region9
  $region8: #{nmt_forward.14} parent=0 // pred_region
    _
  $region9: #{nmt_forward.14} parent=0 // pred_fallthru
    _
  // Predicated region
  $region10: #{nmt_forward.14} parent=0 // pred_check
    _
  $region11: #{nmt_forward.14} parent=0 // pred_check_branch
    %15 = sbr.rel (0) target = $region13
  $region12: #{nmt_forward.14} parent=0 // pred_region
    _
  $region13: #{nmt_forward.14} parent=0 // pred_fallthru
    _
  // Predicated region
  $region14: #{nmt_forward.14} parent=0 // pred_check
    _
  $region15: #{nmt_forward.14} parent=0 // pred_check_branch
    %17 = sbr.rel (0) target = $region17
  $region16: #{nmt_forward.14} parent=0 // pred_region
    _
  $region17: #{nmt_forward.14} parent=0 // pred_fallthru
    _
  // Predicated region
  $region18: #{nmt_forward.14} parent=0 // pred_check
    _
  $region19: #{nmt_forward.14} parent=0 // pred_check_branch
    %19 = sbr.rel (0) target = $region21
  $region20: #{nmt_forward.14} parent=0 // pred_region
    _
  $region21: #{nmt_forward.14} parent=0 // pred_fallthru
    _
  %v21 = vld [vmem:[%s0] sm:$0xff]
  %v22 = vld [vmem:[%s0 + $0x8] sm:$0xff]
  %v23 = vld [vmem:[%s1] sm:$0x1]
  %v24 = vld [vmem:[%s2] sm:$0x1]
  %vm25 = vcmask 523264
  %v26 = vsel %vm25, %v21, 0.0
  %27 = vadd.xlane.f32.xlu0 %v26
  %v28 = vpop.xlane.xlu0 %27
  %v29 = vsel %vm25, %v22, 0.0
  %30 = vadd.xlane.f32.xlu0 %v29
  %v31 = vpop.xlane.xlu0 %30
  %v32 = vrcp.pop 64.0
  %v33 = vmul.f32 %v28, %v32
  %v34 = vmul.f32 %v31, %v32
  %v35 = vsub.f32 %v21, %v33
  %v36 = vsub.f32 %v22, %v34
  %v37 = vmul.f32 %v35, %v35
  %v38 = vmul.f32 %v36, %v36
  %v39 = vsel %vm25, %v37, 0.0
  %40 = vadd.xlane.f32.xlu0 %v39
  %v41 = vpop.xlane.xlu0 %40
  %v42 = vsel %vm25, %v38, 0.0
  %43 = vadd.xlane.f32.xlu0 %v42
  %v44 = vpop.xlane.xlu0 %43
  %v45 = vmul.f32 %v41, %v32
  %v46 = vmul.f32 %v44, %v32
  %v47 = vadd.f32 %v45, 1e-05
  %v48 = vadd.f32 %v46, 1e-05
  %v49 = vrsqrt.pop %v47
  %v50 = vrsqrt.pop %v48
  %v51 = vmul.f32 %v35, %v49
  %v52 = vmul.f32 %v36, %v50
  %v54 = vlaneseq
  %v55 = vshrl.u32 %v54, 7
  %v56 = vsub.s32 0, %v55
  %v57 = vrot.slane %v23, %v56
  %v59 = vmul.f32 %v51, %v57
  %v60 = vmul.f32 %v52, %v57
  %v62 = vlaneseq
  %v63 = vshrl.u32 %v62, 7
  %v64 = vsub.s32 0, %v63
  %v65 = vrot.slane %v24, %v64
  %v67 = vadd.f32 %v59, %v65
  %v68 = vadd.f32 %v60, %v65
  %v69 = vld [vmem:[%s3] sm:$0xf]
  %v70 = vld [vmem:[%s3 + $0x4] sm:$0xf]
  %v71 = vld [vmem:[%s3 + $0x8] sm:$0xf]
  %v72 = vld [vmem:[%s3 + $0xc] sm:$0xf]
  %v73 = vld [vmem:[%s3 + $0x10] sm:$0xf]
  %v74 = vld [vmem:[%s3 + $0x14] sm:$0xf]
  %v75 = vld [vmem:[%s3 + $0x18] sm:$0xf]
  %v76 = vld [vmem:[%s3 + $0x1c] sm:$0xf]
  %v77 = vpack.c.bf16 %v68, %v67
  %v78 = vld [vmem:[%s4] sm:$0x1]
  %v80 = vlaneseq
  %v81 = vshrl.u32 %v80, 7
  %v82 = vsub.s32 0, %v81
  %v83 = vrot.slane %v78, %v82
  %v93 = vunpack.c.l.b16 %v69
  %v94 = vunpack.c.l.b16 %v70
  %v95 = vunpack.c.l.b16 %v71
  %v96 = vunpack.c.l.b16 %v72
  %v97 = vunpack.c.l.b16 %v73
  %v98 = vunpack.c.l.b16 %v74
  %v99 = vunpack.c.l.b16 %v75
  %v100 = vunpack.c.l.b16 %v76
  %v101 = vpack.c.b16 %v94, %v93
  %v102 = vpack.c.b16 %v96, %v95
  %v103 = vpack.c.b16 %v98, %v97
  %v104 = vpack.c.b16 %v100, %v99
  %v110 = vsel %vm25, %v77, 0
  %112 = vmatprep.subr.bf16.mxu0 0
  %113 = vmatpush1.bf16.msra.mxu0 %v101
  %114 = vmatprep.subr.bf16.mxu0 0
  %115 = vmatpush1.bf16.msra.mxu0 %v102
  %116 = vmatprep.subr.bf16.mxu0 0
  %117 = vmatpush1.bf16.msra.mxu0 %v103
  %118 = vmatprep.subr.bf16.mxu0 0
  %119 = vmatpush1.bf16.msra.mxu0 %v104
  %120 = vmatprep.subr.bf16.mxu0 0
  %121 = vmatpush1.bf16.msra.mxu0 0
  %122 = vmatprep.subr.bf16.mxu0 0
  %123 = vmatpush1.bf16.msra.mxu0 0
  %124 = vmatprep.subr.bf16.mxu0 0
  %125 = vmatpush1.bf16.msra.mxu0 0
  %126 = vmatprep.subr.bf16.mxu0 0
  %127 = vmatpush1.bf16.msra.mxu0 0
  %128 = vmatprep.subr.bf16.mxu0 0
  %129 = vmatpush1.bf16.msra.mxu0 0
  %130 = vmatprep.subr.bf16.mxu0 0
  %131 = vmatpush1.bf16.msra.mxu0 0
  %132 = vmatprep.subr.bf16.mxu0 0
  %133 = vmatpush1.bf16.msra.mxu0 0
  %134 = vmatprep.subr.bf16.mxu0 0
  %135 = vmatpush1.bf16.msra.mxu0 0
  %136 = vmatprep.subr.bf16.mxu0 0
  %137 = vmatpush1.bf16.msra.mxu0 0
  %138 = vmatprep.subr.bf16.mxu0 0
  %139 = vmatpush1.bf16.msra.mxu0 0
  %140 = vmatprep.subr.bf16.mxu0 0
  %141 = vmatpush1.bf16.msra.mxu0 0
  %142 = vmatprep.subr.bf16.mxu0 0
  %143 = vmatpush1.bf16.msra.mxu0 0
  %144 = vmatprep.mubr.bf16.mxu0 0
  %145 = vmatmul.mubr.bf16.gmra.mrb[0].mxu0 %v110
  %v146 = vpop.f32.mrb[0].mxu0
  %v147 = vadd.f32 %v83, %v146
  %v148 = vpop.f32.mrb[0].mxu0
  %v149 = vpop.f32.mrb[0].mxu0
  %v150 = vadd.f32 %v83, %v149
  %v151 = vpop.f32.mrb[0].mxu0
  %152 = vdwg.mxu0
  %153 = vmax.xlane.f32.xlu0 %v147
  %v154 = vpop.xlane.xlu0 %153
  %155 = vmax.xlane.f32.xlu0 %v150
  %v156 = vpop.xlane.xlu0 %155
  %v157 = vsub.f32 %v147, %v154
  %v158 = vsub.f32 %v150, %v156
  %v159 = vmul.f32 %v157, 1.442695
  %v160 = vpow.pop %v159
  %v161 = vmul.f32 %v158, 1.442695
  %v162 = vpow.pop %v161
  %163 = vadd.xlane.f32.xlu0 %v160
  %v164 = vpop.xlane.xlu0 %163
  %165 = vadd.xlane.f32.xlu0 %v162
  %v166 = vpop.xlane.xlu0 %165
  %v167 = vlog2.pop %v164
  %v168 = vmul.f32 %v167, 0.6931472
  %v169 = vlog2.pop %v166
  %v170 = vmul.f32 %v169, 0.6931472
  %v171 = vsub.f32 %v157, %v168
  %v172 = vsub.f32 %v158, %v170
  %173 = vst [vmem:[%s5] sm:$0xff] %v171
  %174 = vst [vmem:[%s5 + $0x8] sm:$0xff] %v172
  // Predicated region
  $region22: #{nmt_forward.14} parent=0 // pred_check
    _
  $region23: #{nmt_forward.14} parent=0 // pred_check_branch
    %176 = sbr.rel (0) target = $region25
  $region24: #{nmt_forward.14} parent=0 // pred_region
    _
  $region25: #{nmt_forward.14} parent=0 // pred_fallthru
    _
  // Predicated region
  $region26: #{nmt_forward.14} parent=0 // pred_check
    _
  $region27: #{nmt_forward.14} parent=0 // pred_check_branch
    %178 = sbr.rel (0) target = $region29
  $region28: #{nmt_forward.14} parent=0 // pred_region
    _
  $region29: #{nmt_forward.14} parent=0 // pred_fallthru
    _

// kernel: nmt_forward.13
$region0: #{nmt_forward.13}
  #allocation0 [shape = 'u32[]', space=smem, size = 0x4, offset = 0x4, fixed_abs, tag = 'smem constant byte address 0x4 - core index']
  #allocation1 [shape = 'u32[144,128]{1,0:T(1,128)}', space=vmem, size = 0x12000, scoped, tag = 'internal scratch']
  %s0 = inlined_call_operand.vmem [shape: f32[2,8,64], index: 0, kind: input, shape index: {}]
  %s1 = inlined_call_operand.vmem [shape: f32[2,10,64], index: 1, kind: input, shape index: {}]
  %s2 = inlined_call_operand.vmem [shape: f32[2,8,8], index: 2, kind: input, shape index: {}]
  %s3 = inlined_call_operand.vmem [shape: f32[2,1,10], index: 3, kind: input, shape index: {}]
  %s4 = inlined_call_operand.vmem [shape: f32[1,64], index: 4, kind: input, shape index: {}]
  %s5 = inlined_call_operand.vmem [shape: f32[1,64], index: 5, kind: input, shape index: {}]
  %s6 = inlined_call_operand.vmem [shape: bf16[64,192], index: 6, kind: input, shape index: {}]
  %s7 = inlined_call_operand.vmem [shape: f32[1,192], index: 7, kind: input, shape index: {}]
  %s8 = inlined_call_operand.vmem [shape: bf16[64,64], index: 8, kind: input, shape index: {}]
  %s9 = inlined_call_operand.vmem [shape: f32[1,64], index: 9, kind: input, shape index: {}]
  %s10 = inlined_call_operand.vmem [shape: f32[1,64], index: 10, kind: input, shape index: {}]
  %s11 = inlined_call_operand.vmem [shape: f32[1,64], index: 11, kind: input, shape index: {}]
  %s12 = inlined_call_operand.vmem [shape: bf16[64,64], index: 12, kind: input, shape index: {}]
  %s13 = inlined_call_operand.vmem [shape: f32[1,64], index: 13, kind: input, shape index: {}]
  %s14 = inlined_call_operand.vmem [shape: bf16[64,128], index: 14, kind: input, shape index: {}]
  %s15 = inlined_call_operand.vmem [shape: f32[1,128], index: 15, kind: input, shape index: {}]
  %s16 = inlined_call_operand.vmem [shape: bf16[64,64], index: 16, kind: input, shape index: {}]
  %s17 = inlined_call_operand.vmem [shape: f32[1,64], index: 17, kind: input, shape index: {}]
  %s18 = inlined_call_operand.vmem [shape: f32[1,64], index: 18, kind: input, shape index: {}]
  %s19 = inlined_call_operand.vmem [shape: f32[1,64], index: 19, kind: input, shape index: {}]
  %s20 = inlined_call_operand.vmem [shape: bf16[64,128], index: 20, kind: input, shape index: {}]
  %s21 = inlined_call_operand.vmem [shape: f32[1,128], index: 21, kind: input, shape index: {}]
  %s22 = inlined_call_operand.vmem [shape: bf16[128,64], index: 22, kind: input, shape index: {}]
  %s23 = inlined_call_operand.hbm [shape: f32[1,64], index: 23, kind: input, shape index: {}]
  %s24 = inlined_call_operand.vmem [shape: f32[2,8,64], index: 24, kind: output, shape index: {}]
  %s25 = sld [smem:[#allocation0]]
  $region133: #{nmt_forward.13} parent=0
    _
  %s27 = ssub.s32 1, %s25
  %s28 = scalar_select 0, %s27, %s25
  $region1: #{nmt_forward.13} parent=0
    #allocation2 [shape = 'u8[512]{0}', space=vmem, size = 0x400, scoped, tag = 'input window, operand 23, single buffered']
    #allocation3 [shape = 's32[2]{0}', space=sflag, size = 0x8, scoped, tag = 'scoped memory for nmt_forward.13']
    %29 = vsyncpa [#allocation3], 0
    loop: start=0, step=1, limit=4
    $region2: #{nmt_forward.13} parent=1 // loop_pre_header
      _
    $region3: #{nmt_forward.13} parent=1 // loop_header
      %s31 = sphi 0, %s35
      %p32 = scmp.ge.s32.totalorder %s31, 4
      %s41 = sphi 0, %s43
      %s44 = sphi 0, %s41
      %s45 = sphi 0, %s44
      %s61 = sphi 0, %s45
      %s67 = sphi 0, %s69
      %s70 = sphi 0, %s67
      %s71 = sphi 0, %s70
      %s87 = sphi 0, %s71
      %s93 = sphi 0, %s95
      %s96 = sphi 0, %s93
      %s97 = sphi 0, %s96
      %s113 = sphi 0, %s97
      %s119 = sphi 0, %s121
      %s122 = sphi 0, %s119
      %s123 = sphi 0, %s122
      %s139 = sphi 0, %s123
      %s143 = sphi 0, %s143
      %s145 = sphi 0, %s143
      %s146 = sphi 0, %s145
      %s160 = sphi 0, %s146
      %s164 = sphi 0, %s164
      %s166 = sphi 0, %s164
      %s167 = sphi 0, %s166
      %s181 = sphi 0, %s167
      %s185 = sphi 0, %s185
      %s187 = sphi 0, %s185
      %s188 = sphi 0, %s187
      %s202 = sphi 0, %s188
      %s206 = sphi 0, %s206
      %s208 = sphi 0, %s206
      %s209 = sphi 0, %s208
      %s223 = sphi 0, %s209
      %s227 = sphi 0, %s227
      %s229 = sphi 0, %s227
      %s230 = sphi 0, %s229
      %s244 = sphi 0, %s230
      %s248 = sphi 0, %s248
      %s250 = sphi 0, %s248
      %s251 = sphi 0, %s250
      %s265 = sphi 0, %s251
      %s269 = sphi 0, %s269
      %s271 = sphi 0, %s269
      %s272 = sphi 0, %s271
      %s286 = sphi 0, %s272
      %s290 = sphi 0, %s290
      %s292 = sphi 0, %s290
      %s293 = sphi 0, %s292
      %s307 = sphi 0, %s293
      %s311 = sphi 0, %s311
      %s313 = sphi 0, %s311
      %s314 = sphi 0, %s313
      %s328 = sphi 0, %s314
      %s332 = sphi 0, %s332
      %s334 = sphi 0, %s332
      %s335 = sphi 0, %s334
      %s349 = sphi 0, %s335
      %s353 = sphi 0, %s353
      %s355 = sphi 0, %s353
      %s356 = sphi 0, %s355
      %s370 = sphi 0, %s356
      %s374 = sphi 0, %s374
      %s376 = sphi 0, %s374
      %s377 = sphi 0, %s376
      %s391 = sphi 0, %s377
      %s395 = sphi 0, %s395
      %s397 = sphi 0, %s395
      %s398 = sphi 0, %s397
      %s412 = sphi 0, %s398
      %s416 = sphi 0, %s416
      %s418 = sphi 0, %s416
      %s419 = sphi 0, %s418
      %s433 = sphi 0, %s419
      %s437 = sphi 0, %s437
      %s439 = sphi 0, %s437
      %s440 = sphi 0, %s439
      %s454 = sphi 0, %s440
      %s458 = sphi 0, %s458
      %s460 = sphi 0, %s458
      %s461 = sphi 0, %s460
      %s475 = sphi 0, %s461
      %s479 = sphi 0, %s479
      %s481 = sphi 0, %s479
      %s482 = sphi 0, %s481
      %s496 = sphi 0, %s482
      %s500 = sphi 0, %s500
      %s502 = sphi 0, %s500
      %s503 = sphi 0, %s502
      %s517 = sphi 0, %s503
      %s521 = sphi 0, %s521
      %s523 = sphi 0, %s521
      %s524 = sphi 0, %s523
      %s538 = sphi 0, %s524
      %s542 = sphi 0, %s542
      %s544 = sphi 0, %s542
      %s545 = sphi 0, %s544
      %s559 = sphi 0, %s545
      %s565 = sphi 0, %s567
      %s568 = sphi 0, %s565
      %s569 = sphi 0, %s568
      %s585 = sphi 0, %s569
    $region4: #{nmt_forward.13} parent=1 // loop_header_branch
      %34 = sbr.rel (%p32) target = $region8
    $region5: #{nmt_forward.13} parent=1 // loop_body
      %s36 = ssub.s32 %s31, 1
      %s37 = ssub.s32 %s31, 2
      %s38 = sadd.s32 %s31, 1
      %s39 = ssub.s32 %s31, %s38
      %p40 = scmp.eq.s32.totalorder %s39, 0
      %s42 = sadd.s32 %s41, 1
      %s43 = scalar_select %p40, %s41, %s42
      %p46 = pneg %p40
      %p47 = scmp.eq.s32.totalorder %s31, 1
      %p48 = por %p46, %p47
      %p49 = scmp.ne.s32.totalorder %s41, %s44
      %p50 = scmp.eq.s32.totalorder %s31, 0
      %p51 = por %p49, %p50
      %p52 = scmp.ne.s32.totalorder %s41, %s44
      %p53 = scmp.eq.s32.totalorder %s36, 1
      %p54 = por %p52, %p53
      %p55 = scmp.ne.s32.totalorder %s44, %s45
      %p56 = scmp.eq.s32.totalorder %s36, 0
      %p57 = por %p55, %p56
      %p58 = scmp.ne.s32.totalorder %s44, %s45
      %p59 = scmp.eq.s32.totalorder %s37, 1
      %p60 = por %p58, %p59
      %p62 = scmp.ne.s32.totalorder %s45, %s61
      %p63 = scmp.eq.s32.totalorder %s37, 0
      %p64 = por %p62, %p63
      %s65 = ssub.s32 %s31, %s38
      %p66 = scmp.eq.s32.totalorder %s65, 0
      %s68 = sadd.s32 %s67, 1
      %s69 = scalar_select %p66, %s67, %s68
      %p72 = pneg %p66
      %p73 = scmp.eq.s32.totalorder %s31, 1
      %p74 = por %p72, %p73
      %p75 = scmp.ne.s32.totalorder %s67, %s70
      %p76 = scmp.eq.s32.totalorder %s31, 0
      %p77 = por %p75, %p76
      %p78 = scmp.ne.s32.totalorder %s67, %s70
      %p79 = scmp.eq.s32.totalorder %s36, 1
      %p80 = por %p78, %p79
      %p81 = scmp.ne.s32.totalorder %s70, %s71
      %p82 = scmp.eq.s32.totalorder %s36, 0
      %p83 = por %p81, %p82
      %p84 = scmp.ne.s32.totalorder %s70, %s71
      %p85 = scmp.eq.s32.totalorder %s37, 1
      %p86 = por %p84, %p85
      %p88 = scmp.ne.s32.totalorder %s71, %s87
      %p89 = scmp.eq.s32.totalorder %s37, 0
      %p90 = por %p88, %p89
      %s91 = ssub.s32 %s31, %s38
      %p92 = scmp.eq.s32.totalorder %s91, 0
      %s94 = sadd.s32 %s93, 1
      %s95 = scalar_select %p92, %s93, %s94
      %p98 = pneg %p92
      %p99 = scmp.eq.s32.totalorder %s31, 1
      %p100 = por %p98, %p99
      %p101 = scmp.ne.s32.totalorder %s93, %s96
      %p102 = scmp.eq.s32.totalorder %s31, 0
      %p103 = por %p101, %p102
      %p104 = scmp.ne.s32.totalorder %s93, %s96
      %p105 = scmp.eq.s32.totalorder %s36, 1
      %p106 = por %p104, %p105
      %p107 = scmp.ne.s32.totalorder %s96, %s97
      %p108 = scmp.eq.s32.totalorder %s36, 0
      %p109 = por %p107, %p108
      %p110 = scmp.ne.s32.totalorder %s96, %s97
      %p111 = scmp.eq.s32.totalorder %s37, 1
      %p112 = por %p110, %p111
      %p114 = scmp.ne.s32.totalorder %s97, %s113
      %p115 = scmp.eq.s32.totalorder %s37, 0
      %p116 = por %p114, %p115
      %s117 = ssub.s32 %s31, %s38
      %p118 = scmp.eq.s32.totalorder %s117, 0
      %s120 = sadd.s32 %s119, 1
      %s121 = scalar_select %p118, %s119, %s120
      %p124 = pneg %p118
      %p125 = scmp.eq.s32.totalorder %s31, 1
      %p126 = por %p124, %p125
      %p127 = scmp.ne.s32.totalorder %s119, %s122
      %p128 = scmp.eq.s32.totalorder %s31, 0
      %p129 = por %p127, %p128
      %p130 = scmp.ne.s32.totalorder %s119, %s122
      %p131 = scmp.eq.s32.totalorder %s36, 1
      %p132 = por %p130, %p131
      %p133 = scmp.ne.s32.totalorder %s122, %s123
      %p134 = scmp.eq.s32.totalorder %s36, 0
      %p135 = por %p133, %p134
      %p136 = scmp.ne.s32.totalorder %s122, %s123
      %p137 = scmp.eq.s32.totalorder %s37, 1
      %p138 = por %p136, %p137
      %p140 = scmp.ne.s32.totalorder %s123, %s139
      %p141 = scmp.eq.s32.totalorder %s37, 0
      %p142 = por %p140, %p141
      %s144 = sadd.s32 %s143, 1
      %p147 = scmp.eq.s32.totalorder %s31, 1
      %p148 = scmp.ne.s32.totalorder %s143, %s145
      %p149 = scmp.eq.s32.totalorder %s31, 0
      %p150 = por %p148, %p149
      %p151 = scmp.ne.s32.totalorder %s143, %s145
      %p152 = scmp.eq.s32.totalorder %s36, 1
      %p153 = por %p151, %p152
      %p154 = scmp.ne.s32.totalorder %s145, %s146
      %p155 = scmp.eq.s32.totalorder %s36, 0
      %p156 = por %p154, %p155
      %p157 = scmp.ne.s32.totalorder %s145, %s146
      %p158 = scmp.eq.s32.totalorder %s37, 1
      %p159 = por %p157, %p158
      %p161 = scmp.ne.s32.totalorder %s146, %s160
      %p162 = scmp.eq.s32.totalorder %s37, 0
      %p163 = por %p161, %p162
      %s165 = sadd.s32 %s164, 1
      %p168 = scmp.eq.s32.totalorder %s31, 1
      %p169 = scmp.ne.s32.totalorder %s164, %s166
      %p170 = scmp.eq.s32.totalorder %s31, 0
      %p171 = por %p169, %p170
      %p172 = scmp.ne.s32.totalorder %s164, %s166
      %p173 = scmp.eq.s32.totalorder %s36, 1
      %p174 = por %p172, %p173
      %p175 = scmp.ne.s32.totalorder %s166, %s167
      %p176 = scmp.eq.s32.totalorder %s36, 0
      %p177 = por %p175, %p176
      %p178 = scmp.ne.s32.totalorder %s166, %s167
      %p179 = scmp.eq.s32.totalorder %s37, 1
      %p180 = por %p178, %p179
      %p182 = scmp.ne.s32.totalorder %s167, %s181
      %p183 = scmp.eq.s32.totalorder %s37, 0
      %p184 = por %p182, %p183
      %s186 = sadd.s32 %s185, 1
      %p189 = scmp.eq.s32.totalorder %s31, 1
      %p190 = scmp.ne.s32.totalorder %s185, %s187
      %p191 = scmp.eq.s32.totalorder %s31, 0
      %p192 = por %p190, %p191
      %p193 = scmp.ne.s32.totalorder %s185, %s187
      %p194 = scmp.eq.s32.totalorder %s36, 1
      %p195 = por %p193, %p194
      %p196 = scmp.ne.s32.totalorder %s187, %s188
      %p197 = scmp.eq.s32.totalorder %s36, 0
      %p198 = por %p196, %p197
      %p199 = scmp.ne.s32.totalorder %s187, %s188
      %p200 = scmp.eq.s32.totalorder %s37, 1
      %p201 = por %p199, %p200
      %p203 = scmp.ne.s32.totalorder %s188, %s202
      %p204 = scmp.eq.s32.totalorder %s37, 0
      %p205 = por %p203, %p204
      %s207 = sadd.s32 %s206, 1
      %p210 = scmp.eq.s32.totalorder %s31, 1
      %p211 = scmp.ne.s32.totalorder %s206, %s208
      %p212 = scmp.eq.s32.totalorder %s31, 0
      %p213 = por %p211, %p212
      %p214 = scmp.ne.s32.totalorder %s206, %s208
      %p215 = scmp.eq.s32.totalorder %s36, 1
      %p216 = por %p214, %p215
      %p217 = scmp.ne.s32.totalorder %s208, %s209
      %p218 = scmp.eq.s32.totalorder %s36, 0
      %p219 = por %p217, %p218
      %p220 = scmp.ne.s32.totalorder %s208, %s209
      %p221 = scmp.eq.s32.totalorder %s37, 1
      %p222 = por %p220, %p221
      %p224 = scmp.ne.s32.totalorder %s209, %s223
      %p225 = scmp.eq.s32.totalorder %s37, 0
      %p226 = por %p224, %p225
      %s228 = sadd.s32 %s227, 1
      %p231 = scmp.eq.s32.totalorder %s31, 1
      %p232 = scmp.ne.s32.totalorder %s227, %s229
      %p233 = scmp.eq.s32.totalorder %s31, 0
      %p234 = por %p232, %p233
      %p235 = scmp.ne.s32.totalorder %s227, %s229
      %p236 = scmp.eq.s32.totalorder %s36, 1
      %p237 = por %p235, %p236
      %p238 = scmp.ne.s32.totalorder %s229, %s230
      %p239 = scmp.eq.s32.totalorder %s36, 0
      %p240 = por %p238, %p239
      %p241 = scmp.ne.s32.totalorder %s229, %s230
      %p242 = scmp.eq.s32.totalorder %s37, 1
      %p243 = por %p241, %p242
      %p245 = scmp.ne.s32.totalorder %s230, %s244
      %p246 = scmp.eq.s32.totalorder %s37, 0
      %p247 = por %p245, %p246
      %s249 = sadd.s32 %s248, 1
      %p252 = scmp.eq.s32.totalorder %s31, 1
      %p253 = scmp.ne.s32.totalorder %s248, %s250
      %p254 = scmp.eq.s32.totalorder %s31, 0
      %p255 = por %p253, %p254
      %p256 = scmp.ne.s32.totalorder %s248, %s250
      %p257 = scmp.eq.s32.totalorder %s36, 1
      %p258 = por %p256, %p257
      %p259 = scmp.ne.s32.totalorder %s250, %s251
      %p260 = scmp.eq.s32.totalorder %s36, 0
      %p261 = por %p259, %p260
      %p262 = scmp.ne.s32.totalorder %s250, %s251
      %p263 = scmp.eq.s32.totalorder %s37, 1
      %p264 = por %p262, %p263
      %p266 = scmp.ne.s32.totalorder %s251, %s265
      %p267 = scmp.eq.s32.totalorder %s37, 0
      %p268 = por %p266, %p267
      %s270 = sadd.s32 %s269, 1
      %p273 = scmp.eq.s32.totalorder %s31, 1
      %p274 = scmp.ne.s32.totalorder %s269, %s271
      %p275 = scmp.eq.s32.totalorder %s31, 0
      %p276 = por %p274, %p275
      %p277 = scmp.ne.s32.totalorder %s269, %s271
      %p278 = scmp.eq.s32.totalorder %s36, 1
      %p279 = por %p277, %p278
      %p280 = scmp.ne.s32.totalorder %s271, %s272
      %p281 = scmp.eq.s32.totalorder %s36, 0
      %p282 = por %p280, %p281
      %p283 = scmp.ne.s32.totalorder %s271, %s272
      %p284 = scmp.eq.s32.totalorder %s37, 1
      %p285 = por %p283, %p284
      %p287 = scmp.ne.s32.totalorder %s272, %s286
      %p288 = scmp.eq.s32.totalorder %s37, 0
      %p289 = por %p287, %p288
      %s291 = sadd.s32 %s290, 1
      %p294 = scmp.eq.s32.totalorder %s31, 1
      %p295 = scmp.ne.s32.totalorder %s290, %s292
      %p296 = scmp.eq.s32.totalorder %s31, 0
      %p297 = por %p295, %p296
      %p298 = scmp.ne.s32.totalorder %s290, %s292
      %p299 = scmp.eq.s32.totalorder %s36, 1
      %p300 = por %p298, %p299
      %p301 = scmp.ne.s32.totalorder %s292, %s293
      %p302 = scmp.eq.s32.totalorder %s36, 0
      %p303 = por %p301, %p302
      %p304 = scmp.ne.s32.totalorder %s292, %s293
      %p305 = scmp.eq.s32.totalorder %s37, 1
      %p306 = por %p304, %p305
      %p308 = scmp.ne.s32.totalorder %s293, %s307
      %p309 = scmp.eq.s32.totalorder %s37, 0
      %p310 = por %p308, %p309
      %s312 = sadd.s32 %s311, 1
      %p315 = scmp.eq.s32.totalorder %s31, 1
      %p316 = scmp.ne.s32.totalorder %s311, %s313
      %p317 = scmp.eq.s32.totalorder %s31, 0
      %p318 = por %p316, %p317
      %p319 = scmp.ne.s32.totalorder %s311, %s313
      %p320 = scmp.eq.s32.totalorder %s36, 1
      %p321 = por %p319, %p320
      %p322 = scmp.ne.s32.totalorder %s313, %s314
      %p323 = scmp.eq.s32.totalorder %s36, 0
      %p324 = por %p322, %p323
      %p325 = scmp.ne.s32.totalorder %s313, %s314
      %p326 = scmp.eq.s32.totalorder %s37, 1
      %p327 = por %p325, %p326
      %p329 = scmp.ne.s32.totalorder %s314, %s328
      %p330 = scmp.eq.s32.totalorder %s37, 0
      %p331 = por %p329, %p330
      %s333 = sadd.s32 %s332, 1
      %p336 = scmp.eq.s32.totalorder %s31, 1
      %p337 = scmp.ne.s32.totalorder %s332, %s334
      %p338 = scmp.eq.s32.totalorder %s31, 0
      %p339 = por %p337, %p338
      %p340 = scmp.ne.s32.totalorder %s332, %s334
      %p341 = scmp.eq.s32.totalorder %s36, 1
      %p342 = por %p340, %p341
      %p343 = scmp.ne.s32.totalorder %s334, %s335
      %p344 = scmp.eq.s32.totalorder %s36, 0
      %p345 = por %p343, %p344
      %p346 = scmp.ne.s32.totalorder %s334, %s335
      %p347 = scmp.eq.s32.totalorder %s37, 1
      %p348 = por %p346, %p347
      %p350 = scmp.ne.s32.totalorder %s335, %s349
      %p351 = scmp.eq.s32.totalorder %s37, 0
      %p352 = por %p350, %p351
      %s354 = sadd.s32 %s353, 1
      %p357 = scmp.eq.s32.totalorder %s31, 1
      %p358 = scmp.ne.s32.totalorder %s353, %s355
      %p359 = scmp.eq.s32.totalorder %s31, 0
      %p360 = por %p358, %p359
      %p361 = scmp.ne.s32.totalorder %s353, %s355
      %p362 = scmp.eq.s32.totalorder %s36, 1
      %p363 = por %p361, %p362
      %p364 = scmp.ne.s32.totalorder %s355, %s356
      %p365 = scmp.eq.s32.totalorder %s36, 0
      %p366 = por %p364, %p365
      %p367 = scmp.ne.s32.totalorder %s355, %s356
      %p368 = scmp.eq.s32.totalorder %s37, 1
      %p369 = por %p367, %p368
      %p371 = scmp.ne.s32.totalorder %s356, %s370
      %p372 = scmp.eq.s32.totalorder %s37, 0
      %p373 = por %p371, %p372
      %s375 = sadd.s32 %s374, 1
      %p378 = scmp.eq.s32.totalorder %s31, 1
      %p379 = scmp.ne.s32.totalorder %s374, %s376
      %p380 = scmp.eq.s32.totalorder %s31, 0
      %p381 = por %p379, %p380
      %p382 = scmp.ne.s32.totalorder %s374, %s376
      %p383 = scmp.eq.s32.totalorder %s36, 1
      %p384 = por %p382, %p383
      %p385 = scmp.ne.s32.totalorder %s376, %s377
      %p386 = scmp.eq.s32.totalorder %s36, 0
      %p387 = por %p385, %p386
      %p388 = scmp.ne.s32.totalorder %s376, %s377
      %p389 = scmp.eq.s32.totalorder %s37, 1
      %p390 = por %p388, %p389
      %p392 = scmp.ne.s32.totalorder %s377, %s391
      %p393 = scmp.eq.s32.totalorder %s37, 0
      %p394 = por %p392, %p393
      %s396 = sadd.s32 %s395, 1
      %p399 = scmp.eq.s32.totalorder %s31, 1
      %p400 = scmp.ne.s32.totalorder %s395, %s397
      %p401 = scmp.eq.s32.totalorder %s31, 0
      %p402 = por %p400, %p401
      %p403 = scmp.ne.s32.totalorder %s395, %s397
      %p404 = scmp.eq.s32.totalorder %s36, 1
      %p405 = por %p403, %p404
      %p406 = scmp.ne.s32.totalorder %s397, %s398
      %p407 = scmp.eq.s32.totalorder %s36, 0
      %p408 = por %p406, %p407
      %p409 = scmp.ne.s32.totalorder %s397, %s398
      %p410 = scmp.eq.s32.totalorder %s37, 1
      %p411 = por %p409, %p410
      %p413 = scmp.ne.s32.totalorder %s398, %s412
      %p414 = scmp.eq.s32.totalorder %s37, 0
      %p415 = por %p413, %p414
      %s417 = sadd.s32 %s416, 1
      %p420 = scmp.eq.s32.totalorder %s31, 1
      %p421 = scmp.ne.s32.totalorder %s416, %s418
      %p422 = scmp.eq.s32.totalorder %s31, 0
      %p423 = por %p421, %p422
      %p424 = scmp.ne.s32.totalorder %s416, %s418
      %p425 = scmp.eq.s32.totalorder %s36, 1
      %p426 = por %p424, %p425
      %p427 = scmp.ne.s32.totalorder %s418, %s419
      %p428 = scmp.eq.s32.totalorder %s36, 0
      %p429 = por %p427, %p428
      %p430 = scmp.ne.s32.totalorder %s418, %s419
      %p431 = scmp.eq.s32.totalorder %s37, 1
      %p432 = por %p430, %p431
      %p434 = scmp.ne.s32.totalorder %s419, %s433
      %p435 = scmp.eq.s32.totalorder %s37, 0
      %p436 = por %p434, %p435
      %s438 = sadd.s32 %s437, 1
      %p441 = scmp.eq.s32.totalorder %s31, 1
      %p442 = scmp.ne.s32.totalorder %s437, %s439
      %p443 = scmp.eq.s32.totalorder %s31, 0
      %p444 = por %p442, %p443
      %p445 = scmp.ne.s32.totalorder %s437, %s439
      %p446 = scmp.eq.s32.totalorder %s36, 1
      %p447 = por %p445, %p446
      %p448 = scmp.ne.s32.totalorder %s439, %s440
      %p449 = scmp.eq.s32.totalorder %s36, 0
      %p450 = por %p448, %p449
      %p451 = scmp.ne.s32.totalorder %s439, %s440
      %p452 = scmp.eq.s32.totalorder %s37, 1
      %p453 = por %p451, %p452
      %p455 = scmp.ne.s32.totalorder %s440, %s454
      %p456 = scmp.eq.s32.totalorder %s37, 0
      %p457 = por %p455, %p456
      %s459 = sadd.s32 %s458, 1
      %p462 = scmp.eq.s32.totalorder %s31, 1
      %p463 = scmp.ne.s32.totalorder %s458, %s460
      %p464 = scmp.eq.s32.totalorder %s31, 0
      %p465 = por %p463, %p464
      %p466 = scmp.ne.s32.totalorder %s458, %s460
      %p467 = scmp.eq.s32.totalorder %s36, 1
      %p468 = por %p466, %p467
      %p469 = scmp.ne.s32.totalorder %s460, %s461
      %p470 = scmp.eq.s32.totalorder %s36, 0
      %p471 = por %p469, %p470
      %p472 = scmp.ne.s32.totalorder %s460, %s461
      %p473 = scmp.eq.s32.totalorder %s37, 1
      %p474 = por %p472, %p473
      %p476 = scmp.ne.s32.totalorder %s461, %s475
      %p477 = scmp.eq.s32.totalorder %s37, 0
      %p478 = por %p476, %p477
      %s480 = sadd.s32 %s479, 1
      %p483 = scmp.eq.s32.totalorder %s31, 1
      %p484 = scmp.ne.s32.totalorder %s479, %s481
      %p485 = scmp.eq.s32.totalorder %s31, 0
      %p486 = por %p484, %p485
      %p487 = scmp.ne.s32.totalorder %s479, %s481
      %p488 = scmp.eq.s32.totalorder %s36, 1
      %p489 = por %p487, %p488
      %p490 = scmp.ne.s32.totalorder %s481, %s482
      %p491 = scmp.eq.s32.totalorder %s36, 0
      %p492 = por %p490, %p491
      %p493 = scmp.ne.s32.totalorder %s481, %s482
      %p494 = scmp.eq.s32.totalorder %s37, 1
      %p495 = por %p493, %p494
      %p497 = scmp.ne.s32.totalorder %s482, %s496
      %p498 = scmp.eq.s32.totalorder %s37, 0
      %p499 = por %p497, %p498
      %s501 = sadd.s32 %s500, 1
      %p504 = scmp.eq.s32.totalorder %s31, 1
      %p505 = scmp.ne.s32.totalorder %s500, %s502
      %p506 = scmp.eq.s32.totalorder %s31, 0
      %p507 = por %p505, %p506
      %p508 = scmp.ne.s32.totalorder %s500, %s502
      %p509 = scmp.eq.s32.totalorder %s36, 1
      %p510 = por %p508, %p509
      %p511 = scmp.ne.s32.totalorder %s502, %s503
      %p512 = scmp.eq.s32.totalorder %s36, 0
      %p513 = por %p511, %p512
      %p514 = scmp.ne.s32.totalorder %s502, %s503
      %p515 = scmp.eq.s32.totalorder %s37, 1
      %p516 = por %p514, %p515
      %p518 = scmp.ne.s32.totalorder %s503, %s517
      %p519 = scmp.eq.s32.totalorder %s37, 0
      %p520 = por %p518, %p519
      %s522 = sadd.s32 %s521, 1
      %p525 = scmp.eq.s32.totalorder %s31, 1
      %p526 = scmp.ne.s32.totalorder %s521, %s523
      %p527 = scmp.eq.s32.totalorder %s31, 0
      %p528 = por %p526, %p527
      %p529 = scmp.ne.s32.totalorder %s521, %s523
      %p530 = scmp.eq.s32.totalorder %s36, 1
      %p531 = por %p529, %p530
      %p532 = scmp.ne.s32.totalorder %s523, %s524
      %p533 = scmp.eq.s32.totalorder %s36, 0
      %p534 = por %p532, %p533
      %p535 = scmp.ne.s32.totalorder %s523, %s524
      %p536 = scmp.eq.s32.totalorder %s37, 1
      %p537 = por %p535, %p536
      %p539 = scmp.ne.s32.totalorder %s524, %s538
      %p540 = scmp.eq.s32.totalorder %s37, 0
      %p541 = por %p539, %p540
      %s543 = sadd.s32 %s542, 1
      %p546 = scmp.eq.s32.totalorder %s31, 1
      %p547 = scmp.ne.s32.totalorder %s542, %s544
      %p548 = scmp.eq.s32.totalorder %s31, 0
      %p549 = por %p547, %p548
      %p550 = scmp.ne.s32.totalorder %s542, %s544
      %p551 = scmp.eq.s32.totalorder %s36, 1
      %p552 = por %p550, %p551
      %p553 = scmp.ne.s32.totalorder %s544, %s545
      %p554 = scmp.eq.s32.totalorder %s36, 0
      %p555 = por %p553, %p554
      %p556 = scmp.ne.s32.totalorder %s544, %s545
      %p557 = scmp.eq.s32.totalorder %s37, 1
      %p558 = por %p556, %p557
      %p560 = scmp.ne.s32.totalorder %s545, %s559
      %p561 = scmp.eq.s32.totalorder %s37, 0
      %p562 = por %p560, %p561
      %s563 = ssub.s32 %s31, %s38
      %p564 = scmp.eq.s32.totalorder %s563, 0
      %s566 = sadd.s32 %s565, 1
      %s567 = scalar_select %p564, %s565, %s566
      %p570 = pneg %p564
      %p571 = scmp.eq.s32.totalorder %s31, 1
      %p572 = por %p570, %p571
      %p573 = scmp.ne.s32.totalorder %s565, %s568
      %p574 = scmp.eq.s32.totalorder %s31, 0
      %p575 = por %p573, %p574
      %p576 = scmp.ne.s32.totalorder %s565, %s568
      %p577 = scmp.eq.s32.totalorder %s36, 1
      %p578 = por %p576, %p577
      %p579 = scmp.ne.s32.totalorder %s568, %s569
      %p580 = scmp.eq.s32.totalorder %s36, 0
      %p581 = por %p579, %p580
      %p582 = scmp.ne.s32.totalorder %s568, %s569
      %p583 = scmp.eq.s32.totalorder %s37, 1
      %p584 = por %p582, %p583
      %p586 = scmp.ne.s32.totalorder %s569, %s585
      %p587 = scmp.eq.s32.totalorder %s37, 0
      %p588 = por %p586, %p587
      %p589 = scmp.le.s32.totalorder 1, %s31
      %p590 = scmp.lt.s32.totalorder %s31, 3
      %p591 = pnand %p589, %p590
      %p592 = pneg %p591
      // Predicated region
      $region9: #{nmt_forward.13} parent=5 // pred_check
        _
      $region10: #{nmt_forward.13} parent=5 // pred_check_branch
        %594 = sbr.rel (%p591) target = $region12
      $region11: #{nmt_forward.13} parent=5 // pred_region
        %s595 = ssub.s32 %s31, 1
        // Predicated region
        $region13: #{nmt_forward.13} parent=11 // pred_check
          %p596 = pneg %p156
        $region14: #{nmt_forward.13} parent=11 // pred_check_branch
          %598 = sbr.rel (%p596) target = $region16
        $region15: #{nmt_forward.13} parent=11 // pred_region
          _
        $region16: #{nmt_forward.13} parent=11 // pred_fallthru
          _
        // Predicated region
        $region17: #{nmt_forward.13} parent=11 // pred_check
          %p599 = pneg %p177
        $region18: #{nmt_forward.13} parent=11 // pred_check_branch
          %601 = sbr.rel (%p599) target = $region20
        $region19: #{nmt_forward.13} parent=11 // pred_region
          _
        $region20: #{nmt_forward.13} parent=11 // pred_fallthru
          _
        // Predicated region
        $region21: #{nmt_forward.13} parent=11 // pred_check
          %p602 = pneg %p198
        $region22: #{nmt_forward.13} parent=11 // pred_check_branch
          %604 = sbr.rel (%p602) target = $region24
        $region23: #{nmt_forward.13} parent=11 // pred_region
          _
        $region24: #{nmt_forward.13} parent=11 // pred_fallthru
          _
        // Predicated region
        $region25: #{nmt_forward.13} parent=11 // pred_check
          %p605 = pneg %p219
        $region26: #{nmt_forward.13} parent=11 // pred_check_branch
          %607 = sbr.rel (%p605) target = $region28
        $region27: #{nmt_forward.13} parent=11 // pred_region
          _
        $region28: #{nmt_forward.13} parent=11 // pred_fallthru
          _
        // Predicated region
        $region29: #{nmt_forward.13} parent=11 // pred_check
          %p608 = pneg %p240
        $region30: #{nmt_forward.13} parent=11 // pred_check_branch
          %610 = sbr.rel (%p608) target = $region32
        $region31: #{nmt_forward.13} parent=11 // pred_region
          _
        $region32: #{nmt_forward.13} parent=11 // pred_fallthru
          _
        // Predicated region
        $region33: #{nmt_forward.13} parent=11 // pred_check
          %p611 = pneg %p261
        $region34: #{nmt_forward.13} parent=11 // pred_check_branch
          %613 = sbr.rel (%p611) target = $region36
        $region35: #{nmt_forward.13} parent=11 // pred_region
          _
        $region36: #{nmt_forward.13} parent=11 // pred_fallthru
          _
        // Predicated region
        $region37: #{nmt_forward.13} parent=11 // pred_check
          %p614 = pneg %p282
        $region38: #{nmt_forward.13} parent=11 // pred_check_branch
          %616 = sbr.rel (%p614) target = $region40
        $region39: #{nmt_forward.13} parent=11 // pred_region
          _
        $region40: #{nmt_forward.13} parent=11 // pred_fallthru
          _
        // Predicated region
        $region41: #{nmt_forward.13} parent=11 // pred_check
          %p617 = pneg %p303
        $region42: #{nmt_forward.13} parent=11 // pred_check_branch
          %619 = sbr.rel (%p617) target = $region44
        $region43: #{nmt_forward.13} parent=11 // pred_region
          _
        $region44: #{nmt_forward.13} parent=11 // pred_fallthru
          _
        // Predicated region
        $region45: #{nmt_forward.13} parent=11 // pred_check
          %p620 = pneg %p324
        $region46: #{nmt_forward.13} parent=11 // pred_check_branch
          %622 = sbr.rel (%p620) target = $region48
        $region47: #{nmt_forward.13} parent=11 // pred_region
          _
        $region48: #{nmt_forward.13} parent=11 // pred_fallthru
          _
        // Predicated region
        $region49: #{nmt_forward.13} parent=11 // pred_check
          %p623 = pneg %p345
        $region50: #{nmt_forward.13} parent=11 // pred_check_branch
          %625 = sbr.rel (%p623) target = $region52
        $region51: #{nmt_forward.13} parent=11 // pred_region
          _
        $region52: #{nmt_forward.13} parent=11 // pred_fallthru
          _
        // Predicated region
        $region53: #{nmt_forward.13} parent=11 // pred_check
          %p626 = pneg %p366
        $region54: #{nmt_forward.13} parent=11 // pred_check_branch
          %628 = sbr.rel (%p626) target = $region56
        $region55: #{nmt_forward.13} parent=11 // pred_region
          _
        $region56: #{nmt_forward.13} parent=11 // pred_fallthru
          _
        // Predicated region
        $region57: #{nmt_forward.13} parent=11 // pred_check
          %p629 = pneg %p387
        $region58: #{nmt_forward.13} parent=11 // pred_check_branch
          %631 = sbr.rel (%p629) target = $region60
        $region59: #{nmt_forward.13} parent=11 // pred_region
          _
        $region60: #{nmt_forward.13} parent=11 // pred_fallthru
          _
        // Predicated region
        $region61: #{nmt_forward.13} parent=11 // pred_check
          %p632 = pneg %p408
        $region62: #{nmt_forward.13} parent=11 // pred_check_branch
          %634 = sbr.rel (%p632) target = $region64
        $region63: #{nmt_forward.13} parent=11 // pred_region
          _
        $region64: #{nmt_forward.13} parent=11 // pred_fallthru
          _
        // Predicated region
        $region65: #{nmt_forward.13} parent=11 // pred_check
          %p635 = pneg %p429
        $region66: #{nmt_forward.13} parent=11 // pred_check_branch
          %637 = sbr.rel (%p635) target = $region68
        $region67: #{nmt_forward.13} parent=11 // pred_region
          _
        $region68: #{nmt_forward.13} parent=11 // pred_fallthru
          _
        // Predicated region
        $region69: #{nmt_forward.13} parent=11 // pred_check
          %p638 = pneg %p450
        $region70: #{nmt_forward.13} parent=11 // pred_check_branch
          %640 = sbr.rel (%p638) target = $region72
        $region71: #{nmt_forward.13} parent=11 // pred_region
          _
        $region72: #{nmt_forward.13} parent=11 // pred_fallthru
          _
        // Predicated region
        $region73: #{nmt_forward.13} parent=11 // pred_check
          %p641 = pneg %p471
        $region74: #{nmt_forward.13} parent=11 // pred_check_branch
          %643 = sbr.rel (%p641) target = $region76
        $region75: #{nmt_forward.13} parent=11 // pred_region
          _
        $region76: #{nmt_forward.13} parent=11 // pred_fallthru
          _
        // Predicated region
        $region77: #{nmt_forward.13} parent=11 // pred_check
          %p644 = pneg %p492
        $region78: #{nmt_forward.13} parent=11 // pred_check_branch
          %646 = sbr.rel (%p644) target = $region80
        $region79: #{nmt_forward.13} parent=11 // pred_region
          _
        $region80: #{nmt_forward.13} parent=11 // pred_fallthru
          _
        // Predicated region
        $region81: #{nmt_forward.13} parent=11 // pred_check
          %p647 = pneg %p513
        $region82: #{nmt_forward.13} parent=11 // pred_check_branch
          %649 = sbr.rel (%p647) target = $region84
        $region83: #{nmt_forward.13} parent=11 // pred_region
          _
        $region84: #{nmt_forward.13} parent=11 // pred_fallthru
          _
        // Predicated region
        $region85: #{nmt_forward.13} parent=11 // pred_check
          %p650 = pneg %p534
        $region86: #{nmt_forward.13} parent=11 // pred_check_branch
          %652 = sbr.rel (%p650) target = $region88
        $region87: #{nmt_forward.13} parent=11 // pred_region
          _
        $region88: #{nmt_forward.13} parent=11 // pred_fallthru
          _
        // Predicated region
        $region89: #{nmt_forward.13} parent=11 // pred_check
          %p653 = pneg %p555
        $region90: #{nmt_forward.13} parent=11 // pred_check_branch
          %655 = sbr.rel (%p653) target = $region92
        $region91: #{nmt_forward.13} parent=11 // pred_region
          %s657 = ssub.s32 16, 16
          %658 = vsyncadd [#allocation3], %s657
          %s660 = sshll.u32 [#allocation2], 4
          %s661 = int_to_ptr.vmem [resolvable:$true] %s660
          %663 = dma.hbm_to_vmem [thread:$0]  %s23, 16, %s661, [#allocation3]
        $region92: #{nmt_forward.13} parent=11 // pred_fallthru
          _
      $region12: #{nmt_forward.13} parent=5 // pred_fallthru
        _
      %p664 = scmp.lt.s32.totalorder %s31, 2
      // Predicated region
      $region93: #{nmt_forward.13} parent=5 // pred_check
        %p665 = pneg %p664
      $region94: #{nmt_forward.13} parent=5 // pred_check_branch
        %667 = sbr.rel (%p665) target = $region96
      $region95: #{nmt_forward.13} parent=5 // pred_region
        // Predicated region
        $region97: #{nmt_forward.13} parent=95 // pred_check
          %p668 = pneg %p51
        $region98: #{nmt_forward.13} parent=95 // pred_check_branch
          %670 = sbr.rel (%p668) target = $region100
        $region99: #{nmt_forward.13} parent=95 // pred_region
          %p671 = scmp.lt.s32.totalorder %s31, 1
          %s672 = scalar_select %p671, %s31, 1
          %s673 = smul.addr %s672, 8
          %s674 = scalar_lea.vmem %s0, %s673
        $region100: #{nmt_forward.13} parent=95 // pred_fallthru
          _
        // Predicated region
        $region101: #{nmt_forward.13} parent=95 // pred_check
          %p675 = pneg %p77
        $region102: #{nmt_forward.13} parent=95 // pred_check_branch
          %677 = sbr.rel (%p675) target = $region104
        $region103: #{nmt_forward.13} parent=95 // pred_region
          %p678 = scmp.lt.s32.totalorder %s31, 1
          %s679 = scalar_select %p678, %s31, 1
          %s680 = smul.addr %s679, 2
          %s681 = smul.addr %s680, 8
          %s682 = scalar_lea.vmem %s1, %s681
        $region104: #{nmt_forward.13} parent=95 // pred_fallthru
          _
        // Predicated region
        $region105: #{nmt_forward.13} parent=95 // pred_check
          %p683 = pneg %p103
        $region106: #{nmt_forward.13} parent=95 // pred_check_branch
          %685 = sbr.rel (%p683) target = $region108
        $region107: #{nmt_forward.13} parent=95 // pred_region
          %p686 = scmp.lt.s32.totalorder %s31, 1
          %s687 = scalar_select %p686, %s31, 1
          %s688 = smul.addr %s687, 8
          %s689 = scalar_lea.vmem %s2, %s688
        $region108: #{nmt_forward.13} parent=95 // pred_fallthru
          _
        // Predicated region
        $region109: #{nmt_forward.13} parent=95 // pred_check
          %p690 = pneg %p129
        $region110: #{nmt_forward.13} parent=95 // pred_check_branch
          %692 = sbr.rel (%p690) target = $region112
        $region111: #{nmt_forward.13} parent=95 // pred_region
          %p693 = scmp.lt.s32.totalorder %s31, 1
          %s694 = scalar_select %p693, %s31, 1
          %s695 = scalar_lea.vmem %s3, %s694
        $region112: #{nmt_forward.13} parent=95 // pred_fallthru
          _
      $region96: #{nmt_forward.13} parent=5 // pred_fallthru
        _
      %p696 = scmp.le.s32.totalorder 1, %s31
      %p697 = scmp.lt.s32.totalorder %s31, 3
      %p698 = pnand %p696, %p697
      %p699 = pneg %p698
      // Predicated region
      $region113: #{nmt_forward.13} parent=5 // pred_check
        _
      $region114: #{nmt_forward.13} parent=5 // pred_check_branch
        %701 = sbr.rel (%p698) target = $region116
      $region115: #{nmt_forward.13} parent=5 // pred_region
        %s702 = ssub.s32 %s31, 1
        // Predicated region
        $region117: #{nmt_forward.13} parent=115 // pred_check
          %p703 = pneg %p555
        $region118: #{nmt_forward.13} parent=115 // pred_check_branch
          %705 = sbr.rel (%p703) target = $region120
        $region119: #{nmt_forward.13} parent=115 // pred_region
          %706 = dma.done [#allocation3], 16
        $region120: #{nmt_forward.13} parent=115 // pred_fallthru
          _
        %p707 = scmp.lt.s32.totalorder %s36, 1
        %s708 = scalar_select %p707, %s36, 1
        %s709 = smul.addr %s708, 8
        %s710 = scalar_lea.vmem %s0, %s709
        %p711 = pneg %p57
        %p712 = pneg %p54
        %p713 = scmp.lt.s32.totalorder %s36, 1
        %s714 = scalar_select %p713, %s36, 1
        %s715 = smul.addr %s714, 2
        %s716 = smul.addr %s715, 8
        %s717 = scalar_lea.vmem %s1, %s716
        %p718 = pneg %p83
        %p719 = pneg %p80
        %p720 = scmp.lt.s32.totalorder %s36, 1
        %s721 = scalar_select %p720, %s36, 1
        %s722 = smul.addr %s721, 8
        %s723 = scalar_lea.vmem %s2, %s722
        %p724 = pneg %p109
        %p725 = pneg %p106
        %p726 = scmp.lt.s32.totalorder %s36, 1
        %s727 = scalar_select %p726, %s36, 1
        %s728 = scalar_lea.vmem %s3, %s727
        %p729 = pneg %p135
        %p730 = pneg %p132
        %p731 = pneg %p156
        %p732 = pneg %p153
        %p733 = pneg %p177
        %p734 = pneg %p174
        %p735 = pneg %p198
        %p736 = pneg %p195
        %p737 = pneg %p219
        %p738 = pneg %p216
        %p739 = pneg %p240
        %p740 = pneg %p237
        %p741 = pneg %p261
        %p742 = pneg %p258
        %p743 = pneg %p282
        %p744 = pneg %p279
        %p745 = pneg %p303
        %p746 = pneg %p300
        %p747 = pneg %p324
        %p748 = pneg %p321
        %p749 = pneg %p345
        %p750 = pneg %p342
        %p751 = pneg %p366
        %p752 = pneg %p363
        %p753 = pneg %p387
        %p754 = pneg %p384
        %p755 = pneg %p408
        %p756 = pneg %p405
        %p757 = pneg %p429
        %p758 = pneg %p426
        %p759 = pneg %p450
        %p760 = pneg %p447
        %p761 = pneg %p471
        %p762 = pneg %p468
        %p763 = pneg %p492
        %p764 = pneg %p489
        %p765 = pneg %p513
        %p766 = pneg %p510
        %p767 = pneg %p534
        %p768 = pneg %p531
        %p769 = pneg %p555
        %p770 = pneg %p552
        %p771 = pneg %p581
        %p772 = pneg %p578
        %p773 = scmp.lt.s32.totalorder %s36, 1
        %s774 = scalar_select %p773, %s36, 1
        %s775 = smul.addr %s774, 8
        %s776 = scalar_lea.vmem %s24, %s775
        %p777 = scmp.lt.s32.totalorder %s36, 1
        %s778 = scalar_select %p777, %s36, 1
        %s779 = smul.addr %s778, 8
        %s780 = scalar_lea.vmem %s0, %s779
        %p781 = scmp.lt.s32.totalorder %s36, 1
        %s782 = scalar_select %p781, %s36, 1
        %s783 = smul.addr %s782, 2
        %s784 = smul.addr %s783, 8
        %s785 = scalar_lea.vmem %s1, %s784
        %p786 = scmp.lt.s32.totalorder %s36, 1
        %s787 = scalar_select %p786, %s36, 1
        %s788 = smul.addr %s787, 8
        %s789 = scalar_lea.vmem %s2, %s788
        %p790 = scmp.lt.s32.totalorder %s36, 1
        %s791 = scalar_select %p790, %s36, 1
        %s792 = scalar_lea.vmem %s3, %s791
        %p793 = scmp.lt.s32.totalorder %s36, 1
        %s794 = scalar_select %p793, %s36, 1
        %s795 = smul.addr %s794, 8
        %s796 = scalar_lea.vmem %s24, %s795
        %v798 = vld [vmem:[%s780] sm:$0xff]
        %v799 = vld [vmem:[%s785] sm:$0xff]
        %v800 = vld [vmem:[%s785 + $0x8] sm:$0x3]
        %v801 = vld [vmem:[%s789] sm:$0xff]
        %v802 = vld [vmem:[%s792] sm:$0x1]
        %v803 = vmul.f32 %v802, -1e+09
        %v804 = vld [vmem:[%s4] sm:$0x1]
        %v805 = vld [vmem:[%s5] sm:$0x1]
        %vm806 = vcmask 523264
        %v807 = vsel %vm806, %v798, 0.0
        %808 = vadd.xlane.f32.xlu0 %v807
        %v809 = vpop.xlane.xlu0 %808
        %v810 = vrcp.pop 64.0
        %v811 = vmul.f32 %v809, %v810
        %v812 = vsub.f32 %v798, %v811
        %v813 = vmul.f32 %v812, %v812
        %v814 = vsel %vm806, %v813, 0.0
        %815 = vadd.xlane.f32.xlu0 %v814
        %v816 = vpop.xlane.xlu0 %815
        %v817 = vmul.f32 %v816, %v810
        %v818 = vadd.f32 %v817, 1e-05
        %v819 = vrsqrt.pop %v818
        %v820 = vmul.f32 %v812, %v819
        %v822 = vlaneseq
        %v823 = vshrl.u32 %v822, 7
        %v824 = vsub.s32 0, %v823
        %v825 = vrot.slane %v804, %v824
        %v827 = vmul.f32 %v820, %v825
        %v829 = vlaneseq
        %v830 = vshrl.u32 %v829, 7
        %v831 = vsub.s32 0, %v830
        %v832 = vrot.slane %v805, %v831
        %v834 = vadd.f32 %v827, %v832
        %v835 = vld [vmem:[%s6] sm:$0xff]
        %v836 = vld [vmem:[%s6 + $0x8] sm:$0xff]
        %v837 = vld [vmem:[%s6 + $0x10] sm:$0xff]
        %v838 = vld [vmem:[%s6 + $0x18] sm:$0xff]
        %v839 = vld [vmem:[%s6 + $0x20] sm:$0xff]
        %v840 = vld [vmem:[%s6 + $0x28] sm:$0xff]
        %v841 = vld [vmem:[%s6 + $0x30] sm:$0xff]
        %v842 = vld [vmem:[%s6 + $0x38] sm:$0xff]
        %v843 = vpack.c.bf16 %v834, %v834
        %v844 = vld [vmem:[%s7] sm:$0x3]
        %v846 = vlaneseq
        %v847 = vshrl.u32 %v846, 7
        %v848 = vsub.s32 0, %v847
        %v849 = vrot.slane %v844, %v848
        %v850 = vlaneseq
        %v851 = vshrl.u32 %v850, 7
        %v852 = vsub.s32 1, %v851
        %v853 = vrot.slane %v844, %v852
        %v864 = vunpack.c.l.b16 %v835
        %v865 = vunpack.c.h.b16 %v835
        %v866 = vunpack.c.l.b16 %v836
        %v867 = vunpack.c.h.b16 %v836
        %v868 = vunpack.c.l.b16 %v837
        %v869 = vunpack.c.h.b16 %v837
        %v870 = vunpack.c.l.b16 %v838
        %v871 = vunpack.c.h.b16 %v838
        %v872 = vunpack.c.l.b16 %v839
        %v873 = vunpack.c.h.b16 %v839
        %v874 = vunpack.c.l.b16 %v840
        %v875 = vunpack.c.h.b16 %v840
        %v876 = vunpack.c.l.b16 %v841
        %v877 = vunpack.c.h.b16 %v841
        %v878 = vunpack.c.l.b16 %v842
        %v879 = vunpack.c.h.b16 %v842
        %v880 = vpack.c.b16 %v866, %v864
        %v881 = vpack.c.b16 %v867, %v865
        %v882 = vpack.c.b16 %v870, %v868
        %v883 = vpack.c.b16 %v871, %v869
        %v884 = vpack.c.b16 %v874, %v872
        %v885 = vpack.c.b16 %v875, %v873
        %v886 = vpack.c.b16 %v878, %v876
        %v887 = vpack.c.b16 %v879, %v877
        %v897 = vsel %vm806, %v843, 0
        %899 = vmatprep.subr.bf16.mxu0 %v881
        %900 = vmatpush1.bf16.msra.mxu0 %v880
        %901 = vmatprep.subr.bf16.mxu0 %v883
        %902 = vmatpush1.bf16.msra.mxu0 %v882
        %903 = vmatprep.subr.bf16.mxu0 %v885
        %904 = vmatpush1.bf16.msra.mxu0 %v884
        %905 = vmatprep.subr.bf16.mxu0 %v887
        %906 = vmatpush1.bf16.msra.mxu0 %v886
        %907 = vmatprep.subr.bf16.mxu0 0
        %908 = vmatpush1.bf16.msra.mxu0 0
        %909 = vmatprep.subr.bf16.mxu0 0
        %910 = vmatpush1.bf16.msra.mxu0 0
        %911 = vmatprep.subr.bf16.mxu0 0
        %912 = vmatpush1.bf16.msra.mxu0 0
        %913 = vmatprep.subr.bf16.mxu0 0
        %914 = vmatpush1.bf16.msra.mxu0 0
        %915 = vmatprep.subr.bf16.mxu0 0
        %916 = vmatpush1.bf16.msra.mxu0 0
        %917 = vmatprep.subr.bf16.mxu0 0
        %918 = vmatpush1.bf16.msra.mxu0 0
        %919 = vmatprep.subr.bf16.mxu0 0
        %920 = vmatpush1.bf16.msra.mxu0 0
        %921 = vmatprep.subr.bf16.mxu0 0
        %922 = vmatpush1.bf16.msra.mxu0 0
        %923 = vmatprep.subr.bf16.mxu0 0
        %924 = vmatpush1.bf16.msra.mxu0 0
        %925 = vmatprep.subr.bf16.mxu0 0
        %926 = vmatpush1.bf16.msra.mxu0 0
        %927 = vmatprep.subr.bf16.mxu0 0
        %928 = vmatpush1.bf16.msra.mxu0 0
        %929 = vmatprep.subr.bf16.mxu0 0
        %930 = vmatpush1.bf16.msra.mxu0 0
        %931 = vmatprep.mubr.bf16.mxu0 0
        %932 = vmatmul.mubr.bf16.gmra.mrb[0].mxu0 %v897
        %v933 = vpop.f32.mrb[0].mxu0
        %v934 = vadd.f32 %v849, %v933
        %v935 = vpop.f32.mrb[0].mxu0
        %v936 = vadd.f32 %v853, %v935
        %v937 = vpop.f32.mrb[0].mxu0
        %v938 = vpop.f32.mrb[0].mxu0
        %939 = vdwg.mxu0
        %v940 = vld [vmem:[%s8] sm:$0xf]
        %v941 = vld [vmem:[%s8 + $0x4] sm:$0xf]
        %v942 = vld [vmem:[%s8 + $0x8] sm:$0xf]
        %v943 = vld [vmem:[%s8 + $0xc] sm:$0xf]
        %v944 = vld [vmem:[%s8 + $0x10] sm:$0xf]
        %v945 = vld [vmem:[%s8 + $0x14] sm:$0xf]
        %v946 = vld [vmem:[%s8 + $0x18] sm:$0xf]
        %v947 = vld [vmem:[%s8 + $0x1c] sm:$0xf]
        %v948 = vld [vmem:[%s9] sm:$0x1]
        %v949 = vpack.c.bf16 %v934, %v934
        %v950 = vpack.c.bf16 %v936, %v936
        %952 = vrot.lane.b32.xlu0 %v949, 64
        %v953 = vpop.permute.xlu0 %952
        %vm954 = vcmask 130048
        %v956 = vsel %vm954, %v949, 0
        %v959 = vsel %vm954, %v953, 0
        %961 = vmatprep.subr.bf16.mxu0 0
        %962 = vmatpush1.bf16.xpose.msra.mxu0 %v959
        %963 = vmatprep.subr.bf16.mxu0 0
        %964 = vmatpush1.bf16.xpose.msra.mxu0 0
        %965 = vmatprep.subr.bf16.mxu0 0
        %966 = vmatpush1.bf16.xpose.msra.mxu0 0
        %967 = vmatprep.subr.bf16.mxu0 0
        %968 = vmatpush1.bf16.xpose.msra.mxu0 0
        %969 = vmatprep.subr.bf16.mxu0 0
        %970 = vmatpush1.bf16.xpose.msra.mxu0 0
        %971 = vmatprep.subr.bf16.mxu0 0
        %972 = vmatpush1.bf16.xpose.msra.mxu0 0
        %973 = vmatprep.subr.bf16.mxu0 0
        %974 = vmatpush1.bf16.xpose.msra.mxu0 0
        %975 = vmatprep.subr.bf16.mxu0 0
        %976 = vmatpush1.bf16.xpose.msra.mxu0 0
        %977 = vmatprep.subr.bf16.mxu0 0
        %978 = vmatpush1.bf16.xpose.msra.mxu0 0
        %979 = vmatprep.subr.bf16.mxu0 0
        %980 = vmatpush1.bf16.xpose.msra.mxu0 0
        %981 = vmatprep.subr.bf16.mxu0 0
        %982 = vmatpush1.bf16.xpose.msra.mxu0 0
        %983 = vmatprep.subr.bf16.mxu0 0
        %984 = vmatpush1.bf16.xpose.msra.mxu0 0
        %985 = vmatprep.subr.bf16.mxu0 0
        %986 = vmatpush1.bf16.xpose.msra.mxu0 0
        %987 = vmatprep.subr.bf16.mxu0 0
        %988 = vmatpush1.bf16.xpose.msra.mxu0 0
        %989 = vmatprep.subr.bf16.mxu0 0
        %990 = vmatpush1.bf16.xpose.msra.mxu0 0
        %991 = vmatprep.subr.bf16.mxu0 0
        %992 = vmatpush1.bf16.xpose.msra.mxu0 0
        %993 = vmatprep.mubr.bf16.mxu0 0
        %994 = vmatmul.mubr.bf16.gmra.mrb[0].mxu0 %v956
        %v995 = vpop.f32.mrb[0].mxu0
        %v996 = vadd.f32 0.0, %v995
        %v997 = vpop.f32.mrb[0].mxu0
        %v998 = vpop.f32.mrb[0].mxu0
        %v999 = vpop.f32.mrb[0].mxu0
        %1000 = vdwg.mxu0
        %v1001 = vmul.f32 %v996, 0.25
        %v1002 = vadd.f32 %v1001, %v801
        %vm1003 = vcmask 64512
        %v1004 = vsel %vm1003, %v1002, -inf
        %1005 = vmax.xlane.f32.xlu0 %v1004
        %v1006 = vpop.xlane.xlu0 %1005
        %v1007 = vsub.f32 %v1002, %v1006
        %v1008 = vmul.f32 %v1007, 1.442695
        %v1009 = vpow.pop %v1008
        %v1010 = vsel %vm1003, %v1009, 0.0
        %1011 = vadd.xlane.f32.xlu0 %v1010
        %v1012 = vpop.xlane.xlu0 %1011
        %v1013 = vrcp.pop %v1012
        %v1014 = vmul.f32 %v1009, %v1013
        %v1015 = vpack.c.bf16 %v1014, %v1014
        %v1017 = vsel %vm1003, %v1015, 0
        %vm1019 = vcmask 1043456
        %v1021 = vsel %vm1019, %v950, 0
        %1023 = vmatprep.subr.bf16.mxu0 0
        %1024 = vmatpush1.bf16.msra.mxu0 %v1021
        %1025 = vmatprep.subr.bf16.mxu0 0
        %1026 = vmatpush1.bf16.msra.mxu0 0
        %1027 = vmatprep.subr.bf16.mxu0 0
        %1028 = vmatpush1.bf16.msra.mxu0 0
        %1029 = vmatprep.subr.bf16.mxu0 0
        %1030 = vmatpush1.bf16.msra.mxu0 0
        %1031 = vmatprep.subr.bf16.mxu0 0
        %1032 = vmatpush1.bf16.msra.mxu0 0
        %1033 = vmatprep.subr.bf16.mxu0 0
        %1034 = vmatpush1.bf16.msra.mxu0 0
        %1035 = vmatprep.subr.bf16.mxu0 0
        %1036 = vmatpush1.bf16.msra.mxu0 0
        %1037 = vmatprep.subr.bf16.mxu0 0
        %1038 = vmatpush1.bf16.msra.mxu0 0
        %1039 = vmatprep.subr.bf16.mxu0 0
        %1040 = vmatpush1.bf16.msra.mxu0 0
        %1041 = vmatprep.subr.bf16.mxu0 0
        %1042 = vmatpush1.bf16.msra.mxu0 0
        %1043 = vmatprep.subr.bf16.mxu0 0
        %1044 = vmatpush1.bf16.msra.mxu0 0
        %1045 = vmatprep.subr.bf16.mxu0 0
        %1046 = vmatpush1.bf16.msra.mxu0 0
        %1047 = vmatprep.subr.bf16.mxu0 0
        %1048 = vmatpush1.bf16.msra.mxu0 0
        %1049 = vmatprep.subr.bf16.mxu0 0
        %1050 = vmatpush1.bf16.msra.mxu0 0
        %1051 = vmatprep.subr.bf16.mxu0 0
        %1052 = vmatpush1.bf16.msra.mxu0 0
        %1053 = vmatprep.subr.bf16.mxu0 0
        %1054 = vmatpush1.bf16.msra.mxu0 0
        %1055 = vmatprep.mubr.bf16.mxu0 0
        %1056 = vmatmul.mubr.bf16.gmra.mrb[0].mxu0 %v1017
        %v1057 = vpop.f32.mrb[0].mxu0
        %v1058 = vadd.f32 0.0, %v1057
        %v1059 = vpop.f32.mrb[0].mxu0
        %v1060 = vpop.f32.mrb[0].mxu0
        %v1061 = vpop.f32.mrb[0].mxu0
        %1062 = vdwg.mxu0
        %v1063 = vpack.c.bf16 %v1058, %v1058
        %1064 = vrot.lane.b32.xlu0 %v949, 112
        %v1065 = vpop.permute.xlu0 %1064
        %1066 = vrot.lane.b32.xlu0 %v949, 48
        %v1067 = vpop.permute.xlu0 %1066
        %v1069 = vsel %vm954, %v1065, 0
        %v1072 = vsel %vm954, %v1067, 0
        %1074 = vmatprep.subr.bf16.mxu0 0
        %1075 = vmatpush1.bf16.xpose.msra.mxu0 %v1072
        %1076 = vmatprep.subr.bf16.mxu0 0
        %1077 = vmatpush1.bf16.xpose.msra.mxu0 0
        %1078 = vmatprep.subr.bf16.mxu0 0
        %1079 = vmatpush1.bf16.xpose.msra.mxu0 0
        %1080 = vmatprep.subr.bf16.mxu0 0
        %1081 = vmatpush1.bf16.xpose.msra.mxu0 0
        %1082 = vmatprep.subr.bf16.mxu0 0
        %1083 = vmatpush1.bf16.xpose.msra.mxu0 0
        %1084 = vmatprep.subr.bf16.mxu0 0
        %1085 = vmatpush1.bf16.xpose.msra.mxu0 0
        %1086 = vmatprep.subr.bf16.mxu0 0
        %1087 = vmatpush1.bf16.xpose.msra.mxu0 0
        %1088 = vmatprep.subr.bf16.mxu0 0
        %1089 = vmatpush1.bf16.xpose.msra.mxu0 0
        %1090 = vmatprep.subr.bf16.mxu0 0
        %1091 = vmatpush1.bf16.xpose.msra.mxu0 0
        %1092 = vmatprep.subr.bf16.mxu0 0
        %1093 = vmatpush1.bf16.xpose.msra.mxu0 0
        %1094 = vmatprep.subr.bf16.mxu0 0
        %1095 = vmatpush1.bf16.xpose.msra.mxu0 0
        %1096 = vmatprep.subr.bf16.mxu0 0
        %1097 = vmatpush1.bf16.xpose.msra.mxu0 0
        %1098 = vmatprep.subr.bf16.mxu0 0
        %1099 = vmatpush1.bf16.xpose.msra.mxu0 0
        %1100 = vmatprep.subr.bf16.mxu0 0
        %1101 = vmatpush1.bf16.xpose.msra.mxu0 0
        %1102 = vmatprep.subr.bf16.mxu0 0
        %1103 = vmatpush1.bf16.xpose.msra.mxu0 0
        %1104 = vmatprep.subr.bf16.mxu0 0
        %1105 = vmatpush1.bf16.xpose.msra.mxu0 0
        %1106 = vmatprep.mubr.bf16.mxu0 0
        %1107 = vmatmul.mubr.bf16.gmra.mrb[0].mxu0 %v1069
        %v1108 = vpop.f32.mrb[0].mxu0
        %v1109 = vadd.f32 0.0, %v1108
        %v1110 = vpop.f32.mrb[0].mxu0
        %v1111 = vpop.f32.mrb[0].mxu0
        %v1112 = vpop.f32.mrb[0].mxu0
        %1113 = vdwg.mxu0
        %v1114 = vmul.f32 %v1109, 0.25
        %v1115 = vadd.f32 %v1114, %v801
        %v1116 = vsel %vm1003, %v1115, -inf
        %1117 = vmax.xlane.f32.xlu0 %v1116
        %v1118 = vpop.xlane.xlu0 %1117
        %v1119 = vsub.f32 %v1115, %v1118
        %v1120 = vmul.f32 %v1119, 1.442695
        %v1121 = vpow.pop %v1120
        %v1122 = vsel %vm1003, %v1121, 0.0
        %1123 = vadd.xlane.f32.xlu0 %v1122
        %v1124 = vpop.xlane.xlu0 %1123
        %v1125 = vrcp.pop %v1124
        %v1126 = vmul.f32 %v1121, %v1125
        %v1127 = vpack.c.bf16 %v1126, %v1126
        %1129 = vrot.lane.b32.xlu0 %v950, 112
        %v1130 = vpop.permute.xlu0 %1129
        %v1132 = vsel %vm1003, %v1127, 0
        %v1135 = vsel %vm1019, %v1130, 0
        %1137 = vmatprep.subr.bf16.mxu0 0
        %1138 = vmatpush1.bf16.msra.mxu0 %v1135
        %1139 = vmatprep.subr.bf16.mxu0 0
        %1140 = vmatpush1.bf16.msra.mxu0 0
        %1141 = vmatprep.subr.bf16.mxu0 0
        %1142 = vmatpush1.bf16.msra.mxu0 0
        %1143 = vmatprep.subr.bf16.mxu0 0
        %1144 = vmatpush1.bf16.msra.mxu0 0
        %1145 = vmatprep.subr.bf16.mxu0 0
        %1146 = vmatpush1.bf16.msra.mxu0 0
        %1147 = vmatprep.subr.bf16.mxu0 0
        %1148 = vmatpush1.bf16.msra.mxu0 0
        %1149 = vmatprep.subr.bf16.mxu0 0
        %1150 = vmatpush1.bf16.msra.mxu0 0
        %1151 = vmatprep.subr.bf16.mxu0 0
        %1152 = vmatpush1.bf16.msra.mxu0 0
        %1153 = vmatprep.subr.bf16.mxu0 0
        %1154 = vmatpush1.bf16.msra.mxu0 0
        %1155 = vmatprep.subr.bf16.mxu0 0
        %1156 = vmatpush1.bf16.msra.mxu0 0
        %1157 = vmatprep.subr.bf16.mxu0 0
        %1158 = vmatpush1.bf16.msra.mxu0 0
        %1159 = vmatprep.subr.bf16.mxu0 0
        %1160 = vmatpush1.bf16.msra.mxu0 0
        %1161 = vmatprep.subr.bf16.mxu0 0
        %1162 = vmatpush1.bf16.msra.mxu0 0
        %1163 = vmatprep.subr.bf16.mxu0 0
        %1164 = vmatpush1.bf16.msra.mxu0 0
        %1165 = vmatprep.subr.bf16.mxu0 0
        %1166 = vmatpush1.bf16.msra.mxu0 0
        %1167 = vmatprep.subr.bf16.mxu0 0
        %1168 = vmatpush1.bf16.msra.mxu0 0
        %1169 = vmatprep.mubr.bf16.mxu0 0
        %1170 = vmatmul.mubr.bf16.gmra.mrb[0].mxu0 %v1132
        %v1171 = vpop.f32.mrb[0].mxu0
        %v1172 = vadd.f32 0.0, %v1171
        %v1173 = vpop.f32.mrb[0].mxu0
        %v1174 = vpop.f32.mrb[0].mxu0
        %v1175 = vpop.f32.mrb[0].mxu0
        %1176 = vdwg.mxu0
        %v1177 = vpack.c.bf16 %v1172, %v1172
        %v1180 = vunpack.c.l.b16 %v942
        %v1181 = vunpack.c.l.b16 %v943
        %v1182 = vpack.c.b16 %v1181, %v1180
        %v1185 = vsel %vm954, %v1177, 0
        %1187 = vmatprep.subr.bf16.mxu0 0
        %1188 = vmatpush1.bf16.msra.mxu0 %v1182
        %1189 = vmatprep.subr.bf16.mxu0 0
        %1190 = vmatpush1.bf16.msra.mxu0 0
        %1191 = vmatprep.subr.bf16.mxu0 0
        %1192 = vmatpush1.bf16.msra.mxu0 0
        %1193 = vmatprep.subr.bf16.mxu0 0
        %1194 = vmatpush1.bf16.msra.mxu0 0
        %1195 = vmatprep.subr.bf16.mxu0 0
        %1196 = vmatpush1.bf16.msra.mxu0 0
        %1197 = vmatprep.subr.bf16.mxu0 0
        %1198 = vmatpush1.bf16.msra.mxu0 0
        %1199 = vmatprep.subr.bf16.mxu0 0
        %1200 = vmatpush1.bf16.msra.mxu0 0
        %1201 = vmatprep.subr.bf16.mxu0 0
        %1202 = vmatpush1.bf16.msra.mxu0 0
        %1203 = vmatprep.subr.bf16.mxu0 0
        %1204 = vmatpush1.bf16.msra.mxu0 0
        %1205 = vmatprep.subr.bf16.mxu0 0
        %1206 = vmatpush1.bf16.msra.mxu0 0
        %1207 = vmatprep.subr.bf16.mxu0 0
        %1208 = vmatpush1.bf16.msra.mxu0 0
        %1209 = vmatprep.subr.bf16.mxu0 0
        %1210 = vmatpush1.bf16.msra.mxu0 0
        %1211 = vmatprep.subr.bf16.mxu0 0
        %1212 = vmatpush1.bf16.msra.mxu0 0
        %1213 = vmatprep.subr.bf16.mxu0 0
        %1214 = vmatpush1.bf16.msra.mxu0 0
        %1215 = vmatprep.subr.bf16.mxu0 0
        %1216 = vmatpush1.bf16.msra.mxu0 0
        %1217 = vmatprep.subr.bf16.mxu0 0
        %1218 = vmatpush1.bf16.msra.mxu0 0
        %1219 = vmatprep.mubr.bf16.mxu0 0
        %1220 = vmatmul.mubr.bf16.gmra.mrb[0].mxu0 %v1185
        %v1221 = vpop.f32.mrb[0].mxu0
        %v1222 = vadd.f32 0.0, %v1221
        %v1223 = vpop.f32.mrb[0].mxu0
        %v1224 = vpop.f32.mrb[0].mxu0
        %v1225 = vpop.f32.mrb[0].mxu0
        %1226 = vdwg.mxu0
        %v1229 = vunpack.c.l.b16 %v940
        %v1230 = vunpack.c.l.b16 %v941
        %v1231 = vpack.c.b16 %v1230, %v1229
        %v1234 = vsel %vm954, %v1063, 0
        %1236 = vmatprep.subr.bf16.mxu0 0
        %1237 = vmatpush1.bf16.msra.mxu0 %v1231
        %1238 = vmatprep.subr.bf16.mxu0 0
        %1239 = vmatpush1.bf16.msra.mxu0 0
        %1240 = vmatprep.subr.bf16.mxu0 0
        %1241 = vmatpush1.bf16.msra.mxu0 0
        %1242 = vmatprep.subr.bf16.mxu0 0
        %1243 = vmatpush1.bf16.msra.mxu0 0
        %1244 = vmatprep.subr.bf16.mxu0 0
        %1245 = vmatpush1.bf16.msra.mxu0 0
        %1246 = vmatprep.subr.bf16.mxu0 0
        %1247 = vmatpush1.bf16.msra.mxu0 0
        %1248 = vmatprep.subr.bf16.mxu0 0
        %1249 = vmatpush1.bf16.msra.mxu0 0
        %1250 = vmatprep.subr.bf16.mxu0 0
        %1251 = vmatpush1.bf16.msra.mxu0 0
        %1252 = vmatprep.subr.bf16.mxu0 0
        %1253 = vmatpush1.bf16.msra.mxu0 0
        %1254 = vmatprep.subr.bf16.mxu0 0
        %1255 = vmatpush1.bf16.msra.mxu0 0
        %1256 = vmatprep.subr.bf16.mxu0 0
        %1257 = vmatpush1.bf16.msra.mxu0 0
        %1258 = vmatprep.subr.bf16.mxu0 0
        %1259 = vmatpush1.bf16.msra.mxu0 0
        %1260 = vmatprep.subr.bf16.mxu0 0
        %1261 = vmatpush1.bf16.msra.mxu0 0
        %1262 = vmatprep.subr.bf16.mxu0 0
        %1263 = vmatpush1.bf16.msra.mxu0 0
        %1264 = vmatprep.subr.bf16.mxu0 0
        %1265 = vmatpush1.bf16.msra.mxu0 0
        %1266 = vmatprep.subr.bf16.mxu0 0
        %1267 = vmatpush1.bf16.msra.mxu0 0
        %1268 = vmatprep.mubr.bf16.mxu0 0
        %1269 = vmatmul.mubr.bf16.gmra.mrb[0].mxu0 %v1234
        %v1270 = vpop.f32.mrb[0].mxu0
        %v1271 = vadd.f32 %v1222, %v1270
        %v1272 = vpop.f32.mrb[0].mxu0
        %v1273 = vpop.f32.mrb[0].mxu0
        %v1274 = vpop.f32.mrb[0].mxu0
        %1275 = vdwg.mxu0
        %1276 = vrot.lane.b32.xlu0 %v949, 96
        %v1277 = vpop.permute.xlu0 %1276
        %1278 = vrot.lane.b32.xlu0 %v949, 32
        %v1279 = vpop.permute.xlu0 %1278
        %v1281 = vsel %vm954, %v1277, 0
        %v1284 = vsel %vm954, %v1279, 0
        %1286 = vmatprep.subr.bf16.mxu0 0
        %1287 = vmatpush1.bf16.xpose.msra.mxu0 %v1284
        %1288 = vmatprep.subr.bf16.mxu0 0
        %1289 = vmatpush1.bf16.xpose.msra.mxu0 0
        %1290 = vmatprep.subr.bf16.mxu0 0
        %1291 = vmatpush1.bf16.xpose.msra.mxu0 0
        %1292 = vmatprep.subr.bf16.mxu0 0
        %1293 = vmatpush1.bf16.xpose.msra.mxu0 0
        %1294 = vmatprep.subr.bf16.mxu0 0
        %1295 = vmatpush1.bf16.xpose.msra.mxu0 0
        %1296 = vmatprep.subr.bf16.mxu0 0
        %1297 = vmatpush1.bf16.xpose.msra.mxu0 0
        %1298 = vmatprep.subr.bf16.mxu0 0
        %1299 = vmatpush1.bf16.xpose.msra.mxu0 0
        %1300 = vmatprep.subr.bf16.mxu0 0
        %1301 = vmatpush1.bf16.xpose.msra.mxu0 0
        %1302 = vmatprep.subr.bf16.mxu0 0
        %1303 = vmatpush1.bf16.xpose.msra.mxu0 0
        %1304 = vmatprep.subr.bf16.mxu0 0
        %1305 = vmatpush1.bf16.xpose.msra.mxu0 0
        %1306 = vmatprep.subr.bf16.mxu0 0
        %1307 = vmatpush1.bf16.xpose.msra.mxu0 0
        %1308 = vmatprep.subr.bf16.mxu0 0
        %1309 = vmatpush1.bf16.xpose.msra.mxu0 0
        %1310 = vmatprep.subr.bf16.mxu0 0
        %1311 = vmatpush1.bf16.xpose.msra.mxu0 0
        %1312 = vmatprep.subr.bf16.mxu0 0
        %1313 = vmatpush1.bf16.xpose.msra.mxu0 0
        %1314 = vmatprep.subr.bf16.mxu0 0
        %1315 = vmatpush1.bf16.xpose.msra.mxu0 0
        %1316 = vmatprep.subr.bf16.mxu0 0
        %1317 = vmatpush1.bf16.xpose.msra.mxu0 0
        %1318 = vmatprep.mubr.bf16.mxu0 0
        %1319 = vmatmul.mubr.bf16.gmra.mrb[0].mxu0 %v1281
        %v1320 = vpop.f32.mrb[0].mxu0
        %v1321 = vadd.f32 0.0, %v1320
        %v1322 = vpop.f32.mrb[0].mxu0
        %v1323 = vpop.f32.mrb[0].mxu0
        %v1324 = vpop.f32.mrb[0].mxu0
        %1325 = vdwg.mxu0
        %v1326 = vmul.f32 %v1321, 0.25
        %v1327 = vadd.f32 %v1326, %v801
        %v1328 = vsel %vm1003, %v1327, -inf
        %1329 = vmax.xlane.f32.xlu0 %v1328
        %v1330 = vpop.xlane.xlu0 %1329
        %v1331 = vsub.f32 %v1327, %v1330
        %v1332 = vmul.f32 %v1331, 1.442695
        %v1333 = vpow.pop %v1332
        %v1334 = vsel %vm1003, %v1333, 0.0
        %1335 = vadd.xlane.f32.xlu0 %v1334
        %v1336 = vpop.xlane.xlu0 %1335
        %v1337 = vrcp.pop %v1336
        %v1338 = vmul.f32 %v1333, %v1337
        %v1339 = vpack.c.bf16 %v1338, %v1338
        %1340 = vrot.lane.b32.xlu0 %v950, 96
        %v1341 = vpop.permute.xlu0 %1340
        %v1343 = vsel %vm1003, %v1339, 0
        %v1346 = vsel %vm1019, %v1341, 0
        %1348 = vmatprep.subr.bf16.mxu0 0
        %1349 = vmatpush1.bf16.msra.mxu0 %v1346
        %1350 = vmatprep.subr.bf16.mxu0 0
        %1351 = vmatpush1.bf16.msra.mxu0 0
        %1352 = vmatprep.subr.bf16.mxu0 0
        %1353 = vmatpush1.bf16.msra.mxu0 0
        %1354 = vmatprep.subr.bf16.mxu0 0
        %1355 = vmatpush1.bf16.msra.mxu0 0
        %1356 = vmatprep.subr.bf16.mxu0 0
        %1357 = vmatpush1.bf16.msra.mxu0 0
        %1358 = vmatprep.subr.bf16.mxu0 0
        %1359 = vmatpush1.bf16.msra.mxu0 0
        %1360 = vmatprep.subr.bf16.mxu0 0
        %1361 = vmatpush1.bf16.msra.mxu0 0
        %1362 = vmatprep.subr.bf16.mxu0 0
        %1363 = vmatpush1.bf16.msra.mxu0 0
        %1364 = vmatprep.subr.bf16.mxu0 0
        %1365 = vmatpush1.bf16.msra.mxu0 0
        %1366 = vmatprep.subr.bf16.mxu0 0
        %1367 = vmatpush1.bf16.msra.mxu0 0
        %1368 = vmatprep.subr.bf16.mxu0 0
        %1369 = vmatpush1.bf16.msra.mxu0 0
        %1370 = vmatprep.subr.bf16.mxu0 0
        %1371 = vmatpush1.bf16.msra.mxu0 0
        %1372 = vmatprep.subr.bf16.mxu0 0
        %1373 = vmatpush1.bf16.msra.mxu0 0
        %1374 = vmatprep.subr.bf16.mxu0 0
        %1375 = vmatpush1.bf16.msra.mxu0 0
        %1376 = vmatprep.subr.bf16.mxu0 0
        %1377 = vmatpush1.bf16.msra.mxu0 0
        %1378 = vmatprep.subr.bf16.mxu0 0
        %1379 = vmatpush1.bf16.msra.mxu0 0
        %1380 = vmatprep.mubr.bf16.mxu0 0
        %1381 = vmatmul.mubr.bf16.gmra.mrb[0].mxu0 %v1343
        %v1382 = vpop.f32.mrb[0].mxu0
        %v1383 = vadd.f32 0.0, %v1382
        %v1384 = vpop.f32.mrb[0].mxu0
        %v1385 = vpop.f32.mrb[0].mxu0
        %v1386 = vpop.f32.mrb[0].mxu0
        %1387 = vdwg.mxu0
        %v1388 = vpack.c.bf16 %v1383, %v1383
        %v1391 = vunpack.c.l.b16 %v944
        %v1392 = vunpack.c.l.b16 %v945
        %v1393 = vpack.c.b16 %v1392, %v1391
        %v1396 = vsel %vm954, %v1388, 0
        %1398 = vmatprep.subr.bf16.mxu0 0
        %1399 = vmatpush1.bf16.msra.mxu0 %v1393
        %1400 = vmatprep.subr.bf16.mxu0 0
        %1401 = vmatpush1.bf16.msra.mxu0 0
        %1402 = vmatprep.subr.bf16.mxu0 0
        %1403 = vmatpush1.bf16.msra.mxu0 0
        %1404 = vmatprep.subr.bf16.mxu0 0
        %1405 = vmatpush1.bf16.msra.mxu0 0
        %1406 = vmatprep.subr.bf16.mxu0 0
        %1407 = vmatpush1.bf16.msra.mxu0 0
        %1408 = vmatprep.subr.bf16.mxu0 0
        %1409 = vmatpush1.bf16.msra.mxu0 0
        %1410 = vmatprep.subr.bf16.mxu0 0
        %1411 = vmatpush1.bf16.msra.mxu0 0
        %1412 = vmatprep.subr.bf16.mxu0 0
        %1413 = vmatpush1.bf16.msra.mxu0 0
        %1414 = vmatprep.subr.bf16.mxu0 0
        %1415 = vmatpush1.bf16.msra.mxu0 0
        %1416 = vmatprep.subr.bf16.mxu0 0
        %1417 = vmatpush1.bf16.msra.mxu0 0
        %1418 = vmatprep.subr.bf16.mxu0 0
        %1419 = vmatpush1.bf16.msra.mxu0 0
        %1420 = vmatprep.subr.bf16.mxu0 0
        %1421 = vmatpush1.bf16.msra.mxu0 0
        %1422 = vmatprep.subr.bf16.mxu0 0
        %1423 = vmatpush1.bf16.msra.mxu0 0
        %1424 = vmatprep.subr.bf16.mxu0 0
        %1425 = vmatpush1.bf16.msra.mxu0 0
        %1426 = vmatprep.subr.bf16.mxu0 0
        %1427 = vmatpush1.bf16.msra.mxu0 0
        %1428 = vmatprep.subr.bf16.mxu0 0
        %1429 = vmatpush1.bf16.msra.mxu0 0
        %1430 = vmatprep.mubr.bf16.mxu0 0
        %1431 = vmatmul.mubr.bf16.gmra.mrb[0].mxu0 %v1396
        %v1432 = vpop.f32.mrb[0].mxu0
        %v1433 = vadd.f32 0.0, %v1432
        %v1434 = vpop.f32.mrb[0].mxu0
        %v1435 = vpop.f32.mrb[0].mxu0
        %v1436 = vpop.f32.mrb[0].mxu0
        %1437 = vdwg.mxu0
        %v1438 = vadd.f32 %v1271, %v1433
        %1439 = vrot.lane.b32.xlu0 %v949, 80
        %v1440 = vpop.permute.xlu0 %1439
        %1441 = vrot.lane.b32.xlu0 %v949, 16
        %v1442 = vpop.permute.xlu0 %1441
        %v1444 = vsel %vm954, %v1440, 0
        %v1447 = vsel %vm954, %v1442, 0
        %1449 = vmatprep.subr.bf16.mxu0 0
        %1450 = vmatpush1.bf16.xpose.msra.mxu0 %v1447
        %1451 = vmatprep.subr.bf16.mxu0 0
        %1452 = vmatpush1.bf16.xpose.msra.mxu0 0
        %1453 = vmatprep.subr.bf16.mxu0 0
        %1454 = vmatpush1.bf16.xpose.msra.mxu0 0
        %1455 = vmatprep.subr.bf16.mxu0 0
        %1456 = vmatpush1.bf16.xpose.msra.mxu0 0
        %1457 = vmatprep.subr.bf16.mxu0 0
        %1458 = vmatpush1.bf16.xpose.msra.mxu0 0
        %1459 = vmatprep.subr.bf16.mxu0 0
        %1460 = vmatpush1.bf16.xpose.msra.mxu0 0
        %1461 = vmatprep.subr.bf16.mxu0 0
        %1462 = vmatpush1.bf16.xpose.msra.mxu0 0
        %1463 = vmatprep.subr.bf16.mxu0 0
        %1464 = vmatpush1.bf16.xpose.msra.mxu0 0
        %1465 = vmatprep.subr.bf16.mxu0 0
        %1466 = vmatpush1.bf16.xpose.msra.mxu0 0
        %1467 = vmatprep.subr.bf16.mxu0 0
        %1468 = vmatpush1.bf16.xpose.msra.mxu0 0
        %1469 = vmatprep.subr.bf16.mxu0 0
        %1470 = vmatpush1.bf16.xpose.msra.mxu0 0
        %1471 = vmatprep.subr.bf16.mxu0 0
        %1472 = vmatpush1.bf16.xpose.msra.mxu0 0
        %1473 = vmatprep.subr.bf16.mxu0 0
        %1474 = vmatpush1.bf16.xpose.msra.mxu0 0
        %1475 = vmatprep.subr.bf16.mxu0 0
        %1476 = vmatpush1.bf16.xpose.msra.mxu0 0
        %1477 = vmatprep.subr.bf16.mxu0 0
        %1478 = vmatpush1.bf16.xpose.msra.mxu0 0
        %1479 = vmatprep.subr.bf16.mxu0 0
        %1480 = vmatpush1.bf16.xpose.msra.mxu0 0
        %1481 = vmatprep.mubr.bf16.mxu0 0
        %1482 = vmatmul.mubr.bf16.gmra.mrb[0].mxu0 %v1444
        %v1483 = vpop.f32.mrb[0].mxu0
        %v1484 = vadd.f32 0.0, %v1483
        %v1485 = vpop.f32.mrb[0].mxu0
        %v1486 = vpop.f32.mrb[0].mxu0
        %v1487 = vpop.f32.mrb[0].mxu0
        %1488 = vdwg.mxu0
        %v1489 = vmul.f32 %v1484, 0.25
        %v1490 = vadd.f32 %v1489, %v801
        %v1491 = vsel %vm1003, %v1490, -inf
        %1492 = vmax.xlane.f32.xlu0 %v1491
        %v1493 = vpop.xlane.xlu0 %1492
        %v1494 = vsub.f32 %v1490, %v1493
        %v1495 = vmul.f32 %v1494, 1.442695
        %v1496 = vpow.pop %v1495
        %v1497 = vsel %vm1003, %v1496, 0.0
        %1498 = vadd.xlane.f32.xlu0 %v1497
        %v1499 = vpop.xlane.xlu0 %1498
        %v1500 = vrcp.pop %v1499
        %v1501 = vmul.f32 %v1496, %v1500
        %v1502 = vpack.c.bf16 %v1501, %v1501
        %1503 = vrot.lane.b32.xlu0 %v950, 80
        %v1504 = vpop.permute.xlu0 %1503
        %v1506 = vsel %vm1003, %v1502, 0
        %v1509 = vsel %vm1019, %v1504, 0
        %1511 = vmatprep.subr.bf16.mxu0 0
        %1512 = vmatpush1.bf16.msra.mxu0 %v1509
        %1513 = vmatprep.subr.bf16.mxu0 0
        %1514 = vmatpush1.bf16.msra.mxu0 0
        %1515 = vmatprep.subr.bf16.mxu0 0
        %1516 = vmatpush1.bf16.msra.mxu0 0
        %1517 = vmatprep.subr.bf16.mxu0 0
        %1518 = vmatpush1.bf16.msra.mxu0 0
        %1519 = vmatprep.subr.bf16.mxu0 0
        %1520 = vmatpush1.bf16.msra.mxu0 0
        %1521 = vmatprep.subr.bf16.mxu0 0
        %1522 = vmatpush1.bf16.msra.mxu0 0
        %1523 = vmatprep.subr.bf16.mxu0 0
        %1524 = vmatpush1.bf16.msra.mxu0 0
        %1525 = vmatprep.subr.bf16.mxu0 0
        %1526 = vmatpush1.bf16.msra.mxu0 0
        %1527 = vmatprep.subr.bf16.mxu0 0
        %1528 = vmatpush1.bf16.msra.mxu0 0
        %1529 = vmatprep.subr.bf16.mxu0 0
        %1530 = vmatpush1.bf16.msra.mxu0 0
        %1531 = vmatprep.subr.bf16.mxu0 0
        %1532 = vmatpush1.bf16.msra.mxu0 0
        %1533 = vmatprep.subr.bf16.mxu0 0
        %1534 = vmatpush1.bf16.msra.mxu0 0
        %1535 = vmatprep.subr.bf16.mxu0 0
        %1536 = vmatpush1.bf16.msra.mxu0 0
        %1537 = vmatprep.subr.bf16.mxu0 0
        %1538 = vmatpush1.bf16.msra.mxu0 0
        %1539 = vmatprep.subr.bf16.mxu0 0
        %1540 = vmatpush1.bf16.msra.mxu0 0
        %1541 = vmatprep.subr.bf16.mxu0 0
        %1542 = vmatpush1.bf16.msra.mxu0 0
        %1543 = vmatprep.mubr.bf16.mxu0 0
        %1544 = vmatmul.mubr.bf16.gmra.mrb[0].mxu0 %v1506
        %v1545 = vpop.f32.mrb[0].mxu0
        %v1546 = vadd.f32 0.0, %v1545
        %v1547 = vpop.f32.mrb[0].mxu0
        %v1548 = vpop.f32.mrb[0].mxu0
        %v1549 = vpop.f32.mrb[0].mxu0
        %1550 = vdwg.mxu0
        %v1551 = vpack.c.bf16 %v1546, %v1546
        %v1554 = vunpack.c.l.b16 %v946
        %v1555 = vunpack.c.l.b16 %v947
        %v1556 = vpack.c.b16 %v1555, %v1554
        %v1559 = vsel %vm954, %v1551, 0
        %1561 = vmatprep.subr.bf16.mxu0 0
        %1562 = vmatpush1.bf16.msra.mxu0 %v1556
        %1563 = vmatprep.subr.bf16.mxu0 0
        %1564 = vmatpush1.bf16.msra.mxu0 0
        %1565 = vmatprep.subr.bf16.mxu0 0
        %1566 = vmatpush1.bf16.msra.mxu0 0
        %1567 = vmatprep.subr.bf16.mxu0 0
        %1568 = vmatpush1.bf16.msra.mxu0 0
        %1569 = vmatprep.subr.bf16.mxu0 0
        %1570 = vmatpush1.bf16.msra.mxu0 0
        %1571 = vmatprep.subr.bf16.mxu0 0
        %1572 = vmatpush1.bf16.msra.mxu0 0
        %1573 = vmatprep.subr.bf16.mxu0 0
        %1574 = vmatpush1.bf16.msra.mxu0 0
        %1575 = vmatprep.subr.bf16.mxu0 0
        %1576 = vmatpush1.bf16.msra.mxu0 0
        %1577 = vmatprep.subr.bf16.mxu0 0
        %1578 = vmatpush1.bf16.msra.mxu0 0
        %1579 = vmatprep.subr.bf16.mxu0 0
        %1580 = vmatpush1.bf16.msra.mxu0 0
        %1581 = vmatprep.subr.bf16.mxu0 0
        %1582 = vmatpush1.bf16.msra.mxu0 0
        %1583 = vmatprep.subr.bf16.mxu0 0
        %1584 = vmatpush1.bf16.msra.mxu0 0
        %1585 = vmatprep.subr.bf16.mxu0 0
        %1586 = vmatpush1.bf16.msra.mxu0 0
        %1587 = vmatprep.subr.bf16.mxu0 0
        %1588 = vmatpush1.bf16.msra.mxu0 0
        %1589 = vmatprep.subr.bf16.mxu0 0
        %1590 = vmatpush1.bf16.msra.mxu0 0
        %1591 = vmatprep.subr.bf16.mxu0 0
        %1592 = vmatpush1.bf16.msra.mxu0 0
        %1593 = vmatprep.mubr.bf16.mxu0 0
        %1594 = vmatmul.mubr.bf16.gmra.mrb[0].mxu0 %v1559
        %v1595 = vpop.f32.mrb[0].mxu0
        %v1596 = vadd.f32 0.0, %v1595
        %v1597 = vpop.f32.mrb[0].mxu0
        %v1598 = vpop.f32.mrb[0].mxu0
        %v1599 = vpop.f32.mrb[0].mxu0
        %1600 = vdwg.mxu0
        %v1601 = vadd.f32 %v1438, %v1596
        %v1603 = vlaneseq
        %v1604 = vshrl.u32 %v1603, 7
        %v1605 = vsub.s32 0, %v1604
        %v1606 = vrot.slane %v948, %v1605
        %v1608 = vadd.f32 %v1601, %v1606
        %v1609 = vadd.f32 %v798, %v1608
        %v1610 = vld [vmem:[%s10] sm:$0x1]
        %v1611 = vld [vmem:[%s11] sm:$0x1]
        %v1612 = vsel %vm806, %v1609, 0.0
        %1613 = vadd.xlane.f32.xlu0 %v1612
        %v1614 = vpop.xlane.xlu0 %1613
        %v1615 = vmul.f32 %v1614, %v810
        %v1616 = vsub.f32 %v1609, %v1615
        %v1617 = vmul.f32 %v1616, %v1616
        %v1618 = vsel %vm806, %v1617, 0.0
        %1619 = vadd.xlane.f32.xlu0 %v1618
        %v1620 = vpop.xlane.xlu0 %1619
        %v1621 = vmul.f32 %v1620, %v810
        %v1622 = vadd.f32 %v1621, 1e-05
        %v1623 = vrsqrt.pop %v1622
        %v1624 = vmul.f32 %v1616, %v1623
        %v1626 = vlaneseq
        %v1627 = vshrl.u32 %v1626, 7
        %v1628 = vsub.s32 0, %v1627
        %v1629 = vrot.slane %v1610, %v1628
        %v1631 = vmul.f32 %v1624, %v1629
        %v1633 = vlaneseq
        %v1634 = vshrl.u32 %v1633, 7
        %v1635 = vsub.s32 0, %v1634
        %v1636 = vrot.slane %v1611, %v1635
        %v1638 = vadd.f32 %v1631, %v1636
        %v1639 = vld [vmem:[%s12] sm:$0xf]
        %v1640 = vld [vmem:[%s12 + $0x4] sm:$0xf]
        %v1641 = vld [vmem:[%s12 + $0x8] sm:$0xf]
        %v1642 = vld [vmem:[%s12 + $0xc] sm:$0xf]
        %v1643 = vld [vmem:[%s12 + $0x10] sm:$0xf]
        %v1644 = vld [vmem:[%s12 + $0x14] sm:$0xf]
        %v1645 = vld [vmem:[%s12 + $0x18] sm:$0xf]
        %v1646 = vld [vmem:[%s12 + $0x1c] sm:$0xf]
        %v1647 = vpack.c.bf16 %v1638, %v1638
        %v1648 = vld [vmem:[%s13] sm:$0x1]
        %v1650 = vlaneseq
        %v1651 = vshrl.u32 %v1650, 7
        %v1652 = vsub.s32 0, %v1651
        %v1653 = vrot.slane %v1648, %v1652
        %v1663 = vunpack.c.l.b16 %v1639
        %v1664 = vunpack.c.l.b16 %v1640
        %v1665 = vunpack.c.l.b16 %v1641
        %v1666 = vunpack.c.l.b16 %v1642
        %v1667 = vunpack.c.l.b16 %v1643
        %v1668 = vunpack.c.l.b16 %v1644
        %v1669 = vunpack.c.l.b16 %v1645
        %v1670 = vunpack.c.l.b16 %v1646
        %v1671 = vpack.c.b16 %v1664, %v1663
        %v1672 = vpack.c.b16 %v1666, %v1665
        %v1673 = vpack.c.b16 %v1668, %v1667
        %v1674 = vpack.c.b16 %v1670, %v1669
        %v1680 = vsel %vm806, %v1647, 0
        %1682 = vmatprep.subr.bf16.mxu0 0
        %1683 = vmatpush1.bf16.msra.mxu0 %v1671
        %1684 = vmatprep.subr.bf16.mxu0 0
        %1685 = vmatpush1.bf16.msra.mxu0 %v1672
        %1686 = vmatprep.subr.bf16.mxu0 0
        %1687 = vmatpush1.bf16.msra.mxu0 %v1673
        %1688 = vmatprep.subr.bf16.mxu0 0
        %1689 = vmatpush1.bf16.msra.mxu0 %v1674
        %1690 = vmatprep.subr.bf16.mxu0 0
        %1691 = vmatpush1.bf16.msra.mxu0 0
        %1692 = vmatprep.subr.bf16.mxu0 0
        %1693 = vmatpush1.bf16.msra.mxu0 0
        %1694 = vmatprep.subr.bf16.mxu0 0
        %1695 = vmatpush1.bf16.msra.mxu0 0
        %1696 = vmatprep.subr.bf16.mxu0 0
        %1697 = vmatpush1.bf16.msra.mxu0 0
        %1698 = vmatprep.subr.bf16.mxu0 0
        %1699 = vmatpush1.bf16.msra.mxu0 0
        %1700 = vmatprep.subr.bf16.mxu0 0
        %1701 = vmatpush1.bf16.msra.mxu0 0
        %1702 = vmatprep.subr.bf16.mxu0 0
        %1703 = vmatpush1.bf16.msra.mxu0 0
        %1704 = vmatprep.subr.bf16.mxu0 0
        %1705 = vmatpush1.bf16.msra.mxu0 0
        %1706 = vmatprep.subr.bf16.mxu0 0
        %1707 = vmatpush1.bf16.msra.mxu0 0
        %1708 = vmatprep.subr.bf16.mxu0 0
        %1709 = vmatpush1.bf16.msra.mxu0 0
        %1710 = vmatprep.subr.bf16.mxu0 0
        %1711 = vmatpush1.bf16.msra.mxu0 0
        %1712 = vmatprep.subr.bf16.mxu0 0
        %1713 = vmatpush1.bf16.msra.mxu0 0
        %1714 = vmatprep.mubr.bf16.mxu0 0
        %1715 = vmatmul.mubr.bf16.gmra.mrb[0].mxu0 %v1680
        %v1716 = vpop.f32.mrb[0].mxu0
        %v1717 = vadd.f32 %v1653, %v1716
        %v1718 = vpop.f32.mrb[0].mxu0
        %v1719 = vpop.f32.mrb[0].mxu0
        %v1720 = vpop.f32.mrb[0].mxu0
        %1721 = vdwg.mxu0
        %v1722 = vld [vmem:[%s14] sm:$0xf]
        %v1723 = vld [vmem:[%s14 + $0x4] sm:$0xf]
        %v1724 = vld [vmem:[%s14 + $0x8] sm:$0xf]
        %v1725 = vld [vmem:[%s14 + $0xc] sm:$0xf]
        %v1726 = vld [vmem:[%s14 + $0x10] sm:$0xf]
        %v1727 = vld [vmem:[%s14 + $0x14] sm:$0xf]
        %v1728 = vld [vmem:[%s14 + $0x18] sm:$0xf]
        %v1729 = vld [vmem:[%s14 + $0x1c] sm:$0xf]
        %v1730 = vpack.c.bf16 %v800, %v799
        %v1731 = vld [vmem:[%s15] sm:$0x1]
        %v1733 = vlaneseq
        %v1734 = vshrl.u32 %v1733, 7
        %v1735 = vsub.s32 0, %v1734
        %v1736 = vrot.slane %v1731, %v1735
        %v1746 = vunpack.c.l.b16 %v1722
        %v1747 = vunpack.c.l.b16 %v1723
        %v1748 = vunpack.c.l.b16 %v1724
        %v1749 = vunpack.c.l.b16 %v1725
        %v1750 = vunpack.c.l.b16 %v1726
        %v1751 = vunpack.c.l.b16 %v1727
        %v1752 = vunpack.c.l.b16 %v1728
        %v1753 = vunpack.c.l.b16 %v1729
        %v1754 = vpack.c.b16 %v1747, %v1746
        %v1755 = vpack.c.b16 %v1749, %v1748
        %v1756 = vpack.c.b16 %v1751, %v1750
        %v1757 = vpack.c.b16 %v1753, %v1752
        %v1763 = vsel %vm806, %v1730, 0
        %1765 = vmatprep.subr.bf16.mxu0 0
        %1766 = vmatpush1.bf16.msra.mxu0 %v1754
        %1767 = vmatprep.subr.bf16.mxu0 0
        %1768 = vmatpush1.bf16.msra.mxu0 %v1755
        %1769 = vmatprep.subr.bf16.mxu0 0
        %1770 = vmatpush1.bf16.msra.mxu0 %v1756
        %1771 = vmatprep.subr.bf16.mxu0 0
        %1772 = vmatpush1.bf16.msra.mxu0 %v1757
        %1773 = vmatprep.subr.bf16.mxu0 0
        %1774 = vmatpush1.bf16.msra.mxu0 0
        %1775 = vmatprep.subr.bf16.mxu0 0
        %1776 = vmatpush1.bf16.msra.mxu0 0
        %1777 = vmatprep.subr.bf16.mxu0 0
        %1778 = vmatpush1.bf16.msra.mxu0 0
        %1779 = vmatprep.subr.bf16.mxu0 0
        %1780 = vmatpush1.bf16.msra.mxu0 0
        %1781 = vmatprep.subr.bf16.mxu0 0
        %1782 = vmatpush1.bf16.msra.mxu0 0
        %1783 = vmatprep.subr.bf16.mxu0 0
        %1784 = vmatpush1.bf16.msra.mxu0 0
        %1785 = vmatprep.subr.bf16.mxu0 0
        %1786 = vmatpush1.bf16.msra.mxu0 0
        %1787 = vmatprep.subr.bf16.mxu0 0
        %1788 = vmatpush1.bf16.msra.mxu0 0
        %1789 = vmatprep.subr.bf16.mxu0 0
        %1790 = vmatpush1.bf16.msra.mxu0 0
        %1791 = vmatprep.subr.bf16.mxu0 0
        %1792 = vmatpush1.bf16.msra.mxu0 0
        %1793 = vmatprep.subr.bf16.mxu0 0
        %1794 = vmatpush1.bf16.msra.mxu0 0
        %1795 = vmatprep.subr.bf16.mxu0 0
        %1796 = vmatpush1.bf16.msra.mxu0 0
        %1797 = vmatprep.mubr.bf16.mxu0 0
        %1798 = vmatmul.mubr.bf16.gmra.mrb[0].mxu0 %v1763
        %v1799 = vpop.f32.mrb[0].mxu0
        %v1800 = vadd.f32 %v1736, %v1799
        %v1801 = vpop.f32.mrb[0].mxu0
        %v1802 = vpop.f32.mrb[0].mxu0
        %v1803 = vadd.f32 %v1736, %v1802
        %v1804 = vpop.f32.mrb[0].mxu0
        %1805 = vdwg.mxu0
        %v1806 = vld [vmem:[%s16] sm:$0xf]
        %v1807 = vld [vmem:[%s16 + $0x4] sm:$0xf]
        %v1808 = vld [vmem:[%s16 + $0x8] sm:$0xf]
        %v1809 = vld [vmem:[%s16 + $0xc] sm:$0xf]
        %v1810 = vld [vmem:[%s16 + $0x10] sm:$0xf]
        %v1811 = vld [vmem:[%s16 + $0x14] sm:$0xf]
        %v1812 = vld [vmem:[%s16 + $0x18] sm:$0xf]
        %v1813 = vld [vmem:[%s16 + $0x1c] sm:$0xf]
        %v1814 = vld [vmem:[%s17] sm:$0x1]
        %v1815 = vpack.c.bf16 %v1717, %v1717
        %v1816 = vpack.c.bf16 %v1803, %v1800
        %v1818 = vsel %vm954, %v1815, 0
        %v1821 = vsel %vm954, %v1816, 0
        %1823 = vmatprep.subr.bf16.mxu0 0
        %1824 = vmatpush1.bf16.xpose.msra.mxu0 %v1821
        %1825 = vmatprep.subr.bf16.mxu0 0
        %1826 = vmatpush1.bf16.xpose.msra.mxu0 0
        %1827 = vmatprep.subr.bf16.mxu0 0
        %1828 = vmatpush1.bf16.xpose.msra.mxu0 0
        %1829 = vmatprep.subr.bf16.mxu0 0
        %1830 = vmatpush1.bf16.xpose.msra.mxu0 0
        %1831 = vmatprep.subr.bf16.mxu0 0
        %1832 = vmatpush1.bf16.xpose.msra.mxu0 0
        %1833 = vmatprep.subr.bf16.mxu0 0
        %1834 = vmatpush1.bf16.xpose.msra.mxu0 0
        %1835 = vmatprep.subr.bf16.mxu0 0
        %1836 = vmatpush1.bf16.xpose.msra.mxu0 0
        %1837 = vmatprep.subr.bf16.mxu0 0
        %1838 = vmatpush1.bf16.xpose.msra.mxu0 0
        %1839 = vmatprep.subr.bf16.mxu0 0
        %1840 = vmatpush1.bf16.xpose.msra.mxu0 0
        %1841 = vmatprep.subr.bf16.mxu0 0
        %1842 = vmatpush1.bf16.xpose.msra.mxu0 0
        %1843 = vmatprep.subr.bf16.mxu0 0
        %1844 = vmatpush1.bf16.xpose.msra.mxu0 0
        %1845 = vmatprep.subr.bf16.mxu0 0
        %1846 = vmatpush1.bf16.xpose.msra.mxu0 0
        %1847 = vmatprep.subr.bf16.mxu0 0
        %1848 = vmatpush1.bf16.xpose.msra.mxu0 0
        %1849 = vmatprep.subr.bf16.mxu0 0
        %1850 = vmatpush1.bf16.xpose.msra.mxu0 0
        %1851 = vmatprep.subr.bf16.mxu0 0
        %1852 = vmatpush1.bf16.xpose.msra.mxu0 0
        %1853 = vmatprep.subr.bf16.mxu0 0
        %1854 = vmatpush1.bf16.xpose.msra.mxu0 0
        %1855 = vmatprep.mubr.bf16.mxu0 0
        %1856 = vmatmul.mubr.bf16.gmra.mrb[0].mxu0 %v1818
        %v1857 = vpop.f32.mrb[0].mxu0
        %v1858 = vadd.f32 0.0, %v1857
        %v1859 = vpop.f32.mrb[0].mxu0
        %v1860 = vpop.f32.mrb[0].mxu0
        %v1861 = vpop.f32.mrb[0].mxu0
        %1862 = vdwg.mxu0
        %v1863 = vmul.f32 %v1858, 0.25
        %v1865 = vlaneseq
        %v1866 = vshrl.u32 %v1865, 7
        %v1867 = vsub.s32 0, %v1866
        %v1868 = vrot.slane %v803, %v1867
        %v1870 = vadd.f32 %v1863, %v1868
        %vm1871 = vcmask 80896
        %v1872 = vsel %vm1871, %v1870, -inf
        %1873 = vmax.xlane.f32.xlu0 %v1872
        %v1874 = vpop.xlane.xlu0 %1873
        %v1875 = vsub.f32 %v1870, %v1874
        %v1876 = vmul.f32 %v1875, 1.442695
        %v1877 = vpow.pop %v1876
        %v1878 = vsel %vm1871, %v1877, 0.0
        %1879 = vadd.xlane.f32.xlu0 %v1878
        %v1880 = vpop.xlane.xlu0 %1879
        %v1881 = vrcp.pop %v1880
        %v1882 = vmul.f32 %v1877, %v1881
        %v1883 = vpack.c.bf16 %v1882, %v1882
        %1885 = vrot.lane.b32.xlu0 %v1816, 64
        %v1886 = vpop.permute.xlu0 %1885
        %v1888 = vsel %vm1871, %v1883, 0
        %vm1890 = vcmask 1044480
        %v1892 = vsel %vm1890, %v1886, 0
        %1894 = vmatprep.subr.bf16.mxu0 0
        %1895 = vmatpush1.bf16.msra.mxu0 %v1892
        %1896 = vmatprep.subr.bf16.mxu0 0
        %1897 = vmatpush1.bf16.msra.mxu0 0
        %1898 = vmatprep.subr.bf16.mxu0 0
        %1899 = vmatpush1.bf16.msra.mxu0 0
        %1900 = vmatprep.subr.bf16.mxu0 0
        %1901 = vmatpush1.bf16.msra.mxu0 0
        %1902 = vmatprep.subr.bf16.mxu0 0
        %1903 = vmatpush1.bf16.msra.mxu0 0
        %1904 = vmatprep.subr.bf16.mxu0 0
        %1905 = vmatpush1.bf16.msra.mxu0 0
        %1906 = vmatprep.subr.bf16.mxu0 0
        %1907 = vmatpush1.bf16.msra.mxu0 0
        %1908 = vmatprep.subr.bf16.mxu0 0
        %1909 = vmatpush1.bf16.msra.mxu0 0
        %1910 = vmatprep.subr.bf16.mxu0 0
        %1911 = vmatpush1.bf16.msra.mxu0 0
        %1912 = vmatprep.subr.bf16.mxu0 0
        %1913 = vmatpush1.bf16.msra.mxu0 0
        %1914 = vmatprep.subr.bf16.mxu0 0
        %1915 = vmatpush1.bf16.msra.mxu0 0
        %1916 = vmatprep.subr.bf16.mxu0 0
        %1917 = vmatpush1.bf16.msra.mxu0 0
        %1918 = vmatprep.subr.bf16.mxu0 0
        %1919 = vmatpush1.bf16.msra.mxu0 0
        %1920 = vmatprep.subr.bf16.mxu0 0
        %1921 = vmatpush1.bf16.msra.mxu0 0
        %1922 = vmatprep.subr.bf16.mxu0 0
        %1923 = vmatpush1.bf16.msra.mxu0 0
        %1924 = vmatprep.subr.bf16.mxu0 0
        %1925 = vmatpush1.bf16.msra.mxu0 0
        %1926 = vmatprep.mubr.bf16.mxu0 0
        %1927 = vmatmul.mubr.bf16.gmra.mrb[0].mxu0 %v1888
        %v1928 = vpop.f32.mrb[0].mxu0
        %v1929 = vadd.f32 0.0, %v1928
        %v1930 = vpop.f32.mrb[0].mxu0
        %v1931 = vpop.f32.mrb[0].mxu0
        %v1932 = vpop.f32.mrb[0].mxu0
        %1933 = vdwg.mxu0
        %v1934 = vpack.c.bf16 %v1929, %v1929
        %1936 = vrot.lane.b32.xlu0 %v1815, 112
        %v1937 = vpop.permute.xlu0 %1936
        %1938 = vrot.lane.b32.xlu0 %v1816, 112
        %v1939 = vpop.permute.xlu0 %1938
        %v1941 = vsel %vm954, %v1937, 0
        %v1944 = vsel %vm954, %v1939, 0
        %1946 = vmatprep.subr.bf16.mxu0 0
        %1947 = vmatpush1.bf16.xpose.msra.mxu0 %v1944
        %1948 = vmatprep.subr.bf16.mxu0 0
        %1949 = vmatpush1.bf16.xpose.msra.mxu0 0
        %1950 = vmatprep.subr.bf16.mxu0 0
        %1951 = vmatpush1.bf16.xpose.msra.mxu0 0
        %1952 = vmatprep.subr.bf16.mxu0 0
        %1953 = vmatpush1.bf16.xpose.msra.mxu0 0
        %1954 = vmatprep.subr.bf16.mxu0 0
        %1955 = vmatpush1.bf16.xpose.msra.mxu0 0
        %1956 = vmatprep.subr.bf16.mxu0 0
        %1957 = vmatpush1.bf16.xpose.msra.mxu0 0
        %1958 = vmatprep.subr.bf16.mxu0 0
        %1959 = vmatpush1.bf16.xpose.msra.mxu0 0
        %1960 = vmatprep.subr.bf16.mxu0 0
        %1961 = vmatpush1.bf16.xpose.msra.mxu0 0
        %1962 = vmatprep.subr.bf16.mxu0 0
        %1963 = vmatpush1.bf16.xpose.msra.mxu0 0
        %1964 = vmatprep.subr.bf16.mxu0 0
        %1965 = vmatpush1.bf16.xpose.msra.mxu0 0
        %1966 = vmatprep.subr.bf16.mxu0 0
        %1967 = vmatpush1.bf16.xpose.msra.mxu0 0
        %1968 = vmatprep.subr.bf16.mxu0 0
        %1969 = vmatpush1.bf16.xpose.msra.mxu0 0
        %1970 = vmatprep.subr.bf16.mxu0 0
        %1971 = vmatpush1.bf16.xpose.msra.mxu0 0
        %1972 = vmatprep.subr.bf16.mxu0 0
        %1973 = vmatpush1.bf16.xpose.msra.mxu0 0
        %1974 = vmatprep.subr.bf16.mxu0 0
        %1975 = vmatpush1.bf16.xpose.msra.mxu0 0
        %1976 = vmatprep.subr.bf16.mxu0 0
        %1977 = vmatpush1.bf16.xpose.msra.mxu0 0
        %1978 = vmatprep.mubr.bf16.mxu0 0
        %1979 = vmatmul.mubr.bf16.gmra.mrb[0].mxu0 %v1941
        %v1980 = vpop.f32.mrb[0].mxu0
        %v1981 = vadd.f32 0.0, %v1980
        %v1982 = vpop.f32.mrb[0].mxu0
        %v1983 = vpop.f32.mrb[0].mxu0
        %v1984 = vpop.f32.mrb[0].mxu0
        %1985 = vdwg.mxu0
        %v1986 = vmul.f32 %v1981, 0.25
        %v1987 = vadd.f32 %v1986, %v1868
        %v1988 = vsel %vm1871, %v1987, -inf
        %1989 = vmax.xlane.f32.xlu0 %v1988
        %v1990 = vpop.xlane.xlu0 %1989
        %v1991 = vsub.f32 %v1987, %v1990
        %v1992 = vmul.f32 %v1991, 1.442695
        %v1993 = vpow.pop %v1992
        %v1994 = vsel %vm1871, %v1993, 0.0
        %1995 = vadd.xlane.f32.xlu0 %v1994
        %v1996 = vpop.xlane.xlu0 %1995
        %v1997 = vrcp.pop %v1996
        %v1998 = vmul.f32 %v1993, %v1997
        %v1999 = vpack.c.bf16 %v1998, %v1998
        %2000 = vrot.lane.b32.xlu0 %v1816, 48
        %v2001 = vpop.permute.xlu0 %2000
        %v2003 = vsel %vm1871, %v1999, 0
        %v2006 = vsel %vm1890, %v2001, 0
        %2008 = vmatprep.subr.bf16.mxu0 0
        %2009 = vmatpush1.bf16.msra.mxu0 %v2006
        %2010 = vmatprep.subr.bf16.mxu0 0
        %2011 = vmatpush1.bf16.msra.mxu0 0
        %2012 = vmatprep.subr.bf16.mxu0 0
        %2013 = vmatpush1.bf16.msra.mxu0 0
        %2014 = vmatprep.subr.bf16.mxu0 0
        %2015 = vmatpush1.bf16.msra.mxu0 0
        %2016 = vmatprep.subr.bf16.mxu0 0
        %2017 = vmatpush1.bf16.msra.mxu0 0
        %2018 = vmatprep.subr.bf16.mxu0 0
        %2019 = vmatpush1.bf16.msra.mxu0 0
        %2020 = vmatprep.subr.bf16.mxu0 0
        %2021 = vmatpush1.bf16.msra.mxu0 0
        %2022 = vmatprep.subr.bf16.mxu0 0
        %2023 = vmatpush1.bf16.msra.mxu0 0
        %2024 = vmatprep.subr.bf16.mxu0 0
        %2025 = vmatpush1.bf16.msra.mxu0 0
        %2026 = vmatprep.subr.bf16.mxu0 0
        %2027 = vmatpush1.bf16.msra.mxu0 0
        %2028 = vmatprep.subr.bf16.mxu0 0
        %2029 = vmatpush1.bf16.msra.mxu0 0
        %2030 = vmatprep.subr.bf16.mxu0 0
        %2031 = vmatpush1.bf16.msra.mxu0 0
        %2032 = vmatprep.subr.bf16.mxu0 0
        %2033 = vmatpush1.bf16.msra.mxu0 0
        %2034 = vmatprep.subr.bf16.mxu0 0
        %2035 = vmatpush1.bf16.msra.mxu0 0
        %2036 = vmatprep.subr.bf16.mxu0 0
        %2037 = vmatpush1.bf16.msra.mxu0 0
        %2038 = vmatprep.subr.bf16.mxu0 0
        %2039 = vmatpush1.bf16.msra.mxu0 0
        %2040 = vmatprep.mubr.bf16.mxu0 0
        %2041 = vmatmul.mubr.bf16.gmra.mrb[0].mxu0 %v2003
        %v2042 = vpop.f32.mrb[0].mxu0
        %v2043 = vadd.f32 0.0, %v2042
        %v2044 = vpop.f32.mrb[0].mxu0
        %v2045 = vpop.f32.mrb[0].mxu0
        %v2046 = vpop.f32.mrb[0].mxu0
        %2047 = vdwg.mxu0
        %v2048 = vpack.c.bf16 %v2043, %v2043
        %v2051 = vunpack.c.l.b16 %v1808
        %v2052 = vunpack.c.l.b16 %v1809
        %v2053 = vpack.c.b16 %v2052, %v2051
        %v2056 = vsel %vm954, %v2048, 0
        %2058 = vmatprep.subr.bf16.mxu0 0
        %2059 = vmatpush1.bf16.msra.mxu0 %v2053
        %2060 = vmatprep.subr.bf16.mxu0 0
        %2061 = vmatpush1.bf16.msra.mxu0 0
        %2062 = vmatprep.subr.bf16.mxu0 0
        %2063 = vmatpush1.bf16.msra.mxu0 0
        %2064 = vmatprep.subr.bf16.mxu0 0
        %2065 = vmatpush1.bf16.msra.mxu0 0
        %2066 = vmatprep.subr.bf16.mxu0 0
        %2067 = vmatpush1.bf16.msra.mxu0 0
        %2068 = vmatprep.subr.bf16.mxu0 0
        %2069 = vmatpush1.bf16.msra.mxu0 0
        %2070 = vmatprep.subr.bf16.mxu0 0
        %2071 = vmatpush1.bf16.msra.mxu0 0
        %2072 = vmatprep.subr.bf16.mxu0 0
        %2073 = vmatpush1.bf16.msra.mxu0 0
        %2074 = vmatprep.subr.bf16.mxu0 0
        %2075 = vmatpush1.bf16.msra.mxu0 0
        %2076 = vmatprep.subr.bf16.mxu0 0
        %2077 = vmatpush1.bf16.msra.mxu0 0
        %2078 = vmatprep.subr.bf16.mxu0 0
        %2079 = vmatpush1.bf16.msra.mxu0 0
        %2080 = vmatprep.subr.bf16.mxu0 0
        %2081 = vmatpush1.bf16.msra.mxu0 0
        %2082 = vmatprep.subr.bf16.mxu0 0
        %2083 = vmatpush1.bf16.msra.mxu0 0
        %2084 = vmatprep.subr.bf16.mxu0 0
        %2085 = vmatpush1.bf16.msra.mxu0 0
        %2086 = vmatprep.subr.bf16.mxu0 0
        %2087 = vmatpush1.bf16.msra.mxu0 0
        %2088 = vmatprep.subr.bf16.mxu0 0
        %2089 = vmatpush1.bf16.msra.mxu0 0
        %2090 = vmatprep.mubr.bf16.mxu0 0
        %2091 = vmatmul.mubr.bf16.gmra.mrb[0].mxu0 %v2056
        %v2092 = vpop.f32.mrb[0].mxu0
        %v2093 = vadd.f32 0.0, %v2092
        %v2094 = vpop.f32.mrb[0].mxu0
        %v2095 = vpop.f32.mrb[0].mxu0
        %v2096 = vpop.f32.mrb[0].mxu0
        %2097 = vdwg.mxu0
        %v2100 = vunpack.c.l.b16 %v1806
        %v2101 = vunpack.c.l.b16 %v1807
        %v2102 = vpack.c.b16 %v2101, %v2100
        %v2105 = vsel %vm954, %v1934, 0
        %2107 = vmatprep.subr.bf16.mxu0 0
        %2108 = vmatpush1.bf16.msra.mxu0 %v2102
        %2109 = vmatprep.subr.bf16.mxu0 0
        %2110 = vmatpush1.bf16.msra.mxu0 0
        %2111 = vmatprep.subr.bf16.mxu0 0
        %2112 = vmatpush1.bf16.msra.mxu0 0
        %2113 = vmatprep.subr.bf16.mxu0 0
        %2114 = vmatpush1.bf16.msra.mxu0 0
        %2115 = vmatprep.subr.bf16.mxu0 0
        %2116 = vmatpush1.bf16.msra.mxu0 0
        %2117 = vmatprep.subr.bf16.mxu0 0
        %2118 = vmatpush1.bf16.msra.mxu0 0
        %2119 = vmatprep.subr.bf16.mxu0 0
        %2120 = vmatpush1.bf16.msra.mxu0 0
        %2121 = vmatprep.subr.bf16.mxu0 0
        %2122 = vmatpush1.bf16.msra.mxu0 0
        %2123 = vmatprep.subr.bf16.mxu0 0
        %2124 = vmatpush1.bf16.msra.mxu0 0
        %2125 = vmatprep.subr.bf16.mxu0 0
        %2126 = vmatpush1.bf16.msra.mxu0 0
        %2127 = vmatprep.subr.bf16.mxu0 0
        %2128 = vmatpush1.bf16.msra.mxu0 0
        %2129 = vmatprep.subr.bf16.mxu0 0
        %2130 = vmatpush1.bf16.msra.mxu0 0
        %2131 = vmatprep.subr.bf16.mxu0 0
        %2132 = vmatpush1.bf16.msra.mxu0 0
        %2133 = vmatprep.subr.bf16.mxu0 0
        %2134 = vmatpush1.bf16.msra.mxu0 0
        %2135 = vmatprep.subr.bf16.mxu0 0
        %2136 = vmatpush1.bf16.msra.mxu0 0
        %2137 = vmatprep.subr.bf16.mxu0 0
        %2138 = vmatpush1.bf16.msra.mxu0 0
        %2139 = vmatprep.mubr.bf16.mxu0 0
        %2140 = vmatmul.mubr.bf16.gmra.mrb[0].mxu0 %v2105
        %v2141 = vpop.f32.mrb[0].mxu0
        %v2142 = vadd.f32 %v2093, %v2141
        %v2143 = vpop.f32.mrb[0].mxu0
        %v2144 = vpop.f32.mrb[0].mxu0
        %v2145 = vpop.f32.mrb[0].mxu0
        %2146 = vdwg.mxu0
        %2147 = vrot.lane.b32.xlu0 %v1815, 96
        %v2148 = vpop.permute.xlu0 %2147
        %2149 = vrot.lane.b32.xlu0 %v1816, 96
        %v2150 = vpop.permute.xlu0 %2149
        %v2152 = vsel %vm954, %v2148, 0
        %v2155 = vsel %vm954, %v2150, 0
        %2157 = vmatprep.subr.bf16.mxu0 0
        %2158 = vmatpush1.bf16.xpose.msra.mxu0 %v2155
        %2159 = vmatprep.subr.bf16.mxu0 0
        %2160 = vmatpush1.bf16.xpose.msra.mxu0 0
        %2161 = vmatprep.subr.bf16.mxu0 0
        %2162 = vmatpush1.bf16.xpose.msra.mxu0 0
        %2163 = vmatprep.subr.bf16.mxu0 0
        %2164 = vmatpush1.bf16.xpose.msra.mxu0 0
        %2165 = vmatprep.subr.bf16.mxu0 0
        %2166 = vmatpush1.bf16.xpose.msra.mxu0 0
        %2167 = vmatprep.subr.bf16.mxu0 0
        %2168 = vmatpush1.bf16.xpose.msra.mxu0 0
        %2169 = vmatprep.subr.bf16.mxu0 0
        %2170 = vmatpush1.bf16.xpose.msra.mxu0 0
        %2171 = vmatprep.subr.bf16.mxu0 0
        %2172 = vmatpush1.bf16.xpose.msra.mxu0 0
        %2173 = vmatprep.subr.bf16.mxu0 0
        %2174 = vmatpush1.bf16.xpose.msra.mxu0 0
        %2175 = vmatprep.subr.bf16.mxu0 0
        %2176 = vmatpush1.bf16.xpose.msra.mxu0 0
        %2177 = vmatprep.subr.bf16.mxu0 0
        %2178 = vmatpush1.bf16.xpose.msra.mxu0 0
        %2179 = vmatprep.subr.bf16.mxu0 0
        %2180 = vmatpush1.bf16.xpose.msra.mxu0 0
        %2181 = vmatprep.subr.bf16.mxu0 0
        %2182 = vmatpush1.bf16.xpose.msra.mxu0 0
        %2183 = vmatprep.subr.bf16.mxu0 0
        %2184 = vmatpush1.bf16.xpose.msra.mxu0 0
        %2185 = vmatprep.subr.bf16.mxu0 0
        %2186 = vmatpush1.bf16.xpose.msra.mxu0 0
        %2187 = vmatprep.subr.bf16.mxu0 0
        %2188 = vmatpush1.bf16.xpose.msra.mxu0 0
        %2189 = vmatprep.mubr.bf16.mxu0 0
        %2190 = vmatmul.mubr.bf16.gmra.mrb[0].mxu0 %v2152
        %v2191 = vpop.f32.mrb[0].mxu0
        %v2192 = vadd.f32 0.0, %v2191
        %v2193 = vpop.f32.mrb[0].mxu0
        %v2194 = vpop.f32.mrb[0].mxu0
        %v2195 = vpop.f32.mrb[0].mxu0
        %2196 = vdwg.mxu0
        %v2197 = vmul.f32 %v2192, 0.25
        %v2198 = vadd.f32 %v2197, %v1868
        %v2199 = vsel %vm1871, %v2198, -inf
        %2200 = vmax.xlane.f32.xlu0 %v2199
        %v2201 = vpop.xlane.xlu0 %2200
        %v2202 = vsub.f32 %v2198, %v2201
        %v2203 = vmul.f32 %v2202, 1.442695
        %v2204 = vpow.pop %v2203
        %v2205 = vsel %vm1871, %v2204, 0.0
        %2206 = vadd.xlane.f32.xlu0 %v2205
        %v2207 = vpop.xlane.xlu0 %2206
        %v2208 = vrcp.pop %v2207
        %v2209 = vmul.f32 %v2204, %v2208
        %v2210 = vpack.c.bf16 %v2209, %v2209
        %2211 = vrot.lane.b32.xlu0 %v1816, 32
        %v2212 = vpop.permute.xlu0 %2211
        %v2214 = vsel %vm1871, %v2210, 0
        %v2217 = vsel %vm1890, %v2212, 0
        %2219 = vmatprep.subr.bf16.mxu0 0
        %2220 = vmatpush1.bf16.msra.mxu0 %v2217
        %2221 = vmatprep.subr.bf16.mxu0 0
        %2222 = vmatpush1.bf16.msra.mxu0 0
        %2223 = vmatprep.subr.bf16.mxu0 0
        %2224 = vmatpush1.bf16.msra.mxu0 0
        %2225 = vmatprep.subr.bf16.mxu0 0
        %2226 = vmatpush1.bf16.msra.mxu0 0
        %2227 = vmatprep.subr.bf16.mxu0 0
        %2228 = vmatpush1.bf16.msra.mxu0 0
        %2229 = vmatprep.subr.bf16.mxu0 0
        %2230 = vmatpush1.bf16.msra.mxu0 0
        %2231 = vmatprep.subr.bf16.mxu0 0
        %2232 = vmatpush1.bf16.msra.mxu0 0
        %2233 = vmatprep.subr.bf16.mxu0 0
        %2234 = vmatpush1.bf16.msra.mxu0 0
        %2235 = vmatprep.subr.bf16.mxu0 0
        %2236 = vmatpush1.bf16.msra.mxu0 0
        %2237 = vmatprep.subr.bf16.mxu0 0
        %2238 = vmatpush1.bf16.msra.mxu0 0
        %2239 = vmatprep.subr.bf16.mxu0 0
        %2240 = vmatpush1.bf16.msra.mxu0 0
        %2241 = vmatprep.subr.bf16.mxu0 0
        %2242 = vmatpush1.bf16.msra.mxu0 0
        %2243 = vmatprep.subr.bf16.mxu0 0
        %2244 = vmatpush1.bf16.msra.mxu0 0
        %2245 = vmatprep.subr.bf16.mxu0 0
        %2246 = vmatpush1.bf16.msra.mxu0 0
        %2247 = vmatprep.subr.bf16.mxu0 0
        %2248 = vmatpush1.bf16.msra.mxu0 0
        %2249 = vmatprep.subr.bf16.mxu0 0
        %2250 = vmatpush1.bf16.msra.mxu0 0
        %2251 = vmatprep.mubr.bf16.mxu0 0
        %2252 = vmatmul.mubr.bf16.gmra.mrb[0].mxu0 %v2214
        %v2253 = vpop.f32.mrb[0].mxu0
        %v2254 = vadd.f32 0.0, %v2253
        %v2255 = vpop.f32.mrb[0].mxu0
        %v2256 = vpop.f32.mrb[0].mxu0
        %v2257 = vpop.f32.mrb[0].mxu0
        %2258 = vdwg.mxu0
        %v2259 = vpack.c.bf16 %v2254, %v2254
        %v2262 = vunpack.c.l.b16 %v1810
        %v2263 = vunpack.c.l.b16 %v1811
        %v2264 = vpack.c.b16 %v2263, %v2262
        %v2267 = vsel %vm954, %v2259, 0
        %2269 = vmatprep.subr.bf16.mxu0 0
        %2270 = vmatpush1.bf16.msra.mxu0 %v2264
        %2271 = vmatprep.subr.bf16.mxu0 0
        %2272 = vmatpush1.bf16.msra.mxu0 0
        %2273 = vmatprep.subr.bf16.mxu0 0
        %2274 = vmatpush1.bf16.msra.mxu0 0
        %2275 = vmatprep.subr.bf16.mxu0 0
        %2276 = vmatpush1.bf16.msra.mxu0 0
        %2277 = vmatprep.subr.bf16.mxu0 0
        %2278 = vmatpush1.bf16.msra.mxu0 0
        %2279 = vmatprep.subr.bf16.mxu0 0
        %2280 = vmatpush1.bf16.msra.mxu0 0
        %2281 = vmatprep.subr.bf16.mxu0 0
        %2282 = vmatpush1.bf16.msra.mxu0 0
        %2283 = vmatprep.subr.bf16.mxu0 0
        %2284 = vmatpush1.bf16.msra.mxu0 0
        %2285 = vmatprep.subr.bf16.mxu0 0
        %2286 = vmatpush1.bf16.msra.mxu0 0
        %2287 = vmatprep.subr.bf16.mxu0 0
        %2288 = vmatpush1.bf16.msra.mxu0 0
        %2289 = vmatprep.subr.bf16.mxu0 0
        %2290 = vmatpush1.bf16.msra.mxu0 0
        %2291 = vmatprep.subr.bf16.mxu0 0
        %2292 = vmatpush1.bf16.msra.mxu0 0
        %2293 = vmatprep.subr.bf16.mxu0 0
        %2294 = vmatpush1.bf16.msra.mxu0 0
        %2295 = vmatprep.subr.bf16.mxu0 0
        %2296 = vmatpush1.bf16.msra.mxu0 0
        %2297 = vmatprep.subr.bf16.mxu0 0
        %2298 = vmatpush1.bf16.msra.mxu0 0
        %2299 = vmatprep.subr.bf16.mxu0 0
        %2300 = vmatpush1.bf16.msra.mxu0 0
        %2301 = vmatprep.mubr.bf16.mxu0 0
        %2302 = vmatmul.mubr.bf16.gmra.mrb[0].mxu0 %v2267
        %v2303 = vpop.f32.mrb[0].mxu0
        %v2304 = vadd.f32 0.0, %v2303
        %v2305 = vpop.f32.mrb[0].mxu0
        %v2306 = vpop.f32.mrb[0].mxu0
        %v2307 = vpop.f32.mrb[0].mxu0
        %2308 = vdwg.mxu0
        %v2309 = vadd.f32 %v2142, %v2304
        %2310 = vrot.lane.b32.xlu0 %v1815, 80
        %v2311 = vpop.permute.xlu0 %2310
        %2312 = vrot.lane.b32.xlu0 %v1816, 80
        %v2313 = vpop.permute.xlu0 %2312
        %v2315 = vsel %vm954, %v2311, 0
        %v2318 = vsel %vm954, %v2313, 0
        %2320 = vmatprep.subr.bf16.mxu0 0
        %2321 = vmatpush1.bf16.xpose.msra.mxu0 %v2318
        %2322 = vmatprep.subr.bf16.mxu0 0
        %2323 = vmatpush1.bf16.xpose.msra.mxu0 0
        %2324 = vmatprep.subr.bf16.mxu0 0
        %2325 = vmatpush1.bf16.xpose.msra.mxu0 0
        %2326 = vmatprep.subr.bf16.mxu0 0
        %2327 = vmatpush1.bf16.xpose.msra.mxu0 0
        %2328 = vmatprep.subr.bf16.mxu0 0
        %2329 = vmatpush1.bf16.xpose.msra.mxu0 0
        %2330 = vmatprep.subr.bf16.mxu0 0
        %2331 = vmatpush1.bf16.xpose.msra.mxu0 0
        %2332 = vmatprep.subr.bf16.mxu0 0
        %2333 = vmatpush1.bf16.xpose.msra.mxu0 0
        %2334 = vmatprep.subr.bf16.mxu0 0
        %2335 = vmatpush1.bf16.xpose.msra.mxu0 0
        %2336 = vmatprep.subr.bf16.mxu0 0
        %2337 = vmatpush1.bf16.xpose.msra.mxu0 0
        %2338 = vmatprep.subr.bf16.mxu0 0
        %2339 = vmatpush1.bf16.xpose.msra.mxu0 0
        %2340 = vmatprep.subr.bf16.mxu0 0
        %2341 = vmatpush1.bf16.xpose.msra.mxu0 0
        %2342 = vmatprep.subr.bf16.mxu0 0
        %2343 = vmatpush1.bf16.xpose.msra.mxu0 0
        %2344 = vmatprep.subr.bf16.mxu0 0
        %2345 = vmatpush1.bf16.xpose.msra.mxu0 0
        %2346 = vmatprep.subr.bf16.mxu0 0
        %2347 = vmatpush1.bf16.xpose.msra.mxu0 0
        %2348 = vmatprep.subr.bf16.mxu0 0
        %2349 = vmatpush1.bf16.xpose.msra.mxu0 0
        %2350 = vmatprep.subr.bf16.mxu0 0
        %2351 = vmatpush1.bf16.xpose.msra.mxu0 0
        %2352 = vmatprep.mubr.bf16.mxu0 0
        %2353 = vmatmul.mubr.bf16.gmra.mrb[0].mxu0 %v2315
        %v2354 = vpop.f32.mrb[0].mxu0
        %v2355 = vadd.f32 0.0, %v2354
        %v2356 = vpop.f32.mrb[0].mxu0
        %v2357 = vpop.f32.mrb[0].mxu0
        %v2358 = vpop.f32.mrb[0].mxu0
        %2359 = vdwg.mxu0
        %v2360 = vmul.f32 %v2355, 0.25
        %v2361 = vadd.f32 %v2360, %v1868
        %v2362 = vsel %vm1871, %v2361, -inf
        %2363 = vmax.xlane.f32.xlu0 %v2362
        %v2364 = vpop.xlane.xlu0 %2363
        %v2365 = vsub.f32 %v2361, %v2364
        %v2366 = vmul.f32 %v2365, 1.442695
        %v2367 = vpow.pop %v2366
        %v2368 = vsel %vm1871, %v2367, 0.0
        %2369 = vadd.xlane.f32.xlu0 %v2368
        %v2370 = vpop.xlane.xlu0 %2369
        %v2371 = vrcp.pop %v2370
        %v2372 = vmul.f32 %v2367, %v2371
        %v2373 = vpack.c.bf16 %v2372, %v2372
        %2374 = vrot.lane.b32.xlu0 %v1816, 16
        %v2375 = vpop.permute.xlu0 %2374
        %v2377 = vsel %vm1871, %v2373, 0
        %v2380 = vsel %vm1890, %v2375, 0
        %2382 = vmatprep.subr.bf16.mxu0 0
        %2383 = vmatpush1.bf16.msra.mxu0 %v2380
        %2384 = vmatprep.subr.bf16.mxu0 0
        %2385 = vmatpush1.bf16.msra.mxu0 0
        %2386 = vmatprep.subr.bf16.mxu0 0
        %2387 = vmatpush1.bf16.msra.mxu0 0
        %2388 = vmatprep.subr.bf16.mxu0 0
        %2389 = vmatpush1.bf16.msra.mxu0 0
        %2390 = vmatprep.subr.bf16.mxu0 0
        %2391 = vmatpush1.bf16.msra.mxu0 0
        %2392 = vmatprep.subr.bf16.mxu0 0
        %2393 = vmatpush1.bf16.msra.mxu0 0
        %2394 = vmatprep.subr.bf16.mxu0 0
        %2395 = vmatpush1.bf16.msra.mxu0 0
        %2396 = vmatprep.subr.bf16.mxu0 0
        %2397 = vmatpush1.bf16.msra.mxu0 0
        %2398 = vmatprep.subr.bf16.mxu0 0
        %2399 = vmatpush1.bf16.msra.mxu0 0
        %2400 = vmatprep.subr.bf16.mxu0 0
        %2401 = vmatpush1.bf16.msra.mxu0 0
        %2402 = vmatprep.subr.bf16.mxu0 0
        %2403 = vmatpush1.bf16.msra.mxu0 0
        %2404 = vmatprep.subr.bf16.mxu0 0
        %2405 = vmatpush1.bf16.msra.mxu0 0
        %2406 = vmatprep.subr.bf16.mxu0 0
        %2407 = vmatpush1.bf16.msra.mxu0 0
        %2408 = vmatprep.subr.bf16.mxu0 0
        %2409 = vmatpush1.bf16.msra.mxu0 0
        %2410 = vmatprep.subr.bf16.mxu0 0
        %2411 = vmatpush1.bf16.msra.mxu0 0
        %2412 = vmatprep.subr.bf16.mxu0 0
        %2413 = vmatpush1.bf16.msra.mxu0 0
        %2414 = vmatprep.mubr.bf16.mxu0 0
        %2415 = vmatmul.mubr.bf16.gmra.mrb[0].mxu0 %v2377
        %v2416 = vpop.f32.mrb[0].mxu0
        %v2417 = vadd.f32 0.0, %v2416
        %v2418 = vpop.f32.mrb[0].mxu0
        %v2419 = vpop.f32.mrb[0].mxu0
        %v2420 = vpop.f32.mrb[0].mxu0
        %2421 = vdwg.mxu0
        %v2422 = vpack.c.bf16 %v2417, %v2417
        %v2425 = vunpack.c.l.b16 %v1812
        %v2426 = vunpack.c.l.b16 %v1813
        %v2427 = vpack.c.b16 %v2426, %v2425
        %v2430 = vsel %vm954, %v2422, 0
        %2432 = vmatprep.subr.bf16.mxu0 0
        %2433 = vmatpush1.bf16.msra.mxu0 %v2427
        %2434 = vmatprep.subr.bf16.mxu0 0
        %2435 = vmatpush1.bf16.msra.mxu0 0
        %2436 = vmatprep.subr.bf16.mxu0 0
        %2437 = vmatpush1.bf16.msra.mxu0 0
        %2438 = vmatprep.subr.bf16.mxu0 0
        %2439 = vmatpush1.bf16.msra.mxu0 0
        %2440 = vmatprep.subr.bf16.mxu0 0
        %2441 = vmatpush1.bf16.msra.mxu0 0
        %2442 = vmatprep.subr.bf16.mxu0 0
        %2443 = vmatpush1.bf16.msra.mxu0 0
        %2444 = vmatprep.subr.bf16.mxu0 0
        %2445 = vmatpush1.bf16.msra.mxu0 0
        %2446 = vmatprep.subr.bf16.mxu0 0
        %2447 = vmatpush1.bf16.msra.mxu0 0
        %2448 = vmatprep.subr.bf16.mxu0 0
        %2449 = vmatpush1.bf16.msra.mxu0 0
        %2450 = vmatprep.subr.bf16.mxu0 0
        %2451 = vmatpush1.bf16.msra.mxu0 0
        %2452 = vmatprep.subr.bf16.mxu0 0
        %2453 = vmatpush1.bf16.msra.mxu0 0
        %2454 = vmatprep.subr.bf16.mxu0 0
        %2455 = vmatpush1.bf16.msra.mxu0 0
        %2456 = vmatprep.subr.bf16.mxu0 0
        %2457 = vmatpush1.bf16.msra.mxu0 0
        %2458 = vmatprep.subr.bf16.mxu0 0
        %2459 = vmatpush1.bf16.msra.mxu0 0
        %2460 = vmatprep.subr.bf16.mxu0 0
        %2461 = vmatpush1.bf16.msra.mxu0 0
        %2462 = vmatprep.subr.bf16.mxu0 0
        %2463 = vmatpush1.bf16.msra.mxu0 0
        %2464 = vmatprep.mubr.bf16.mxu0 0
        %2465 = vmatmul.mubr.bf16.gmra.mrb[0].mxu0 %v2430
        %v2466 = vpop.f32.mrb[0].mxu0
        %v2467 = vadd.f32 0.0, %v2466
        %v2468 = vpop.f32.mrb[0].mxu0
        %v2469 = vpop.f32.mrb[0].mxu0
        %v2470 = vpop.f32.mrb[0].mxu0
        %2471 = vdwg.mxu0
        %v2472 = vadd.f32 %v2309, %v2467
        %v2474 = vlaneseq
        %v2475 = vshrl.u32 %v2474, 7
        %v2476 = vsub.s32 0, %v2475
        %v2477 = vrot.slane %v1814, %v2476
        %v2479 = vadd.f32 %v2472, %v2477
        %v2480 = vadd.f32 %v1609, %v2479
        %v2481 = vld [vmem:[%s18] sm:$0x1]
        %v2482 = vld [vmem:[%s19] sm:$0x1]
        %v2483 = vsel %vm806, %v2480, 0.0
        %2484 = vadd.xlane.f32.xlu0 %v2483
        %v2485 = vpop.xlane.xlu0 %2484
        %v2486 = vmul.f32 %v2485, %v810
        %v2487 = vsub.f32 %v2480, %v2486
        %v2488 = vmul.f32 %v2487, %v2487
        %v2489 = vsel %vm806, %v2488, 0.0
        %2490 = vadd.xlane.f32.xlu0 %v2489
        %v2491 = vpop.xlane.xlu0 %2490
        %v2492 = vmul.f32 %v2491, %v810
        %v2493 = vadd.f32 %v2492, 1e-05
        %v2494 = vrsqrt.pop %v2493
        %v2495 = vmul.f32 %v2487, %v2494
        %v2497 = vlaneseq
        %v2498 = vshrl.u32 %v2497, 7
        %v2499 = vsub.s32 0, %v2498
        %v2500 = vrot.slane %v2481, %v2499
        %v2502 = vmul.f32 %v2495, %v2500
        %v2504 = vlaneseq
        %v2505 = vshrl.u32 %v2504, 7
        %v2506 = vsub.s32 0, %v2505
        %v2507 = vrot.slane %v2482, %v2506
        %v2509 = vadd.f32 %v2502, %v2507
        %v2510 = vld [vmem:[%s20] sm:$0xf]
        %v2511 = vld [vmem:[%s20 + $0x4] sm:$0xf]
        %v2512 = vld [vmem:[%s20 + $0x8] sm:$0xf]
        %v2513 = vld [vmem:[%s20 + $0xc] sm:$0xf]
        %v2514 = vld [vmem:[%s20 + $0x10] sm:$0xf]
        %v2515 = vld [vmem:[%s20 + $0x14] sm:$0xf]
        %v2516 = vld [vmem:[%s20 + $0x18] sm:$0xf]
        %v2517 = vld [vmem:[%s20 + $0x1c] sm:$0xf]
        %v2518 = vpack.c.bf16 %v2509, %v2509
        %v2519 = vld [vmem:[%s21] sm:$0x1]
        %v2521 = vlaneseq
        %v2522 = vshrl.u32 %v2521, 7
        %v2523 = vsub.s32 0, %v2522
        %v2524 = vrot.slane %v2519, %v2523
        %v2534 = vunpack.c.l.b16 %v2510
        %v2535 = vunpack.c.l.b16 %v2511
        %v2536 = vunpack.c.l.b16 %v2512
        %v2537 = vunpack.c.l.b16 %v2513
        %v2538 = vunpack.c.l.b16 %v2514
        %v2539 = vunpack.c.l.b16 %v2515
        %v2540 = vunpack.c.l.b16 %v2516
        %v2541 = vunpack.c.l.b16 %v2517
        %v2542 = vpack.c.b16 %v2535, %v2534
        %v2543 = vpack.c.b16 %v2537, %v2536
        %v2544 = vpack.c.b16 %v2539, %v2538
        %v2545 = vpack.c.b16 %v2541, %v2540
        %v2551 = vsel %vm806, %v2518, 0
        %2553 = vmatprep.subr.bf16.mxu0 0
        %2554 = vmatpush1.bf16.msra.mxu0 %v2542
        %2555 = vmatprep.subr.bf16.mxu0 0
        %2556 = vmatpush1.bf16.msra.mxu0 %v2543
        %2557 = vmatprep.subr.bf16.mxu0 0
        %2558 = vmatpush1.bf16.msra.mxu0 %v2544
        %2559 = vmatprep.subr.bf16.mxu0 0
        %2560 = vmatpush1.bf16.msra.mxu0 %v2545
        %2561 = vmatprep.subr.bf16.mxu0 0
        %2562 = vmatpush1.bf16.msra.mxu0 0
        %2563 = vmatprep.subr.bf16.mxu0 0
        %2564 = vmatpush1.bf16.msra.mxu0 0
        %2565 = vmatprep.subr.bf16.mxu0 0
        %2566 = vmatpush1.bf16.msra.mxu0 0
        %2567 = vmatprep.subr.bf16.mxu0 0
        %2568 = vmatpush1.bf16.msra.mxu0 0
        %2569 = vmatprep.subr.bf16.mxu0 0
        %2570 = vmatpush1.bf16.msra.mxu0 0
        %2571 = vmatprep.subr.bf16.mxu0 0
        %2572 = vmatpush1.bf16.msra.mxu0 0
        %2573 = vmatprep.subr.bf16.mxu0 0
        %2574 = vmatpush1.bf16.msra.mxu0 0
        %2575 = vmatprep.subr.bf16.mxu0 0
        %2576 = vmatpush1.bf16.msra.mxu0 0
        %2577 = vmatprep.subr.bf16.mxu0 0
        %2578 = vmatpush1.bf16.msra.mxu0 0
        %2579 = vmatprep.subr.bf16.mxu0 0
        %2580 = vmatpush1.bf16.msra.mxu0 0
        %2581 = vmatprep.subr.bf16.mxu0 0
        %2582 = vmatpush1.bf16.msra.mxu0 0
        %2583 = vmatprep.subr.bf16.mxu0 0
        %2584 = vmatpush1.bf16.msra.mxu0 0
        %2585 = vmatprep.mubr.bf16.mxu0 0
        %2586 = vmatmul.mubr.bf16.gmra.mrb[0].mxu0 %v2551
        %v2587 = vpop.f32.mrb[0].mxu0
        %v2588 = vadd.f32 %v2524, %v2587
        %v2589 = vpop.f32.mrb[0].mxu0
        %v2590 = vpop.f32.mrb[0].mxu0
        %v2591 = vpop.f32.mrb[0].mxu0
        %2592 = vdwg.mxu0
        %v2593 = vmax.f32 %v2588, 0.0
        %v2594 = vld [vmem:[%s22] sm:$0xf]
        %v2595 = vld [vmem:[%s22 + $0x4] sm:$0xf]
        %v2596 = vld [vmem:[%s22 + $0x8] sm:$0xf]
        %v2597 = vld [vmem:[%s22 + $0xc] sm:$0xf]
        %v2598 = vld [vmem:[%s22 + $0x10] sm:$0xf]
        %v2599 = vld [vmem:[%s22 + $0x14] sm:$0xf]
        %v2600 = vld [vmem:[%s22 + $0x18] sm:$0xf]
        %v2601 = vld [vmem:[%s22 + $0x1c] sm:$0xf]
        %v2602 = vld [vmem:[%s22 + $0x20] sm:$0xf]
        %v2603 = vld [vmem:[%s22 + $0x24] sm:$0xf]
        %v2604 = vld [vmem:[%s22 + $0x28] sm:$0xf]
        %v2605 = vld [vmem:[%s22 + $0x2c] sm:$0xf]
        %v2606 = vld [vmem:[%s22 + $0x30] sm:$0xf]
        %v2607 = vld [vmem:[%s22 + $0x34] sm:$0xf]
        %v2608 = vld [vmem:[%s22 + $0x38] sm:$0xf]
        %v2609 = vld [vmem:[%s22 + $0x3c] sm:$0xf]
        %v2610 = vpack.c.bf16 %v2593, %v2593
        %v2611 = vld [vmem:[#allocation2] sm:$0x1]
        %v2613 = vlaneseq
        %v2614 = vshrl.u32 %v2613, 7
        %v2615 = vsub.s32 0, %v2614
        %v2616 = vrot.slane %v2611, %v2615
        %v2634 = vunpack.c.l.b16 %v2594
        %v2635 = vunpack.c.l.b16 %v2595
        %v2636 = vunpack.c.l.b16 %v2596
        %v2637 = vunpack.c.l.b16 %v2597
        %v2638 = vunpack.c.l.b16 %v2598
        %v2639 = vunpack.c.l.b16 %v2599
        %v2640 = vunpack.c.l.b16 %v2600
        %v2641 = vunpack.c.l.b16 %v2601
        %v2642 = vunpack.c.l.b16 %v2602
        %v2643 = vunpack.c.l.b16 %v2603
        %v2644 = vunpack.c.l.b16 %v2604
        %v2645 = vunpack.c.l.b16 %v2605
        %v2646 = vunpack.c.l.b16 %v2606
        %v2647 = vunpack.c.l.b16 %v2607
        %v2648 = vunpack.c.l.b16 %v2608
        %v2649 = vunpack.c.l.b16 %v2609
        %v2650 = vpack.c.b16 %v2635, %v2634
        %v2651 = vpack.c.b16 %v2637, %v2636
        %v2652 = vpack.c.b16 %v2639, %v2638
        %v2653 = vpack.c.b16 %v2641, %v2640
        %v2654 = vpack.c.b16 %v2643, %v2642
        %v2655 = vpack.c.b16 %v2645, %v2644
        %v2656 = vpack.c.b16 %v2647, %v2646
        %v2657 = vpack.c.b16 %v2649, %v2648
        %2666 = vmatprep.subr.bf16.mxu0 0
        %2667 = vmatpush1.bf16.msra.mxu0 %v2650
        %2668 = vmatprep.subr.bf16.mxu0 0
        %2669 = vmatpush1.bf16.msra.mxu0 %v2651
        %2670 = vmatprep.subr.bf16.mxu0 0
        %2671 = vmatpush1.bf16.msra.mxu0 %v2652
        %2672 = vmatprep.subr.bf16.mxu0 0
        %2673 = vmatpush1.bf16.msra.mxu0 %v2653
        %2674 = vmatprep.subr.bf16.mxu0 0
        %2675 = vmatpush1.bf16.msra.mxu0 %v2654
        %2676 = vmatprep.subr.bf16.mxu0 0
        %2677 = vmatpush1.bf16.msra.mxu0 %v2655
        %2678 = vmatprep.subr.bf16.mxu0 0
        %2679 = vmatpush1.bf16.msra.mxu0 %v2656
        %2680 = vmatprep.subr.bf16.mxu0 0
        %2681 = vmatpush1.bf16.msra.mxu0 %v2657
        %2682 = vmatprep.subr.bf16.mxu0 0
        %2683 = vmatpush1.bf16.msra.mxu0 0
        %2684 = vmatprep.subr.bf16.mxu0 0
        %2685 = vmatpush1.bf16.msra.mxu0 0
        %2686 = vmatprep.subr.bf16.mxu0 0
        %2687 = vmatpush1.bf16.msra.mxu0 0
        %2688 = vmatprep.subr.bf16.mxu0 0
        %2689 = vmatpush1.bf16.msra.mxu0 0
        %2690 = vmatprep.subr.bf16.mxu0 0
        %2691 = vmatpush1.bf16.msra.mxu0 0
        %2692 = vmatprep.subr.bf16.mxu0 0
        %2693 = vmatpush1.bf16.msra.mxu0 0
        %2694 = vmatprep.subr.bf16.mxu0 0
        %2695 = vmatpush1.bf16.msra.mxu0 0
        %2696 = vmatprep.subr.bf16.mxu0 0
        %2697 = vmatpush1.bf16.msra.mxu0 0
        %2698 = vmatprep.mubr.bf16.mxu0 0
        %2699 = vmatmul.mubr.bf16.gmra.mrb[0].mxu0 %v2610
        %v2700 = vpop.f32.mrb[0].mxu0
        %v2701 = vadd.f32 %v2616, %v2700
        %v2702 = vpop.f32.mrb[0].mxu0
        %v2703 = vpop.f32.mrb[0].mxu0
        %v2704 = vpop.f32.mrb[0].mxu0
        %2705 = vdwg.mxu0
        %v2706 = vadd.f32 %v2480, %v2701
        %2707 = vst.msk [vmem:[%s796] sm:$0xff] %vm806, %v2706
        %p2708 = scmp.lt.s32.totalorder %s36, 1
        %s2709 = scalar_select %p2708, %s36, 1
        %s2710 = smul.addr %s2709, 8
        %s2711 = scalar_lea.vmem %s24, %s2710
        // Predicated region
        $region121: #{nmt_forward.13} parent=115 // pred_check
          %p2712 = pneg %p578
        $region122: #{nmt_forward.13} parent=115 // pred_check_branch
          %2714 = sbr.rel (%p2712) target = $region124
        $region123: #{nmt_forward.13} parent=115 // pred_region
          _
        $region124: #{nmt_forward.13} parent=115 // pred_fallthru
          _
      $region116: #{nmt_forward.13} parent=5 // pred_fallthru
        _
      %p2715 = scmp.le.s32.totalorder 2, %s31
      // Predicated region
      $region125: #{nmt_forward.13} parent=5 // pred_check
        %p2716 = pneg %p2715
      $region126: #{nmt_forward.13} parent=5 // pred_check_branch
        %2718 = sbr.rel (%p2716) target = $region128
      $region127: #{nmt_forward.13} parent=5 // pred_region
        %s2719 = ssub.s32 %s31, 2
        // Predicated region
        $region129: #{nmt_forward.13} parent=127 // pred_check
          %p2720 = pneg %p584
        $region130: #{nmt_forward.13} parent=127 // pred_check_branch
          %2722 = sbr.rel (%p2720) target = $region132
        $region131: #{nmt_forward.13} parent=127 // pred_region
          %p2723 = scmp.lt.s32.totalorder %s37, 1
          %s2724 = scalar_select %p2723, %s37, 1
          %s2725 = smul.addr %s2724, 8
          %s2726 = scalar_lea.vmem %s24, %s2725
        $region132: #{nmt_forward.13} parent=127 // pred_fallthru
          _
      $region128: #{nmt_forward.13} parent=5 // pred_fallthru
        _
    $region6: #{nmt_forward.13} parent=1 // loop_footer
      %s35 = sadd.s32 1, %s31
    $region7: #{nmt_forward.13} parent=1 // loop_footer_branch
      %30 = sbr.rel target = $region3
    $region8: #{nmt_forward.13} parent=1 // loop_exit
      _
    %2727 = vsyncpa [#allocation3], 1
    %s2728 = scalar_lea.sflag [#allocation3], 1
    %2729 = vsyncpa %s2728, 1

// kernel: nmt_forward.12
$region0: #{nmt_forward.12}
  #allocation0 [shape = 'u32[]', space=smem, size = 0x4, offset = 0x4, fixed_abs, tag = 'smem constant byte address 0x4 - core index']
  #allocation1 [shape = 'u32[144,128]{1,0:T(1,128)}', space=vmem, size = 0x12000, scoped, tag = 'internal scratch']
  %s0 = inlined_call_operand.vmem [shape: f32[2,8,64], index: 0, kind: input, shape index: {}]
  %s1 = inlined_call_operand.vmem [shape: f32[2,10,64], index: 1, kind: input, shape index: {}]
  %s2 = inlined_call_operand.vmem [shape: f32[2,8,8], index: 2, kind: input, shape index: {}]
  %s3 = inlined_call_operand.vmem [shape: f32[2,1,10], index: 3, kind: input, shape index: {}]
  %s4 = inlined_call_operand.vmem [shape: f32[1,64], index: 4, kind: input, shape index: {}]
  %s5 = inlined_call_operand.vmem [shape: f32[1,64], index: 5, kind: input, shape index: {}]
  %s6 = inlined_call_operand.vmem [shape: bf16[64,192], index: 6, kind: input, shape index: {}]
  %s7 = inlined_call_operand.vmem [shape: f32[1,192], index: 7, kind: input, shape index: {}]
  %s8 = inlined_call_operand.vmem [shape: bf16[64,64], index: 8, kind: input, shape index: {}]
  %s9 = inlined_call_operand.vmem [shape: f32[1,64], index: 9, kind: input, shape index: {}]
  %s10 = inlined_call_operand.vmem [shape: f32[1,64], index: 10, kind: input, shape index: {}]
  %s11 = inlined_call_operand.vmem [shape: f32[1,64], index: 11, kind: input, shape index: {}]
  %s12 = inlined_call_operand.vmem [shape: bf16[64,64], index: 12, kind: input, shape index: {}]
  %s13 = inlined_call_operand.vmem [shape: f32[1,64], index: 13, kind: input, shape index: {}]
  %s14 = inlined_call_operand.vmem [shape: bf16[64,128], index: 14, kind: input, shape index: {}]
  %s15 = inlined_call_operand.vmem [shape: f32[1,128], index: 15, kind: input, shape index: {}]
  %s16 = inlined_call_operand.vmem [shape: bf16[64,64], index: 16, kind: input, shape index: {}]
  %s17 = inlined_call_operand.vmem [shape: f32[1,64], index: 17, kind: input, shape index: {}]
  %s18 = inlined_call_operand.vmem [shape: f32[1,64], index: 18, kind: input, shape index: {}]
  %s19 = inlined_call_operand.vmem [shape: f32[1,64], index: 19, kind: input, shape index: {}]
  %s20 = inlined_call_operand.vmem [shape: bf16[64,128], index: 20, kind: input, shape index: {}]
  %s21 = inlined_call_operand.vmem [shape: f32[1,128], index: 21, kind: input, shape index: {}]
  %s22 = inlined_call_operand.vmem [shape: bf16[128,64], index: 22, kind: input, shape index: {}]
  %s23 = inlined_call_operand.vmem [shape: f32[1,64], index: 23, kind: input, shape index: {}]
  %s24 = inlined_call_operand.vmem [shape: f32[2,8,64], index: 24, kind: output, shape index: {}]
  %s25 = sld [smem:[#allocation0]]
  $region129: #{nmt_forward.12} parent=0
    _
  %s27 = ssub.s32 1, %s25
  %s28 = scalar_select 0, %s27, %s25
  loop: start=0, step=1, limit=4
  $region2: #{nmt_forward.12} parent=0 // loop_pre_header
    _
  $region3: #{nmt_forward.12} parent=0 // loop_header
    %s30 = sphi 0, %s34
    %p31 = scmp.ge.s32.totalorder %s30, 4
    %s40 = sphi 0, %s42
    %s43 = sphi 0, %s40
    %s44 = sphi 0, %s43
    %s60 = sphi 0, %s44
    %s66 = sphi 0, %s68
    %s69 = sphi 0, %s66
    %s70 = sphi 0, %s69
    %s86 = sphi 0, %s70
    %s92 = sphi 0, %s94
    %s95 = sphi 0, %s92
    %s96 = sphi 0, %s95
    %s112 = sphi 0, %s96
    %s118 = sphi 0, %s120
    %s121 = sphi 0, %s118
    %s122 = sphi 0, %s121
    %s138 = sphi 0, %s122
    %s142 = sphi 0, %s142
    %s144 = sphi 0, %s142
    %s145 = sphi 0, %s144
    %s159 = sphi 0, %s145
    %s163 = sphi 0, %s163
    %s165 = sphi 0, %s163
    %s166 = sphi 0, %s165
    %s180 = sphi 0, %s166
    %s184 = sphi 0, %s184
    %s186 = sphi 0, %s184
    %s187 = sphi 0, %s186
    %s201 = sphi 0, %s187
    %s205 = sphi 0, %s205
    %s207 = sphi 0, %s205
    %s208 = sphi 0, %s207
    %s222 = sphi 0, %s208
    %s226 = sphi 0, %s226
    %s228 = sphi 0, %s226
    %s229 = sphi 0, %s228
    %s243 = sphi 0, %s229
    %s247 = sphi 0, %s247
    %s249 = sphi 0, %s247
    %s250 = sphi 0, %s249
    %s264 = sphi 0, %s250
    %s268 = sphi 0, %s268
    %s270 = sphi 0, %s268
    %s271 = sphi 0, %s270
    %s285 = sphi 0, %s271
    %s289 = sphi 0, %s289
    %s291 = sphi 0, %s289
    %s292 = sphi 0, %s291
    %s306 = sphi 0, %s292
    %s310 = sphi 0, %s310
    %s312 = sphi 0, %s310
    %s313 = sphi 0, %s312
    %s327 = sphi 0, %s313
    %s331 = sphi 0, %s331
    %s333 = sphi 0, %s331
    %s334 = sphi 0, %s333
    %s348 = sphi 0, %s334
    %s352 = sphi 0, %s352
    %s354 = sphi 0, %s352
    %s355 = sphi 0, %s354
    %s369 = sphi 0, %s355
    %s373 = sphi 0, %s373
    %s375 = sphi 0, %s373
    %s376 = sphi 0, %s375
    %s390 = sphi 0, %s376
    %s394 = sphi 0, %s394
    %s396 = sphi 0, %s394
    %s397 = sphi 0, %s396
    %s411 = sphi 0, %s397
    %s415 = sphi 0, %s415
    %s417 = sphi 0, %s415
    %s418 = sphi 0, %s417
    %s432 = sphi 0, %s418
    %s436 = sphi 0, %s436
    %s438 = sphi 0, %s436
    %s439 = sphi 0, %s438
    %s453 = sphi 0, %s439
    %s457 = sphi 0, %s457
    %s459 = sphi 0, %s457
    %s460 = sphi 0, %s459
    %s474 = sphi 0, %s460
    %s478 = sphi 0, %s478
    %s480 = sphi 0, %s478
    %s481 = sphi 0, %s480
    %s495 = sphi 0, %s481
    %s499 = sphi 0, %s499
    %s501 = sphi 0, %s499
    %s502 = sphi 0, %s501
    %s516 = sphi 0, %s502
    %s520 = sphi 0, %s520
    %s522 = sphi 0, %s520
    %s523 = sphi 0, %s522
    %s537 = sphi 0, %s523
    %s541 = sphi 0, %s541
    %s543 = sphi 0, %s541
    %s544 = sphi 0, %s543
    %s558 = sphi 0, %s544
    %s564 = sphi 0, %s566
    %s567 = sphi 0, %s564
    %s568 = sphi 0, %s567
    %s584 = sphi 0, %s568
  $region4: #{nmt_forward.12} parent=0 // loop_header_branch
    %33 = sbr.rel (%p31) target = $region8
  $region5: #{nmt_forward.12} parent=0 // loop_body
    %s35 = ssub.s32 %s30, 1
    %s36 = ssub.s32 %s30, 2
    %s37 = sadd.s32 %s30, 1
    %s38 = ssub.s32 %s30, %s37
    %p39 = scmp.eq.s32.totalorder %s38, 0
    %s41 = sadd.s32 %s40, 1
    %s42 = scalar_select %p39, %s40, %s41
    %p45 = pneg %p39
    %p46 = scmp.eq.s32.totalorder %s30, 1
    %p47 = por %p45, %p46
    %p48 = scmp.ne.s32.totalorder %s40, %s43
    %p49 = scmp.eq.s32.totalorder %s30, 0
    %p50 = por %p48, %p49
    %p51 = scmp.ne.s32.totalorder %s40, %s43
    %p52 = scmp.eq.s32.totalorder %s35, 1
    %p53 = por %p51, %p52
    %p54 = scmp.ne.s32.totalorder %s43, %s44
    %p55 = scmp.eq.s32.totalorder %s35, 0
    %p56 = por %p54, %p55
    %p57 = scmp.ne.s32.totalorder %s43, %s44
    %p58 = scmp.eq.s32.totalorder %s36, 1
    %p59 = por %p57, %p58
    %p61 = scmp.ne.s32.totalorder %s44, %s60
    %p62 = scmp.eq.s32.totalorder %s36, 0
    %p63 = por %p61, %p62
    %s64 = ssub.s32 %s30, %s37
    %p65 = scmp.eq.s32.totalorder %s64, 0
    %s67 = sadd.s32 %s66, 1
    %s68 = scalar_select %p65, %s66, %s67
    %p71 = pneg %p65
    %p72 = scmp.eq.s32.totalorder %s30, 1
    %p73 = por %p71, %p72
    %p74 = scmp.ne.s32.totalorder %s66, %s69
    %p75 = scmp.eq.s32.totalorder %s30, 0
    %p76 = por %p74, %p75
    %p77 = scmp.ne.s32.totalorder %s66, %s69
    %p78 = scmp.eq.s32.totalorder %s35, 1
    %p79 = por %p77, %p78
    %p80 = scmp.ne.s32.totalorder %s69, %s70
    %p81 = scmp.eq.s32.totalorder %s35, 0
    %p82 = por %p80, %p81
    %p83 = scmp.ne.s32.totalorder %s69, %s70
    %p84 = scmp.eq.s32.totalorder %s36, 1
    %p85 = por %p83, %p84
    %p87 = scmp.ne.s32.totalorder %s70, %s86
    %p88 = scmp.eq.s32.totalorder %s36, 0
    %p89 = por %p87, %p88
    %s90 = ssub.s32 %s30, %s37
    %p91 = scmp.eq.s32.totalorder %s90, 0
    %s93 = sadd.s32 %s92, 1
    %s94 = scalar_select %p91, %s92, %s93
    %p97 = pneg %p91
    %p98 = scmp.eq.s32.totalorder %s30, 1
    %p99 = por %p97, %p98
    %p100 = scmp.ne.s32.totalorder %s92, %s95
    %p101 = scmp.eq.s32.totalorder %s30, 0
    %p102 = por %p100, %p101
    %p103 = scmp.ne.s32.totalorder %s92, %s95
    %p104 = scmp.eq.s32.totalorder %s35, 1
    %p105 = por %p103, %p104
    %p106 = scmp.ne.s32.totalorder %s95, %s96
    %p107 = scmp.eq.s32.totalorder %s35, 0
    %p108 = por %p106, %p107
    %p109 = scmp.ne.s32.totalorder %s95, %s96
    %p110 = scmp.eq.s32.totalorder %s36, 1
    %p111 = por %p109, %p110
    %p113 = scmp.ne.s32.totalorder %s96, %s112
    %p114 = scmp.eq.s32.totalorder %s36, 0
    %p115 = por %p113, %p114
    %s116 = ssub.s32 %s30, %s37
    %p117 = scmp.eq.s32.totalorder %s116, 0
    %s119 = sadd.s32 %s118, 1
    %s120 = scalar_select %p117, %s118, %s119
    %p123 = pneg %p117
    %p124 = scmp.eq.s32.totalorder %s30, 1
    %p125 = por %p123, %p124
    %p126 = scmp.ne.s32.totalorder %s118, %s121
    %p127 = scmp.eq.s32.totalorder %s30, 0
    %p128 = por %p126, %p127
    %p129 = scmp.ne.s32.totalorder %s118, %s121
    %p130 = scmp.eq.s32.totalorder %s35, 1
    %p131 = por %p129, %p130
    %p132 = scmp.ne.s32.totalorder %s121, %s122
    %p133 = scmp.eq.s32.totalorder %s35, 0
    %p134 = por %p132, %p133
    %p135 = scmp.ne.s32.totalorder %s121, %s122
    %p136 = scmp.eq.s32.totalorder %s36, 1
    %p137 = por %p135, %p136
    %p139 = scmp.ne.s32.totalorder %s122, %s138
    %p140 = scmp.eq.s32.totalorder %s36, 0
    %p141 = por %p139, %p140
    %s143 = sadd.s32 %s142, 1
    %p146 = scmp.eq.s32.totalorder %s30, 1
    %p147 = scmp.ne.s32.totalorder %s142, %s144
    %p148 = scmp.eq.s32.totalorder %s30, 0
    %p149 = por %p147, %p148
    %p150 = scmp.ne.s32.totalorder %s142, %s144
    %p151 = scmp.eq.s32.totalorder %s35, 1
    %p152 = por %p150, %p151
    %p153 = scmp.ne.s32.totalorder %s144, %s145
    %p154 = scmp.eq.s32.totalorder %s35, 0
    %p155 = por %p153, %p154
    %p156 = scmp.ne.s32.totalorder %s144, %s145
    %p157 = scmp.eq.s32.totalorder %s36, 1
    %p158 = por %p156, %p157
    %p160 = scmp.ne.s32.totalorder %s145, %s159
    %p161 = scmp.eq.s32.totalorder %s36, 0
    %p162 = por %p160, %p161
    %s164 = sadd.s32 %s163, 1
    %p167 = scmp.eq.s32.totalorder %s30, 1
    %p168 = scmp.ne.s32.totalorder %s163, %s165
    %p169 = scmp.eq.s32.totalorder %s30, 0
    %p170 = por %p168, %p169
    %p171 = scmp.ne.s32.totalorder %s163, %s165
    %p172 = scmp.eq.s32.totalorder %s35, 1
    %p173 = por %p171, %p172
    %p174 = scmp.ne.s32.totalorder %s165, %s166
    %p175 = scmp.eq.s32.totalorder %s35, 0
    %p176 = por %p174, %p175
    %p177 = scmp.ne.s32.totalorder %s165, %s166
    %p178 = scmp.eq.s32.totalorder %s36, 1
    %p179 = por %p177, %p178
    %p181 = scmp.ne.s32.totalorder %s166, %s180
    %p182 = scmp.eq.s32.totalorder %s36, 0
    %p183 = por %p181, %p182
    %s185 = sadd.s32 %s184, 1
    %p188 = scmp.eq.s32.totalorder %s30, 1
    %p189 = scmp.ne.s32.totalorder %s184, %s186
    %p190 = scmp.eq.s32.totalorder %s30, 0
    %p191 = por %p189, %p190
    %p192 = scmp.ne.s32.totalorder %s184, %s186
    %p193 = scmp.eq.s32.totalorder %s35, 1
    %p194 = por %p192, %p193
    %p195 = scmp.ne.s32.totalorder %s186, %s187
    %p196 = scmp.eq.s32.totalorder %s35, 0
    %p197 = por %p195, %p196
    %p198 = scmp.ne.s32.totalorder %s186, %s187
    %p199 = scmp.eq.s32.totalorder %s36, 1
    %p200 = por %p198, %p199
    %p202 = scmp.ne.s32.totalorder %s187, %s201
    %p203 = scmp.eq.s32.totalorder %s36, 0
    %p204 = por %p202, %p203
    %s206 = sadd.s32 %s205, 1
    %p209 = scmp.eq.s32.totalorder %s30, 1
    %p210 = scmp.ne.s32.totalorder %s205, %s207
    %p211 = scmp.eq.s32.totalorder %s30, 0
    %p212 = por %p210, %p211
    %p213 = scmp.ne.s32.totalorder %s205, %s207
    %p214 = scmp.eq.s32.totalorder %s35, 1
    %p215 = por %p213, %p214
    %p216 = scmp.ne.s32.totalorder %s207, %s208
    %p217 = scmp.eq.s32.totalorder %s35, 0
    %p218 = por %p216, %p217
    %p219 = scmp.ne.s32.totalorder %s207, %s208
    %p220 = scmp.eq.s32.totalorder %s36, 1
    %p221 = por %p219, %p220
    %p223 = scmp.ne.s32.totalorder %s208, %s222
    %p224 = scmp.eq.s32.totalorder %s36, 0
    %p225 = por %p223, %p224
    %s227 = sadd.s32 %s226, 1
    %p230 = scmp.eq.s32.totalorder %s30, 1
    %p231 = scmp.ne.s32.totalorder %s226, %s228
    %p232 = scmp.eq.s32.totalorder %s30, 0
    %p233 = por %p231, %p232
    %p234 = scmp.ne.s32.totalorder %s226, %s228
    %p235 = scmp.eq.s32.totalorder %s35, 1
    %p236 = por %p234, %p235
    %p237 = scmp.ne.s32.totalorder %s228, %s229
    %p238 = scmp.eq.s32.totalorder %s35, 0
    %p239 = por %p237, %p238
    %p240 = scmp.ne.s32.totalorder %s228, %s229
    %p241 = scmp.eq.s32.totalorder %s36, 1
    %p242 = por %p240, %p241
    %p244 = scmp.ne.s32.totalorder %s229, %s243
    %p245 = scmp.eq.s32.totalorder %s36, 0
    %p246 = por %p244, %p245
    %s248 = sadd.s32 %s247, 1
    %p251 = scmp.eq.s32.totalorder %s30, 1
    %p252 = scmp.ne.s32.totalorder %s247, %s249
    %p253 = scmp.eq.s32.totalorder %s30, 0
    %p254 = por %p252, %p253
    %p255 = scmp.ne.s32.totalorder %s247, %s249
    %p256 = scmp.eq.s32.totalorder %s35, 1
    %p257 = por %p255, %p256
    %p258 = scmp.ne.s32.totalorder %s249, %s250
    %p259 = scmp.eq.s32.totalorder %s35, 0
    %p260 = por %p258, %p259
    %p261 = scmp.ne.s32.totalorder %s249, %s250
    %p262 = scmp.eq.s32.totalorder %s36, 1
    %p263 = por %p261, %p262
    %p265 = scmp.ne.s32.totalorder %s250, %s264
    %p266 = scmp.eq.s32.totalorder %s36, 0
    %p267 = por %p265, %p266
    %s269 = sadd.s32 %s268, 1
    %p272 = scmp.eq.s32.totalorder %s30, 1
    %p273 = scmp.ne.s32.totalorder %s268, %s270
    %p274 = scmp.eq.s32.totalorder %s30, 0
    %p275 = por %p273, %p274
    %p276 = scmp.ne.s32.totalorder %s268, %s270
    %p277 = scmp.eq.s32.totalorder %s35, 1
    %p278 = por %p276, %p277
    %p279 = scmp.ne.s32.totalorder %s270, %s271
    %p280 = scmp.eq.s32.totalorder %s35, 0
    %p281 = por %p279, %p280
    %p282 = scmp.ne.s32.totalorder %s270, %s271
    %p283 = scmp.eq.s32.totalorder %s36, 1
    %p284 = por %p282, %p283
    %p286 = scmp.ne.s32.totalorder %s271, %s285
    %p287 = scmp.eq.s32.totalorder %s36, 0
    %p288 = por %p286, %p287
    %s290 = sadd.s32 %s289, 1
    %p293 = scmp.eq.s32.totalorder %s30, 1
    %p294 = scmp.ne.s32.totalorder %s289, %s291
    %p295 = scmp.eq.s32.totalorder %s30, 0
    %p296 = por %p294, %p295
    %p297 = scmp.ne.s32.totalorder %s289, %s291
    %p298 = scmp.eq.s32.totalorder %s35, 1
    %p299 = por %p297, %p298
    %p300 = scmp.ne.s32.totalorder %s291, %s292
    %p301 = scmp.eq.s32.totalorder %s35, 0
    %p302 = por %p300, %p301
    %p303 = scmp.ne.s32.totalorder %s291, %s292
    %p304 = scmp.eq.s32.totalorder %s36, 1
    %p305 = por %p303, %p304
    %p307 = scmp.ne.s32.totalorder %s292, %s306
    %p308 = scmp.eq.s32.totalorder %s36, 0
    %p309 = por %p307, %p308
    %s311 = sadd.s32 %s310, 1
    %p314 = scmp.eq.s32.totalorder %s30, 1
    %p315 = scmp.ne.s32.totalorder %s310, %s312
    %p316 = scmp.eq.s32.totalorder %s30, 0
    %p317 = por %p315, %p316
    %p318 = scmp.ne.s32.totalorder %s310, %s312
    %p319 = scmp.eq.s32.totalorder %s35, 1
    %p320 = por %p318, %p319
    %p321 = scmp.ne.s32.totalorder %s312, %s313
    %p322 = scmp.eq.s32.totalorder %s35, 0
    %p323 = por %p321, %p322
    %p324 = scmp.ne.s32.totalorder %s312, %s313
    %p325 = scmp.eq.s32.totalorder %s36, 1
    %p326 = por %p324, %p325
    %p328 = scmp.ne.s32.totalorder %s313, %s327
    %p329 = scmp.eq.s32.totalorder %s36, 0
    %p330 = por %p328, %p329
    %s332 = sadd.s32 %s331, 1
    %p335 = scmp.eq.s32.totalorder %s30, 1
    %p336 = scmp.ne.s32.totalorder %s331, %s333
    %p337 = scmp.eq.s32.totalorder %s30, 0
    %p338 = por %p336, %p337
    %p339 = scmp.ne.s32.totalorder %s331, %s333
    %p340 = scmp.eq.s32.totalorder %s35, 1
    %p341 = por %p339, %p340
    %p342 = scmp.ne.s32.totalorder %s333, %s334
    %p343 = scmp.eq.s32.totalorder %s35, 0
    %p344 = por %p342, %p343
    %p345 = scmp.ne.s32.totalorder %s333, %s334
    %p346 = scmp.eq.s32.totalorder %s36, 1
    %p347 = por %p345, %p346
    %p349 = scmp.ne.s32.totalorder %s334, %s348
    %p350 = scmp.eq.s32.totalorder %s36, 0
    %p351 = por %p349, %p350
    %s353 = sadd.s32 %s352, 1
    %p356 = scmp.eq.s32.totalorder %s30, 1
    %p357 = scmp.ne.s32.totalorder %s352, %s354
    %p358 = scmp.eq.s32.totalorder %s30, 0
    %p359 = por %p357, %p358
    %p360 = scmp.ne.s32.totalorder %s352, %s354
    %p361 = scmp.eq.s32.totalorder %s35, 1
    %p362 = por %p360, %p361
    %p363 = scmp.ne.s32.totalorder %s354, %s355
    %p364 = scmp.eq.s32.totalorder %s35, 0
    %p365 = por %p363, %p364
    %p366 = scmp.ne.s32.totalorder %s354, %s355
    %p367 = scmp.eq.s32.totalorder %s36, 1
    %p368 = por %p366, %p367
    %p370 = scmp.ne.s32.totalorder %s355, %s369
    %p371 = scmp.eq.s32.totalorder %s36, 0
    %p372 = por %p370, %p371
    %s374 = sadd.s32 %s373, 1
    %p377 = scmp.eq.s32.totalorder %s30, 1
    %p378 = scmp.ne.s32.totalorder %s373, %s375
    %p379 = scmp.eq.s32.totalorder %s30, 0
    %p380 = por %p378, %p379
    %p381 = scmp.ne.s32.totalorder %s373, %s375
    %p382 = scmp.eq.s32.totalorder %s35, 1
    %p383 = por %p381, %p382
    %p384 = scmp.ne.s32.totalorder %s375, %s376
    %p385 = scmp.eq.s32.totalorder %s35, 0
    %p386 = por %p384, %p385
    %p387 = scmp.ne.s32.totalorder %s375, %s376
    %p388 = scmp.eq.s32.totalorder %s36, 1
    %p389 = por %p387, %p388
    %p391 = scmp.ne.s32.totalorder %s376, %s390
    %p392 = scmp.eq.s32.totalorder %s36, 0
    %p393 = por %p391, %p392
    %s395 = sadd.s32 %s394, 1
    %p398 = scmp.eq.s32.totalorder %s30, 1
    %p399 = scmp.ne.s32.totalorder %s394, %s396
    %p400 = scmp.eq.s32.totalorder %s30, 0
    %p401 = por %p399, %p400
    %p402 = scmp.ne.s32.totalorder %s394, %s396
    %p403 = scmp.eq.s32.totalorder %s35, 1
    %p404 = por %p402, %p403
    %p405 = scmp.ne.s32.totalorder %s396, %s397
    %p406 = scmp.eq.s32.totalorder %s35, 0
    %p407 = por %p405, %p406
    %p408 = scmp.ne.s32.totalorder %s396, %s397
    %p409 = scmp.eq.s32.totalorder %s36, 1
    %p410 = por %p408, %p409
    %p412 = scmp.ne.s32.totalorder %s397, %s411
    %p413 = scmp.eq.s32.totalorder %s36, 0
    %p414 = por %p412, %p413
    %s416 = sadd.s32 %s415, 1
    %p419 = scmp.eq.s32.totalorder %s30, 1
    %p420 = scmp.ne.s32.totalorder %s415, %s417
    %p421 = scmp.eq.s32.totalorder %s30, 0
    %p422 = por %p420, %p421
    %p423 = scmp.ne.s32.totalorder %s415, %s417
    %p424 = scmp.eq.s32.totalorder %s35, 1
    %p425 = por %p423, %p424
    %p426 = scmp.ne.s32.totalorder %s417, %s418
    %p427 = scmp.eq.s32.totalorder %s35, 0
    %p428 = por %p426, %p427
    %p429 = scmp.ne.s32.totalorder %s417, %s418
    %p430 = scmp.eq.s32.totalorder %s36, 1
    %p431 = por %p429, %p430
    %p433 = scmp.ne.s32.totalorder %s418, %s432
    %p434 = scmp.eq.s32.totalorder %s36, 0
    %p435 = por %p433, %p434
    %s437 = sadd.s32 %s436, 1
    %p440 = scmp.eq.s32.totalorder %s30, 1
    %p441 = scmp.ne.s32.totalorder %s436, %s438
    %p442 = scmp.eq.s32.totalorder %s30, 0
    %p443 = por %p441, %p442
    %p444 = scmp.ne.s32.totalorder %s436, %s438
    %p445 = scmp.eq.s32.totalorder %s35, 1
    %p446 = por %p444, %p445
    %p447 = scmp.ne.s32.totalorder %s438, %s439
    %p448 = scmp.eq.s32.totalorder %s35, 0
    %p449 = por %p447, %p448
    %p450 = scmp.ne.s32.totalorder %s438, %s439
    %p451 = scmp.eq.s32.totalorder %s36, 1
    %p452 = por %p450, %p451
    %p454 = scmp.ne.s32.totalorder %s439, %s453
    %p455 = scmp.eq.s32.totalorder %s36, 0
    %p456 = por %p454, %p455
    %s458 = sadd.s32 %s457, 1
    %p461 = scmp.eq.s32.totalorder %s30, 1
    %p462 = scmp.ne.s32.totalorder %s457, %s459
    %p463 = scmp.eq.s32.totalorder %s30, 0
    %p464 = por %p462, %p463
    %p465 = scmp.ne.s32.totalorder %s457, %s459
    %p466 = scmp.eq.s32.totalorder %s35, 1
    %p467 = por %p465, %p466
    %p468 = scmp.ne.s32.totalorder %s459, %s460
    %p469 = scmp.eq.s32.totalorder %s35, 0
    %p470 = por %p468, %p469
    %p471 = scmp.ne.s32.totalorder %s459, %s460
    %p472 = scmp.eq.s32.totalorder %s36, 1
    %p473 = por %p471, %p472
    %p475 = scmp.ne.s32.totalorder %s460, %s474
    %p476 = scmp.eq.s32.totalorder %s36, 0
    %p477 = por %p475, %p476
    %s479 = sadd.s32 %s478, 1
    %p482 = scmp.eq.s32.totalorder %s30, 1
    %p483 = scmp.ne.s32.totalorder %s478, %s480
    %p484 = scmp.eq.s32.totalorder %s30, 0
    %p485 = por %p483, %p484
    %p486 = scmp.ne.s32.totalorder %s478, %s480
    %p487 = scmp.eq.s32.totalorder %s35, 1
    %p488 = por %p486, %p487
    %p489 = scmp.ne.s32.totalorder %s480, %s481
    %p490 = scmp.eq.s32.totalorder %s35, 0
    %p491 = por %p489, %p490
    %p492 = scmp.ne.s32.totalorder %s480, %s481
    %p493 = scmp.eq.s32.totalorder %s36, 1
    %p494 = por %p492, %p493
    %p496 = scmp.ne.s32.totalorder %s481, %s495
    %p497 = scmp.eq.s32.totalorder %s36, 0
    %p498 = por %p496, %p497
    %s500 = sadd.s32 %s499, 1
    %p503 = scmp.eq.s32.totalorder %s30, 1
    %p504 = scmp.ne.s32.totalorder %s499, %s501
    %p505 = scmp.eq.s32.totalorder %s30, 0
    %p506 = por %p504, %p505
    %p507 = scmp.ne.s32.totalorder %s499, %s501
    %p508 = scmp.eq.s32.totalorder %s35, 1
    %p509 = por %p507, %p508
    %p510 = scmp.ne.s32.totalorder %s501, %s502
    %p511 = scmp.eq.s32.totalorder %s35, 0
    %p512 = por %p510, %p511
    %p513 = scmp.ne.s32.totalorder %s501, %s502
    %p514 = scmp.eq.s32.totalorder %s36, 1
    %p515 = por %p513, %p514
    %p517 = scmp.ne.s32.totalorder %s502, %s516
    %p518 = scmp.eq.s32.totalorder %s36, 0
    %p519 = por %p517, %p518
    %s521 = sadd.s32 %s520, 1
    %p524 = scmp.eq.s32.totalorder %s30, 1
    %p525 = scmp.ne.s32.totalorder %s520, %s522
    %p526 = scmp.eq.s32.totalorder %s30, 0
    %p527 = por %p525, %p526
    %p528 = scmp.ne.s32.totalorder %s520, %s522
    %p529 = scmp.eq.s32.totalorder %s35, 1
    %p530 = por %p528, %p529
    %p531 = scmp.ne.s32.totalorder %s522, %s523
    %p532 = scmp.eq.s32.totalorder %s35, 0
    %p533 = por %p531, %p532
    %p534 = scmp.ne.s32.totalorder %s522, %s523
    %p535 = scmp.eq.s32.totalorder %s36, 1
    %p536 = por %p534, %p535
    %p538 = scmp.ne.s32.totalorder %s523, %s537
    %p539 = scmp.eq.s32.totalorder %s36, 0
    %p540 = por %p538, %p539
    %s542 = sadd.s32 %s541, 1
    %p545 = scmp.eq.s32.totalorder %s30, 1
    %p546 = scmp.ne.s32.totalorder %s541, %s543
    %p547 = scmp.eq.s32.totalorder %s30, 0
    %p548 = por %p546, %p547
    %p549 = scmp.ne.s32.totalorder %s541, %s543
    %p550 = scmp.eq.s32.totalorder %s35, 1
    %p551 = por %p549, %p550
    %p552 = scmp.ne.s32.totalorder %s543, %s544
    %p553 = scmp.eq.s32.totalorder %s35, 0
    %p554 = por %p552, %p553
    %p555 = scmp.ne.s32.totalorder %s543, %s544
    %p556 = scmp.eq.s32.totalorder %s36, 1
    %p557 = por %p555, %p556
    %p559 = scmp.ne.s32.totalorder %s544, %s558
    %p560 = scmp.eq.s32.totalorder %s36, 0
    %p561 = por %p559, %p560
    %s562 = ssub.s32 %s30, %s37
    %p563 = scmp.eq.s32.totalorder %s562, 0
    %s565 = sadd.s32 %s564, 1
    %s566 = scalar_select %p563, %s564, %s565
    %p569 = pneg %p563
    %p570 = scmp.eq.s32.totalorder %s30, 1
    %p571 = por %p569, %p570
    %p572 = scmp.ne.s32.totalorder %s564, %s567
    %p573 = scmp.eq.s32.totalorder %s30, 0
    %p574 = por %p572, %p573
    %p575 = scmp.ne.s32.totalorder %s564, %s567
    %p576 = scmp.eq.s32.totalorder %s35, 1
    %p577 = por %p575, %p576
    %p578 = scmp.ne.s32.totalorder %s567, %s568
    %p579 = scmp.eq.s32.totalorder %s35, 0
    %p580 = por %p578, %p579
    %p581 = scmp.ne.s32.totalorder %s567, %s568
    %p582 = scmp.eq.s32.totalorder %s36, 1
    %p583 = por %p581, %p582
    %p585 = scmp.ne.s32.totalorder %s568, %s584
    %p586 = scmp.eq.s32.totalorder %s36, 0
    %p587 = por %p585, %p586
    %p588 = scmp.le.s32.totalorder 1, %s30
    %p589 = scmp.lt.s32.totalorder %s30, 3
    %p590 = pnand %p588, %p589
    %p591 = pneg %p590
    // Predicated region
    $region9: #{nmt_forward.12} parent=5 // pred_check
      _
    $region10: #{nmt_forward.12} parent=5 // pred_check_branch
      %593 = sbr.rel (%p590) target = $region12
    $region11: #{nmt_forward.12} parent=5 // pred_region
      %s594 = ssub.s32 %s30, 1
      // Predicated region
      $region13: #{nmt_forward.12} parent=11 // pred_check
        %p595 = pneg %p155
      $region14: #{nmt_forward.12} parent=11 // pred_check_branch
        %597 = sbr.rel (%p595) target = $region16
      $region15: #{nmt_forward.12} parent=11 // pred_region
        _
      $region16: #{nmt_forward.12} parent=11 // pred_fallthru
        _
      // Predicated region
      $region17: #{nmt_forward.12} parent=11 // pred_check
        %p598 = pneg %p176
      $region18: #{nmt_forward.12} parent=11 // pred_check_branch
        %600 = sbr.rel (%p598) target = $region20
      $region19: #{nmt_forward.12} parent=11 // pred_region
        _
      $region20: #{nmt_forward.12} parent=11 // pred_fallthru
        _
      // Predicated region
      $region21: #{nmt_forward.12} parent=11 // pred_check
        %p601 = pneg %p197
      $region22: #{nmt_forward.12} parent=11 // pred_check_branch
        %603 = sbr.rel (%p601) target = $region24
      $region23: #{nmt_forward.12} parent=11 // pred_region
        _
      $region24: #{nmt_forward.12} parent=11 // pred_fallthru
        _
      // Predicated region
      $region25: #{nmt_forward.12} parent=11 // pred_check
        %p604 = pneg %p218
      $region26: #{nmt_forward.12} parent=11 // pred_check_branch
        %606 = sbr.rel (%p604) target = $region28
      $region27: #{nmt_forward.12} parent=11 // pred_region
        _
      $region28: #{nmt_forward.12} parent=11 // pred_fallthru
        _
      // Predicated region
      $region29: #{nmt_forward.12} parent=11 // pred_check
        %p607 = pneg %p239
      $region30: #{nmt_forward.12} parent=11 // pred_check_branch
        %609 = sbr.rel (%p607) target = $region32
      $region31: #{nmt_forward.12} parent=11 // pred_region
        _
      $region32: #{nmt_forward.12} parent=11 // pred_fallthru
        _
      // Predicated region
      $region33: #{nmt_forward.12} parent=11 // pred_check
        %p610 = pneg %p260
      $region34: #{nmt_forward.12} parent=11 // pred_check_branch
        %612 = sbr.rel (%p610) target = $region36
      $region35: #{nmt_forward.12} parent=11 // pred_region
        _
      $region36: #{nmt_forward.12} parent=11 // pred_fallthru
        _
      // Predicated region
      $region37: #{nmt_forward.12} parent=11 // pred_check
        %p613 = pneg %p281
      $region38: #{nmt_forward.12} parent=11 // pred_check_branch
        %615 = sbr.rel (%p613) target = $region40
      $region39: #{nmt_forward.12} parent=11 // pred_region
        _
      $region40: #{nmt_forward.12} parent=11 // pred_fallthru
        _
      // Predicated region
      $region41: #{nmt_forward.12} parent=11 // pred_check
        %p616 = pneg %p302
      $region42: #{nmt_forward.12} parent=11 // pred_check_branch
        %618 = sbr.rel (%p616) target = $region44
      $region43: #{nmt_forward.12} parent=11 // pred_region
        _
      $region44: #{nmt_forward.12} parent=11 // pred_fallthru
        _
      // Predicated region
      $region45: #{nmt_forward.12} parent=11 // pred_check
        %p619 = pneg %p323
      $region46: #{nmt_forward.12} parent=11 // pred_check_branch
        %621 = sbr.rel (%p619) target = $region48
      $region47: #{nmt_forward.12} parent=11 // pred_region
        _
      $region48: #{nmt_forward.12} parent=11 // pred_fallthru
        _
      // Predicated region
      $region49: #{nmt_forward.12} parent=11 // pred_check
        %p622 = pneg %p344
      $region50: #{nmt_forward.12} parent=11 // pred_check_branch
        %624 = sbr.rel (%p622) target = $region52
      $region51: #{nmt_forward.12} parent=11 // pred_region
        _
      $region52: #{nmt_forward.12} parent=11 // pred_fallthru
        _
      // Predicated region
      $region53: #{nmt_forward.12} parent=11 // pred_check
        %p625 = pneg %p365
      $region54: #{nmt_forward.12} parent=11 // pred_check_branch
        %627 = sbr.rel (%p625) target = $region56
      $region55: #{nmt_forward.12} parent=11 // pred_region
        _
      $region56: #{nmt_forward.12} parent=11 // pred_fallthru
        _
      // Predicated region
      $region57: #{nmt_forward.12} parent=11 // pred_check
        %p628 = pneg %p386
      $region58: #{nmt_forward.12} parent=11 // pred_check_branch
        %630 = sbr.rel (%p628) target = $region60
      $region59: #{nmt_forward.12} parent=11 // pred_region
        _
      $region60: #{nmt_forward.12} parent=11 // pred_fallthru
        _
      // Predicated region
      $region61: #{nmt_forward.12} parent=11 // pred_check
        %p631 = pneg %p407
      $region62: #{nmt_forward.12} parent=11 // pred_check_branch
        %633 = sbr.rel (%p631) target = $region64
      $region63: #{nmt_forward.12} parent=11 // pred_region
        _
      $region64: #{nmt_forward.12} parent=11 // pred_fallthru
        _
      // Predicated region
      $region65: #{nmt_forward.12} parent=11 // pred_check
        %p634 = pneg %p428
      $region66: #{nmt_forward.12} parent=11 // pred_check_branch
        %636 = sbr.rel (%p634) target = $region68
      $region67: #{nmt_forward.12} parent=11 // pred_region
        _
      $region68: #{nmt_forward.12} parent=11 // pred_fallthru
        _
      // Predicated region
      $region69: #{nmt_forward.12} parent=11 // pred_check
        %p637 = pneg %p449
      $region70: #{nmt_forward.12} parent=11 // pred_check_branch
        %639 = sbr.rel (%p637) target = $region72
      $region71: #{nmt_forward.12} parent=11 // pred_region
        _
      $region72: #{nmt_forward.12} parent=11 // pred_fallthru
        _
      // Predicated region
      $region73: #{nmt_forward.12} parent=11 // pred_check
        %p640 = pneg %p470
      $region74: #{nmt_forward.12} parent=11 // pred_check_branch
        %642 = sbr.rel (%p640) target = $region76
      $region75: #{nmt_forward.12} parent=11 // pred_region
        _
      $region76: #{nmt_forward.12} parent=11 // pred_fallthru
        _
      // Predicated region
      $region77: #{nmt_forward.12} parent=11 // pred_check
        %p643 = pneg %p491
      $region78: #{nmt_forward.12} parent=11 // pred_check_branch
        %645 = sbr.rel (%p643) target = $region80
      $region79: #{nmt_forward.12} parent=11 // pred_region
        _
      $region80: #{nmt_forward.12} parent=11 // pred_fallthru
        _
      // Predicated region
      $region81: #{nmt_forward.12} parent=11 // pred_check
        %p646 = pneg %p512
      $region82: #{nmt_forward.12} parent=11 // pred_check_branch
        %648 = sbr.rel (%p646) target = $region84
      $region83: #{nmt_forward.12} parent=11 // pred_region
        _
      $region84: #{nmt_forward.12} parent=11 // pred_fallthru
        _
      // Predicated region
      $region85: #{nmt_forward.12} parent=11 // pred_check
        %p649 = pneg %p533
      $region86: #{nmt_forward.12} parent=11 // pred_check_branch
        %651 = sbr.rel (%p649) target = $region88
      $region87: #{nmt_forward.12} parent=11 // pred_region
        _
      $region88: #{nmt_forward.12} parent=11 // pred_fallthru
        _
      // Predicated region
      $region89: #{nmt_forward.12} parent=11 // pred_check
        %p652 = pneg %p554
      $region90: #{nmt_forward.12} parent=11 // pred_check_branch
        %654 = sbr.rel (%p652) target = $region92
      $region91: #{nmt_forward.12} parent=11 // pred_region
        _
      $region92: #{nmt_forward.12} parent=11 // pred_fallthru
        _
    $region12: #{nmt_forward.12} parent=5 // pred_fallthru
      _
    %p655 = scmp.lt.s32.totalorder %s30, 2
    // Predicated region
    $region93: #{nmt_forward.12} parent=5 // pred_check
      %p656 = pneg %p655
    $region94: #{nmt_forward.12} parent=5 // pred_check_branch
      %658 = sbr.rel (%p656) target = $region96
    $region95: #{nmt_forward.12} parent=5 // pred_region
      // Predicated region
      $region97: #{nmt_forward.12} parent=95 // pred_check
        %p659 = pneg %p50
      $region98: #{nmt_forward.12} parent=95 // pred_check_branch
        %661 = sbr.rel (%p659) target = $region100
      $region99: #{nmt_forward.12} parent=95 // pred_region
        %p662 = scmp.lt.s32.totalorder %s30, 1
        %s663 = scalar_select %p662, %s30, 1
        %s664 = smul.addr %s663, 8
        %s665 = scalar_lea.vmem %s0, %s664
      $region100: #{nmt_forward.12} parent=95 // pred_fallthru
        _
      // Predicated region
      $region101: #{nmt_forward.12} parent=95 // pred_check
        %p666 = pneg %p76
      $region102: #{nmt_forward.12} parent=95 // pred_check_branch
        %668 = sbr.rel (%p666) target = $region104
      $region103: #{nmt_forward.12} parent=95 // pred_region
        %p669 = scmp.lt.s32.totalorder %s30, 1
        %s670 = scalar_select %p669, %s30, 1
        %s671 = smul.addr %s670, 2
        %s672 = smul.addr %s671, 8
        %s673 = scalar_lea.vmem %s1, %s672
      $region104: #{nmt_forward.12} parent=95 // pred_fallthru
        _
      // Predicated region
      $region105: #{nmt_forward.12} parent=95 // pred_check
        %p674 = pneg %p102
      $region106: #{nmt_forward.12} parent=95 // pred_check_branch
        %676 = sbr.rel (%p674) target = $region108
      $region107: #{nmt_forward.12} parent=95 // pred_region
        %p677 = scmp.lt.s32.totalorder %s30, 1
        %s678 = scalar_select %p677, %s30, 1
        %s679 = smul.addr %s678, 8
        %s680 = scalar_lea.vmem %s2, %s679
      $region108: #{nmt_forward.12} parent=95 // pred_fallthru
        _
      // Predicated region
      $region109: #{nmt_forward.12} parent=95 // pred_check
        %p681 = pneg %p128
      $region110: #{nmt_forward.12} parent=95 // pred_check_branch
        %683 = sbr.rel (%p681) target = $region112
      $region111: #{nmt_forward.12} parent=95 // pred_region
        %p684 = scmp.lt.s32.totalorder %s30, 1
        %s685 = scalar_select %p684, %s30, 1
        %s686 = scalar_lea.vmem %s3, %s685
      $region112: #{nmt_forward.12} parent=95 // pred_fallthru
        _
    $region96: #{nmt_forward.12} parent=5 // pred_fallthru
      _
    %p687 = scmp.le.s32.totalorder 1, %s30
    %p688 = scmp.lt.s32.totalorder %s30, 3
    %p689 = pnand %p687, %p688
    %p690 = pneg %p689
    // Predicated region
    $region113: #{nmt_forward.12} parent=5 // pred_check
      _
    $region114: #{nmt_forward.12} parent=5 // pred_check_branch
      %692 = sbr.rel (%p689) target = $region116
    $region115: #{nmt_forward.12} parent=5 // pred_region
      %s693 = ssub.s32 %s30, 1
      %p694 = scmp.lt.s32.totalorder %s35, 1
      %s695 = scalar_select %p694, %s35, 1
      %s696 = smul.addr %s695, 8
      %s697 = scalar_lea.vmem %s0, %s696
      %p698 = pneg %p56
      %p699 = pneg %p53
      %p700 = scmp.lt.s32.totalorder %s35, 1
      %s701 = scalar_select %p700, %s35, 1
      %s702 = smul.addr %s701, 2
      %s703 = smul.addr %s702, 8
      %s704 = scalar_lea.vmem %s1, %s703
      %p705 = pneg %p82
      %p706 = pneg %p79
      %p707 = scmp.lt.s32.totalorder %s35, 1
      %s708 = scalar_select %p707, %s35, 1
      %s709 = smul.addr %s708, 8
      %s710 = scalar_lea.vmem %s2, %s709
      %p711 = pneg %p108
      %p712 = pneg %p105
      %p713 = scmp.lt.s32.totalorder %s35, 1
      %s714 = scalar_select %p713, %s35, 1
      %s715 = scalar_lea.vmem %s3, %s714
      %p716 = pneg %p134
      %p717 = pneg %p131
      %p718 = pneg %p155
      %p719 = pneg %p152
      %p720 = pneg %p176
      %p721 = pneg %p173
      %p722 = pneg %p197
      %p723 = pneg %p194
      %p724 = pneg %p218
      %p725 = pneg %p215
      %p726 = pneg %p239
      %p727 = pneg %p236
      %p728 = pneg %p260
      %p729 = pneg %p257
      %p730 = pneg %p281
      %p731 = pneg %p278
      %p732 = pneg %p302
      %p733 = pneg %p299
      %p734 = pneg %p323
      %p735 = pneg %p320
      %p736 = pneg %p344
      %p737 = pneg %p341
      %p738 = pneg %p365
      %p739 = pneg %p362
      %p740 = pneg %p386
      %p741 = pneg %p383
      %p742 = pneg %p407
      %p743 = pneg %p404
      %p744 = pneg %p428
      %p745 = pneg %p425
      %p746 = pneg %p449
      %p747 = pneg %p446
      %p748 = pneg %p470
      %p749 = pneg %p467
      %p750 = pneg %p491
      %p751 = pneg %p488
      %p752 = pneg %p512
      %p753 = pneg %p509
      %p754 = pneg %p533
      %p755 = pneg %p530
      %p756 = pneg %p554
      %p757 = pneg %p551
      %p758 = pneg %p580
      %p759 = pneg %p577
      %p760 = scmp.lt.s32.totalorder %s35, 1
      %s761 = scalar_select %p760, %s35, 1
      %s762 = smul.addr %s761, 8
      %s763 = scalar_lea.vmem %s24, %s762
      %p764 = scmp.lt.s32.totalorder %s35, 1
      %s765 = scalar_select %p764, %s35, 1
      %s766 = smul.addr %s765, 8
      %s767 = scalar_lea.vmem %s0, %s766
      %p768 = scmp.lt.s32.totalorder %s35, 1
      %s769 = scalar_select %p768, %s35, 1
      %s770 = smul.addr %s769, 2
      %s771 = smul.addr %s770, 8
      %s772 = scalar_lea.vmem %s1, %s771
      %p773 = scmp.lt.s32.totalorder %s35, 1
      %s774 = scalar_select %p773, %s35, 1
      %s775 = smul.addr %s774, 8
      %s776 = scalar_lea.vmem %s2, %s775
      %p777 = scmp.lt.s32.totalorder %s35, 1
      %s778 = scalar_select %p777, %s35, 1
      %s779 = scalar_lea.vmem %s3, %s778
      %p780 = scmp.lt.s32.totalorder %s35, 1
      %s781 = scalar_select %p780, %s35, 1
      %s782 = smul.addr %s781, 8
      %s783 = scalar_lea.vmem %s24, %s782
      %v785 = vld [vmem:[%s767] sm:$0xff]
      %v786 = vld [vmem:[%s772] sm:$0xff]
      %v787 = vld [vmem:[%s772 + $0x8] sm:$0x3]
      %v788 = vld [vmem:[%s776] sm:$0xff]
      %v789 = vld [vmem:[%s779] sm:$0x1]
      %v790 = vmul.f32 %v789, -1e+09
      %v791 = vld [vmem:[%s4] sm:$0x1]
      %v792 = vld [vmem:[%s5] sm:$0x1]
      %vm793 = vcmask 523264
      %v794 = vsel %vm793, %v785, 0.0
      %795 = vadd.xlane.f32.xlu0 %v794
      %v796 = vpop.xlane.xlu0 %795
      %v797 = vrcp.pop 64.0
      %v798 = vmul.f32 %v796, %v797
      %v799 = vsub.f32 %v785, %v798
      %v800 = vmul.f32 %v799, %v799
      %v801 = vsel %vm793, %v800, 0.0
      %802 = vadd.xlane.f32.xlu0 %v801
      %v803 = vpop.xlane.xlu0 %802
      %v804 = vmul.f32 %v803, %v797
      %v805 = vadd.f32 %v804, 1e-05
      %v806 = vrsqrt.pop %v805
      %v807 = vmul.f32 %v799, %v806
      %v809 = vlaneseq
      %v810 = vshrl.u32 %v809, 7
      %v811 = vsub.s32 0, %v810
      %v812 = vrot.slane %v791, %v811
      %v814 = vmul.f32 %v807, %v812
      %v816 = vlaneseq
      %v817 = vshrl.u32 %v816, 7
      %v818 = vsub.s32 0, %v817
      %v819 = vrot.slane %v792, %v818
      %v821 = vadd.f32 %v814, %v819
      %v822 = vld [vmem:[%s6] sm:$0xff]
      %v823 = vld [vmem:[%s6 + $0x8] sm:$0xff]
      %v824 = vld [vmem:[%s6 + $0x10] sm:$0xff]
      %v825 = vld [vmem:[%s6 + $0x18] sm:$0xff]
      %v826 = vld [vmem:[%s6 + $0x20] sm:$0xff]
      %v827 = vld [vmem:[%s6 + $0x28] sm:$0xff]
      %v828 = vld [vmem:[%s6 + $0x30] sm:$0xff]
      %v829 = vld [vmem:[%s6 + $0x38] sm:$0xff]
      %v830 = vpack.c.bf16 %v821, %v821
      %v831 = vld [vmem:[%s7] sm:$0x3]
      %v833 = vlaneseq
      %v834 = vshrl.u32 %v833, 7
      %v835 = vsub.s32 0, %v834
      %v836 = vrot.slane %v831, %v835
      %v837 = vlaneseq
      %v838 = vshrl.u32 %v837, 7
      %v839 = vsub.s32 1, %v838
      %v840 = vrot.slane %v831, %v839
      %v851 = vunpack.c.l.b16 %v822
      %v852 = vunpack.c.h.b16 %v822
      %v853 = vunpack.c.l.b16 %v823
      %v854 = vunpack.c.h.b16 %v823
      %v855 = vunpack.c.l.b16 %v824
      %v856 = vunpack.c.h.b16 %v824
      %v857 = vunpack.c.l.b16 %v825
      %v858 = vunpack.c.h.b16 %v825
      %v859 = vunpack.c.l.b16 %v826
      %v860 = vunpack.c.h.b16 %v826
      %v861 = vunpack.c.l.b16 %v827
      %v862 = vunpack.c.h.b16 %v827
      %v863 = vunpack.c.l.b16 %v828
      %v864 = vunpack.c.h.b16 %v828
      %v865 = vunpack.c.l.b16 %v829
      %v866 = vunpack.c.h.b16 %v829
      %v867 = vpack.c.b16 %v853, %v851
      %v868 = vpack.c.b16 %v854, %v852
      %v869 = vpack.c.b16 %v857, %v855
      %v870 = vpack.c.b16 %v858, %v856
      %v871 = vpack.c.b16 %v861, %v859
      %v872 = vpack.c.b16 %v862, %v860
      %v873 = vpack.c.b16 %v865, %v863
      %v874 = vpack.c.b16 %v866, %v864
      %v884 = vsel %vm793, %v830, 0
      %886 = vmatprep.subr.bf16.mxu0 %v868
      %887 = vmatpush1.bf16.msra.mxu0 %v867
      %888 = vmatprep.subr.bf16.mxu0 %v870
      %889 = vmatpush1.bf16.msra.mxu0 %v869
      %890 = vmatprep.subr.bf16.mxu0 %v872
      %891 = vmatpush1.bf16.msra.mxu0 %v871
      %892 = vmatprep.subr.bf16.mxu0 %v874
      %893 = vmatpush1.bf16.msra.mxu0 %v873
      %894 = vmatprep.subr.bf16.mxu0 0
      %895 = vmatpush1.bf16.msra.mxu0 0
      %896 = vmatprep.subr.bf16.mxu0 0
      %897 = vmatpush1.bf16.msra.mxu0 0
      %898 = vmatprep.subr.bf16.mxu0 0
      %899 = vmatpush1.bf16.msra.mxu0 0
      %900 = vmatprep.subr.bf16.mxu0 0
      %901 = vmatpush1.bf16.msra.mxu0 0
      %902 = vmatprep.subr.bf16.mxu0 0
      %903 = vmatpush1.bf16.msra.mxu0 0
      %904 = vmatprep.subr.bf16.mxu0 0
      %905 = vmatpush1.bf16.msra.mxu0 0
      %906 = vmatprep.subr.bf16.mxu0 0
      %907 = vmatpush1.bf16.msra.mxu0 0
      %908 = vmatprep.subr.bf16.mxu0 0
      %909 = vmatpush1.bf16.msra.mxu0 0
      %910 = vmatprep.subr.bf16.mxu0 0
      %911 = vmatpush1.bf16.msra.mxu0 0
      %912 = vmatprep.subr.bf16.mxu0 0
      %913 = vmatpush1.bf16.msra.mxu0 0
      %914 = vmatprep.subr.bf16.mxu0 0
      %915 = vmatpush1.bf16.msra.mxu0 0
      %916 = vmatprep.subr.bf16.mxu0 0
      %917 = vmatpush1.bf16.msra.mxu0 0
      %918 = vmatprep.mubr.bf16.mxu0 0
      %919 = vmatmul.mubr.bf16.gmra.mrb[0].mxu0 %v884
      %v920 = vpop.f32.mrb[0].mxu0
      %v921 = vadd.f32 %v836, %v920
      %v922 = vpop.f32.mrb[0].mxu0
      %v923 = vadd.f32 %v840, %v922
      %v924 = vpop.f32.mrb[0].mxu0
      %v925 = vpop.f32.mrb[0].mxu0
      %926 = vdwg.mxu0
      %v927 = vld [vmem:[%s8] sm:$0xf]
      %v928 = vld [vmem:[%s8 + $0x4] sm:$0xf]
      %v929 = vld [vmem:[%s8 + $0x8] sm:$0xf]
      %v930 = vld [vmem:[%s8 + $0xc] sm:$0xf]
      %v931 = vld [vmem:[%s8 + $0x10] sm:$0xf]
      %v932 = vld [vmem:[%s8 + $0x14] sm:$0xf]
      %v933 = vld [vmem:[%s8 + $0x18] sm:$0xf]
      %v934 = vld [vmem:[%s8 + $0x1c] sm:$0xf]
      %v935 = vld [vmem:[%s9] sm:$0x1]
      %v936 = vpack.c.bf16 %v921, %v921
      %v937 = vpack.c.bf16 %v923, %v923
      %939 = vrot.lane.b32.xlu0 %v936, 64
      %v940 = vpop.permute.xlu0 %939
      %vm941 = vcmask 130048
      %v943 = vsel %vm941, %v936, 0
      %v946 = vsel %vm941, %v940, 0
      %948 = vmatprep.subr.bf16.mxu0 0
      %949 = vmatpush1.bf16.xpose.msra.mxu0 %v946
      %950 = vmatprep.subr.bf16.mxu0 0
      %951 = vmatpush1.bf16.xpose.msra.mxu0 0
      %952 = vmatprep.subr.bf16.mxu0 0
      %953 = vmatpush1.bf16.xpose.msra.mxu0 0
      %954 = vmatprep.subr.bf16.mxu0 0
      %955 = vmatpush1.bf16.xpose.msra.mxu0 0
      %956 = vmatprep.subr.bf16.mxu0 0
      %957 = vmatpush1.bf16.xpose.msra.mxu0 0
      %958 = vmatprep.subr.bf16.mxu0 0
      %959 = vmatpush1.bf16.xpose.msra.mxu0 0
      %960 = vmatprep.subr.bf16.mxu0 0
      %961 = vmatpush1.bf16.xpose.msra.mxu0 0
      %962 = vmatprep.subr.bf16.mxu0 0
      %963 = vmatpush1.bf16.xpose.msra.mxu0 0
      %964 = vmatprep.subr.bf16.mxu0 0
      %965 = vmatpush1.bf16.xpose.msra.mxu0 0
      %966 = vmatprep.subr.bf16.mxu0 0
      %967 = vmatpush1.bf16.xpose.msra.mxu0 0
      %968 = vmatprep.subr.bf16.mxu0 0
      %969 = vmatpush1.bf16.xpose.msra.mxu0 0
      %970 = vmatprep.subr.bf16.mxu0 0
      %971 = vmatpush1.bf16.xpose.msra.mxu0 0
      %972 = vmatprep.subr.bf16.mxu0 0
      %973 = vmatpush1.bf16.xpose.msra.mxu0 0
      %974 = vmatprep.subr.bf16.mxu0 0
      %975 = vmatpush1.bf16.xpose.msra.mxu0 0
      %976 = vmatprep.subr.bf16.mxu0 0
      %977 = vmatpush1.bf16.xpose.msra.mxu0 0
      %978 = vmatprep.subr.bf16.mxu0 0
      %979 = vmatpush1.bf16.xpose.msra.mxu0 0
      %980 = vmatprep.mubr.bf16.mxu0 0
      %981 = vmatmul.mubr.bf16.gmra.mrb[0].mxu0 %v943
      %v982 = vpop.f32.mrb[0].mxu0
      %v983 = vadd.f32 0.0, %v982
      %v984 = vpop.f32.mrb[0].mxu0
      %v985 = vpop.f32.mrb[0].mxu0
      %v986 = vpop.f32.mrb[0].mxu0
      %987 = vdwg.mxu0
      %v988 = vmul.f32 %v983, 0.25
      %v989 = vadd.f32 %v988, %v788
      %vm990 = vcmask 64512
      %v991 = vsel %vm990, %v989, -inf
      %992 = vmax.xlane.f32.xlu0 %v991
      %v993 = vpop.xlane.xlu0 %992
      %v994 = vsub.f32 %v989, %v993
      %v995 = vmul.f32 %v994, 1.442695
      %v996 = vpow.pop %v995
      %v997 = vsel %vm990, %v996, 0.0
      %998 = vadd.xlane.f32.xlu0 %v997
      %v999 = vpop.xlane.xlu0 %998
      %v1000 = vrcp.pop %v999
      %v1001 = vmul.f32 %v996, %v1000
      %v1002 = vpack.c.bf16 %v1001, %v1001
      %v1004 = vsel %vm990, %v1002, 0
      %vm1006 = vcmask 1043456
      %v1008 = vsel %vm1006, %v937, 0
      %1010 = vmatprep.subr.bf16.mxu0 0
      %1011 = vmatpush1.bf16.msra.mxu0 %v1008
      %1012 = vmatprep.subr.bf16.mxu0 0
      %1013 = vmatpush1.bf16.msra.mxu0 0
      %1014 = vmatprep.subr.bf16.mxu0 0
      %1015 = vmatpush1.bf16.msra.mxu0 0
      %1016 = vmatprep.subr.bf16.mxu0 0
      %1017 = vmatpush1.bf16.msra.mxu0 0
      %1018 = vmatprep.subr.bf16.mxu0 0
      %1019 = vmatpush1.bf16.msra.mxu0 0
      %1020 = vmatprep.subr.bf16.mxu0 0
      %1021 = vmatpush1.bf16.msra.mxu0 0
      %1022 = vmatprep.subr.bf16.mxu0 0
      %1023 = vmatpush1.bf16.msra.mxu0 0
      %1024 = vmatprep.subr.bf16.mxu0 0
      %1025 = vmatpush1.bf16.msra.mxu0 0
      %1026 = vmatprep.subr.bf16.mxu0 0
      %1027 = vmatpush1.bf16.msra.mxu0 0
      %1028 = vmatprep.subr.bf16.mxu0 0
      %1029 = vmatpush1.bf16.msra.mxu0 0
      %1030 = vmatprep.subr.bf16.mxu0 0
      %1031 = vmatpush1.bf16.msra.mxu0 0
      %1032 = vmatprep.subr.bf16.mxu0 0
      %1033 = vmatpush1.bf16.msra.mxu0 0
      %1034 = vmatprep.subr.bf16.mxu0 0
      %1035 = vmatpush1.bf16.msra.mxu0 0
      %1036 = vmatprep.subr.bf16.mxu0 0
      %1037 = vmatpush1.bf16.msra.mxu0 0
      %1038 = vmatprep.subr.bf16.mxu0 0
      %1039 = vmatpush1.bf16.msra.mxu0 0
      %1040 = vmatprep.subr.bf16.mxu0 0
      %1041 = vmatpush1.bf16.msra.mxu0 0
      %1042 = vmatprep.mubr.bf16.mxu0 0
      %1043 = vmatmul.mubr.bf16.gmra.mrb[0].mxu0 %v1004
      %v1044 = vpop.f32.mrb[0].mxu0
      %v1045 = vadd.f32 0.0, %v1044
      %v1046 = vpop.f32.mrb[0].mxu0
      %v1047 = vpop.f32.mrb[0].mxu0
      %v1048 = vpop.f32.mrb[0].mxu0
      %1049 = vdwg.mxu0
      %v1050 = vpack.c.bf16 %v1045, %v1045
      %1051 = vrot.lane.b32.xlu0 %v936, 112
      %v1052 = vpop.permute.xlu0 %1051
      %1053 = vrot.lane.b32.xlu0 %v936, 48
      %v1054 = vpop.permute.xlu0 %1053
      %v1056 = vsel %vm941, %v1052, 0
      %v1059 = vsel %vm941, %v1054, 0
      %1061 = vmatprep.subr.bf16.mxu0 0
      %1062 = vmatpush1.bf16.xpose.msra.mxu0 %v1059
      %1063 = vmatprep.subr.bf16.mxu0 0
      %1064 = vmatpush1.bf16.xpose.msra.mxu0 0
      %1065 = vmatprep.subr.bf16.mxu0 0
      %1066 = vmatpush1.bf16.xpose.msra.mxu0 0
      %1067 = vmatprep.subr.bf16.mxu0 0
      %1068 = vmatpush1.bf16.xpose.msra.mxu0 0
      %1069 = vmatprep.subr.bf16.mxu0 0
      %1070 = vmatpush1.bf16.xpose.msra.mxu0 0
      %1071 = vmatprep.subr.bf16.mxu0 0
      %1072 = vmatpush1.bf16.xpose.msra.mxu0 0
      %1073 = vmatprep.subr.bf16.mxu0 0
      %1074 = vmatpush1.bf16.xpose.msra.mxu0 0
      %1075 = vmatprep.subr.bf16.mxu0 0
      %1076 = vmatpush1.bf16.xpose.msra.mxu0 0
      %1077 = vmatprep.subr.bf16.mxu0 0
      %1078 = vmatpush1.bf16.xpose.msra.mxu0 0
      %1079 = vmatprep.subr.bf16.mxu0 0
      %1080 = vmatpush1.bf16.xpose.msra.mxu0 0
      %1081 = vmatprep.subr.bf16.mxu0 0
      %1082 = vmatpush1.bf16.xpose.msra.mxu0 0
      %1083 = vmatprep.subr.bf16.mxu0 0
      %1084 = vmatpush1.bf16.xpose.msra.mxu0 0
      %1085 = vmatprep.subr.bf16.mxu0 0
      %1086 = vmatpush1.bf16.xpose.msra.mxu0 0
      %1087 = vmatprep.subr.bf16.mxu0 0
      %1088 = vmatpush1.bf16.xpose.msra.mxu0 0
      %1089 = vmatprep.subr.bf16.mxu0 0
      %1090 = vmatpush1.bf16.xpose.msra.mxu0 0
      %1091 = vmatprep.subr.bf16.mxu0 0
      %1092 = vmatpush1.bf16.xpose.msra.mxu0 0
      %1093 = vmatprep.mubr.bf16.mxu0 0
      %1094 = vmatmul.mubr.bf16.gmra.mrb[0].mxu0 %v1056
      %v1095 = vpop.f32.mrb[0].mxu0
      %v1096 = vadd.f32 0.0, %v1095
      %v1097 = vpop.f32.mrb[0].mxu0
      %v1098 = vpop.f32.mrb[0].mxu0
      %v1099 = vpop.f32.mrb[0].mxu0
      %1100 = vdwg.mxu0
      %v1101 = vmul.f32 %v1096, 0.25
      %v1102 = vadd.f32 %v1101, %v788
      %v1103 = vsel %vm990, %v1102, -inf
      %1104 = vmax.xlane.f32.xlu0 %v1103
      %v1105 = vpop.xlane.xlu0 %1104
      %v1106 = vsub.f32 %v1102, %v1105
      %v1107 = vmul.f32 %v1106, 1.442695
      %v1108 = vpow.pop %v1107
      %v1109 = vsel %vm990, %v1108, 0.0
      %1110 = vadd.xlane.f32.xlu0 %v1109
      %v1111 = vpop.xlane.xlu0 %1110
      %v1112 = vrcp.pop %v1111
      %v1113 = vmul.f32 %v1108, %v1112
      %v1114 = vpack.c.bf16 %v1113, %v1113
      %1116 = vrot.lane.b32.xlu0 %v937, 112
      %v1117 = vpop.permute.xlu0 %1116
      %v1119 = vsel %vm990, %v1114, 0
      %v1122 = vsel %vm1006, %v1117, 0
      %1124 = vmatprep.subr.bf16.mxu0 0
      %1125 = vmatpush1.bf16.msra.mxu0 %v1122
      %1126 = vmatprep.subr.bf16.mxu0 0
      %1127 = vmatpush1.bf16.msra.mxu0 0
      %1128 = vmatprep.subr.bf16.mxu0 0
      %1129 = vmatpush1.bf16.msra.mxu0 0
      %1130 = vmatprep.subr.bf16.mxu0 0
      %1131 = vmatpush1.bf16.msra.mxu0 0
      %1132 = vmatprep.subr.bf16.mxu0 0
      %1133 = vmatpush1.bf16.msra.mxu0 0
      %1134 = vmatprep.subr.bf16.mxu0 0
      %1135 = vmatpush1.bf16.msra.mxu0 0
      %1136 = vmatprep.subr.bf16.mxu0 0
      %1137 = vmatpush1.bf16.msra.mxu0 0
      %1138 = vmatprep.subr.bf16.mxu0 0
      %1139 = vmatpush1.bf16.msra.mxu0 0
      %1140 = vmatprep.subr.bf16.mxu0 0
      %1141 = vmatpush1.bf16.msra.mxu0 0
      %1142 = vmatprep.subr.bf16.mxu0 0
      %1143 = vmatpush1.bf16.msra.mxu0 0
      %1144 = vmatprep.subr.bf16.mxu0 0
      %1145 = vmatpush1.bf16.msra.mxu0 0
      %1146 = vmatprep.subr.bf16.mxu0 0
      %1147 = vmatpush1.bf16.msra.mxu0 0
      %1148 = vmatprep.subr.bf16.mxu0 0
      %1149 = vmatpush1.bf16.msra.mxu0 0
      %1150 = vmatprep.subr.bf16.mxu0 0
      %1151 = vmatpush1.bf16.msra.mxu0 0
      %1152 = vmatprep.subr.bf16.mxu0 0
      %1153 = vmatpush1.bf16.msra.mxu0 0
      %1154 = vmatprep.subr.bf16.mxu0 0
      %1155 = vmatpush1.bf16.msra.mxu0 0
      %1156 = vmatprep.mubr.bf16.mxu0 0
      %1157 = vmatmul.mubr.bf16.gmra.mrb[0].mxu0 %v1119
      %v1158 = vpop.f32.mrb[0].mxu0
      %v1159 = vadd.f32 0.0, %v1158
      %v1160 = vpop.f32.mrb[0].mxu0
      %v1161 = vpop.f32.mrb[0].mxu0
      %v1162 = vpop.f32.mrb[0].mxu0
      %1163 = vdwg.mxu0
      %v1164 = vpack.c.bf16 %v1159, %v1159
      %v1167 = vunpack.c.l.b16 %v929
      %v1168 = vunpack.c.l.b16 %v930
      %v1169 = vpack.c.b16 %v1168, %v1167
      %v1172 = vsel %vm941, %v1164, 0
      %1174 = vmatprep.subr.bf16.mxu0 0
      %1175 = vmatpush1.bf16.msra.mxu0 %v1169
      %1176 = vmatprep.subr.bf16.mxu0 0
      %1177 = vmatpush1.bf16.msra.mxu0 0
      %1178 = vmatprep.subr.bf16.mxu0 0
      %1179 = vmatpush1.bf16.msra.mxu0 0
      %1180 = vmatprep.subr.bf16.mxu0 0
      %1181 = vmatpush1.bf16.msra.mxu0 0
      %1182 = vmatprep.subr.bf16.mxu0 0
      %1183 = vmatpush1.bf16.msra.mxu0 0
      %1184 = vmatprep.subr.bf16.mxu0 0
      %1185 = vmatpush1.bf16.msra.mxu0 0
      %1186 = vmatprep.subr.bf16.mxu0 0
      %1187 = vmatpush1.bf16.msra.mxu0 0
      %1188 = vmatprep.subr.bf16.mxu0 0
      %1189 = vmatpush1.bf16.msra.mxu0 0
      %1190 = vmatprep.subr.bf16.mxu0 0
      %1191 = vmatpush1.bf16.msra.mxu0 0
      %1192 = vmatprep.subr.bf16.mxu0 0
      %1193 = vmatpush1.bf16.msra.mxu0 0
      %1194 = vmatprep.subr.bf16.mxu0 0
      %1195 = vmatpush1.bf16.msra.mxu0 0
      %1196 = vmatprep.subr.bf16.mxu0 0
      %1197 = vmatpush1.bf16.msra.mxu0 0
      %1198 = vmatprep.subr.bf16.mxu0 0
      %1199 = vmatpush1.bf16.msra.mxu0 0
      %1200 = vmatprep.subr.bf16.mxu0 0
      %1201 = vmatpush1.bf16.msra.mxu0 0
      %1202 = vmatprep.subr.bf16.mxu0 0
      %1203 = vmatpush1.bf16.msra.mxu0 0
      %1204 = vmatprep.subr.bf16.mxu0 0
      %1205 = vmatpush1.bf16.msra.mxu0 0
      %1206 = vmatprep.mubr.bf16.mxu0 0
      %1207 = vmatmul.mubr.bf16.gmra.mrb[0].mxu0 %v1172
      %v1208 = vpop.f32.mrb[0].mxu0
      %v1209 = vadd.f32 0.0, %v1208
      %v1210 = vpop.f32.mrb[0].mxu0
      %v1211 = vpop.f32.mrb[0].mxu0
      %v1212 = vpop.f32.mrb[0].mxu0
      %1213 = vdwg.mxu0
      %v1216 = vunpack.c.l.b16 %v927
      %v1217 = vunpack.c.l.b16 %v928
      %v1218 = vpack.c.b16 %v1217, %v1216
      %v1221 = vsel %vm941, %v1050, 0
      %1223 = vmatprep.subr.bf16.mxu0 0
      %1224 = vmatpush1.bf16.msra.mxu0 %v1218
      %1225 = vmatprep.subr.bf16.mxu0 0
      %1226 = vmatpush1.bf16.msra.mxu0 0
      %1227 = vmatprep.subr.bf16.mxu0 0
      %1228 = vmatpush1.bf16.msra.mxu0 0
      %1229 = vmatprep.subr.bf16.mxu0 0
      %1230 = vmatpush1.bf16.msra.mxu0 0
      %1231 = vmatprep.subr.bf16.mxu0 0
      %1232 = vmatpush1.bf16.msra.mxu0 0
      %1233 = vmatprep.subr.bf16.mxu0 0
      %1234 = vmatpush1.bf16.msra.mxu0 0
      %1235 = vmatprep.subr.bf16.mxu0 0
      %1236 = vmatpush1.bf16.msra.mxu0 0
      %1237 = vmatprep.subr.bf16.mxu0 0
      %1238 = vmatpush1.bf16.msra.mxu0 0
      %1239 = vmatprep.subr.bf16.mxu0 0
      %1240 = vmatpush1.bf16.msra.mxu0 0
      %1241 = vmatprep.subr.bf16.mxu0 0
      %1242 = vmatpush1.bf16.msra.mxu0 0
      %1243 = vmatprep.subr.bf16.mxu0 0
      %1244 = vmatpush1.bf16.msra.mxu0 0
      %1245 = vmatprep.subr.bf16.mxu0 0
      %1246 = vmatpush1.bf16.msra.mxu0 0
      %1247 = vmatprep.subr.bf16.mxu0 0
      %1248 = vmatpush1.bf16.msra.mxu0 0
      %1249 = vmatprep.subr.bf16.mxu0 0
      %1250 = vmatpush1.bf16.msra.mxu0 0
      %1251 = vmatprep.subr.bf16.mxu0 0
      %1252 = vmatpush1.bf16.msra.mxu0 0
      %1253 = vmatprep.subr.bf16.mxu0 0
      %1254 = vmatpush1.bf16.msra.mxu0 0
      %1255 = vmatprep.mubr.bf16.mxu0 0
      %1256 = vmatmul.mubr.bf16.gmra.mrb[0].mxu0 %v1221
      %v1257 = vpop.f32.mrb[0].mxu0
      %v1258 = vadd.f32 %v1209, %v1257
      %v1259 = vpop.f32.mrb[0].mxu0
      %v1260 = vpop.f32.mrb[0].mxu0
      %v1261 = vpop.f32.mrb[0].mxu0
      %1262 = vdwg.mxu0
      %1263 = vrot.lane.b32.xlu0 %v936, 96
      %v1264 = vpop.permute.xlu0 %1263
      %1265 = vrot.lane.b32.xlu0 %v936, 32
      %v1266 = vpop.permute.xlu0 %1265
      %v1268 = vsel %vm941, %v1264, 0
      %v1271 = vsel %vm941, %v1266, 0
      %1273 = vmatprep.subr.bf16.mxu0 0
      %1274 = vmatpush1.bf16.xpose.msra.mxu0 %v1271
      %1275 = vmatprep.subr.bf16.mxu0 0
      %1276 = vmatpush1.bf16.xpose.msra.mxu0 0
      %1277 = vmatprep.subr.bf16.mxu0 0
      %1278 = vmatpush1.bf16.xpose.msra.mxu0 0
      %1279 = vmatprep.subr.bf16.mxu0 0
      %1280 = vmatpush1.bf16.xpose.msra.mxu0 0
      %1281 = vmatprep.subr.bf16.mxu0 0
      %1282 = vmatpush1.bf16.xpose.msra.mxu0 0
      %1283 = vmatprep.subr.bf16.mxu0 0
      %1284 = vmatpush1.bf16.xpose.msra.mxu0 0
      %1285 = vmatprep.subr.bf16.mxu0 0
      %1286 = vmatpush1.bf16.xpose.msra.mxu0 0
      %1287 = vmatprep.subr.bf16.mxu0 0
      %1288 = vmatpush1.bf16.xpose.msra.mxu0 0
      %1289 = vmatprep.subr.bf16.mxu0 0
      %1290 = vmatpush1.bf16.xpose.msra.mxu0 0
      %1291 = vmatprep.subr.bf16.mxu0 0
      %1292 = vmatpush1.bf16.xpose.msra.mxu0 0
      %1293 = vmatprep.subr.bf16.mxu0 0
      %1294 = vmatpush1.bf16.xpose.msra.mxu0 0
      %1295 = vmatprep.subr.bf16.mxu0 0
      %1296 = vmatpush1.bf16.xpose.msra.mxu0 0
      %1297 = vmatprep.subr.bf16.mxu0 0
      %1298 = vmatpush1.bf16.xpose.msra.mxu0 0
      %1299 = vmatprep.subr.bf16.mxu0 0
      %1300 = vmatpush1.bf16.xpose.msra.mxu0 0
      %1301 = vmatprep.subr.bf16.mxu0 0
      %1302 = vmatpush1.bf16.xpose.msra.mxu0 0
      %1303 = vmatprep.subr.bf16.mxu0 0
      %1304 = vmatpush1.bf16.xpose.msra.mxu0 0
      %1305 = vmatprep.mubr.bf16.mxu0 0
      %1306 = vmatmul.mubr.bf16.gmra.mrb[0].mxu0 %v1268
      %v1307 = vpop.f32.mrb[0].mxu0
      %v1308 = vadd.f32 0.0, %v1307
      %v1309 = vpop.f32.mrb[0].mxu0
      %v1310 = vpop.f32.mrb[0].mxu0
      %v1311 = vpop.f32.mrb[0].mxu0
      %1312 = vdwg.mxu0
      %v1313 = vmul.f32 %v1308, 0.25
      %v1314 = vadd.f32 %v1313, %v788
      %v1315 = vsel %vm990, %v1314, -inf
      %1316 = vmax.xlane.f32.xlu0 %v1315
      %v1317 = vpop.xlane.xlu0 %1316
      %v1318 = vsub.f32 %v1314, %v1317
      %v1319 = vmul.f32 %v1318, 1.442695
      %v1320 = vpow.pop %v1319
      %v1321 = vsel %vm990, %v1320, 0.0
      %1322 = vadd.xlane.f32.xlu0 %v1321
      %v1323 = vpop.xlane.xlu0 %1322
      %v1324 = vrcp.pop %v1323
      %v1325 = vmul.f32 %v1320, %v1324
      %v1326 = vpack.c.bf16 %v1325, %v1325
      %1327 = vrot.lane.b32.xlu0 %v937, 96
      %v1328 = vpop.permute.xlu0 %1327
      %v1330 = vsel %vm990, %v1326, 0
      %v1333 = vsel %vm1006, %v1328, 0
      %1335 = vmatprep.subr.bf16.mxu0 0
      %1336 = vmatpush1.bf16.msra.mxu0 %v1333
      %1337 = vmatprep.subr.bf16.mxu0 0
      %1338 = vmatpush1.bf16.msra.mxu0 0
      %1339 = vmatprep.subr.bf16.mxu0 0
      %1340 = vmatpush1.bf16.msra.mxu0 0
      %1341 = vmatprep.subr.bf16.mxu0 0
      %1342 = vmatpush1.bf16.msra.mxu0 0
      %1343 = vmatprep.subr.bf16.mxu0 0
      %1344 = vmatpush1.bf16.msra.mxu0 0
      %1345 = vmatprep.subr.bf16.mxu0 0
      %1346 = vmatpush1.bf16.msra.mxu0 0
      %1347 = vmatprep.subr.bf16.mxu0 0
      %1348 = vmatpush1.bf16.msra.mxu0 0
      %1349 = vmatprep.subr.bf16.mxu0 0
      %1350 = vmatpush1.bf16.msra.mxu0 0
      %1351 = vmatprep.subr.bf16.mxu0 0
      %1352 = vmatpush1.bf16.msra.mxu0 0
      %1353 = vmatprep.subr.bf16.mxu0 0
      %1354 = vmatpush1.bf16.msra.mxu0 0
      %1355 = vmatprep.subr.bf16.mxu0 0
      %1356 = vmatpush1.bf16.msra.mxu0 0
      %1357 = vmatprep.subr.bf16.mxu0 0
      %1358 = vmatpush1.bf16.msra.mxu0 0
      %1359 = vmatprep.subr.bf16.mxu0 0
      %1360 = vmatpush1.bf16.msra.mxu0 0
      %1361 = vmatprep.subr.bf16.mxu0 0
      %1362 = vmatpush1.bf16.msra.mxu0 0
      %1363 = vmatprep.subr.bf16.mxu0 0
      %1364 = vmatpush1.bf16.msra.mxu0 0
      %1365 = vmatprep.subr.bf16.mxu0 0
      %1366 = vmatpush1.bf16.msra.mxu0 0
      %1367 = vmatprep.mubr.bf16.mxu0 0
      %1368 = vmatmul.mubr.bf16.gmra.mrb[0].mxu0 %v1330
      %v1369 = vpop.f32.mrb[0].mxu0
      %v1370 = vadd.f32 0.0, %v1369
      %v1371 = vpop.f32.mrb[0].mxu0
      %v1372 = vpop.f32.mrb[0].mxu0
      %v1373 = vpop.f32.mrb[0].mxu0
      %1374 = vdwg.mxu0
      %v1375 = vpack.c.bf16 %v1370, %v1370
      %v1378 = vunpack.c.l.b16 %v931
      %v1379 = vunpack.c.l.b16 %v932
      %v1380 = vpack.c.b16 %v1379, %v1378
      %v1383 = vsel %vm941, %v1375, 0
      %1385 = vmatprep.subr.bf16.mxu0 0
      %1386 = vmatpush1.bf16.msra.mxu0 %v1380
      %1387 = vmatprep.subr.bf16.mxu0 0
      %1388 = vmatpush1.bf16.msra.mxu0 0
      %1389 = vmatprep.subr.bf16.mxu0 0
      %1390 = vmatpush1.bf16.msra.mxu0 0
      %1391 = vmatprep.subr.bf16.mxu0 0
      %1392 = vmatpush1.bf16.msra.mxu0 0
      %1393 = vmatprep.subr.bf16.mxu0 0
      %1394 = vmatpush1.bf16.msra.mxu0 0
      %1395 = vmatprep.subr.bf16.mxu0 0
      %1396 = vmatpush1.bf16.msra.mxu0 0
      %1397 = vmatprep.subr.bf16.mxu0 0
      %1398 = vmatpush1.bf16.msra.mxu0 0
      %1399 = vmatprep.subr.bf16.mxu0 0
      %1400 = vmatpush1.bf16.msra.mxu0 0
      %1401 = vmatprep.subr.bf16.mxu0 0
      %1402 = vmatpush1.bf16.msra.mxu0 0
      %1403 = vmatprep.subr.bf16.mxu0 0
      %1404 = vmatpush1.bf16.msra.mxu0 0
      %1405 = vmatprep.subr.bf16.mxu0 0
      %1406 = vmatpush1.bf16.msra.mxu0 0
      %1407 = vmatprep.subr.bf16.mxu0 0
      %1408 = vmatpush1.bf16.msra.mxu0 0
      %1409 = vmatprep.subr.bf16.mxu0 0
      %1410 = vmatpush1.bf16.msra.mxu0 0
      %1411 = vmatprep.subr.bf16.mxu0 0
      %1412 = vmatpush1.bf16.msra.mxu0 0
      %1413 = vmatprep.subr.bf16.mxu0 0
      %1414 = vmatpush1.bf16.msra.mxu0 0
      %1415 = vmatprep.subr.bf16.mxu0 0
      %1416 = vmatpush1.bf16.msra.mxu0 0
      %1417 = vmatprep.mubr.bf16.mxu0 0
      %1418 = vmatmul.mubr.bf16.gmra.mrb[0].mxu0 %v1383
      %v1419 = vpop.f32.mrb[0].mxu0
      %v1420 = vadd.f32 0.0, %v1419
      %v1421 = vpop.f32.mrb[0].mxu0
      %v1422 = vpop.f32.mrb[0].mxu0
      %v1423 = vpop.f32.mrb[0].mxu0
      %1424 = vdwg.mxu0
      %v1425 = vadd.f32 %v1258, %v1420
      %1426 = vrot.lane.b32.xlu0 %v936, 80
      %v1427 = vpop.permute.xlu0 %1426
      %1428 = vrot.lane.b32.xlu0 %v936, 16
      %v1429 = vpop.permute.xlu0 %1428
      %v1431 = vsel %vm941, %v1427, 0
      %v1434 = vsel %vm941, %v1429, 0
      %1436 = vmatprep.subr.bf16.mxu0 0
      %1437 = vmatpush1.bf16.xpose.msra.mxu0 %v1434
      %1438 = vmatprep.subr.bf16.mxu0 0
      %1439 = vmatpush1.bf16.xpose.msra.mxu0 0
      %1440 = vmatprep.subr.bf16.mxu0 0
      %1441 = vmatpush1.bf16.xpose.msra.mxu0 0
      %1442 = vmatprep.subr.bf16.mxu0 0
      %1443 = vmatpush1.bf16.xpose.msra.mxu0 0
      %1444 = vmatprep.subr.bf16.mxu0 0
      %1445 = vmatpush1.bf16.xpose.msra.mxu0 0
      %1446 = vmatprep.subr.bf16.mxu0 0
      %1447 = vmatpush1.bf16.xpose.msra.mxu0 0
      %1448 = vmatprep.subr.bf16.mxu0 0
      %1449 = vmatpush1.bf16.xpose.msra.mxu0 0
      %1450 = vmatprep.subr.bf16.mxu0 0
      %1451 = vmatpush1.bf16.xpose.msra.mxu0 0
      %1452 = vmatprep.subr.bf16.mxu0 0
      %1453 = vmatpush1.bf16.xpose.msra.mxu0 0
      %1454 = vmatprep.subr.bf16.mxu0 0
      %1455 = vmatpush1.bf16.xpose.msra.mxu0 0
      %1456 = vmatprep.subr.bf16.mxu0 0
      %1457 = vmatpush1.bf16.xpose.msra.mxu0 0
      %1458 = vmatprep.subr.bf16.mxu0 0
      %1459 = vmatpush1.bf16.xpose.msra.mxu0 0
      %1460 = vmatprep.subr.bf16.mxu0 0
      %1461 = vmatpush1.bf16.xpose.msra.mxu0 0
      %1462 = vmatprep.subr.bf16.mxu0 0
      %1463 = vmatpush1.bf16.xpose.msra.mxu0 0
      %1464 = vmatprep.subr.bf16.mxu0 0
      %1465 = vmatpush1.bf16.xpose.msra.mxu0 0
      %1466 = vmatprep.subr.bf16.mxu0 0
      %1467 = vmatpush1.bf16.xpose.msra.mxu0 0
      %1468 = vmatprep.mubr.bf16.mxu0 0
      %1469 = vmatmul.mubr.bf16.gmra.mrb[0].mxu0 %v1431
      %v1470 = vpop.f32.mrb[0].mxu0
      %v1471 = vadd.f32 0.0, %v1470
      %v1472 = vpop.f32.mrb[0].mxu0
      %v1473 = vpop.f32.mrb[0].mxu0
      %v1474 = vpop.f32.mrb[0].mxu0
      %1475 = vdwg.mxu0
      %v1476 = vmul.f32 %v1471, 0.25
      %v1477 = vadd.f32 %v1476, %v788
      %v1478 = vsel %vm990, %v1477, -inf
      %1479 = vmax.xlane.f32.xlu0 %v1478
      %v1480 = vpop.xlane.xlu0 %1479
      %v1481 = vsub.f32 %v1477, %v1480
      %v1482 = vmul.f32 %v1481, 1.442695
      %v1483 = vpow.pop %v1482
      %v1484 = vsel %vm990, %v1483, 0.0
      %1485 = vadd.xlane.f32.xlu0 %v1484
      %v1486 = vpop.xlane.xlu0 %1485
      %v1487 = vrcp.pop %v1486
      %v1488 = vmul.f32 %v1483, %v1487
      %v1489 = vpack.c.bf16 %v1488, %v1488
      %1490 = vrot.lane.b32.xlu0 %v937, 80
      %v1491 = vpop.permute.xlu0 %1490
      %v1493 = vsel %vm990, %v1489, 0
      %v1496 = vsel %vm1006, %v1491, 0
      %1498 = vmatprep.subr.bf16.mxu0 0
      %1499 = vmatpush1.bf16.msra.mxu0 %v1496
      %1500 = vmatprep.subr.bf16.mxu0 0
      %1501 = vmatpush1.bf16.msra.mxu0 0
      %1502 = vmatprep.subr.bf16.mxu0 0
      %1503 = vmatpush1.bf16.msra.mxu0 0
      %1504 = vmatprep.subr.bf16.mxu0 0
      %1505 = vmatpush1.bf16.msra.mxu0 0
      %1506 = vmatprep.subr.bf16.mxu0 0
      %1507 = vmatpush1.bf16.msra.mxu0 0
      %1508 = vmatprep.subr.bf16.mxu0 0
      %1509 = vmatpush1.bf16.msra.mxu0 0
      %1510 = vmatprep.subr.bf16.mxu0 0
      %1511 = vmatpush1.bf16.msra.mxu0 0
      %1512 = vmatprep.subr.bf16.mxu0 0
      %1513 = vmatpush1.bf16.msra.mxu0 0
      %1514 = vmatprep.subr.bf16.mxu0 0
      %1515 = vmatpush1.bf16.msra.mxu0 0
      %1516 = vmatprep.subr.bf16.mxu0 0
      %1517 = vmatpush1.bf16.msra.mxu0 0
      %1518 = vmatprep.subr.bf16.mxu0 0
      %1519 = vmatpush1.bf16.msra.mxu0 0
      %1520 = vmatprep.subr.bf16.mxu0 0
      %1521 = vmatpush1.bf16.msra.mxu0 0
      %1522 = vmatprep.subr.bf16.mxu0 0
      %1523 = vmatpush1.bf16.msra.mxu0 0
      %1524 = vmatprep.subr.bf16.mxu0 0
      %1525 = vmatpush1.bf16.msra.mxu0 0
      %1526 = vmatprep.subr.bf16.mxu0 0
      %1527 = vmatpush1.bf16.msra.mxu0 0
      %1528 = vmatprep.subr.bf16.mxu0 0
      %1529 = vmatpush1.bf16.msra.mxu0 0
      %1530 = vmatprep.mubr.bf16.mxu0 0
      %1531 = vmatmul.mubr.bf16.gmra.mrb[0].mxu0 %v1493
      %v1532 = vpop.f32.mrb[0].mxu0
      %v1533 = vadd.f32 0.0, %v1532
      %v1534 = vpop.f32.mrb[0].mxu0
      %v1535 = vpop.f32.mrb[0].mxu0
      %v1536 = vpop.f32.mrb[0].mxu0
      %1537 = vdwg.mxu0
      %v1538 = vpack.c.bf16 %v1533, %v1533
      %v1541 = vunpack.c.l.b16 %v933
      %v1542 = vunpack.c.l.b16 %v934
      %v1543 = vpack.c.b16 %v1542, %v1541
      %v1546 = vsel %vm941, %v1538, 0
      %1548 = vmatprep.subr.bf16.mxu0 0
      %1549 = vmatpush1.bf16.msra.mxu0 %v1543
      %1550 = vmatprep.subr.bf16.mxu0 0
      %1551 = vmatpush1.bf16.msra.mxu0 0
      %1552 = vmatprep.subr.bf16.mxu0 0
      %1553 = vmatpush1.bf16.msra.mxu0 0
      %1554 = vmatprep.subr.bf16.mxu0 0
      %1555 = vmatpush1.bf16.msra.mxu0 0
      %1556 = vmatprep.subr.bf16.mxu0 0
      %1557 = vmatpush1.bf16.msra.mxu0 0
      %1558 = vmatprep.subr.bf16.mxu0 0
      %1559 = vmatpush1.bf16.msra.mxu0 0
      %1560 = vmatprep.subr.bf16.mxu0 0
      %1561 = vmatpush1.bf16.msra.mxu0 0
      %1562 = vmatprep.subr.bf16.mxu0 0
      %1563 = vmatpush1.bf16.msra.mxu0 0
      %1564 = vmatprep.subr.bf16.mxu0 0
      %1565 = vmatpush1.bf16.msra.mxu0 0
      %1566 = vmatprep.subr.bf16.mxu0 0
      %1567 = vmatpush1.bf16.msra.mxu0 0
      %1568 = vmatprep.subr.bf16.mxu0 0
      %1569 = vmatpush1.bf16.msra.mxu0 0
      %1570 = vmatprep.subr.bf16.mxu0 0
      %1571 = vmatpush1.bf16.msra.mxu0 0
      %1572 = vmatprep.subr.bf16.mxu0 0
      %1573 = vmatpush1.bf16.msra.mxu0 0
      %1574 = vmatprep.subr.bf16.mxu0 0
      %1575 = vmatpush1.bf16.msra.mxu0 0
      %1576 = vmatprep.subr.bf16.mxu0 0
      %1577 = vmatpush1.bf16.msra.mxu0 0
      %1578 = vmatprep.subr.bf16.mxu0 0
      %1579 = vmatpush1.bf16.msra.mxu0 0
      %1580 = vmatprep.mubr.bf16.mxu0 0
      %1581 = vmatmul.mubr.bf16.gmra.mrb[0].mxu0 %v1546
      %v1582 = vpop.f32.mrb[0].mxu0
      %v1583 = vadd.f32 0.0, %v1582
      %v1584 = vpop.f32.mrb[0].mxu0
      %v1585 = vpop.f32.mrb[0].mxu0
      %v1586 = vpop.f32.mrb[0].mxu0
      %1587 = vdwg.mxu0
      %v1588 = vadd.f32 %v1425, %v1583
      %v1590 = vlaneseq
      %v1591 = vshrl.u32 %v1590, 7
      %v1592 = vsub.s32 0, %v1591
      %v1593 = vrot.slane %v935, %v1592
      %v1595 = vadd.f32 %v1588, %v1593
      %v1596 = vadd.f32 %v785, %v1595
      %v1597 = vld [vmem:[%s10] sm:$0x1]
      %v1598 = vld [vmem:[%s11] sm:$0x1]
      %v1599 = vsel %vm793, %v1596, 0.0
      %1600 = vadd.xlane.f32.xlu0 %v1599
      %v1601 = vpop.xlane.xlu0 %1600
      %v1602 = vmul.f32 %v1601, %v797
      %v1603 = vsub.f32 %v1596, %v1602
      %v1604 = vmul.f32 %v1603, %v1603
      %v1605 = vsel %vm793, %v1604, 0.0
      %1606 = vadd.xlane.f32.xlu0 %v1605
      %v1607 = vpop.xlane.xlu0 %1606
      %v1608 = vmul.f32 %v1607, %v797
      %v1609 = vadd.f32 %v1608, 1e-05
      %v1610 = vrsqrt.pop %v1609
      %v1611 = vmul.f32 %v1603, %v1610
      %v1613 = vlaneseq
      %v1614 = vshrl.u32 %v1613, 7
      %v1615 = vsub.s32 0, %v1614
      %v1616 = vrot.slane %v1597, %v1615
      %v1618 = vmul.f32 %v1611, %v1616
      %v1620 = vlaneseq
      %v1621 = vshrl.u32 %v1620, 7
      %v1622 = vsub.s32 0, %v1621
      %v1623 = vrot.slane %v1598, %v1622
      %v1625 = vadd.f32 %v1618, %v1623
      %v1626 = vld [vmem:[%s12] sm:$0xf]
      %v1627 = vld [vmem:[%s12 + $0x4] sm:$0xf]
      %v1628 = vld [vmem:[%s12 + $0x8] sm:$0xf]
      %v1629 = vld [vmem:[%s12 + $0xc] sm:$0xf]
      %v1630 = vld [vmem:[%s12 + $0x10] sm:$0xf]
      %v1631 = vld [vmem:[%s12 + $0x14] sm:$0xf]
      %v1632 = vld [vmem:[%s12 + $0x18] sm:$0xf]
      %v1633 = vld [vmem:[%s12 + $0x1c] sm:$0xf]
      %v1634 = vpack.c.bf16 %v1625, %v1625
      %v1635 = vld [vmem:[%s13] sm:$0x1]
      %v1637 = vlaneseq
      %v1638 = vshrl.u32 %v1637, 7
      %v1639 = vsub.s32 0, %v1638
      %v1640 = vrot.slane %v1635, %v1639
      %v1650 = vunpack.c.l.b16 %v1626
      %v1651 = vunpack.c.l.b16 %v1627
      %v1652 = vunpack.c.l.b16 %v1628
      %v1653 = vunpack.c.l.b16 %v1629
      %v1654 = vunpack.c.l.b16 %v1630
      %v1655 = vunpack.c.l.b16 %v1631
      %v1656 = vunpack.c.l.b16 %v1632
      %v1657 = vunpack.c.l.b16 %v1633
      %v1658 = vpack.c.b16 %v1651, %v1650
      %v1659 = vpack.c.b16 %v1653, %v1652
      %v1660 = vpack.c.b16 %v1655, %v1654
      %v1661 = vpack.c.b16 %v1657, %v1656
      %v1667 = vsel %vm793, %v1634, 0
      %1669 = vmatprep.subr.bf16.mxu0 0
      %1670 = vmatpush1.bf16.msra.mxu0 %v1658
      %1671 = vmatprep.subr.bf16.mxu0 0
      %1672 = vmatpush1.bf16.msra.mxu0 %v1659
      %1673 = vmatprep.subr.bf16.mxu0 0
      %1674 = vmatpush1.bf16.msra.mxu0 %v1660
      %1675 = vmatprep.subr.bf16.mxu0 0
      %1676 = vmatpush1.bf16.msra.mxu0 %v1661
      %1677 = vmatprep.subr.bf16.mxu0 0
      %1678 = vmatpush1.bf16.msra.mxu0 0
      %1679 = vmatprep.subr.bf16.mxu0 0
      %1680 = vmatpush1.bf16.msra.mxu0 0
      %1681 = vmatprep.subr.bf16.mxu0 0
      %1682 = vmatpush1.bf16.msra.mxu0 0
      %1683 = vmatprep.subr.bf16.mxu0 0
      %1684 = vmatpush1.bf16.msra.mxu0 0
      %1685 = vmatprep.subr.bf16.mxu0 0
      %1686 = vmatpush1.bf16.msra.mxu0 0
      %1687 = vmatprep.subr.bf16.mxu0 0
      %1688 = vmatpush1.bf16.msra.mxu0 0
      %1689 = vmatprep.subr.bf16.mxu0 0
      %1690 = vmatpush1.bf16.msra.mxu0 0
      %1691 = vmatprep.subr.bf16.mxu0 0
      %1692 = vmatpush1.bf16.msra.mxu0 0
      %1693 = vmatprep.subr.bf16.mxu0 0
      %1694 = vmatpush1.bf16.msra.mxu0 0
      %1695 = vmatprep.subr.bf16.mxu0 0
      %1696 = vmatpush1.bf16.msra.mxu0 0
      %1697 = vmatprep.subr.bf16.mxu0 0
      %1698 = vmatpush1.bf16.msra.mxu0 0
      %1699 = vmatprep.subr.bf16.mxu0 0
      %1700 = vmatpush1.bf16.msra.mxu0 0
      %1701 = vmatprep.mubr.bf16.mxu0 0
      %1702 = vmatmul.mubr.bf16.gmra.mrb[0].mxu0 %v1667
      %v1703 = vpop.f32.mrb[0].mxu0
      %v1704 = vadd.f32 %v1640, %v1703
      %v1705 = vpop.f32.mrb[0].mxu0
      %v1706 = vpop.f32.mrb[0].mxu0
      %v1707 = vpop.f32.mrb[0].mxu0
      %1708 = vdwg.mxu0
      %v1709 = vld [vmem:[%s14] sm:$0xf]
      %v1710 = vld [vmem:[%s14 + $0x4] sm:$0xf]
      %v1711 = vld [vmem:[%s14 + $0x8] sm:$0xf]
      %v1712 = vld [vmem:[%s14 + $0xc] sm:$0xf]
      %v1713 = vld [vmem:[%s14 + $0x10] sm:$0xf]
      %v1714 = vld [vmem:[%s14 + $0x14] sm:$0xf]
      %v1715 = vld [vmem:[%s14 + $0x18] sm:$0xf]
      %v1716 = vld [vmem:[%s14 + $0x1c] sm:$0xf]
      %v1717 = vpack.c.bf16 %v787, %v786
      %v1718 = vld [vmem:[%s15] sm:$0x1]
      %v1720 = vlaneseq
      %v1721 = vshrl.u32 %v1720, 7
      %v1722 = vsub.s32 0, %v1721
      %v1723 = vrot.slane %v1718, %v1722
      %v1733 = vunpack.c.l.b16 %v1709
      %v1734 = vunpack.c.l.b16 %v1710
      %v1735 = vunpack.c.l.b16 %v1711
      %v1736 = vunpack.c.l.b16 %v1712
      %v1737 = vunpack.c.l.b16 %v1713
      %v1738 = vunpack.c.l.b16 %v1714
      %v1739 = vunpack.c.l.b16 %v1715
      %v1740 = vunpack.c.l.b16 %v1716
      %v1741 = vpack.c.b16 %v1734, %v1733
      %v1742 = vpack.c.b16 %v1736, %v1735
      %v1743 = vpack.c.b16 %v1738, %v1737
      %v1744 = vpack.c.b16 %v1740, %v1739
      %v1750 = vsel %vm793, %v1717, 0
      %1752 = vmatprep.subr.bf16.mxu0 0
      %1753 = vmatpush1.bf16.msra.mxu0 %v1741
      %1754 = vmatprep.subr.bf16.mxu0 0
      %1755 = vmatpush1.bf16.msra.mxu0 %v1742
      %1756 = vmatprep.subr.bf16.mxu0 0
      %1757 = vmatpush1.bf16.msra.mxu0 %v1743
      %1758 = vmatprep.subr.bf16.mxu0 0
      %1759 = vmatpush1.bf16.msra.mxu0 %v1744
      %1760 = vmatprep.subr.bf16.mxu0 0
      %1761 = vmatpush1.bf16.msra.mxu0 0
      %1762 = vmatprep.subr.bf16.mxu0 0
      %1763 = vmatpush1.bf16.msra.mxu0 0
      %1764 = vmatprep.subr.bf16.mxu0 0
      %1765 = vmatpush1.bf16.msra.mxu0 0
      %1766 = vmatprep.subr.bf16.mxu0 0
      %1767 = vmatpush1.bf16.msra.mxu0 0
      %1768 = vmatprep.subr.bf16.mxu0 0
      %1769 = vmatpush1.bf16.msra.mxu0 0
      %1770 = vmatprep.subr.bf16.mxu0 0
      %1771 = vmatpush1.bf16.msra.mxu0 0
      %1772 = vmatprep.subr.bf16.mxu0 0
      %1773 = vmatpush1.bf16.msra.mxu0 0
      %1774 = vmatprep.subr.bf16.mxu0 0
      %1775 = vmatpush1.bf16.msra.mxu0 0
      %1776 = vmatprep.subr.bf16.mxu0 0
      %1777 = vmatpush1.bf16.msra.mxu0 0
      %1778 = vmatprep.subr.bf16.mxu0 0
      %1779 = vmatpush1.bf16.msra.mxu0 0
      %1780 = vmatprep.subr.bf16.mxu0 0
      %1781 = vmatpush1.bf16.msra.mxu0 0
      %1782 = vmatprep.subr.bf16.mxu0 0
      %1783 = vmatpush1.bf16.msra.mxu0 0
      %1784 = vmatprep.mubr.bf16.mxu0 0
      %1785 = vmatmul.mubr.bf16.gmra.mrb[0].mxu0 %v1750
      %v1786 = vpop.f32.mrb[0].mxu0
      %v1787 = vadd.f32 %v1723, %v1786
      %v1788 = vpop.f32.mrb[0].mxu0
      %v1789 = vpop.f32.mrb[0].mxu0
      %v1790 = vadd.f32 %v1723, %v1789
      %v1791 = vpop.f32.mrb[0].mxu0
      %1792 = vdwg.mxu0
      %v1793 = vld [vmem:[%s16] sm:$0xf]
      %v1794 = vld [vmem:[%s16 + $0x4] sm:$0xf]
      %v1795 = vld [vmem:[%s16 + $0x8] sm:$0xf]
      %v1796 = vld [vmem:[%s16 + $0xc] sm:$0xf]
      %v1797 = vld [vmem:[%s16 + $0x10] sm:$0xf]
      %v1798 = vld [vmem:[%s16 + $0x14] sm:$0xf]
      %v1799 = vld [vmem:[%s16 + $0x18] sm:$0xf]
      %v1800 = vld [vmem:[%s16 + $0x1c] sm:$0xf]
      %v1801 = vld [vmem:[%s17] sm:$0x1]
      %v1802 = vpack.c.bf16 %v1704, %v1704
      %v1803 = vpack.c.bf16 %v1790, %v1787
      %v1805 = vsel %vm941, %v1802, 0
      %v1808 = vsel %vm941, %v1803, 0
      %1810 = vmatprep.subr.bf16.mxu0 0
      %1811 = vmatpush1.bf16.xpose.msra.mxu0 %v1808
      %1812 = vmatprep.subr.bf16.mxu0 0
      %1813 = vmatpush1.bf16.xpose.msra.mxu0 0
      %1814 = vmatprep.subr.bf16.mxu0 0
      %1815 = vmatpush1.bf16.xpose.msra.mxu0 0
      %1816 = vmatprep.subr.bf16.mxu0 0
      %1817 = vmatpush1.bf16.xpose.msra.mxu0 0
      %1818 = vmatprep.subr.bf16.mxu0 0
      %1819 = vmatpush1.bf16.xpose.msra.mxu0 0
      %1820 = vmatprep.subr.bf16.mxu0 0
      %1821 = vmatpush1.bf16.xpose.msra.mxu0 0
      %1822 = vmatprep.subr.bf16.mxu0 0
      %1823 = vmatpush1.bf16.xpose.msra.mxu0 0
      %1824 = vmatprep.subr.bf16.mxu0 0
      %1825 = vmatpush1.bf16.xpose.msra.mxu0 0
      %1826 = vmatprep.subr.bf16.mxu0 0
      %1827 = vmatpush1.bf16.xpose.msra.mxu0 0
      %1828 = vmatprep.subr.bf16.mxu0 0
      %1829 = vmatpush1.bf16.xpose.msra.mxu0 0
      %1830 = vmatprep.subr.bf16.mxu0 0
      %1831 = vmatpush1.bf16.xpose.msra.mxu0 0
      %1832 = vmatprep.subr.bf16.mxu0 0
      %1833 = vmatpush1.bf16.xpose.msra.mxu0 0
      %1834 = vmatprep.subr.bf16.mxu0 0
      %1835 = vmatpush1.bf16.xpose.msra.mxu0 0
      %1836 = vmatprep.subr.bf16.mxu0 0
      %1837 = vmatpush1.bf16.xpose.msra.mxu0 0
      %1838 = vmatprep.subr.bf16.mxu0 0
      %1839 = vmatpush1.bf16.xpose.msra.mxu0 0
      %1840 = vmatprep.subr.bf16.mxu0 0
      %1841 = vmatpush1.bf16.xpose.msra.mxu0 0
      %1842 = vmatprep.mubr.bf16.mxu0 0
      %1843 = vmatmul.mubr.bf16.gmra.mrb[0].mxu0 %v1805
      %v1844 = vpop.f32.mrb[0].mxu0
      %v1845 = vadd.f32 0.0, %v1844
      %v1846 = vpop.f32.mrb[0].mxu0
      %v1847 = vpop.f32.mrb[0].mxu0
      %v1848 = vpop.f32.mrb[0].mxu0
      %1849 = vdwg.mxu0
      %v1850 = vmul.f32 %v1845, 0.25
      %v1852 = vlaneseq
      %v1853 = vshrl.u32 %v1852, 7
      %v1854 = vsub.s32 0, %v1853
      %v1855 = vrot.slane %v790, %v1854
      %v1857 = vadd.f32 %v1850, %v1855
      %vm1858 = vcmask 80896
      %v1859 = vsel %vm1858, %v1857, -inf
      %1860 = vmax.xlane.f32.xlu0 %v1859
      %v1861 = vpop.xlane.xlu0 %1860
      %v1862 = vsub.f32 %v1857, %v1861
      %v1863 = vmul.f32 %v1862, 1.442695
      %v1864 = vpow.pop %v1863
      %v1865 = vsel %vm1858, %v1864, 0.0
      %1866 = vadd.xlane.f32.xlu0 %v1865
      %v1867 = vpop.xlane.xlu0 %1866
      %v1868 = vrcp.pop %v1867
      %v1869 = vmul.f32 %v1864, %v1868
      %v1870 = vpack.c.bf16 %v1869, %v1869
      %1872 = vrot.lane.b32.xlu0 %v1803, 64
      %v1873 = vpop.permute.xlu0 %1872
      %v1875 = vsel %vm1858, %v1870, 0
      %vm1877 = vcmask 1044480
      %v1879 = vsel %vm1877, %v1873, 0
      %1881 = vmatprep.subr.bf16.mxu0 0
      %1882 = vmatpush1.bf16.msra.mxu0 %v1879
      %1883 = vmatprep.subr.bf16.mxu0 0
      %1884 = vmatpush1.bf16.msra.mxu0 0
      %1885 = vmatprep.subr.bf16.mxu0 0
      %1886 = vmatpush1.bf16.msra.mxu0 0
      %1887 = vmatprep.subr.bf16.mxu0 0
      %1888 = vmatpush1.bf16.msra.mxu0 0
      %1889 = vmatprep.subr.bf16.mxu0 0
      %1890 = vmatpush1.bf16.msra.mxu0 0
      %1891 = vmatprep.subr.bf16.mxu0 0
      %1892 = vmatpush1.bf16.msra.mxu0 0
      %1893 = vmatprep.subr.bf16.mxu0 0
      %1894 = vmatpush1.bf16.msra.mxu0 0
      %1895 = vmatprep.subr.bf16.mxu0 0
      %1896 = vmatpush1.bf16.msra.mxu0 0
      %1897 = vmatprep.subr.bf16.mxu0 0
      %1898 = vmatpush1.bf16.msra.mxu0 0
      %1899 = vmatprep.subr.bf16.mxu0 0
      %1900 = vmatpush1.bf16.msra.mxu0 0
      %1901 = vmatprep.subr.bf16.mxu0 0
      %1902 = vmatpush1.bf16.msra.mxu0 0
      %1903 = vmatprep.subr.bf16.mxu0 0
      %1904 = vmatpush1.bf16.msra.mxu0 0
      %1905 = vmatprep.subr.bf16.mxu0 0
      %1906 = vmatpush1.bf16.msra.mxu0 0
      %1907 = vmatprep.subr.bf16.mxu0 0
      %1908 = vmatpush1.bf16.msra.mxu0 0
      %1909 = vmatprep.subr.bf16.mxu0 0
      %1910 = vmatpush1.bf16.msra.mxu0 0
      %1911 = vmatprep.subr.bf16.mxu0 0
      %1912 = vmatpush1.bf16.msra.mxu0 0
      %1913 = vmatprep.mubr.bf16.mxu0 0
      %1914 = vmatmul.mubr.bf16.gmra.mrb[0].mxu0 %v1875
      %v1915 = vpop.f32.mrb[0].mxu0
      %v1916 = vadd.f32 0.0, %v1915
      %v1917 = vpop.f32.mrb[0].mxu0
      %v1918 = vpop.f32.mrb[0].mxu0
      %v1919 = vpop.f32.mrb[0].mxu0
      %1920 = vdwg.mxu0
      %v1921 = vpack.c.bf16 %v1916, %v1916
      %1923 = vrot.lane.b32.xlu0 %v1802, 112
      %v1924 = vpop.permute.xlu0 %1923
      %1925 = vrot.lane.b32.xlu0 %v1803, 112
      %v1926 = vpop.permute.xlu0 %1925
      %v1928 = vsel %vm941, %v1924, 0
      %v1931 = vsel %vm941, %v1926, 0
      %1933 = vmatprep.subr.bf16.mxu0 0
      %1934 = vmatpush1.bf16.xpose.msra.mxu0 %v1931
      %1935 = vmatprep.subr.bf16.mxu0 0
      %1936 = vmatpush1.bf16.xpose.msra.mxu0 0
      %1937 = vmatprep.subr.bf16.mxu0 0
      %1938 = vmatpush1.bf16.xpose.msra.mxu0 0
      %1939 = vmatprep.subr.bf16.mxu0 0
      %1940 = vmatpush1.bf16.xpose.msra.mxu0 0
      %1941 = vmatprep.subr.bf16.mxu0 0
      %1942 = vmatpush1.bf16.xpose.msra.mxu0 0
      %1943 = vmatprep.subr.bf16.mxu0 0
      %1944 = vmatpush1.bf16.xpose.msra.mxu0 0
      %1945 = vmatprep.subr.bf16.mxu0 0
      %1946 = vmatpush1.bf16.xpose.msra.mxu0 0
      %1947 = vmatprep.subr.bf16.mxu0 0
      %1948 = vmatpush1.bf16.xpose.msra.mxu0 0
      %1949 = vmatprep.subr.bf16.mxu0 0
      %1950 = vmatpush1.bf16.xpose.msra.mxu0 0
      %1951 = vmatprep.subr.bf16.mxu0 0
      %1952 = vmatpush1.bf16.xpose.msra.mxu0 0
      %1953 = vmatprep.subr.bf16.mxu0 0
      %1954 = vmatpush1.bf16.xpose.msra.mxu0 0
      %1955 = vmatprep.subr.bf16.mxu0 0
      %1956 = vmatpush1.bf16.xpose.msra.mxu0 0
      %1957 = vmatprep.subr.bf16.mxu0 0
      %1958 = vmatpush1.bf16.xpose.msra.mxu0 0
      %1959 = vmatprep.subr.bf16.mxu0 0
      %1960 = vmatpush1.bf16.xpose.msra.mxu0 0
      %1961 = vmatprep.subr.bf16.mxu0 0
      %1962 = vmatpush1.bf16.xpose.msra.mxu0 0
      %1963 = vmatprep.subr.bf16.mxu0 0
      %1964 = vmatpush1.bf16.xpose.msra.mxu0 0
      %1965 = vmatprep.mubr.bf16.mxu0 0
      %1966 = vmatmul.mubr.bf16.gmra.mrb[0].mxu0 %v1928
      %v1967 = vpop.f32.mrb[0].mxu0
      %v1968 = vadd.f32 0.0, %v1967
      %v1969 = vpop.f32.mrb[0].mxu0
      %v1970 = vpop.f32.mrb[0].mxu0
      %v1971 = vpop.f32.mrb[0].mxu0
      %1972 = vdwg.mxu0
      %v1973 = vmul.f32 %v1968, 0.25
      %v1974 = vadd.f32 %v1973, %v1855
      %v1975 = vsel %vm1858, %v1974, -inf
      %1976 = vmax.xlane.f32.xlu0 %v1975
      %v1977 = vpop.xlane.xlu0 %1976
      %v1978 = vsub.f32 %v1974, %v1977
      %v1979 = vmul.f32 %v1978, 1.442695
      %v1980 = vpow.pop %v1979
      %v1981 = vsel %vm1858, %v1980, 0.0
      %1982 = vadd.xlane.f32.xlu0 %v1981
      %v1983 = vpop.xlane.xlu0 %1982
      %v1984 = vrcp.pop %v1983
      %v1985 = vmul.f32 %v1980, %v1984
      %v1986 = vpack.c.bf16 %v1985, %v1985
      %1987 = vrot.lane.b32.xlu0 %v1803, 48
      %v1988 = vpop.permute.xlu0 %1987
      %v1990 = vsel %vm1858, %v1986, 0
      %v1993 = vsel %vm1877, %v1988, 0
      %1995 = vmatprep.subr.bf16.mxu0 0
      %1996 = vmatpush1.bf16.msra.mxu0 %v1993
      %1997 = vmatprep.subr.bf16.mxu0 0
      %1998 = vmatpush1.bf16.msra.mxu0 0
      %1999 = vmatprep.subr.bf16.mxu0 0
      %2000 = vmatpush1.bf16.msra.mxu0 0
      %2001 = vmatprep.subr.bf16.mxu0 0
      %2002 = vmatpush1.bf16.msra.mxu0 0
      %2003 = vmatprep.subr.bf16.mxu0 0
      %2004 = vmatpush1.bf16.msra.mxu0 0
      %2005 = vmatprep.subr.bf16.mxu0 0
      %2006 = vmatpush1.bf16.msra.mxu0 0
      %2007 = vmatprep.subr.bf16.mxu0 0
      %2008 = vmatpush1.bf16.msra.mxu0 0
      %2009 = vmatprep.subr.bf16.mxu0 0
      %2010 = vmatpush1.bf16.msra.mxu0 0
      %2011 = vmatprep.subr.bf16.mxu0 0
      %2012 = vmatpush1.bf16.msra.mxu0 0
      %2013 = vmatprep.subr.bf16.mxu0 0
      %2014 = vmatpush1.bf16.msra.mxu0 0
      %2015 = vmatprep.subr.bf16.mxu0 0
      %2016 = vmatpush1.bf16.msra.mxu0 0
      %2017 = vmatprep.subr.bf16.mxu0 0
      %2018 = vmatpush1.bf16.msra.mxu0 0
      %2019 = vmatprep.subr.bf16.mxu0 0
      %2020 = vmatpush1.bf16.msra.mxu0 0
      %2021 = vmatprep.subr.bf16.mxu0 0
      %2022 = vmatpush1.bf16.msra.mxu0 0
      %2023 = vmatprep.subr.bf16.mxu0 0
      %2024 = vmatpush1.bf16.msra.mxu0 0
      %2025 = vmatprep.subr.bf16.mxu0 0
      %2026 = vmatpush1.bf16.msra.mxu0 0
      %2027 = vmatprep.mubr.bf16.mxu0 0
      %2028 = vmatmul.mubr.bf16.gmra.mrb[0].mxu0 %v1990
      %v2029 = vpop.f32.mrb[0].mxu0
      %v2030 = vadd.f32 0.0, %v2029
      %v2031 = vpop.f32.mrb[0].mxu0
      %v2032 = vpop.f32.mrb[0].mxu0
      %v2033 = vpop.f32.mrb[0].mxu0
      %2034 = vdwg.mxu0
      %v2035 = vpack.c.bf16 %v2030, %v2030
      %v2038 = vunpack.c.l.b16 %v1795
      %v2039 = vunpack.c.l.b16 %v1796
      %v2040 = vpack.c.b16 %v2039, %v2038
      %v2043 = vsel %vm941, %v2035, 0
      %2045 = vmatprep.subr.bf16.mxu0 0
      %2046 = vmatpush1.bf16.msra.mxu0 %v2040
      %2047 = vmatprep.subr.bf16.mxu0 0
      %2048 = vmatpush1.bf16.msra.mxu0 0
      %2049 = vmatprep.subr.bf16.mxu0 0
      %2050 = vmatpush1.bf16.msra.mxu0 0
      %2051 = vmatprep.subr.bf16.mxu0 0
      %2052 = vmatpush1.bf16.msra.mxu0 0
      %2053 = vmatprep.subr.bf16.mxu0 0
      %2054 = vmatpush1.bf16.msra.mxu0 0
      %2055 = vmatprep.subr.bf16.mxu0 0
      %2056 = vmatpush1.bf16.msra.mxu0 0
      %2057 = vmatprep.subr.bf16.mxu0 0
      %2058 = vmatpush1.bf16.msra.mxu0 0
      %2059 = vmatprep.subr.bf16.mxu0 0
      %2060 = vmatpush1.bf16.msra.mxu0 0
      %2061 = vmatprep.subr.bf16.mxu0 0
      %2062 = vmatpush1.bf16.msra.mxu0 0
      %2063 = vmatprep.subr.bf16.mxu0 0
      %2064 = vmatpush1.bf16.msra.mxu0 0
      %2065 = vmatprep.subr.bf16.mxu0 0
      %2066 = vmatpush1.bf16.msra.mxu0 0
      %2067 = vmatprep.subr.bf16.mxu0 0
      %2068 = vmatpush1.bf16.msra.mxu0 0
      %2069 = vmatprep.subr.bf16.mxu0 0
      %2070 = vmatpush1.bf16.msra.mxu0 0
      %2071 = vmatprep.subr.bf16.mxu0 0
      %2072 = vmatpush1.bf16.msra.mxu0 0
      %2073 = vmatprep.subr.bf16.mxu0 0
      %2074 = vmatpush1.bf16.msra.mxu0 0
      %2075 = vmatprep.subr.bf16.mxu0 0
      %2076 = vmatpush1.bf16.msra.mxu0 0
      %2077 = vmatprep.mubr.bf16.mxu0 0
      %2078 = vmatmul.mubr.bf16.gmra.mrb[0].mxu0 %v2043
      %v2079 = vpop.f32.mrb[0].mxu0
      %v2080 = vadd.f32 0.0, %v2079
      %v2081 = vpop.f32.mrb[0].mxu0
      %v2082 = vpop.f32.mrb[0].mxu0
      %v2083 = vpop.f32.mrb[0].mxu0
      %2084 = vdwg.mxu0
      %v2087 = vunpack.c.l.b16 %v1793
      %v2088 = vunpack.c.l.b16 %v1794
      %v2089 = vpack.c.b16 %v2088, %v2087
      %v2092 = vsel %vm941, %v1921, 0
      %2094 = vmatprep.subr.bf16.mxu0 0
      %2095 = vmatpush1.bf16.msra.mxu0 %v2089
      %2096 = vmatprep.subr.bf16.mxu0 0
      %2097 = vmatpush1.bf16.msra.mxu0 0
      %2098 = vmatprep.subr.bf16.mxu0 0
      %2099 = vmatpush1.bf16.msra.mxu0 0
      %2100 = vmatprep.subr.bf16.mxu0 0
      %2101 = vmatpush1.bf16.msra.mxu0 0
      %2102 = vmatprep.subr.bf16.mxu0 0
      %2103 = vmatpush1.bf16.msra.mxu0 0
      %2104 = vmatprep.subr.bf16.mxu0 0
      %2105 = vmatpush1.bf16.msra.mxu0 0
      %2106 = vmatprep.subr.bf16.mxu0 0
      %2107 = vmatpush1.bf16.msra.mxu0 0
      %2108 = vmatprep.subr.bf16.mxu0 0
      %2109 = vmatpush1.bf16.msra.mxu0 0
      %2110 = vmatprep.subr.bf16.mxu0 0
      %2111 = vmatpush1.bf16.msra.mxu0 0
      %2112 = vmatprep.subr.bf16.mxu0 0
      %2113 = vmatpush1.bf16.msra.mxu0 0
      %2114 = vmatprep.subr.bf16.mxu0 0
      %2115 = vmatpush1.bf16.msra.mxu0 0
      %2116 = vmatprep.subr.bf16.mxu0 0
      %2117 = vmatpush1.bf16.msra.mxu0 0
      %2118 = vmatprep.subr.bf16.mxu0 0
      %2119 = vmatpush1.bf16.msra.mxu0 0
      %2120 = vmatprep.subr.bf16.mxu0 0
      %2121 = vmatpush1.bf16.msra.mxu0 0
      %2122 = vmatprep.subr.bf16.mxu0 0
      %2123 = vmatpush1.bf16.msra.mxu0 0
      %2124 = vmatprep.subr.bf16.mxu0 0
      %2125 = vmatpush1.bf16.msra.mxu0 0
      %2126 = vmatprep.mubr.bf16.mxu0 0
      %2127 = vmatmul.mubr.bf16.gmra.mrb[0].mxu0 %v2092
      %v2128 = vpop.f32.mrb[0].mxu0
      %v2129 = vadd.f32 %v2080, %v2128
      %v2130 = vpop.f32.mrb[0].mxu0
      %v2131 = vpop.f32.mrb[0].mxu0
      %v2132 = vpop.f32.mrb[0].mxu0
      %2133 = vdwg.mxu0
      %2134 = vrot.lane.b32.xlu0 %v1802, 96
      %v2135 = vpop.permute.xlu0 %2134
      %2136 = vrot.lane.b32.xlu0 %v1803, 96
      %v2137 = vpop.permute.xlu0 %2136
      %v2139 = vsel %vm941, %v2135, 0
      %v2142 = vsel %vm941, %v2137, 0
      %2144 = vmatprep.subr.bf16.mxu0 0
      %2145 = vmatpush1.bf16.xpose.msra.mxu0 %v2142
      %2146 = vmatprep.subr.bf16.mxu0 0
      %2147 = vmatpush1.bf16.xpose.msra.mxu0 0
      %2148 = vmatprep.subr.bf16.mxu0 0
      %2149 = vmatpush1.bf16.xpose.msra.mxu0 0
      %2150 = vmatprep.subr.bf16.mxu0 0
      %2151 = vmatpush1.bf16.xpose.msra.mxu0 0
      %2152 = vmatprep.subr.bf16.mxu0 0
      %2153 = vmatpush1.bf16.xpose.msra.mxu0 0
      %2154 = vmatprep.subr.bf16.mxu0 0
      %2155 = vmatpush1.bf16.xpose.msra.mxu0 0
      %2156 = vmatprep.subr.bf16.mxu0 0
      %2157 = vmatpush1.bf16.xpose.msra.mxu0 0
      %2158 = vmatprep.subr.bf16.mxu0 0
      %2159 = vmatpush1.bf16.xpose.msra.mxu0 0
      %2160 = vmatprep.subr.bf16.mxu0 0
      %2161 = vmatpush1.bf16.xpose.msra.mxu0 0
      %2162 = vmatprep.subr.bf16.mxu0 0
      %2163 = vmatpush1.bf16.xpose.msra.mxu0 0
      %2164 = vmatprep.subr.bf16.mxu0 0
      %2165 = vmatpush1.bf16.xpose.msra.mxu0 0
      %2166 = vmatprep.subr.bf16.mxu0 0
      %2167 = vmatpush1.bf16.xpose.msra.mxu0 0
      %2168 = vmatprep.subr.bf16.mxu0 0
      %2169 = vmatpush1.bf16.xpose.msra.mxu0 0
      %2170 = vmatprep.subr.bf16.mxu0 0
      %2171 = vmatpush1.bf16.xpose.msra.mxu0 0
      %2172 = vmatprep.subr.bf16.mxu0 0
      %2173 = vmatpush1.bf16.xpose.msra.mxu0 0
      %2174 = vmatprep.subr.bf16.mxu0 0
      %2175 = vmatpush1.bf16.xpose.msra.mxu0 0
      %2176 = vmatprep.mubr.bf16.mxu0 0
      %2177 = vmatmul.mubr.bf16.gmra.mrb[0].mxu0 %v2139
      %v2178 = vpop.f32.mrb[0].mxu0
      %v2179 = vadd.f32 0.0, %v2178
      %v2180 = vpop.f32.mrb[0].mxu0
      %v2181 = vpop.f32.mrb[0].mxu0
      %v2182 = vpop.f32.mrb[0].mxu0
      %2183 = vdwg.mxu0
      %v2184 = vmul.f32 %v2179, 0.25
      %v2185 = vadd.f32 %v2184, %v1855
      %v2186 = vsel %vm1858, %v2185, -inf
      %2187 = vmax.xlane.f32.xlu0 %v2186
      %v2188 = vpop.xlane.xlu0 %2187
      %v2189 = vsub.f32 %v2185, %v2188
      %v2190 = vmul.f32 %v2189, 1.442695
      %v2191 = vpow.pop %v2190
      %v2192 = vsel %vm1858, %v2191, 0.0
      %2193 = vadd.xlane.f32.xlu0 %v2192
      %v2194 = vpop.xlane.xlu0 %2193
      %v2195 = vrcp.pop %v2194
      %v2196 = vmul.f32 %v2191, %v2195
      %v2197 = vpack.c.bf16 %v2196, %v2196
      %2198 = vrot.lane.b32.xlu0 %v1803, 32
      %v2199 = vpop.permute.xlu0 %2198
      %v2201 = vsel %vm1858, %v2197, 0
      %v2204 = vsel %vm1877, %v2199, 0
      %2206 = vmatprep.subr.bf16.mxu0 0
      %2207 = vmatpush1.bf16.msra.mxu0 %v2204
      %2208 = vmatprep.subr.bf16.mxu0 0
      %2209 = vmatpush1.bf16.msra.mxu0 0
      %2210 = vmatprep.subr.bf16.mxu0 0
      %2211 = vmatpush1.bf16.msra.mxu0 0
      %2212 = vmatprep.subr.bf16.mxu0 0
      %2213 = vmatpush1.bf16.msra.mxu0 0
      %2214 = vmatprep.subr.bf16.mxu0 0
      %2215 = vmatpush1.bf16.msra.mxu0 0
      %2216 = vmatprep.subr.bf16.mxu0 0
      %2217 = vmatpush1.bf16.msra.mxu0 0
      %2218 = vmatprep.subr.bf16.mxu0 0
      %2219 = vmatpush1.bf16.msra.mxu0 0
      %2220 = vmatprep.subr.bf16.mxu0 0
      %2221 = vmatpush1.bf16.msra.mxu0 0
      %2222 = vmatprep.subr.bf16.mxu0 0
      %2223 = vmatpush1.bf16.msra.mxu0 0
      %2224 = vmatprep.subr.bf16.mxu0 0
      %2225 = vmatpush1.bf16.msra.mxu0 0
      %2226 = vmatprep.subr.bf16.mxu0 0
      %2227 = vmatpush1.bf16.msra.mxu0 0
      %2228 = vmatprep.subr.bf16.mxu0 0
      %2229 = vmatpush1.bf16.msra.mxu0 0
      %2230 = vmatprep.subr.bf16.mxu0 0
      %2231 = vmatpush1.bf16.msra.mxu0 0
      %2232 = vmatprep.subr.bf16.mxu0 0
      %2233 = vmatpush1.bf16.msra.mxu0 0
      %2234 = vmatprep.subr.bf16.mxu0 0
      %2235 = vmatpush1.bf16.msra.mxu0 0
      %2236 = vmatprep.subr.bf16.mxu0 0
      %2237 = vmatpush1.bf16.msra.mxu0 0
      %2238 = vmatprep.mubr.bf16.mxu0 0
      %2239 = vmatmul.mubr.bf16.gmra.mrb[0].mxu0 %v2201
      %v2240 = vpop.f32.mrb[0].mxu0
      %v2241 = vadd.f32 0.0, %v2240
      %v2242 = vpop.f32.mrb[0].mxu0
      %v2243 = vpop.f32.mrb[0].mxu0
      %v2244 = vpop.f32.mrb[0].mxu0
      %2245 = vdwg.mxu0
      %v2246 = vpack.c.bf16 %v2241, %v2241
      %v2249 = vunpack.c.l.b16 %v1797
      %v2250 = vunpack.c.l.b16 %v1798
      %v2251 = vpack.c.b16 %v2250, %v2249
      %v2254 = vsel %vm941, %v2246, 0
      %2256 = vmatprep.subr.bf16.mxu0 0
      %2257 = vmatpush1.bf16.msra.mxu0 %v2251
      %2258 = vmatprep.subr.bf16.mxu0 0
      %2259 = vmatpush1.bf16.msra.mxu0 0
      %2260 = vmatprep.subr.bf16.mxu0 0
      %2261 = vmatpush1.bf16.msra.mxu0 0
      %2262 = vmatprep.subr.bf16.mxu0 0
      %2263 = vmatpush1.bf16.msra.mxu0 0
      %2264 = vmatprep.subr.bf16.mxu0 0
      %2265 = vmatpush1.bf16.msra.mxu0 0
      %2266 = vmatprep.subr.bf16.mxu0 0
      %2267 = vmatpush1.bf16.msra.mxu0 0
      %2268 = vmatprep.subr.bf16.mxu0 0
      %2269 = vmatpush1.bf16.msra.mxu0 0
      %2270 = vmatprep.subr.bf16.mxu0 0
      %2271 = vmatpush1.bf16.msra.mxu0 0
      %2272 = vmatprep.subr.bf16.mxu0 0
      %2273 = vmatpush1.bf16.msra.mxu0 0
      %2274 = vmatprep.subr.bf16.mxu0 0
      %2275 = vmatpush1.bf16.msra.mxu0 0
      %2276 = vmatprep.subr.bf16.mxu0 0
      %2277 = vmatpush1.bf16.msra.mxu0 0
      %2278 = vmatprep.subr.bf16.mxu0 0
      %2279 = vmatpush1.bf16.msra.mxu0 0
      %2280 = vmatprep.subr.bf16.mxu0 0
      %2281 = vmatpush1.bf16.msra.mxu0 0
      %2282 = vmatprep.subr.bf16.mxu0 0
      %2283 = vmatpush1.bf16.msra.mxu0 0
      %2284 = vmatprep.subr.bf16.mxu0 0
      %2285 = vmatpush1.bf16.msra.mxu0 0
      %2286 = vmatprep.subr.bf16.mxu0 0
      %2287 = vmatpush1.bf16.msra.mxu0 0
      %2288 = vmatprep.mubr.bf16.mxu0 0
      %2289 = vmatmul.mubr.bf16.gmra.mrb[0].mxu0 %v2254
      %v2290 = vpop.f32.mrb[0].mxu0
      %v2291 = vadd.f32 0.0, %v2290
      %v2292 = vpop.f32.mrb[0].mxu0
      %v2293 = vpop.f32.mrb[0].mxu0
      %v2294 = vpop.f32.mrb[0].mxu0
      %2295 = vdwg.mxu0
      %v2296 = vadd.f32 %v2129, %v2291
      %2297 = vrot.lane.b32.xlu0 %v1802, 80
      %v2298 = vpop.permute.xlu0 %2297
      %2299 = vrot.lane.b32.xlu0 %v1803, 80
      %v2300 = vpop.permute.xlu0 %2299
      %v2302 = vsel %vm941, %v2298, 0
      %v2305 = vsel %vm941, %v2300, 0
      %2307 = vmatprep.subr.bf16.mxu0 0
      %2308 = vmatpush1.bf16.xpose.msra.mxu0 %v2305
      %2309 = vmatprep.subr.bf16.mxu0 0
      %2310 = vmatpush1.bf16.xpose.msra.mxu0 0
      %2311 = vmatprep.subr.bf16.mxu0 0
      %2312 = vmatpush1.bf16.xpose.msra.mxu0 0
      %2313 = vmatprep.subr.bf16.mxu0 0
      %2314 = vmatpush1.bf16.xpose.msra.mxu0 0
      %2315 = vmatprep.subr.bf16.mxu0 0
      %2316 = vmatpush1.bf16.xpose.msra.mxu0 0
      %2317 = vmatprep.subr.bf16.mxu0 0
      %2318 = vmatpush1.bf16.xpose.msra.mxu0 0
      %2319 = vmatprep.subr.bf16.mxu0 0
      %2320 = vmatpush1.bf16.xpose.msra.mxu0 0
      %2321 = vmatprep.subr.bf16.mxu0 0
      %2322 = vmatpush1.bf16.xpose.msra.mxu0 0
      %2323 = vmatprep.subr.bf16.mxu0 0
      %2324 = vmatpush1.bf16.xpose.msra.mxu0 0
      %2325 = vmatprep.subr.bf16.mxu0 0
      %2326 = vmatpush1.bf16.xpose.msra.mxu0 0
      %2327 = vmatprep.subr.bf16.mxu0 0
      %2328 = vmatpush1.bf16.xpose.msra.mxu0 0
      %2329 = vmatprep.subr.bf16.mxu0 0
      %2330 = vmatpush1.bf16.xpose.msra.mxu0 0
      %2331 = vmatprep.subr.bf16.mxu0 0
      %2332 = vmatpush1.bf16.xpose.msra.mxu0 0
      %2333 = vmatprep.subr.bf16.mxu0 0
      %2334 = vmatpush1.bf16.xpose.msra.mxu0 0
      %2335 = vmatprep.subr.bf16.mxu0 0
      %2336 = vmatpush1.bf16.xpose.msra.mxu0 0
      %2337 = vmatprep.subr.bf16.mxu0 0
      %2338 = vmatpush1.bf16.xpose.msra.mxu0 0
      %2339 = vmatprep.mubr.bf16.mxu0 0
      %2340 = vmatmul.mubr.bf16.gmra.mrb[0].mxu0 %v2302
      %v2341 = vpop.f32.mrb[0].mxu0
      %v2342 = vadd.f32 0.0, %v2341
      %v2343 = vpop.f32.mrb[0].mxu0
      %v2344 = vpop.f32.mrb[0].mxu0
      %v2345 = vpop.f32.mrb[0].mxu0
      %2346 = vdwg.mxu0
      %v2347 = vmul.f32 %v2342, 0.25
      %v2348 = vadd.f32 %v2347, %v1855
      %v2349 = vsel %vm1858, %v2348, -inf
      %2350 = vmax.xlane.f32.xlu0 %v2349
      %v2351 = vpop.xlane.xlu0 %2350
      %v2352 = vsub.f32 %v2348, %v2351
      %v2353 = vmul.f32 %v2352, 1.442695
      %v2354 = vpow.pop %v2353
      %v2355 = vsel %vm1858, %v2354, 0.0
      %2356 = vadd.xlane.f32.xlu0 %v2355
      %v2357 = vpop.xlane.xlu0 %2356
      %v2358 = vrcp.pop %v2357
      %v2359 = vmul.f32 %v2354, %v2358
      %v2360 = vpack.c.bf16 %v2359, %v2359
      %2361 = vrot.lane.b32.xlu0 %v1803, 16
      %v2362 = vpop.permute.xlu0 %2361
      %v2364 = vsel %vm1858, %v2360, 0
      %v2367 = vsel %vm1877, %v2362, 0
      %2369 = vmatprep.subr.bf16.mxu0 0
      %2370 = vmatpush1.bf16.msra.mxu0 %v2367
      %2371 = vmatprep.subr.bf16.mxu0 0
      %2372 = vmatpush1.bf16.msra.mxu0 0
      %2373 = vmatprep.subr.bf16.mxu0 0
      %2374 = vmatpush1.bf16.msra.mxu0 0
      %2375 = vmatprep.subr.bf16.mxu0 0
      %2376 = vmatpush1.bf16.msra.mxu0 0
      %2377 = vmatprep.subr.bf16.mxu0 0
      %2378 = vmatpush1.bf16.msra.mxu0 0
      %2379 = vmatprep.subr.bf16.mxu0 0
      %2380 = vmatpush1.bf16.msra.mxu0 0
      %2381 = vmatprep.subr.bf16.mxu0 0
      %2382 = vmatpush1.bf16.msra.mxu0 0
      %2383 = vmatprep.subr.bf16.mxu0 0
      %2384 = vmatpush1.bf16.msra.mxu0 0
      %2385 = vmatprep.subr.bf16.mxu0 0
      %2386 = vmatpush1.bf16.msra.mxu0 0
      %2387 = vmatprep.subr.bf16.mxu0 0
      %2388 = vmatpush1.bf16.msra.mxu0 0
      %2389 = vmatprep.subr.bf16.mxu0 0
      %2390 = vmatpush1.bf16.msra.mxu0 0
      %2391 = vmatprep.subr.bf16.mxu0 0
      %2392 = vmatpush1.bf16.msra.mxu0 0
      %2393 = vmatprep.subr.bf16.mxu0 0
      %2394 = vmatpush1.bf16.msra.mxu0 0
      %2395 = vmatprep.subr.bf16.mxu0 0
      %2396 = vmatpush1.bf16.msra.mxu0 0
      %2397 = vmatprep.subr.bf16.mxu0 0
      %2398 = vmatpush1.bf16.msra.mxu0 0
      %2399 = vmatprep.subr.bf16.mxu0 0
      %2400 = vmatpush1.bf16.msra.mxu0 0
      %2401 = vmatprep.mubr.bf16.mxu0 0
      %2402 = vmatmul.mubr.bf16.gmra.mrb[0].mxu0 %v2364
      %v2403 = vpop.f32.mrb[0].mxu0
      %v2404 = vadd.f32 0.0, %v2403
      %v2405 = vpop.f32.mrb[0].mxu0
      %v2406 = vpop.f32.mrb[0].mxu0
      %v2407 = vpop.f32.mrb[0].mxu0
      %2408 = vdwg.mxu0
      %v2409 = vpack.c.bf16 %v2404, %v2404
      %v2412 = vunpack.c.l.b16 %v1799
      %v2413 = vunpack.c.l.b16 %v1800
      %v2414 = vpack.c.b16 %v2413, %v2412
      %v2417 = vsel %vm941, %v2409, 0
      %2419 = vmatprep.subr.bf16.mxu0 0
      %2420 = vmatpush1.bf16.msra.mxu0 %v2414
      %2421 = vmatprep.subr.bf16.mxu0 0
      %2422 = vmatpush1.bf16.msra.mxu0 0
      %2423 = vmatprep.subr.bf16.mxu0 0
      %2424 = vmatpush1.bf16.msra.mxu0 0
      %2425 = vmatprep.subr.bf16.mxu0 0
      %2426 = vmatpush1.bf16.msra.mxu0 0
      %2427 = vmatprep.subr.bf16.mxu0 0
      %2428 = vmatpush1.bf16.msra.mxu0 0
      %2429 = vmatprep.subr.bf16.mxu0 0
      %2430 = vmatpush1.bf16.msra.mxu0 0
      %2431 = vmatprep.subr.bf16.mxu0 0
      %2432 = vmatpush1.bf16.msra.mxu0 0
      %2433 = vmatprep.subr.bf16.mxu0 0
      %2434 = vmatpush1.bf16.msra.mxu0 0
      %2435 = vmatprep.subr.bf16.mxu0 0
      %2436 = vmatpush1.bf16.msra.mxu0 0
      %2437 = vmatprep.subr.bf16.mxu0 0
      %2438 = vmatpush1.bf16.msra.mxu0 0
      %2439 = vmatprep.subr.bf16.mxu0 0
      %2440 = vmatpush1.bf16.msra.mxu0 0
      %2441 = vmatprep.subr.bf16.mxu0 0
      %2442 = vmatpush1.bf16.msra.mxu0 0
      %2443 = vmatprep.subr.bf16.mxu0 0
      %2444 = vmatpush1.bf16.msra.mxu0 0
      %2445 = vmatprep.subr.bf16.mxu0 0
      %2446 = vmatpush1.bf16.msra.mxu0 0
      %2447 = vmatprep.subr.bf16.mxu0 0
      %2448 = vmatpush1.bf16.msra.mxu0 0
      %2449 = vmatprep.subr.bf16.mxu0 0
      %2450 = vmatpush1.bf16.msra.mxu0 0
      %2451 = vmatprep.mubr.bf16.mxu0 0
      %2452 = vmatmul.mubr.bf16.gmra.mrb[0].mxu0 %v2417
      %v2453 = vpop.f32.mrb[0].mxu0
      %v2454 = vadd.f32 0.0, %v2453
      %v2455 = vpop.f32.mrb[0].mxu0
      %v2456 = vpop.f32.mrb[0].mxu0
      %v2457 = vpop.f32.mrb[0].mxu0
      %2458 = vdwg.mxu0
      %v2459 = vadd.f32 %v2296, %v2454
      %v2461 = vlaneseq
      %v2462 = vshrl.u32 %v2461, 7
      %v2463 = vsub.s32 0, %v2462
      %v2464 = vrot.slane %v1801, %v2463
      %v2466 = vadd.f32 %v2459, %v2464
      %v2467 = vadd.f32 %v1596, %v2466
      %v2468 = vld [vmem:[%s18] sm:$0x1]
      %v2469 = vld [vmem:[%s19] sm:$0x1]
      %v2470 = vsel %vm793, %v2467, 0.0
      %2471 = vadd.xlane.f32.xlu0 %v2470
      %v2472 = vpop.xlane.xlu0 %2471
      %v2473 = vmul.f32 %v2472, %v797
      %v2474 = vsub.f32 %v2467, %v2473
      %v2475 = vmul.f32 %v2474, %v2474
      %v2476 = vsel %vm793, %v2475, 0.0
      %2477 = vadd.xlane.f32.xlu0 %v2476
      %v2478 = vpop.xlane.xlu0 %2477
      %v2479 = vmul.f32 %v2478, %v797
      %v2480 = vadd.f32 %v2479, 1e-05
      %v2481 = vrsqrt.pop %v2480
      %v2482 = vmul.f32 %v2474, %v2481
      %v2484 = vlaneseq
      %v2485 = vshrl.u32 %v2484, 7
      %v2486 = vsub.s32 0, %v2485
      %v2487 = vrot.slane %v2468, %v2486
      %v2489 = vmul.f32 %v2482, %v2487
      %v2491 = vlaneseq
      %v2492 = vshrl.u32 %v2491, 7
      %v2493 = vsub.s32 0, %v2492
      %v2494 = vrot.slane %v2469, %v2493
      %v2496 = vadd.f32 %v2489, %v2494
      %v2497 = vld [vmem:[%s20] sm:$0xf]
      %v2498 = vld [vmem:[%s20 + $0x4] sm:$0xf]
      %v2499 = vld [vmem:[%s20 + $0x8] sm:$0xf]
      %v2500 = vld [vmem:[%s20 + $0xc] sm:$0xf]
      %v2501 = vld [vmem:[%s20 + $0x10] sm:$0xf]
      %v2502 = vld [vmem:[%s20 + $0x14] sm:$0xf]
      %v2503 = vld [vmem:[%s20 + $0x18] sm:$0xf]
      %v2504 = vld [vmem:[%s20 + $0x1c] sm:$0xf]
      %v2505 = vpack.c.bf16 %v2496, %v2496
      %v2506 = vld [vmem:[%s21] sm:$0x1]
      %v2508 = vlaneseq
      %v2509 = vshrl.u32 %v2508, 7
      %v2510 = vsub.s32 0, %v2509
      %v2511 = vrot.slane %v2506, %v2510
      %v2521 = vunpack.c.l.b16 %v2497
      %v2522 = vunpack.c.l.b16 %v2498
      %v2523 = vunpack.c.l.b16 %v2499
      %v2524 = vunpack.c.l.b16 %v2500
      %v2525 = vunpack.c.l.b16 %v2501
      %v2526 = vunpack.c.l.b16 %v2502
      %v2527 = vunpack.c.l.b16 %v2503
      %v2528 = vunpack.c.l.b16 %v2504
      %v2529 = vpack.c.b16 %v2522, %v2521
      %v2530 = vpack.c.b16 %v2524, %v2523
      %v2531 = vpack.c.b16 %v2526, %v2525
      %v2532 = vpack.c.b16 %v2528, %v2527
      %v2538 = vsel %vm793, %v2505, 0
      %2540 = vmatprep.subr.bf16.mxu0 0
      %2541 = vmatpush1.bf16.msra.mxu0 %v2529
      %2542 = vmatprep.subr.bf16.mxu0 0
      %2543 = vmatpush1.bf16.msra.mxu0 %v2530
      %2544 = vmatprep.subr.bf16.mxu0 0
      %2545 = vmatpush1.bf16.msra.mxu0 %v2531
      %2546 = vmatprep.subr.bf16.mxu0 0
      %2547 = vmatpush1.bf16.msra.mxu0 %v2532
      %2548 = vmatprep.subr.bf16.mxu0 0
      %2549 = vmatpush1.bf16.msra.mxu0 0
      %2550 = vmatprep.subr.bf16.mxu0 0
      %2551 = vmatpush1.bf16.msra.mxu0 0
      %2552 = vmatprep.subr.bf16.mxu0 0
      %2553 = vmatpush1.bf16.msra.mxu0 0
      %2554 = vmatprep.subr.bf16.mxu0 0
      %2555 = vmatpush1.bf16.msra.mxu0 0
      %2556 = vmatprep.subr.bf16.mxu0 0
      %2557 = vmatpush1.bf16.msra.mxu0 0
      %2558 = vmatprep.subr.bf16.mxu0 0
      %2559 = vmatpush1.bf16.msra.mxu0 0
      %2560 = vmatprep.subr.bf16.mxu0 0
      %2561 = vmatpush1.bf16.msra.mxu0 0
      %2562 = vmatprep.subr.bf16.mxu0 0
      %2563 = vmatpush1.bf16.msra.mxu0 0
      %2564 = vmatprep.subr.bf16.mxu0 0
      %2565 = vmatpush1.bf16.msra.mxu0 0
      %2566 = vmatprep.subr.bf16.mxu0 0
      %2567 = vmatpush1.bf16.msra.mxu0 0
      %2568 = vmatprep.subr.bf16.mxu0 0
      %2569 = vmatpush1.bf16.msra.mxu0 0
      %2570 = vmatprep.subr.bf16.mxu0 0
      %2571 = vmatpush1.bf16.msra.mxu0 0
      %2572 = vmatprep.mubr.bf16.mxu0 0
      %2573 = vmatmul.mubr.bf16.gmra.mrb[0].mxu0 %v2538
      %v2574 = vpop.f32.mrb[0].mxu0
      %v2575 = vadd.f32 %v2511, %v2574
      %v2576 = vpop.f32.mrb[0].mxu0
      %v2577 = vpop.f32.mrb[0].mxu0
      %v2578 = vpop.f32.mrb[0].mxu0
      %2579 = vdwg.mxu0
      %v2580 = vmax.f32 %v2575, 0.0
      %v2581 = vld [vmem:[%s22] sm:$0xf]
      %v2582 = vld [vmem:[%s22 + $0x4] sm:$0xf]
      %v2583 = vld [vmem:[%s22 + $0x8] sm:$0xf]
      %v2584 = vld [vmem:[%s22 + $0xc] sm:$0xf]
      %v2585 = vld [vmem:[%s22 + $0x10] sm:$0xf]
      %v2586 = vld [vmem:[%s22 + $0x14] sm:$0xf]
      %v2587 = vld [vmem:[%s22 + $0x18] sm:$0xf]
      %v2588 = vld [vmem:[%s22 + $0x1c] sm:$0xf]
      %v2589 = vld [vmem:[%s22 + $0x20] sm:$0xf]
      %v2590 = vld [vmem:[%s22 + $0x24] sm:$0xf]
      %v2591 = vld [vmem:[%s22 + $0x28] sm:$0xf]
      %v2592 = vld [vmem:[%s22 + $0x2c] sm:$0xf]
      %v2593 = vld [vmem:[%s22 + $0x30] sm:$0xf]
      %v2594 = vld [vmem:[%s22 + $0x34] sm:$0xf]
      %v2595 = vld [vmem:[%s22 + $0x38] sm:$0xf]
      %v2596 = vld [vmem:[%s22 + $0x3c] sm:$0xf]
      %v2597 = vpack.c.bf16 %v2580, %v2580
      %v2598 = vld [vmem:[%s23] sm:$0x1]
      %v2600 = vlaneseq
      %v2601 = vshrl.u32 %v2600, 7
      %v2602 = vsub.s32 0, %v2601
      %v2603 = vrot.slane %v2598, %v2602
      %v2621 = vunpack.c.l.b16 %v2581
      %v2622 = vunpack.c.l.b16 %v2582
      %v2623 = vunpack.c.l.b16 %v2583
      %v2624 = vunpack.c.l.b16 %v2584
      %v2625 = vunpack.c.l.b16 %v2585
      %v2626 = vunpack.c.l.b16 %v2586
      %v2627 = vunpack.c.l.b16 %v2587
      %v2628 = vunpack.c.l.b16 %v2588
      %v2629 = vunpack.c.l.b16 %v2589
      %v2630 = vunpack.c.l.b16 %v2590
      %v2631 = vunpack.c.l.b16 %v2591
      %v2632 = vunpack.c.l.b16 %v2592
      %v2633 = vunpack.c.l.b16 %v2593
      %v2634 = vunpack.c.l.b16 %v2594
      %v2635 = vunpack.c.l.b16 %v2595
      %v2636 = vunpack.c.l.b16 %v2596
      %v2637 = vpack.c.b16 %v2622, %v2621
      %v2638 = vpack.c.b16 %v2624, %v2623
      %v2639 = vpack.c.b16 %v2626, %v2625
      %v2640 = vpack.c.b16 %v2628, %v2627
      %v2641 = vpack.c.b16 %v2630, %v2629
      %v2642 = vpack.c.b16 %v2632, %v2631
      %v2643 = vpack.c.b16 %v2634, %v2633
      %v2644 = vpack.c.b16 %v2636, %v2635
      %2653 = vmatprep.subr.bf16.mxu0 0
      %2654 = vmatpush1.bf16.msra.mxu0 %v2637
      %2655 = vmatprep.subr.bf16.mxu0 0
      %2656 = vmatpush1.bf16.msra.mxu0 %v2638
      %2657 = vmatprep.subr.bf16.mxu0 0
      %2658 = vmatpush1.bf16.msra.mxu0 %v2639
      %2659 = vmatprep.subr.bf16.mxu0 0
      %2660 = vmatpush1.bf16.msra.mxu0 %v2640
      %2661 = vmatprep.subr.bf16.mxu0 0
      %2662 = vmatpush1.bf16.msra.mxu0 %v2641
      %2663 = vmatprep.subr.bf16.mxu0 0
      %2664 = vmatpush1.bf16.msra.mxu0 %v2642
      %2665 = vmatprep.subr.bf16.mxu0 0
      %2666 = vmatpush1.bf16.msra.mxu0 %v2643
      %2667 = vmatprep.subr.bf16.mxu0 0
      %2668 = vmatpush1.bf16.msra.mxu0 %v2644
      %2669 = vmatprep.subr.bf16.mxu0 0
      %2670 = vmatpush1.bf16.msra.mxu0 0
      %2671 = vmatprep.subr.bf16.mxu0 0
      %2672 = vmatpush1.bf16.msra.mxu0 0
      %2673 = vmatprep.subr.bf16.mxu0 0
      %2674 = vmatpush1.bf16.msra.mxu0 0
      %2675 = vmatprep.subr.bf16.mxu0 0
      %2676 = vmatpush1.bf16.msra.mxu0 0
      %2677 = vmatprep.subr.bf16.mxu0 0
      %2678 = vmatpush1.bf16.msra.mxu0 0
      %2679 = vmatprep.subr.bf16.mxu0 0
      %2680 = vmatpush1.bf16.msra.mxu0 0
      %2681 = vmatprep.subr.bf16.mxu0 0
      %2682 = vmatpush1.bf16.msra.mxu0 0
      %2683 = vmatprep.subr.bf16.mxu0 0
      %2684 = vmatpush1.bf16.msra.mxu0 0
      %2685 = vmatprep.mubr.bf16.mxu0 0
      %2686 = vmatmul.mubr.bf16.gmra.mrb[0].mxu0 %v2597
      %v2687 = vpop.f32.mrb[0].mxu0
      %v2688 = vadd.f32 %v2603, %v2687
      %v2689 = vpop.f32.mrb[0].mxu0
      %v2690 = vpop.f32.mrb[0].mxu0
      %v2691 = vpop.f32.mrb[0].mxu0
      %2692 = vdwg.mxu0
      %v2693 = vadd.f32 %v2467, %v2688
      %2694 = vst.msk [vmem:[%s783] sm:$0xff] %vm793, %v2693
      %p2695 = scmp.lt.s32.totalorder %s35, 1
      %s2696 = scalar_select %p2695, %s35, 1
      %s2697 = smul.addr %s2696, 8
      %s2698 = scalar_lea.vmem %s24, %s2697
      // Predicated region
      $region117: #{nmt_forward.12} parent=115 // pred_check
        %p2699 = pneg %p577
      $region118: #{nmt_forward.12} parent=115 // pred_check_branch
        %2701 = sbr.rel (%p2699) target = $region120
      $region119: #{nmt_forward.12} parent=115 // pred_region
        _
      $region120: #{nmt_forward.12} parent=115 // pred_fallthru
        _
    $region116: #{nmt_forward.12} parent=5 // pred_fallthru
      _
    %p2702 = scmp.le.s32.totalorder 2, %s30
    // Predicated region
    $region121: #{nmt_forward.12} parent=5 // pred_check
      %p2703 = pneg %p2702
    $region122: #{nmt_forward.12} parent=5 // pred_check_branch
      %2705 = sbr.rel (%p2703) target = $region124
    $region123: #{nmt_forward.12} parent=5 // pred_region
      %s2706 = ssub.s32 %s30, 2
      // Predicated region
      $region125: #{nmt_forward.12} parent=123 // pred_check
        %p2707 = pneg %p583
      $region126: #{nmt_forward.12} parent=123 // pred_check_branch
        %2709 = sbr.rel (%p2707) target = $region128
      $region127: #{nmt_forward.12} parent=123 // pred_region
        %p2710 = scmp.lt.s32.totalorder %s36, 1
        %s2711 = scalar_select %p2710, %s36, 1
        %s2712 = smul.addr %s2711, 8
        %s2713 = scalar_lea.vmem %s24, %s2712
      $region128: #{nmt_forward.12} parent=123 // pred_fallthru
        _
    $region124: #{nmt_forward.12} parent=5 // pred_fallthru
      _
  $region6: #{nmt_forward.12} parent=0 // loop_footer
    %s34 = sadd.s32 1, %s30
  $region7: #{nmt_forward.12} parent=0 // loop_footer_branch
    %29 = sbr.rel target = $region3
  $region8: #{nmt_forward.12} parent=0 // loop_exit
    _

</llo_original>
